<compile_context>
chip_gen: v7x
topology: tpu7x:2x2x1
jax: 0.10.0
libtpu: 0.0.40
codegen_flags: <defaults>
</compile_context>

<pallas_src>
import jax
import jax.numpy as jnp
from jax import lax
from jax.experimental import pallas as pl
from jax.experimental.pallas import tpu as pltpu

# ---- small ViT config (same structure as google/vit-base, scaled down) ----
B = 2            # batch
C = 3            # image channels
IMG = 16         # image side
PATCH = 4        # patch side
NPATCH = (IMG // PATCH) ** 2          # 16 patches
SEQ = NPATCH + 1                      # 17 tokens (CLS + patches)
SP = 24                               # SEQ padded up to a multiple of 8 sublanes
BS = B * SP                           # 48 token rows processed as one slab
D = 32           # hidden size
NHEAD = 4
DHEAD = D // NHEAD                    # 8
DFF = 64         # intermediate (MLP) size
NLAYERS = 2
NLABELS = 2
EPS = 1e-12      # HF ViT layer_norm_eps
PATCH_K = C * PATCH * PATCH           # 48
NEG_INF = -1e30


# ----------------------------- in-kernel helpers -----------------------------
def _gelu(x):
    # tanh-approx GELU (transcendental goes to the EUP slot).
    # TODO(synk): HF ViT uses exact erf-GELU; tanh approx deviates by ~1e-3 —
    #             acceptable for inference, flagged per review.
    c = 0.7978845608028654  # sqrt(2/pi)
    return 0.5 * x * (1.0 + jnp.tanh(c * (x + 0.044715 * x * x * x)))


def _layernorm(x, w, b):
    mu = jnp.mean(x, axis=-1, keepdims=True)
    var = jnp.mean(jnp.square(x - mu), axis=-1, keepdims=True)
    return (x - mu) * lax.rsqrt(var + EPS) * w + b


# ----------------------------- fused forward kernel -----------------------------
def _vit_kernel(
    patches_ref, pw_ref, base_ref, bias_ref,
    ln1w_ref, ln1b_ref,
    wq_ref, bq_ref, wk_ref, bk_ref, wv_ref, bv_ref,
    wo_ref, bo_ref,
    ln2w_ref, ln2b_ref,
    w1_ref, b1_ref, w2_ref, b2_ref,
    flnw_ref, flnb_ref, cw_ref, cb_ref,
    o_ref,
):
    # --- patch embedding (conv-as-GEMM); CLS token, pos-emb and patch bias are
    #     pre-folded into `base` (zero rows in `patches` for CLS / pad slots).
    x = jnp.dot(patches_ref[...], pw_ref[...],
                preferred_element_type=jnp.float32) + base_ref[...]      # (BS, D)

    attn_bias = bias_ref[...]            # (BS, BS): 0 valid / -1e30 masked
    scale = 1.0 / (DHEAD ** 0.5)

    for l in range(NLAYERS):             # static unroll over stacked layer weights
        # --- self-attention block (pre-LN) ---
        h = _layernorm(x, ln1w_ref[l], ln1b_ref[l])
        q = (jnp.dot(h, wq_ref[l], preferred_element_type=jnp.float32)
             + bq_ref[l]) * scale        # scale folded into q
        k = jnp.dot(h, wk_ref[l], preferred_element_type=jnp.float32) + bk_ref[l]
        v = jnp.dot(h, wv_ref[l], preferred_element_type=jnp.float32) + bv_ref[l]
        wo_l = wo_ref[l]                 # (D, D)

        attn = jnp.zeros((BS, D), jnp.float32)
        for hd in range(NHEAD):          # static; each step = 3 aligned 2-D MXU dots
            sl = slice(hd * DHEAD, (hd + 1) * DHEAD)
            qh, kh, vh = q[:, sl], k[:, sl], v[:, sl]
            s = lax.dot_general(qh, kh, (((1,), (1,)), ((), ())),
                                preferred_element_type=jnp.float32)      # (BS, BS)
            s = s + attn_bias            # block-diag over batch + pad-key mask
            s = s - jnp.max(s, axis=-1, keepdims=True)
            p = jnp.exp(s)
            p = p * pl.reciprocal(jnp.sum(p, axis=-1, keepdims=True), approx=True)
            ctx = jnp.dot(p, vh, preferred_element_type=jnp.float32)     # (BS, DHEAD)
            # fold per-head context straight into the output projection
            attn = attn + jnp.dot(ctx, wo_l[sl, :],
                                  preferred_element_type=jnp.float32)
        x = x + attn + bo_ref[l]         # residual 1 (dropout = identity)

        # --- MLP block (pre-LN) ---
        h2 = _layernorm(x, ln2w_ref[l], ln2b_ref[l])
        m = _gelu(jnp.dot(h2, w1_ref[l], preferred_element_type=jnp.float32)
                  + b1_ref[l])
        x = x + jnp.dot(m, w2_ref[l], preferred_element_type=jnp.float32) + b2_ref[l]

    # --- final LayerNorm on the CLS tokens + classifier head ---
    cls = jnp.concatenate([x[b * SP:b * SP + 1, :] for b in range(B)], axis=0)  # (B, D)
    cls = _layernorm(cls, flnw_ref[...], flnb_ref[...])
    o_ref[...] = (jnp.dot(cls, cw_ref[...], preferred_element_type=jnp.float32)
                  + cb_ref[...])


# ----------------------------- glue -----------------------------
def extract_patches(x):
    # (B, C, H, W) -> (B, N, C*P*P), same element ordering as
    # Conv2d(stride=P).flatten(2).transpose(1, 2) in HF ViT.
    b, c, h, w = x.shape
    x = x.reshape(b, c, h // PATCH, PATCH, w // PATCH, PATCH)
    x = x.transpose(0, 2, 4, 1, 3, 5)                   # (B, Hp, Wp, C, P, P)
    return x.reshape(b, (h // PATCH) * (w // PATCH), c * PATCH * PATCH)


def init_params(key):
    def nrm(key, shape, scale=0.02):
        return scale * jax.random.normal(key, shape, dtype=jnp.float32)

    keys = jax.random.split(key, 8 + NLAYERS)
    params = {
        "patch_w": nrm(keys[0], (D, C, PATCH, PATCH)),   # Conv2d weight layout
        "patch_b": nrm(keys[1], (D,)),
        "cls_token": nrm(keys[2], (1, 1, D)),
        "pos_emb": nrm(keys[3], (1, SEQ, D)),
        "final_ln_w": jnp.ones((D,), jnp.float32),
        "final_ln_b": jnp.zeros((D,), jnp.float32),
        "cls_w": nrm(keys[4], (D, NLABELS)),
        "cls_b": nrm(keys[5], (NLABELS,)),
        "layers": [],
    }
    for l in range(NLAYERS):
        lk = jax.random.split(keys[8 + l], 8)
        params["layers"].append({
            "ln1w": jnp.ones((D,), jnp.float32), "ln1b": jnp.zeros((D,), jnp.float32),
            "wq": nrm(lk[0], (D, D)), "bq": jnp.zeros((D,), jnp.float32),
            "wk": nrm(lk[1], (D, D)), "bk": jnp.zeros((D,), jnp.float32),
            "wv": nrm(lk[2], (D, D)), "bv": jnp.zeros((D,), jnp.float32),
            "wo": nrm(lk[3], (D, D)), "bo": jnp.zeros((D,), jnp.float32),
            "ln2w": jnp.ones((D,), jnp.float32), "ln2b": jnp.zeros((D,), jnp.float32),
            "w1": nrm(lk[4], (D, DFF)), "b1": jnp.zeros((DFF,), jnp.float32),
            "w2": nrm(lk[5], (DFF, D)), "b2": jnp.zeros((D,), jnp.float32),
        })
    return params


def vit_forward(pixel_values, params):
    # ---- input / weight layout glue (pure reshapes, done once in XLA) ----
    patches = extract_patches(pixel_values)                              # (B, N, K)
    # row 0 of each batch block = CLS slot (zeros), rows SEQ..SP-1 = pad (zeros)
    patches = jnp.pad(patches, ((0, 0), (1, SP - 1 - NPATCH), (0, 0)))   # (B, SP, K)
    patches = patches.reshape(BS, PATCH_K)

    pw = params["patch_w"].reshape(D, PATCH_K).T                         # (K, D)

    # base = pos-emb (+ patch bias on patch rows, + CLS token on row 0), padded.
    pos = params["pos_emb"][0]                                           # (SEQ, D)
    base_cls = params["cls_token"].reshape(1, D) + pos[0:1]
    base_patch = pos[1:SEQ] + params["patch_b"][None, :]
    base_pad = jnp.zeros((SP - SEQ, D), jnp.float32)
    base = jnp.tile(jnp.concatenate([base_cls, base_patch, base_pad], axis=0),
                    (B, 1))                                              # (BS, D)

    # additive attention mask: block-diagonal over batch, pad keys = -inf.
    rows = jnp.arange(BS)
    cols = jnp.arange(BS)
    valid = (rows[:, None] // SP == cols[None, :] // SP) & ((cols[None, :] % SP) < SEQ)
    attn_bias = jnp.where(valid, 0.0, NEG_INF).astype(jnp.float32)       # (BS, BS)

    def stk(name, rs=None):
        a = jnp.stack([lp[name] for lp in params["layers"]])
        return a if rs is None else a.reshape((NLAYERS,) + rs)

    args = [
        patches, pw, base, attn_bias,
        stk("ln1w", (1, D)), stk("ln1b", (1, D)),
        stk("wq"), stk("bq", (1, D)),
        stk("wk"), stk("bk", (1, D)),
        stk("wv"), stk("bv", (1, D)),
        stk("wo"), stk("bo", (1, D)),
        stk("ln2w", (1, D)), stk("ln2b", (1, D)),
        stk("w1"), stk("b1", (1, DFF)),
        stk("w2"), stk("b2", (1, D)),
        params["final_ln_w"].reshape(1, D), params["final_ln_b"].reshape(1, D),
        params["cls_w"], params["cls_b"].reshape(1, NLABELS),
    ]

    def full_spec(a):
        nd = a.ndim
        return pl.BlockSpec(a.shape, lambda i, _nd=nd: (0,) * _nd)

    return pl.pallas_call(
        _vit_kernel,
        out_shape=jax.ShapeDtypeStruct((B, NLABELS), jnp.float32),
        grid=(1,),
        in_specs=[full_spec(a) for a in args],
        out_specs=pl.BlockSpec((B, NLABELS), lambda i: (0, 0)),
        compiler_params=pltpu.CompilerParams(dimension_semantics=("arbitrary",)),
    )(*args)


if __name__ == "__main__":
    key = jax.random.PRNGKey(0)
    kx, kp = jax.random.split(key)
    pixel_values = jax.random.normal(kx, (B, C, IMG, IMG), dtype=jnp.float32)
    params = init_params(kp)

    logits = vit_forward(pixel_values, params)
    jax.block_until_ready(logits)
    assert logits.shape == (B, NLABELS)
    print("KERNEL_OK")
</pallas_src>

<mosaic_0001>
module attributes {stable_mosaic.version = 11 : i64} {
  func.func @_vit_kernel(%arg0: i32, %arg1: memref<48x48xf32, #tpu.memory_space<vmem>>, %arg2: memref<48x32xf32, #tpu.memory_space<vmem>>, %arg3: memref<48x32xf32, #tpu.memory_space<vmem>>, %arg4: memref<48x48xf32, #tpu.memory_space<vmem>>, %arg5: memref<2x1x32xf32, #tpu.memory_space<vmem>>, %arg6: memref<2x1x32xf32, #tpu.memory_space<vmem>>, %arg7: memref<2x32x32xf32, #tpu.memory_space<vmem>>, %arg8: memref<2x1x32xf32, #tpu.memory_space<vmem>>, %arg9: memref<2x32x32xf32, #tpu.memory_space<vmem>>, %arg10: memref<2x1x32xf32, #tpu.memory_space<vmem>>, %arg11: memref<2x32x32xf32, #tpu.memory_space<vmem>>, %arg12: memref<2x1x32xf32, #tpu.memory_space<vmem>>, %arg13: memref<2x32x32xf32, #tpu.memory_space<vmem>>, %arg14: memref<2x1x32xf32, #tpu.memory_space<vmem>>, %arg15: memref<2x1x32xf32, #tpu.memory_space<vmem>>, %arg16: memref<2x1x32xf32, #tpu.memory_space<vmem>>, %arg17: memref<2x32x64xf32, #tpu.memory_space<vmem>>, %arg18: memref<2x1x64xf32, #tpu.memory_space<vmem>>, %arg19: memref<2x64x32xf32, #tpu.memory_space<vmem>>, %arg20: memref<2x1x32xf32, #tpu.memory_space<vmem>>, %arg21: memref<1x32xf32, #tpu.memory_space<vmem>>, %arg22: memref<1x32xf32, #tpu.memory_space<vmem>>, %arg23: memref<32x2xf32, #tpu.memory_space<vmem>>, %arg24: memref<1x2xf32, #tpu.memory_space<vmem>>, %arg25: memref<2x2xf32, #tpu.memory_space<vmem>>) attributes {dimension_semantics = [#tpu.dimension_semantics<arbitrary>], iteration_bounds = array<i64: 1>, scalar_prefetch = 0 : i64, scratch_operands = 0 : i64, tpu.core_type = #tpu.core_type<tc>, window_params = [{pipeline_mode = #tpu.pipeline_mode<synchronous>, transform_indices = @transform_0, window_bounds = array<i64: 48, 48>}, {pipeline_mode = #tpu.pipeline_mode<synchronous>, transform_indices = @transform_1, window_bounds = array<i64: 48, 32>}, {pipeline_mode = #tpu.pipeline_mode<synchronous>, transform_indices = @transform_2, window_bounds = array<i64: 48, 32>}, {pipeline_mode = #tpu.pipeline_mode<synchronous>, transform_indices = @transform_3, window_bounds = array<i64: 48, 48>}, {pipeline_mode = #tpu.pipeline_mode<synchronous>, transform_indices = @transform_4, window_bounds = array<i64: 2, 1, 32>}, {pipeline_mode = #tpu.pipeline_mode<synchronous>, transform_indices = @transform_5, window_bounds = array<i64: 2, 1, 32>}, {pipeline_mode = #tpu.pipeline_mode<synchronous>, transform_indices = @transform_6, window_bounds = array<i64: 2, 32, 32>}, {pipeline_mode = #tpu.pipeline_mode<synchronous>, transform_indices = @transform_7, window_bounds = array<i64: 2, 1, 32>}, {pipeline_mode = #tpu.pipeline_mode<synchronous>, transform_indices = @transform_8, window_bounds = array<i64: 2, 32, 32>}, {pipeline_mode = #tpu.pipeline_mode<synchronous>, transform_indices = @transform_9, window_bounds = array<i64: 2, 1, 32>}, {pipeline_mode = #tpu.pipeline_mode<synchronous>, transform_indices = @transform_10, window_bounds = array<i64: 2, 32, 32>}, {pipeline_mode = #tpu.pipeline_mode<synchronous>, transform_indices = @transform_11, window_bounds = array<i64: 2, 1, 32>}, {pipeline_mode = #tpu.pipeline_mode<synchronous>, transform_indices = @transform_12, window_bounds = array<i64: 2, 32, 32>}, {pipeline_mode = #tpu.pipeline_mode<synchronous>, transform_indices = @transform_13, window_bounds = array<i64: 2, 1, 32>}, {pipeline_mode = #tpu.pipeline_mode<synchronous>, transform_indices = @transform_14, window_bounds = array<i64: 2, 1, 32>}, {pipeline_mode = #tpu.pipeline_mode<synchronous>, transform_indices = @transform_15, window_bounds = array<i64: 2, 1, 32>}, {pipeline_mode = #tpu.pipeline_mode<synchronous>, transform_indices = @transform_16, window_bounds = array<i64: 2, 32, 64>}, {pipeline_mode = #tpu.pipeline_mode<synchronous>, transform_indices = @transform_17, window_bounds = array<i64: 2, 1, 64>}, {pipeline_mode = #tpu.pipeline_mode<synchronous>, transform_indices = @transform_18, window_bounds = array<i64: 2, 64, 32>}, {pipeline_mode = #tpu.pipeline_mode<synchronous>, transform_indices = @transform_19, window_bounds = array<i64: 2, 1, 32>}, {pipeline_mode = #tpu.pipeline_mode<synchronous>, transform_indices = @transform_20, window_bounds = array<i64: 1, 32>}, {pipeline_mode = #tpu.pipeline_mode<synchronous>, transform_indices = @transform_21, window_bounds = array<i64: 1, 32>}, {pipeline_mode = #tpu.pipeline_mode<synchronous>, transform_indices = @transform_22, window_bounds = array<i64: 32, 2>}, {pipeline_mode = #tpu.pipeline_mode<synchronous>, transform_indices = @transform_23, window_bounds = array<i64: 1, 2>}, {pipeline_mode = #tpu.pipeline_mode<synchronous>, transform_indices = @transform_24, window_bounds = array<i64: 2, 2>}]} {
    %c0 = arith.constant 0 : index
    %c0_0 = arith.constant 0 : index
    %0 = vector.load %arg1[%c0, %c0_0] : memref<48x48xf32, #tpu.memory_space<vmem>>, vector<48x48xf32>
    %c0_1 = arith.constant 0 : index
    %c0_2 = arith.constant 0 : index
    %1 = vector.load %arg2[%c0_1, %c0_2] : memref<48x32xf32, #tpu.memory_space<vmem>>, vector<48x32xf32>
    %cst = arith.constant dense<0.000000e+00> : vector<48x32xf32>
    %2 = tpu.matmul %0, %1, %cst {dimension_numbers = #tpu.dot_dimension_numbers<[1], [0], [0], [1], [0, 0, 1, 1], [], []>} : vector<48x48xf32>, vector<48x32xf32>, vector<48x32xf32> -> vector<48x32xf32>
    %c0_3 = arith.constant 0 : index
    %c0_4 = arith.constant 0 : index
    %3 = vector.load %arg3[%c0_3, %c0_4] : memref<48x32xf32, #tpu.memory_space<vmem>>, vector<48x32xf32>
    %4 = arith.addf %2, %3 : vector<48x32xf32>
    %c0_5 = arith.constant 0 : index
    %c0_6 = arith.constant 0 : index
    %5 = vector.load %arg4[%c0_5, %c0_6] : memref<48x48xf32, #tpu.memory_space<vmem>>, vector<48x48xf32>
    %c0_7 = arith.constant 0 : index
    %c0_8 = arith.constant 0 : index
    %c0_9 = arith.constant 0 : index
    %6 = vector.load %arg5[%c0_7, %c0_8, %c0_9] : memref<2x1x32xf32, #tpu.memory_space<vmem>>, vector<1x1x32xf32>
    %7 = vector.shape_cast %6 : vector<1x1x32xf32> to vector<1x32xf32>
    %c0_10 = arith.constant 0 : index
    %c0_11 = arith.constant 0 : index
    %c0_12 = arith.constant 0 : index
    %8 = vector.load %arg6[%c0_10, %c0_11, %c0_12] : memref<2x1x32xf32, #tpu.memory_space<vmem>>, vector<1x1x32xf32>
    %9 = vector.shape_cast %8 : vector<1x1x32xf32> to vector<1x32xf32>
    %cst_13 = arith.constant dense<0.000000e+00> : vector<48xf32>
    %10 = vector.multi_reduction <add>, %4, %cst_13 [1] : vector<48x32xf32> to vector<48xf32>
    %11 = vector.shape_cast %10 : vector<48xf32> to vector<48x1xf32>
    %cst_14 = arith.constant 3.200000e+01 : f32
    %12 = vector.broadcast %cst_14 : f32 to vector<48x1xf32>
    %13 = arith.divf %11, %12 : vector<48x1xf32>
    %14 = vector.broadcast %13 : vector<48x1xf32> to vector<48x32xf32>
    %15 = arith.subf %4, %14 : vector<48x32xf32>
    %16 = arith.mulf %15, %15 : vector<48x32xf32>
    %cst_15 = arith.constant dense<0.000000e+00> : vector<48xf32>
    %17 = vector.multi_reduction <add>, %16, %cst_15 [1] : vector<48x32xf32> to vector<48xf32>
    %18 = vector.shape_cast %17 : vector<48xf32> to vector<48x1xf32>
    %cst_16 = arith.constant 3.200000e+01 : f32
    %19 = vector.broadcast %cst_16 : f32 to vector<48x1xf32>
    %20 = arith.divf %18, %19 : vector<48x1xf32>
    %21 = vector.broadcast %13 : vector<48x1xf32> to vector<48x32xf32>
    %22 = arith.subf %4, %21 : vector<48x32xf32>
    %cst_17 = arith.constant 9.99999996E-13 : f32
    %23 = vector.broadcast %cst_17 : f32 to vector<48x1xf32>
    %24 = arith.addf %20, %23 : vector<48x1xf32>
    %25 = math.rsqrt %24 : vector<48x1xf32>
    %26 = vector.broadcast %25 : vector<48x1xf32> to vector<48x32xf32>
    %27 = arith.mulf %22, %26 : vector<48x32xf32>
    %28 = vector.broadcast %7 : vector<1x32xf32> to vector<48x32xf32>
    %29 = arith.mulf %27, %28 : vector<48x32xf32>
    %30 = vector.broadcast %9 : vector<1x32xf32> to vector<48x32xf32>
    %31 = arith.addf %29, %30 : vector<48x32xf32>
    %c0_18 = arith.constant 0 : index
    %c0_19 = arith.constant 0 : index
    %c0_20 = arith.constant 0 : index
    %32 = vector.load %arg7[%c0_18, %c0_19, %c0_20] : memref<2x32x32xf32, #tpu.memory_space<vmem>>, vector<1x32x32xf32>
    %33 = vector.shape_cast %32 : vector<1x32x32xf32> to vector<32x32xf32>
    %cst_21 = arith.constant dense<0.000000e+00> : vector<48x32xf32>
    %34 = tpu.matmul %31, %33, %cst_21 {dimension_numbers = #tpu.dot_dimension_numbers<[1], [0], [0], [1], [0, 0, 1, 1], [], []>} : vector<48x32xf32>, vector<32x32xf32>, vector<48x32xf32> -> vector<48x32xf32>
    %c0_22 = arith.constant 0 : index
    %c0_23 = arith.constant 0 : index
    %c0_24 = arith.constant 0 : index
    %35 = vector.load %arg8[%c0_22, %c0_23, %c0_24] : memref<2x1x32xf32, #tpu.memory_space<vmem>>, vector<1x1x32xf32>
    %36 = vector.shape_cast %35 : vector<1x1x32xf32> to vector<1x32xf32>
    %37 = vector.broadcast %36 : vector<1x32xf32> to vector<48x32xf32>
    %38 = arith.addf %34, %37 : vector<48x32xf32>
    %cst_25 = arith.constant 0.353553385 : f32
    %39 = vector.broadcast %cst_25 : f32 to vector<48x32xf32>
    %40 = arith.mulf %38, %39 : vector<48x32xf32>
    %c0_26 = arith.constant 0 : index
    %c0_27 = arith.constant 0 : index
    %c0_28 = arith.constant 0 : index
    %41 = vector.load %arg9[%c0_26, %c0_27, %c0_28] : memref<2x32x32xf32, #tpu.memory_space<vmem>>, vector<1x32x32xf32>
    %42 = vector.shape_cast %41 : vector<1x32x32xf32> to vector<32x32xf32>
    %cst_29 = arith.constant dense<0.000000e+00> : vector<48x32xf32>
    %43 = tpu.matmul %31, %42, %cst_29 {dimension_numbers = #tpu.dot_dimension_numbers<[1], [0], [0], [1], [0, 0, 1, 1], [], []>} : vector<48x32xf32>, vector<32x32xf32>, vector<48x32xf32> -> vector<48x32xf32>
    %c0_30 = arith.constant 0 : index
    %c0_31 = arith.constant 0 : index
    %c0_32 = arith.constant 0 : index
    %44 = vector.load %arg10[%c0_30, %c0_31, %c0_32] : memref<2x1x32xf32, #tpu.memory_space<vmem>>, vector<1x1x32xf32>
    %45 = vector.shape_cast %44 : vector<1x1x32xf32> to vector<1x32xf32>
    %46 = vector.broadcast %45 : vector<1x32xf32> to vector<48x32xf32>
    %47 = arith.addf %43, %46 : vector<48x32xf32>
    %c0_33 = arith.constant 0 : index
    %c0_34 = arith.constant 0 : index
    %c0_35 = arith.constant 0 : index
    %48 = vector.load %arg11[%c0_33, %c0_34, %c0_35] : memref<2x32x32xf32, #tpu.memory_space<vmem>>, vector<1x32x32xf32>
    %49 = vector.shape_cast %48 : vector<1x32x32xf32> to vector<32x32xf32>
    %cst_36 = arith.constant dense<0.000000e+00> : vector<48x32xf32>
    %50 = tpu.matmul %31, %49, %cst_36 {dimension_numbers = #tpu.dot_dimension_numbers<[1], [0], [0], [1], [0, 0, 1, 1], [], []>} : vector<48x32xf32>, vector<32x32xf32>, vector<48x32xf32> -> vector<48x32xf32>
    %c0_37 = arith.constant 0 : index
    %c0_38 = arith.constant 0 : index
    %c0_39 = arith.constant 0 : index
    %51 = vector.load %arg12[%c0_37, %c0_38, %c0_39] : memref<2x1x32xf32, #tpu.memory_space<vmem>>, vector<1x1x32xf32>
    %52 = vector.shape_cast %51 : vector<1x1x32xf32> to vector<1x32xf32>
    %53 = vector.broadcast %52 : vector<1x32xf32> to vector<48x32xf32>
    %54 = arith.addf %50, %53 : vector<48x32xf32>
    %c0_40 = arith.constant 0 : index
    %c0_41 = arith.constant 0 : index
    %c0_42 = arith.constant 0 : index
    %55 = vector.load %arg13[%c0_40, %c0_41, %c0_42] : memref<2x32x32xf32, #tpu.memory_space<vmem>>, vector<1x32x32xf32>
    %56 = vector.shape_cast %55 : vector<1x32x32xf32> to vector<32x32xf32>
    %cst_43 = arith.constant 0.000000e+00 : f32
    %57 = vector.broadcast %cst_43 : f32 to vector<48x32xf32>
    %58 = vector.extract_strided_slice %40 {offsets = [0, 0], sizes = [48, 8], strides = [1, 1]} : vector<48x32xf32> to vector<48x8xf32>
    %59 = vector.extract_strided_slice %47 {offsets = [0, 0], sizes = [48, 8], strides = [1, 1]} : vector<48x32xf32> to vector<48x8xf32>
    %60 = vector.extract_strided_slice %54 {offsets = [0, 0], sizes = [48, 8], strides = [1, 1]} : vector<48x32xf32> to vector<48x8xf32>
    %cst_44 = arith.constant dense<0.000000e+00> : vector<48x48xf32>
    %61 = tpu.matmul %58, %59, %cst_44 {dimension_numbers = #tpu.dot_dimension_numbers<[1], [1], [0], [0], [0, 0, 1, 0], [], []>} : vector<48x8xf32>, vector<48x8xf32>, vector<48x48xf32> -> vector<48x48xf32>
    %62 = arith.addf %61, %5 : vector<48x48xf32>
    %cst_45 = arith.constant dense<0xFF800000> : vector<48xf32>
    %63 = vector.multi_reduction <maximumf>, %62, %cst_45 [1] : vector<48x48xf32> to vector<48xf32>
    %64 = vector.shape_cast %63 : vector<48xf32> to vector<48x1xf32>
    %65 = vector.broadcast %64 : vector<48x1xf32> to vector<48x48xf32>
    %66 = arith.subf %62, %65 : vector<48x48xf32>
    %67 = math.exp %66 : vector<48x48xf32>
    %cst_46 = arith.constant dense<0.000000e+00> : vector<48xf32>
    %68 = vector.multi_reduction <add>, %67, %cst_46 [1] : vector<48x48xf32> to vector<48xf32>
    %69 = vector.shape_cast %68 : vector<48xf32> to vector<48x1xf32>
    %70 = tpu.reciprocal %69 {approx = true} : vector<48x1xf32> -> vector<48x1xf32>
    %71 = vector.broadcast %70 : vector<48x1xf32> to vector<48x48xf32>
    %72 = arith.mulf %67, %71 : vector<48x48xf32>
    %cst_47 = arith.constant dense<0.000000e+00> : vector<48x8xf32>
    %73 = tpu.matmul %72, %60, %cst_47 {dimension_numbers = #tpu.dot_dimension_numbers<[1], [0], [0], [1], [0, 0, 1, 1], [], []>} : vector<48x48xf32>, vector<48x8xf32>, vector<48x8xf32> -> vector<48x8xf32>
    %74 = vector.extract_strided_slice %56 {offsets = [0, 0], sizes = [8, 32], strides = [1, 1]} : vector<32x32xf32> to vector<8x32xf32>
    %cst_48 = arith.constant dense<0.000000e+00> : vector<48x32xf32>
    %75 = tpu.matmul %73, %74, %cst_48 {dimension_numbers = #tpu.dot_dimension_numbers<[1], [0], [0], [1], [0, 0, 1, 1], [], []>} : vector<48x8xf32>, vector<8x32xf32>, vector<48x32xf32> -> vector<48x32xf32>
    %76 = arith.addf %57, %75 : vector<48x32xf32>
    %77 = vector.extract_strided_slice %40 {offsets = [0, 8], sizes = [48, 8], strides = [1, 1]} : vector<48x32xf32> to vector<48x8xf32>
    %78 = vector.extract_strided_slice %47 {offsets = [0, 8], sizes = [48, 8], strides = [1, 1]} : vector<48x32xf32> to vector<48x8xf32>
    %79 = vector.extract_strided_slice %54 {offsets = [0, 8], sizes = [48, 8], strides = [1, 1]} : vector<48x32xf32> to vector<48x8xf32>
    %cst_49 = arith.constant dense<0.000000e+00> : vector<48x48xf32>
    %80 = tpu.matmul %77, %78, %cst_49 {dimension_numbers = #tpu.dot_dimension_numbers<[1], [1], [0], [0], [0, 0, 1, 0], [], []>} : vector<48x8xf32>, vector<48x8xf32>, vector<48x48xf32> -> vector<48x48xf32>
    %81 = arith.addf %80, %5 : vector<48x48xf32>
    %cst_50 = arith.constant dense<0xFF800000> : vector<48xf32>
    %82 = vector.multi_reduction <maximumf>, %81, %cst_50 [1] : vector<48x48xf32> to vector<48xf32>
    %83 = vector.shape_cast %82 : vector<48xf32> to vector<48x1xf32>
    %84 = vector.broadcast %83 : vector<48x1xf32> to vector<48x48xf32>
    %85 = arith.subf %81, %84 : vector<48x48xf32>
    %86 = math.exp %85 : vector<48x48xf32>
    %cst_51 = arith.constant dense<0.000000e+00> : vector<48xf32>
    %87 = vector.multi_reduction <add>, %86, %cst_51 [1] : vector<48x48xf32> to vector<48xf32>
    %88 = vector.shape_cast %87 : vector<48xf32> to vector<48x1xf32>
    %89 = tpu.reciprocal %88 {approx = true} : vector<48x1xf32> -> vector<48x1xf32>
    %90 = vector.broadcast %89 : vector<48x1xf32> to vector<48x48xf32>
    %91 = arith.mulf %86, %90 : vector<48x48xf32>
    %cst_52 = arith.constant dense<0.000000e+00> : vector<48x8xf32>
    %92 = tpu.matmul %91, %79, %cst_52 {dimension_numbers = #tpu.dot_dimension_numbers<[1], [0], [0], [1], [0, 0, 1, 1], [], []>} : vector<48x48xf32>, vector<48x8xf32>, vector<48x8xf32> -> vector<48x8xf32>
    %93 = vector.extract_strided_slice %56 {offsets = [8, 0], sizes = [8, 32], strides = [1, 1]} : vector<32x32xf32> to vector<8x32xf32>
    %cst_53 = arith.constant dense<0.000000e+00> : vector<48x32xf32>
    %94 = tpu.matmul %92, %93, %cst_53 {dimension_numbers = #tpu.dot_dimension_numbers<[1], [0], [0], [1], [0, 0, 1, 1], [], []>} : vector<48x8xf32>, vector<8x32xf32>, vector<48x32xf32> -> vector<48x32xf32>
    %95 = arith.addf %76, %94 : vector<48x32xf32>
    %96 = vector.extract_strided_slice %40 {offsets = [0, 16], sizes = [48, 8], strides = [1, 1]} : vector<48x32xf32> to vector<48x8xf32>
    %97 = vector.extract_strided_slice %47 {offsets = [0, 16], sizes = [48, 8], strides = [1, 1]} : vector<48x32xf32> to vector<48x8xf32>
    %98 = vector.extract_strided_slice %54 {offsets = [0, 16], sizes = [48, 8], strides = [1, 1]} : vector<48x32xf32> to vector<48x8xf32>
    %cst_54 = arith.constant dense<0.000000e+00> : vector<48x48xf32>
    %99 = tpu.matmul %96, %97, %cst_54 {dimension_numbers = #tpu.dot_dimension_numbers<[1], [1], [0], [0], [0, 0, 1, 0], [], []>} : vector<48x8xf32>, vector<48x8xf32>, vector<48x48xf32> -> vector<48x48xf32>
    %100 = arith.addf %99, %5 : vector<48x48xf32>
    %cst_55 = arith.constant dense<0xFF800000> : vector<48xf32>
    %101 = vector.multi_reduction <maximumf>, %100, %cst_55 [1] : vector<48x48xf32> to vector<48xf32>
    %102 = vector.shape_cast %101 : vector<48xf32> to vector<48x1xf32>
    %103 = vector.broadcast %102 : vector<48x1xf32> to vector<48x48xf32>
    %104 = arith.subf %100, %103 : vector<48x48xf32>
    %105 = math.exp %104 : vector<48x48xf32>
    %cst_56 = arith.constant dense<0.000000e+00> : vector<48xf32>
    %106 = vector.multi_reduction <add>, %105, %cst_56 [1] : vector<48x48xf32> to vector<48xf32>
    %107 = vector.shape_cast %106 : vector<48xf32> to vector<48x1xf32>
    %108 = tpu.reciprocal %107 {approx = true} : vector<48x1xf32> -> vector<48x1xf32>
    %109 = vector.broadcast %108 : vector<48x1xf32> to vector<48x48xf32>
    %110 = arith.mulf %105, %109 : vector<48x48xf32>
    %cst_57 = arith.constant dense<0.000000e+00> : vector<48x8xf32>
    %111 = tpu.matmul %110, %98, %cst_57 {dimension_numbers = #tpu.dot_dimension_numbers<[1], [0], [0], [1], [0, 0, 1, 1], [], []>} : vector<48x48xf32>, vector<48x8xf32>, vector<48x8xf32> -> vector<48x8xf32>
    %112 = vector.extract_strided_slice %56 {offsets = [16, 0], sizes = [8, 32], strides = [1, 1]} : vector<32x32xf32> to vector<8x32xf32>
    %cst_58 = arith.constant dense<0.000000e+00> : vector<48x32xf32>
    %113 = tpu.matmul %111, %112, %cst_58 {dimension_numbers = #tpu.dot_dimension_numbers<[1], [0], [0], [1], [0, 0, 1, 1], [], []>} : vector<48x8xf32>, vector<8x32xf32>, vector<48x32xf32> -> vector<48x32xf32>
    %114 = arith.addf %95, %113 : vector<48x32xf32>
    %115 = vector.extract_strided_slice %40 {offsets = [0, 24], sizes = [48, 8], strides = [1, 1]} : vector<48x32xf32> to vector<48x8xf32>
    %116 = vector.extract_strided_slice %47 {offsets = [0, 24], sizes = [48, 8], strides = [1, 1]} : vector<48x32xf32> to vector<48x8xf32>
    %117 = vector.extract_strided_slice %54 {offsets = [0, 24], sizes = [48, 8], strides = [1, 1]} : vector<48x32xf32> to vector<48x8xf32>
    %cst_59 = arith.constant dense<0.000000e+00> : vector<48x48xf32>
    %118 = tpu.matmul %115, %116, %cst_59 {dimension_numbers = #tpu.dot_dimension_numbers<[1], [1], [0], [0], [0, 0, 1, 0], [], []>} : vector<48x8xf32>, vector<48x8xf32>, vector<48x48xf32> -> vector<48x48xf32>
    %119 = arith.addf %118, %5 : vector<48x48xf32>
    %cst_60 = arith.constant dense<0xFF800000> : vector<48xf32>
    %120 = vector.multi_reduction <maximumf>, %119, %cst_60 [1] : vector<48x48xf32> to vector<48xf32>
    %121 = vector.shape_cast %120 : vector<48xf32> to vector<48x1xf32>
    %122 = vector.broadcast %121 : vector<48x1xf32> to vector<48x48xf32>
    %123 = arith.subf %119, %122 : vector<48x48xf32>
    %124 = math.exp %123 : vector<48x48xf32>
    %cst_61 = arith.constant dense<0.000000e+00> : vector<48xf32>
    %125 = vector.multi_reduction <add>, %124, %cst_61 [1] : vector<48x48xf32> to vector<48xf32>
    %126 = vector.shape_cast %125 : vector<48xf32> to vector<48x1xf32>
    %127 = tpu.reciprocal %126 {approx = true} : vector<48x1xf32> -> vector<48x1xf32>
    %128 = vector.broadcast %127 : vector<48x1xf32> to vector<48x48xf32>
    %129 = arith.mulf %124, %128 : vector<48x48xf32>
    %cst_62 = arith.constant dense<0.000000e+00> : vector<48x8xf32>
    %130 = tpu.matmul %129, %117, %cst_62 {dimension_numbers = #tpu.dot_dimension_numbers<[1], [0], [0], [1], [0, 0, 1, 1], [], []>} : vector<48x48xf32>, vector<48x8xf32>, vector<48x8xf32> -> vector<48x8xf32>
    %131 = vector.extract_strided_slice %56 {offsets = [24, 0], sizes = [8, 32], strides = [1, 1]} : vector<32x32xf32> to vector<8x32xf32>
    %cst_63 = arith.constant dense<0.000000e+00> : vector<48x32xf32>
    %132 = tpu.matmul %130, %131, %cst_63 {dimension_numbers = #tpu.dot_dimension_numbers<[1], [0], [0], [1], [0, 0, 1, 1], [], []>} : vector<48x8xf32>, vector<8x32xf32>, vector<48x32xf32> -> vector<48x32xf32>
    %133 = arith.addf %114, %132 : vector<48x32xf32>
    %134 = arith.addf %4, %133 : vector<48x32xf32>
    %c0_64 = arith.constant 0 : index
    %c0_65 = arith.constant 0 : index
    %c0_66 = arith.constant 0 : index
    %135 = vector.load %arg14[%c0_64, %c0_65, %c0_66] : memref<2x1x32xf32, #tpu.memory_space<vmem>>, vector<1x1x32xf32>
    %136 = vector.shape_cast %135 : vector<1x1x32xf32> to vector<1x32xf32>
    %137 = vector.broadcast %136 : vector<1x32xf32> to vector<48x32xf32>
    %138 = arith.addf %134, %137 : vector<48x32xf32>
    %c0_67 = arith.constant 0 : index
    %c0_68 = arith.constant 0 : index
    %c0_69 = arith.constant 0 : index
    %139 = vector.load %arg15[%c0_67, %c0_68, %c0_69] : memref<2x1x32xf32, #tpu.memory_space<vmem>>, vector<1x1x32xf32>
    %140 = vector.shape_cast %139 : vector<1x1x32xf32> to vector<1x32xf32>
    %c0_70 = arith.constant 0 : index
    %c0_71 = arith.constant 0 : index
    %c0_72 = arith.constant 0 : index
    %141 = vector.load %arg16[%c0_70, %c0_71, %c0_72] : memref<2x1x32xf32, #tpu.memory_space<vmem>>, vector<1x1x32xf32>
    %142 = vector.shape_cast %141 : vector<1x1x32xf32> to vector<1x32xf32>
    %cst_73 = arith.constant dense<0.000000e+00> : vector<48xf32>
    %143 = vector.multi_reduction <add>, %138, %cst_73 [1] : vector<48x32xf32> to vector<48xf32>
    %144 = vector.shape_cast %143 : vector<48xf32> to vector<48x1xf32>
    %cst_74 = arith.constant 3.200000e+01 : f32
    %145 = vector.broadcast %cst_74 : f32 to vector<48x1xf32>
    %146 = arith.divf %144, %145 : vector<48x1xf32>
    %147 = vector.broadcast %146 : vector<48x1xf32> to vector<48x32xf32>
    %148 = arith.subf %138, %147 : vector<48x32xf32>
    %149 = arith.mulf %148, %148 : vector<48x32xf32>
    %cst_75 = arith.constant dense<0.000000e+00> : vector<48xf32>
    %150 = vector.multi_reduction <add>, %149, %cst_75 [1] : vector<48x32xf32> to vector<48xf32>
    %151 = vector.shape_cast %150 : vector<48xf32> to vector<48x1xf32>
    %cst_76 = arith.constant 3.200000e+01 : f32
    %152 = vector.broadcast %cst_76 : f32 to vector<48x1xf32>
    %153 = arith.divf %151, %152 : vector<48x1xf32>
    %154 = vector.broadcast %146 : vector<48x1xf32> to vector<48x32xf32>
    %155 = arith.subf %138, %154 : vector<48x32xf32>
    %cst_77 = arith.constant 9.99999996E-13 : f32
    %156 = vector.broadcast %cst_77 : f32 to vector<48x1xf32>
    %157 = arith.addf %153, %156 : vector<48x1xf32>
    %158 = math.rsqrt %157 : vector<48x1xf32>
    %159 = vector.broadcast %158 : vector<48x1xf32> to vector<48x32xf32>
    %160 = arith.mulf %155, %159 : vector<48x32xf32>
    %161 = vector.broadcast %140 : vector<1x32xf32> to vector<48x32xf32>
    %162 = arith.mulf %160, %161 : vector<48x32xf32>
    %163 = vector.broadcast %142 : vector<1x32xf32> to vector<48x32xf32>
    %164 = arith.addf %162, %163 : vector<48x32xf32>
    %c0_78 = arith.constant 0 : index
    %c0_79 = arith.constant 0 : index
    %c0_80 = arith.constant 0 : index
    %165 = vector.load %arg17[%c0_78, %c0_79, %c0_80] : memref<2x32x64xf32, #tpu.memory_space<vmem>>, vector<1x32x64xf32>
    %166 = vector.shape_cast %165 : vector<1x32x64xf32> to vector<32x64xf32>
    %cst_81 = arith.constant dense<0.000000e+00> : vector<48x64xf32>
    %167 = tpu.matmul %164, %166, %cst_81 {dimension_numbers = #tpu.dot_dimension_numbers<[1], [0], [0], [1], [0, 0, 1, 1], [], []>} : vector<48x32xf32>, vector<32x64xf32>, vector<48x64xf32> -> vector<48x64xf32>
    %c0_82 = arith.constant 0 : index
    %c0_83 = arith.constant 0 : index
    %c0_84 = arith.constant 0 : index
    %168 = vector.load %arg18[%c0_82, %c0_83, %c0_84] : memref<2x1x64xf32, #tpu.memory_space<vmem>>, vector<1x1x64xf32>
    %169 = vector.shape_cast %168 : vector<1x1x64xf32> to vector<1x64xf32>
    %170 = vector.broadcast %169 : vector<1x64xf32> to vector<48x64xf32>
    %171 = arith.addf %167, %170 : vector<48x64xf32>
    %cst_85 = arith.constant 5.000000e-01 : f32
    %172 = vector.broadcast %cst_85 : f32 to vector<48x64xf32>
    %173 = arith.mulf %172, %171 : vector<48x64xf32>
    %cst_86 = arith.constant 4.471500e-02 : f32
    %174 = vector.broadcast %cst_86 : f32 to vector<48x64xf32>
    %175 = arith.mulf %174, %171 : vector<48x64xf32>
    %176 = arith.mulf %175, %171 : vector<48x64xf32>
    %177 = arith.mulf %176, %171 : vector<48x64xf32>
    %178 = arith.addf %171, %177 : vector<48x64xf32>
    %cst_87 = arith.constant 0.797884583 : f32
    %179 = vector.broadcast %cst_87 : f32 to vector<48x64xf32>
    %180 = arith.mulf %179, %178 : vector<48x64xf32>
    %181 = math.tanh %180 : vector<48x64xf32>
    %cst_88 = arith.constant 1.000000e+00 : f32
    %182 = vector.broadcast %cst_88 : f32 to vector<48x64xf32>
    %183 = arith.addf %182, %181 : vector<48x64xf32>
    %184 = arith.mulf %173, %183 : vector<48x64xf32>
    %c0_89 = arith.constant 0 : index
    %c0_90 = arith.constant 0 : index
    %c0_91 = arith.constant 0 : index
    %185 = vector.load %arg19[%c0_89, %c0_90, %c0_91] : memref<2x64x32xf32, #tpu.memory_space<vmem>>, vector<1x64x32xf32>
    %186 = vector.shape_cast %185 : vector<1x64x32xf32> to vector<64x32xf32>
    %cst_92 = arith.constant dense<0.000000e+00> : vector<48x32xf32>
    %187 = tpu.matmul %184, %186, %cst_92 {dimension_numbers = #tpu.dot_dimension_numbers<[1], [0], [0], [1], [0, 0, 1, 1], [], []>} : vector<48x64xf32>, vector<64x32xf32>, vector<48x32xf32> -> vector<48x32xf32>
    %188 = arith.addf %138, %187 : vector<48x32xf32>
    %c0_93 = arith.constant 0 : index
    %c0_94 = arith.constant 0 : index
    %c0_95 = arith.constant 0 : index
    %189 = vector.load %arg20[%c0_93, %c0_94, %c0_95] : memref<2x1x32xf32, #tpu.memory_space<vmem>>, vector<1x1x32xf32>
    %190 = vector.shape_cast %189 : vector<1x1x32xf32> to vector<1x32xf32>
    %191 = vector.broadcast %190 : vector<1x32xf32> to vector<48x32xf32>
    %192 = arith.addf %188, %191 : vector<48x32xf32>
    %c1 = arith.constant 1 : index
    %c0_96 = arith.constant 0 : index
    %c0_97 = arith.constant 0 : index
    %193 = vector.load %arg5[%c1, %c0_96, %c0_97] : memref<2x1x32xf32, #tpu.memory_space<vmem>>, vector<1x1x32xf32>
    %194 = vector.shape_cast %193 : vector<1x1x32xf32> to vector<1x32xf32>
    %c1_98 = arith.constant 1 : index
    %c0_99 = arith.constant 0 : index
    %c0_100 = arith.constant 0 : index
    %195 = vector.load %arg6[%c1_98, %c0_99, %c0_100] : memref<2x1x32xf32, #tpu.memory_space<vmem>>, vector<1x1x32xf32>
    %196 = vector.shape_cast %195 : vector<1x1x32xf32> to vector<1x32xf32>
    %cst_101 = arith.constant dense<0.000000e+00> : vector<48xf32>
    %197 = vector.multi_reduction <add>, %192, %cst_101 [1] : vector<48x32xf32> to vector<48xf32>
    %198 = vector.shape_cast %197 : vector<48xf32> to vector<48x1xf32>
    %cst_102 = arith.constant 3.200000e+01 : f32
    %199 = vector.broadcast %cst_102 : f32 to vector<48x1xf32>
    %200 = arith.divf %198, %199 : vector<48x1xf32>
    %201 = vector.broadcast %200 : vector<48x1xf32> to vector<48x32xf32>
    %202 = arith.subf %192, %201 : vector<48x32xf32>
    %203 = arith.mulf %202, %202 : vector<48x32xf32>
    %cst_103 = arith.constant dense<0.000000e+00> : vector<48xf32>
    %204 = vector.multi_reduction <add>, %203, %cst_103 [1] : vector<48x32xf32> to vector<48xf32>
    %205 = vector.shape_cast %204 : vector<48xf32> to vector<48x1xf32>
    %cst_104 = arith.constant 3.200000e+01 : f32
    %206 = vector.broadcast %cst_104 : f32 to vector<48x1xf32>
    %207 = arith.divf %205, %206 : vector<48x1xf32>
    %208 = vector.broadcast %200 : vector<48x1xf32> to vector<48x32xf32>
    %209 = arith.subf %192, %208 : vector<48x32xf32>
    %cst_105 = arith.constant 9.99999996E-13 : f32
    %210 = vector.broadcast %cst_105 : f32 to vector<48x1xf32>
    %211 = arith.addf %207, %210 : vector<48x1xf32>
    %212 = math.rsqrt %211 : vector<48x1xf32>
    %213 = vector.broadcast %212 : vector<48x1xf32> to vector<48x32xf32>
    %214 = arith.mulf %209, %213 : vector<48x32xf32>
    %215 = vector.broadcast %194 : vector<1x32xf32> to vector<48x32xf32>
    %216 = arith.mulf %214, %215 : vector<48x32xf32>
    %217 = vector.broadcast %196 : vector<1x32xf32> to vector<48x32xf32>
    %218 = arith.addf %216, %217 : vector<48x32xf32>
    %c1_106 = arith.constant 1 : index
    %c0_107 = arith.constant 0 : index
    %c0_108 = arith.constant 0 : index
    %219 = vector.load %arg7[%c1_106, %c0_107, %c0_108] : memref<2x32x32xf32, #tpu.memory_space<vmem>>, vector<1x32x32xf32>
    %220 = vector.shape_cast %219 : vector<1x32x32xf32> to vector<32x32xf32>
    %cst_109 = arith.constant dense<0.000000e+00> : vector<48x32xf32>
    %221 = tpu.matmul %218, %220, %cst_109 {dimension_numbers = #tpu.dot_dimension_numbers<[1], [0], [0], [1], [0, 0, 1, 1], [], []>} : vector<48x32xf32>, vector<32x32xf32>, vector<48x32xf32> -> vector<48x32xf32>
    %c1_110 = arith.constant 1 : index
    %c0_111 = arith.constant 0 : index
    %c0_112 = arith.constant 0 : index
    %222 = vector.load %arg8[%c1_110, %c0_111, %c0_112] : memref<2x1x32xf32, #tpu.memory_space<vmem>>, vector<1x1x32xf32>
    %223 = vector.shape_cast %222 : vector<1x1x32xf32> to vector<1x32xf32>
    %224 = vector.broadcast %223 : vector<1x32xf32> to vector<48x32xf32>
    %225 = arith.addf %221, %224 : vector<48x32xf32>
    %cst_113 = arith.constant 0.353553385 : f32
    %226 = vector.broadcast %cst_113 : f32 to vector<48x32xf32>
    %227 = arith.mulf %225, %226 : vector<48x32xf32>
    %c1_114 = arith.constant 1 : index
    %c0_115 = arith.constant 0 : index
    %c0_116 = arith.constant 0 : index
    %228 = vector.load %arg9[%c1_114, %c0_115, %c0_116] : memref<2x32x32xf32, #tpu.memory_space<vmem>>, vector<1x32x32xf32>
    %229 = vector.shape_cast %228 : vector<1x32x32xf32> to vector<32x32xf32>
    %cst_117 = arith.constant dense<0.000000e+00> : vector<48x32xf32>
    %230 = tpu.matmul %218, %229, %cst_117 {dimension_numbers = #tpu.dot_dimension_numbers<[1], [0], [0], [1], [0, 0, 1, 1], [], []>} : vector<48x32xf32>, vector<32x32xf32>, vector<48x32xf32> -> vector<48x32xf32>
    %c1_118 = arith.constant 1 : index
    %c0_119 = arith.constant 0 : index
    %c0_120 = arith.constant 0 : index
    %231 = vector.load %arg10[%c1_118, %c0_119, %c0_120] : memref<2x1x32xf32, #tpu.memory_space<vmem>>, vector<1x1x32xf32>
    %232 = vector.shape_cast %231 : vector<1x1x32xf32> to vector<1x32xf32>
    %233 = vector.broadcast %232 : vector<1x32xf32> to vector<48x32xf32>
    %234 = arith.addf %230, %233 : vector<48x32xf32>
    %c1_121 = arith.constant 1 : index
    %c0_122 = arith.constant 0 : index
    %c0_123 = arith.constant 0 : index
    %235 = vector.load %arg11[%c1_121, %c0_122, %c0_123] : memref<2x32x32xf32, #tpu.memory_space<vmem>>, vector<1x32x32xf32>
    %236 = vector.shape_cast %235 : vector<1x32x32xf32> to vector<32x32xf32>
    %cst_124 = arith.constant dense<0.000000e+00> : vector<48x32xf32>
    %237 = tpu.matmul %218, %236, %cst_124 {dimension_numbers = #tpu.dot_dimension_numbers<[1], [0], [0], [1], [0, 0, 1, 1], [], []>} : vector<48x32xf32>, vector<32x32xf32>, vector<48x32xf32> -> vector<48x32xf32>
    %c1_125 = arith.constant 1 : index
    %c0_126 = arith.constant 0 : index
    %c0_127 = arith.constant 0 : index
    %238 = vector.load %arg12[%c1_125, %c0_126, %c0_127] : memref<2x1x32xf32, #tpu.memory_space<vmem>>, vector<1x1x32xf32>
    %239 = vector.shape_cast %238 : vector<1x1x32xf32> to vector<1x32xf32>
    %240 = vector.broadcast %239 : vector<1x32xf32> to vector<48x32xf32>
    %241 = arith.addf %237, %240 : vector<48x32xf32>
    %c1_128 = arith.constant 1 : index
    %c0_129 = arith.constant 0 : index
    %c0_130 = arith.constant 0 : index
    %242 = vector.load %arg13[%c1_128, %c0_129, %c0_130] : memref<2x32x32xf32, #tpu.memory_space<vmem>>, vector<1x32x32xf32>
    %243 = vector.shape_cast %242 : vector<1x32x32xf32> to vector<32x32xf32>
    %cst_131 = arith.constant 0.000000e+00 : f32
    %244 = vector.broadcast %cst_131 : f32 to vector<48x32xf32>
    %245 = vector.extract_strided_slice %227 {offsets = [0, 0], sizes = [48, 8], strides = [1, 1]} : vector<48x32xf32> to vector<48x8xf32>
    %246 = vector.extract_strided_slice %234 {offsets = [0, 0], sizes = [48, 8], strides = [1, 1]} : vector<48x32xf32> to vector<48x8xf32>
    %247 = vector.extract_strided_slice %241 {offsets = [0, 0], sizes = [48, 8], strides = [1, 1]} : vector<48x32xf32> to vector<48x8xf32>
    %cst_132 = arith.constant dense<0.000000e+00> : vector<48x48xf32>
    %248 = tpu.matmul %245, %246, %cst_132 {dimension_numbers = #tpu.dot_dimension_numbers<[1], [1], [0], [0], [0, 0, 1, 0], [], []>} : vector<48x8xf32>, vector<48x8xf32>, vector<48x48xf32> -> vector<48x48xf32>
    %249 = arith.addf %248, %5 : vector<48x48xf32>
    %cst_133 = arith.constant dense<0xFF800000> : vector<48xf32>
    %250 = vector.multi_reduction <maximumf>, %249, %cst_133 [1] : vector<48x48xf32> to vector<48xf32>
    %251 = vector.shape_cast %250 : vector<48xf32> to vector<48x1xf32>
    %252 = vector.broadcast %251 : vector<48x1xf32> to vector<48x48xf32>
    %253 = arith.subf %249, %252 : vector<48x48xf32>
    %254 = math.exp %253 : vector<48x48xf32>
    %cst_134 = arith.constant dense<0.000000e+00> : vector<48xf32>
    %255 = vector.multi_reduction <add>, %254, %cst_134 [1] : vector<48x48xf32> to vector<48xf32>
    %256 = vector.shape_cast %255 : vector<48xf32> to vector<48x1xf32>
    %257 = tpu.reciprocal %256 {approx = true} : vector<48x1xf32> -> vector<48x1xf32>
    %258 = vector.broadcast %257 : vector<48x1xf32> to vector<48x48xf32>
    %259 = arith.mulf %254, %258 : vector<48x48xf32>
    %cst_135 = arith.constant dense<0.000000e+00> : vector<48x8xf32>
    %260 = tpu.matmul %259, %247, %cst_135 {dimension_numbers = #tpu.dot_dimension_numbers<[1], [0], [0], [1], [0, 0, 1, 1], [], []>} : vector<48x48xf32>, vector<48x8xf32>, vector<48x8xf32> -> vector<48x8xf32>
    %261 = vector.extract_strided_slice %243 {offsets = [0, 0], sizes = [8, 32], strides = [1, 1]} : vector<32x32xf32> to vector<8x32xf32>
    %cst_136 = arith.constant dense<0.000000e+00> : vector<48x32xf32>
    %262 = tpu.matmul %260, %261, %cst_136 {dimension_numbers = #tpu.dot_dimension_numbers<[1], [0], [0], [1], [0, 0, 1, 1], [], []>} : vector<48x8xf32>, vector<8x32xf32>, vector<48x32xf32> -> vector<48x32xf32>
    %263 = arith.addf %244, %262 : vector<48x32xf32>
    %264 = vector.extract_strided_slice %227 {offsets = [0, 8], sizes = [48, 8], strides = [1, 1]} : vector<48x32xf32> to vector<48x8xf32>
    %265 = vector.extract_strided_slice %234 {offsets = [0, 8], sizes = [48, 8], strides = [1, 1]} : vector<48x32xf32> to vector<48x8xf32>
    %266 = vector.extract_strided_slice %241 {offsets = [0, 8], sizes = [48, 8], strides = [1, 1]} : vector<48x32xf32> to vector<48x8xf32>
    %cst_137 = arith.constant dense<0.000000e+00> : vector<48x48xf32>
    %267 = tpu.matmul %264, %265, %cst_137 {dimension_numbers = #tpu.dot_dimension_numbers<[1], [1], [0], [0], [0, 0, 1, 0], [], []>} : vector<48x8xf32>, vector<48x8xf32>, vector<48x48xf32> -> vector<48x48xf32>
    %268 = arith.addf %267, %5 : vector<48x48xf32>
    %cst_138 = arith.constant dense<0xFF800000> : vector<48xf32>
    %269 = vector.multi_reduction <maximumf>, %268, %cst_138 [1] : vector<48x48xf32> to vector<48xf32>
    %270 = vector.shape_cast %269 : vector<48xf32> to vector<48x1xf32>
    %271 = vector.broadcast %270 : vector<48x1xf32> to vector<48x48xf32>
    %272 = arith.subf %268, %271 : vector<48x48xf32>
    %273 = math.exp %272 : vector<48x48xf32>
    %cst_139 = arith.constant dense<0.000000e+00> : vector<48xf32>
    %274 = vector.multi_reduction <add>, %273, %cst_139 [1] : vector<48x48xf32> to vector<48xf32>
    %275 = vector.shape_cast %274 : vector<48xf32> to vector<48x1xf32>
    %276 = tpu.reciprocal %275 {approx = true} : vector<48x1xf32> -> vector<48x1xf32>
    %277 = vector.broadcast %276 : vector<48x1xf32> to vector<48x48xf32>
    %278 = arith.mulf %273, %277 : vector<48x48xf32>
    %cst_140 = arith.constant dense<0.000000e+00> : vector<48x8xf32>
    %279 = tpu.matmul %278, %266, %cst_140 {dimension_numbers = #tpu.dot_dimension_numbers<[1], [0], [0], [1], [0, 0, 1, 1], [], []>} : vector<48x48xf32>, vector<48x8xf32>, vector<48x8xf32> -> vector<48x8xf32>
    %280 = vector.extract_strided_slice %243 {offsets = [8, 0], sizes = [8, 32], strides = [1, 1]} : vector<32x32xf32> to vector<8x32xf32>
    %cst_141 = arith.constant dense<0.000000e+00> : vector<48x32xf32>
    %281 = tpu.matmul %279, %280, %cst_141 {dimension_numbers = #tpu.dot_dimension_numbers<[1], [0], [0], [1], [0, 0, 1, 1], [], []>} : vector<48x8xf32>, vector<8x32xf32>, vector<48x32xf32> -> vector<48x32xf32>
    %282 = arith.addf %263, %281 : vector<48x32xf32>
    %283 = vector.extract_strided_slice %227 {offsets = [0, 16], sizes = [48, 8], strides = [1, 1]} : vector<48x32xf32> to vector<48x8xf32>
    %284 = vector.extract_strided_slice %234 {offsets = [0, 16], sizes = [48, 8], strides = [1, 1]} : vector<48x32xf32> to vector<48x8xf32>
    %285 = vector.extract_strided_slice %241 {offsets = [0, 16], sizes = [48, 8], strides = [1, 1]} : vector<48x32xf32> to vector<48x8xf32>
    %cst_142 = arith.constant dense<0.000000e+00> : vector<48x48xf32>
    %286 = tpu.matmul %283, %284, %cst_142 {dimension_numbers = #tpu.dot_dimension_numbers<[1], [1], [0], [0], [0, 0, 1, 0], [], []>} : vector<48x8xf32>, vector<48x8xf32>, vector<48x48xf32> -> vector<48x48xf32>
    %287 = arith.addf %286, %5 : vector<48x48xf32>
    %cst_143 = arith.constant dense<0xFF800000> : vector<48xf32>
    %288 = vector.multi_reduction <maximumf>, %287, %cst_143 [1] : vector<48x48xf32> to vector<48xf32>
    %289 = vector.shape_cast %288 : vector<48xf32> to vector<48x1xf32>
    %290 = vector.broadcast %289 : vector<48x1xf32> to vector<48x48xf32>
    %291 = arith.subf %287, %290 : vector<48x48xf32>
    %292 = math.exp %291 : vector<48x48xf32>
    %cst_144 = arith.constant dense<0.000000e+00> : vector<48xf32>
    %293 = vector.multi_reduction <add>, %292, %cst_144 [1] : vector<48x48xf32> to vector<48xf32>
    %294 = vector.shape_cast %293 : vector<48xf32> to vector<48x1xf32>
    %295 = tpu.reciprocal %294 {approx = true} : vector<48x1xf32> -> vector<48x1xf32>
    %296 = vector.broadcast %295 : vector<48x1xf32> to vector<48x48xf32>
    %297 = arith.mulf %292, %296 : vector<48x48xf32>
    %cst_145 = arith.constant dense<0.000000e+00> : vector<48x8xf32>
    %298 = tpu.matmul %297, %285, %cst_145 {dimension_numbers = #tpu.dot_dimension_numbers<[1], [0], [0], [1], [0, 0, 1, 1], [], []>} : vector<48x48xf32>, vector<48x8xf32>, vector<48x8xf32> -> vector<48x8xf32>
    %299 = vector.extract_strided_slice %243 {offsets = [16, 0], sizes = [8, 32], strides = [1, 1]} : vector<32x32xf32> to vector<8x32xf32>
    %cst_146 = arith.constant dense<0.000000e+00> : vector<48x32xf32>
    %300 = tpu.matmul %298, %299, %cst_146 {dimension_numbers = #tpu.dot_dimension_numbers<[1], [0], [0], [1], [0, 0, 1, 1], [], []>} : vector<48x8xf32>, vector<8x32xf32>, vector<48x32xf32> -> vector<48x32xf32>
    %301 = arith.addf %282, %300 : vector<48x32xf32>
    %302 = vector.extract_strided_slice %227 {offsets = [0, 24], sizes = [48, 8], strides = [1, 1]} : vector<48x32xf32> to vector<48x8xf32>
    %303 = vector.extract_strided_slice %234 {offsets = [0, 24], sizes = [48, 8], strides = [1, 1]} : vector<48x32xf32> to vector<48x8xf32>
    %304 = vector.extract_strided_slice %241 {offsets = [0, 24], sizes = [48, 8], strides = [1, 1]} : vector<48x32xf32> to vector<48x8xf32>
    %cst_147 = arith.constant dense<0.000000e+00> : vector<48x48xf32>
    %305 = tpu.matmul %302, %303, %cst_147 {dimension_numbers = #tpu.dot_dimension_numbers<[1], [1], [0], [0], [0, 0, 1, 0], [], []>} : vector<48x8xf32>, vector<48x8xf32>, vector<48x48xf32> -> vector<48x48xf32>
    %306 = arith.addf %305, %5 : vector<48x48xf32>
    %cst_148 = arith.constant dense<0xFF800000> : vector<48xf32>
    %307 = vector.multi_reduction <maximumf>, %306, %cst_148 [1] : vector<48x48xf32> to vector<48xf32>
    %308 = vector.shape_cast %307 : vector<48xf32> to vector<48x1xf32>
    %309 = vector.broadcast %308 : vector<48x1xf32> to vector<48x48xf32>
    %310 = arith.subf %306, %309 : vector<48x48xf32>
    %311 = math.exp %310 : vector<48x48xf32>
    %cst_149 = arith.constant dense<0.000000e+00> : vector<48xf32>
    %312 = vector.multi_reduction <add>, %311, %cst_149 [1] : vector<48x48xf32> to vector<48xf32>
    %313 = vector.shape_cast %312 : vector<48xf32> to vector<48x1xf32>
    %314 = tpu.reciprocal %313 {approx = true} : vector<48x1xf32> -> vector<48x1xf32>
    %315 = vector.broadcast %314 : vector<48x1xf32> to vector<48x48xf32>
    %316 = arith.mulf %311, %315 : vector<48x48xf32>
    %cst_150 = arith.constant dense<0.000000e+00> : vector<48x8xf32>
    %317 = tpu.matmul %316, %304, %cst_150 {dimension_numbers = #tpu.dot_dimension_numbers<[1], [0], [0], [1], [0, 0, 1, 1], [], []>} : vector<48x48xf32>, vector<48x8xf32>, vector<48x8xf32> -> vector<48x8xf32>
    %318 = vector.extract_strided_slice %243 {offsets = [24, 0], sizes = [8, 32], strides = [1, 1]} : vector<32x32xf32> to vector<8x32xf32>
    %cst_151 = arith.constant dense<0.000000e+00> : vector<48x32xf32>
    %319 = tpu.matmul %317, %318, %cst_151 {dimension_numbers = #tpu.dot_dimension_numbers<[1], [0], [0], [1], [0, 0, 1, 1], [], []>} : vector<48x8xf32>, vector<8x32xf32>, vector<48x32xf32> -> vector<48x32xf32>
    %320 = arith.addf %301, %319 : vector<48x32xf32>
    %321 = arith.addf %192, %320 : vector<48x32xf32>
    %c1_152 = arith.constant 1 : index
    %c0_153 = arith.constant 0 : index
    %c0_154 = arith.constant 0 : index
    %322 = vector.load %arg14[%c1_152, %c0_153, %c0_154] : memref<2x1x32xf32, #tpu.memory_space<vmem>>, vector<1x1x32xf32>
    %323 = vector.shape_cast %322 : vector<1x1x32xf32> to vector<1x32xf32>
    %324 = vector.broadcast %323 : vector<1x32xf32> to vector<48x32xf32>
    %325 = arith.addf %321, %324 : vector<48x32xf32>
    %c1_155 = arith.constant 1 : index
    %c0_156 = arith.constant 0 : index
    %c0_157 = arith.constant 0 : index
    %326 = vector.load %arg15[%c1_155, %c0_156, %c0_157] : memref<2x1x32xf32, #tpu.memory_space<vmem>>, vector<1x1x32xf32>
    %327 = vector.shape_cast %326 : vector<1x1x32xf32> to vector<1x32xf32>
    %c1_158 = arith.constant 1 : index
    %c0_159 = arith.constant 0 : index
    %c0_160 = arith.constant 0 : index
    %328 = vector.load %arg16[%c1_158, %c0_159, %c0_160] : memref<2x1x32xf32, #tpu.memory_space<vmem>>, vector<1x1x32xf32>
    %329 = vector.shape_cast %328 : vector<1x1x32xf32> to vector<1x32xf32>
    %cst_161 = arith.constant dense<0.000000e+00> : vector<48xf32>
    %330 = vector.multi_reduction <add>, %325, %cst_161 [1] : vector<48x32xf32> to vector<48xf32>
    %331 = vector.shape_cast %330 : vector<48xf32> to vector<48x1xf32>
    %cst_162 = arith.constant 3.200000e+01 : f32
    %332 = vector.broadcast %cst_162 : f32 to vector<48x1xf32>
    %333 = arith.divf %331, %332 : vector<48x1xf32>
    %334 = vector.broadcast %333 : vector<48x1xf32> to vector<48x32xf32>
    %335 = arith.subf %325, %334 : vector<48x32xf32>
    %336 = arith.mulf %335, %335 : vector<48x32xf32>
    %cst_163 = arith.constant dense<0.000000e+00> : vector<48xf32>
    %337 = vector.multi_reduction <add>, %336, %cst_163 [1] : vector<48x32xf32> to vector<48xf32>
    %338 = vector.shape_cast %337 : vector<48xf32> to vector<48x1xf32>
    %cst_164 = arith.constant 3.200000e+01 : f32
    %339 = vector.broadcast %cst_164 : f32 to vector<48x1xf32>
    %340 = arith.divf %338, %339 : vector<48x1xf32>
    %341 = vector.broadcast %333 : vector<48x1xf32> to vector<48x32xf32>
    %342 = arith.subf %325, %341 : vector<48x32xf32>
    %cst_165 = arith.constant 9.99999996E-13 : f32
    %343 = vector.broadcast %cst_165 : f32 to vector<48x1xf32>
    %344 = arith.addf %340, %343 : vector<48x1xf32>
    %345 = math.rsqrt %344 : vector<48x1xf32>
    %346 = vector.broadcast %345 : vector<48x1xf32> to vector<48x32xf32>
    %347 = arith.mulf %342, %346 : vector<48x32xf32>
    %348 = vector.broadcast %327 : vector<1x32xf32> to vector<48x32xf32>
    %349 = arith.mulf %347, %348 : vector<48x32xf32>
    %350 = vector.broadcast %329 : vector<1x32xf32> to vector<48x32xf32>
    %351 = arith.addf %349, %350 : vector<48x32xf32>
    %c1_166 = arith.constant 1 : index
    %c0_167 = arith.constant 0 : index
    %c0_168 = arith.constant 0 : index
    %352 = vector.load %arg17[%c1_166, %c0_167, %c0_168] : memref<2x32x64xf32, #tpu.memory_space<vmem>>, vector<1x32x64xf32>
    %353 = vector.shape_cast %352 : vector<1x32x64xf32> to vector<32x64xf32>
    %cst_169 = arith.constant dense<0.000000e+00> : vector<48x64xf32>
    %354 = tpu.matmul %351, %353, %cst_169 {dimension_numbers = #tpu.dot_dimension_numbers<[1], [0], [0], [1], [0, 0, 1, 1], [], []>} : vector<48x32xf32>, vector<32x64xf32>, vector<48x64xf32> -> vector<48x64xf32>
    %c1_170 = arith.constant 1 : index
    %c0_171 = arith.constant 0 : index
    %c0_172 = arith.constant 0 : index
    %355 = vector.load %arg18[%c1_170, %c0_171, %c0_172] : memref<2x1x64xf32, #tpu.memory_space<vmem>>, vector<1x1x64xf32>
    %356 = vector.shape_cast %355 : vector<1x1x64xf32> to vector<1x64xf32>
    %357 = vector.broadcast %356 : vector<1x64xf32> to vector<48x64xf32>
    %358 = arith.addf %354, %357 : vector<48x64xf32>
    %cst_173 = arith.constant 5.000000e-01 : f32
    %359 = vector.broadcast %cst_173 : f32 to vector<48x64xf32>
    %360 = arith.mulf %359, %358 : vector<48x64xf32>
    %cst_174 = arith.constant 4.471500e-02 : f32
    %361 = vector.broadcast %cst_174 : f32 to vector<48x64xf32>
    %362 = arith.mulf %361, %358 : vector<48x64xf32>
    %363 = arith.mulf %362, %358 : vector<48x64xf32>
    %364 = arith.mulf %363, %358 : vector<48x64xf32>
    %365 = arith.addf %358, %364 : vector<48x64xf32>
    %cst_175 = arith.constant 0.797884583 : f32
    %366 = vector.broadcast %cst_175 : f32 to vector<48x64xf32>
    %367 = arith.mulf %366, %365 : vector<48x64xf32>
    %368 = math.tanh %367 : vector<48x64xf32>
    %cst_176 = arith.constant 1.000000e+00 : f32
    %369 = vector.broadcast %cst_176 : f32 to vector<48x64xf32>
    %370 = arith.addf %369, %368 : vector<48x64xf32>
    %371 = arith.mulf %360, %370 : vector<48x64xf32>
    %c1_177 = arith.constant 1 : index
    %c0_178 = arith.constant 0 : index
    %c0_179 = arith.constant 0 : index
    %372 = vector.load %arg19[%c1_177, %c0_178, %c0_179] : memref<2x64x32xf32, #tpu.memory_space<vmem>>, vector<1x64x32xf32>
    %373 = vector.shape_cast %372 : vector<1x64x32xf32> to vector<64x32xf32>
    %cst_180 = arith.constant dense<0.000000e+00> : vector<48x32xf32>
    %374 = tpu.matmul %371, %373, %cst_180 {dimension_numbers = #tpu.dot_dimension_numbers<[1], [0], [0], [1], [0, 0, 1, 1], [], []>} : vector<48x64xf32>, vector<64x32xf32>, vector<48x32xf32> -> vector<48x32xf32>
    %375 = arith.addf %325, %374 : vector<48x32xf32>
    %c1_181 = arith.constant 1 : index
    %c0_182 = arith.constant 0 : index
    %c0_183 = arith.constant 0 : index
    %376 = vector.load %arg20[%c1_181, %c0_182, %c0_183] : memref<2x1x32xf32, #tpu.memory_space<vmem>>, vector<1x1x32xf32>
    %377 = vector.shape_cast %376 : vector<1x1x32xf32> to vector<1x32xf32>
    %378 = vector.broadcast %377 : vector<1x32xf32> to vector<48x32xf32>
    %379 = arith.addf %375, %378 : vector<48x32xf32>
    %380 = vector.extract_strided_slice %379 {offsets = [0, 0], sizes = [1, 32], strides = [1, 1]} : vector<48x32xf32> to vector<1x32xf32>
    %381 = vector.extract_strided_slice %379 {offsets = [24, 0], sizes = [1, 32], strides = [1, 1]} : vector<48x32xf32> to vector<1x32xf32>
    %382 = tpu.concatenate %380, %381 in 0 : vector<1x32xf32>, vector<1x32xf32> -> vector<2x32xf32>
    %c0_184 = arith.constant 0 : index
    %c0_185 = arith.constant 0 : index
    %383 = vector.load %arg21[%c0_184, %c0_185] : memref<1x32xf32, #tpu.memory_space<vmem>>, vector<1x32xf32>
    %c0_186 = arith.constant 0 : index
    %c0_187 = arith.constant 0 : index
    %384 = vector.load %arg22[%c0_186, %c0_187] : memref<1x32xf32, #tpu.memory_space<vmem>>, vector<1x32xf32>
    %cst_188 = arith.constant dense<0.000000e+00> : vector<2xf32>
    %385 = vector.multi_reduction <add>, %382, %cst_188 [1] : vector<2x32xf32> to vector<2xf32>
    %386 = vector.shape_cast %385 : vector<2xf32> to vector<2x1xf32>
    %cst_189 = arith.constant 3.200000e+01 : f32
    %387 = vector.broadcast %cst_189 : f32 to vector<2x1xf32>
    %388 = arith.divf %386, %387 : vector<2x1xf32>
    %389 = vector.broadcast %388 : vector<2x1xf32> to vector<2x32xf32>
    %390 = arith.subf %382, %389 : vector<2x32xf32>
    %391 = arith.mulf %390, %390 : vector<2x32xf32>
    %cst_190 = arith.constant dense<0.000000e+00> : vector<2xf32>
    %392 = vector.multi_reduction <add>, %391, %cst_190 [1] : vector<2x32xf32> to vector<2xf32>
    %393 = vector.shape_cast %392 : vector<2xf32> to vector<2x1xf32>
    %cst_191 = arith.constant 3.200000e+01 : f32
    %394 = vector.broadcast %cst_191 : f32 to vector<2x1xf32>
    %395 = arith.divf %393, %394 : vector<2x1xf32>
    %396 = vector.broadcast %388 : vector<2x1xf32> to vector<2x32xf32>
    %397 = arith.subf %382, %396 : vector<2x32xf32>
    %cst_192 = arith.constant 9.99999996E-13 : f32
    %398 = vector.broadcast %cst_192 : f32 to vector<2x1xf32>
    %399 = arith.addf %395, %398 : vector<2x1xf32>
    %400 = math.rsqrt %399 : vector<2x1xf32>
    %401 = vector.broadcast %400 : vector<2x1xf32> to vector<2x32xf32>
    %402 = arith.mulf %397, %401 : vector<2x32xf32>
    %403 = vector.broadcast %383 : vector<1x32xf32> to vector<2x32xf32>
    %404 = arith.mulf %402, %403 : vector<2x32xf32>
    %405 = vector.broadcast %384 : vector<1x32xf32> to vector<2x32xf32>
    %406 = arith.addf %404, %405 : vector<2x32xf32>
    %c0_193 = arith.constant 0 : index
    %c0_194 = arith.constant 0 : index
    %407 = vector.load %arg23[%c0_193, %c0_194] : memref<32x2xf32, #tpu.memory_space<vmem>>, vector<32x2xf32>
    %cst_195 = arith.constant dense<0.000000e+00> : vector<2x2xf32>
    %408 = tpu.matmul %406, %407, %cst_195 {dimension_numbers = #tpu.dot_dimension_numbers<[1], [0], [0], [1], [0, 0, 1, 1], [], []>} : vector<2x32xf32>, vector<32x2xf32>, vector<2x2xf32> -> vector<2x2xf32>
    %c0_196 = arith.constant 0 : index
    %c0_197 = arith.constant 0 : index
    %409 = vector.load %arg24[%c0_196, %c0_197] : memref<1x2xf32, #tpu.memory_space<vmem>>, vector<1x2xf32>
    %410 = vector.broadcast %409 : vector<1x2xf32> to vector<2x2xf32>
    %411 = arith.addf %408, %410 : vector<2x2xf32>
    %c0_198 = arith.constant 0 : index
    %c0_199 = arith.constant 0 : index
    %412 = vector.load %arg25[%c0_198, %c0_199] : memref<2x2xf32, #tpu.memory_space<vmem>>, vector<2x2xf32>
    tpu.vector_store %arg25[%c0_198, %c0_199], %411 {strides = array<i32>} : memref<2x2xf32, #tpu.memory_space<vmem>>, vector<2x2xf32>,
    return
  }
  func.func @transform_0(%arg0: i32) -> (i32, i32) {
    %c0_i32 = arith.constant 0 : i32
    %c0_i32_0 = arith.constant 0 : i32
    %c0_i32_1 = arith.constant 0 : i32
    return %c0_i32, %c0_i32_0 : i32, i32
  }
  func.func @transform_1(%arg0: i32) -> (i32, i32) {
    %c0_i32 = arith.constant 0 : i32
    %c0_i32_0 = arith.constant 0 : i32
    %c0_i32_1 = arith.constant 0 : i32
    return %c0_i32, %c0_i32_0 : i32, i32
  }
  func.func @transform_2(%arg0: i32) -> (i32, i32) {
    %c0_i32 = arith.constant 0 : i32
    %c0_i32_0 = arith.constant 0 : i32
    %c0_i32_1 = arith.constant 0 : i32
    return %c0_i32, %c0_i32_0 : i32, i32
  }
  func.func @transform_3(%arg0: i32) -> (i32, i32) {
    %c0_i32 = arith.constant 0 : i32
    %c0_i32_0 = arith.constant 0 : i32
    %c0_i32_1 = arith.constant 0 : i32
    return %c0_i32, %c0_i32_0 : i32, i32
  }
  func.func @transform_4(%arg0: i32) -> (i32, i32, i32) {
    %c0_i32 = arith.constant 0 : i32
    %c0_i32_0 = arith.constant 0 : i32
    %c0_i32_1 = arith.constant 0 : i32
    %c0_i32_2 = arith.constant 0 : i32
    return %c0_i32, %c0_i32_0, %c0_i32_1 : i32, i32, i32
  }
  func.func @transform_5(%arg0: i32) -> (i32, i32, i32) {
    %c0_i32 = arith.constant 0 : i32
    %c0_i32_0 = arith.constant 0 : i32
    %c0_i32_1 = arith.constant 0 : i32
    %c0_i32_2 = arith.constant 0 : i32
    return %c0_i32, %c0_i32_0, %c0_i32_1 : i32, i32, i32
  }
  func.func @transform_6(%arg0: i32) -> (i32, i32, i32) {
    %c0_i32 = arith.constant 0 : i32
    %c0_i32_0 = arith.constant 0 : i32
    %c0_i32_1 = arith.constant 0 : i32
    %c0_i32_2 = arith.constant 0 : i32
    return %c0_i32, %c0_i32_0, %c0_i32_1 : i32, i32, i32
  }
  func.func @transform_7(%arg0: i32) -> (i32, i32, i32) {
    %c0_i32 = arith.constant 0 : i32
    %c0_i32_0 = arith.constant 0 : i32
    %c0_i32_1 = arith.constant 0 : i32
    %c0_i32_2 = arith.constant 0 : i32
    return %c0_i32, %c0_i32_0, %c0_i32_1 : i32, i32, i32
  }
  func.func @transform_8(%arg0: i32) -> (i32, i32, i32) {
    %c0_i32 = arith.constant 0 : i32
    %c0_i32_0 = arith.constant 0 : i32
    %c0_i32_1 = arith.constant 0 : i32
    %c0_i32_2 = arith.constant 0 : i32
    return %c0_i32, %c0_i32_0, %c0_i32_1 : i32, i32, i32
  }
  func.func @transform_9(%arg0: i32) -> (i32, i32, i32) {
    %c0_i32 = arith.constant 0 : i32
    %c0_i32_0 = arith.constant 0 : i32
    %c0_i32_1 = arith.constant 0 : i32
    %c0_i32_2 = arith.constant 0 : i32
    return %c0_i32, %c0_i32_0, %c0_i32_1 : i32, i32, i32
  }
  func.func @transform_10(%arg0: i32) -> (i32, i32, i32) {
    %c0_i32 = arith.constant 0 : i32
    %c0_i32_0 = arith.constant 0 : i32
    %c0_i32_1 = arith.constant 0 : i32
    %c0_i32_2 = arith.constant 0 : i32
    return %c0_i32, %c0_i32_0, %c0_i32_1 : i32, i32, i32
  }
  func.func @transform_11(%arg0: i32) -> (i32, i32, i32) {
    %c0_i32 = arith.constant 0 : i32
    %c0_i32_0 = arith.constant 0 : i32
    %c0_i32_1 = arith.constant 0 : i32
    %c0_i32_2 = arith.constant 0 : i32
    return %c0_i32, %c0_i32_0, %c0_i32_1 : i32, i32, i32
  }
  func.func @transform_12(%arg0: i32) -> (i32, i32, i32) {
    %c0_i32 = arith.constant 0 : i32
    %c0_i32_0 = arith.constant 0 : i32
    %c0_i32_1 = arith.constant 0 : i32
    %c0_i32_2 = arith.constant 0 : i32
    return %c0_i32, %c0_i32_0, %c0_i32_1 : i32, i32, i32
  }
  func.func @transform_13(%arg0: i32) -> (i32, i32, i32) {
    %c0_i32 = arith.constant 0 : i32
    %c0_i32_0 = arith.constant 0 : i32
    %c0_i32_1 = arith.constant 0 : i32
    %c0_i32_2 = arith.constant 0 : i32
    return %c0_i32, %c0_i32_0, %c0_i32_1 : i32, i32, i32
  }
  func.func @transform_14(%arg0: i32) -> (i32, i32, i32) {
    %c0_i32 = arith.constant 0 : i32
    %c0_i32_0 = arith.constant 0 : i32
    %c0_i32_1 = arith.constant 0 : i32
    %c0_i32_2 = arith.constant 0 : i32
    return %c0_i32, %c0_i32_0, %c0_i32_1 : i32, i32, i32
  }
  func.func @transform_15(%arg0: i32) -> (i32, i32, i32) {
    %c0_i32 = arith.constant 0 : i32
    %c0_i32_0 = arith.constant 0 : i32
    %c0_i32_1 = arith.constant 0 : i32
    %c0_i32_2 = arith.constant 0 : i32
    return %c0_i32, %c0_i32_0, %c0_i32_1 : i32, i32, i32
  }
  func.func @transform_16(%arg0: i32) -> (i32, i32, i32) {
    %c0_i32 = arith.constant 0 : i32
    %c0_i32_0 = arith.constant 0 : i32
    %c0_i32_1 = arith.constant 0 : i32
    %c0_i32_2 = arith.constant 0 : i32
    return %c0_i32, %c0_i32_0, %c0_i32_1 : i32, i32, i32
  }
  func.func @transform_17(%arg0: i32) -> (i32, i32, i32) {
    %c0_i32 = arith.constant 0 : i32
    %c0_i32_0 = arith.constant 0 : i32
    %c0_i32_1 = arith.constant 0 : i32
    %c0_i32_2 = arith.constant 0 : i32
    return %c0_i32, %c0_i32_0, %c0_i32_1 : i32, i32, i32
  }
  func.func @transform_18(%arg0: i32) -> (i32, i32, i32) {
    %c0_i32 = arith.constant 0 : i32
    %c0_i32_0 = arith.constant 0 : i32
    %c0_i32_1 = arith.constant 0 : i32
    %c0_i32_2 = arith.constant 0 : i32
    return %c0_i32, %c0_i32_0, %c0_i32_1 : i32, i32, i32
  }
  func.func @transform_19(%arg0: i32) -> (i32, i32, i32) {
    %c0_i32 = arith.constant 0 : i32
    %c0_i32_0 = arith.constant 0 : i32
    %c0_i32_1 = arith.constant 0 : i32
    %c0_i32_2 = arith.constant 0 : i32
    return %c0_i32, %c0_i32_0, %c0_i32_1 : i32, i32, i32
  }
  func.func @transform_20(%arg0: i32) -> (i32, i32) {
    %c0_i32 = arith.constant 0 : i32
    %c0_i32_0 = arith.constant 0 : i32
    %c0_i32_1 = arith.constant 0 : i32
    return %c0_i32, %c0_i32_0 : i32, i32
  }
  func.func @transform_21(%arg0: i32) -> (i32, i32) {
    %c0_i32 = arith.constant 0 : i32
    %c0_i32_0 = arith.constant 0 : i32
    %c0_i32_1 = arith.constant 0 : i32
    return %c0_i32, %c0_i32_0 : i32, i32
  }
  func.func @transform_22(%arg0: i32) -> (i32, i32) {
    %c0_i32 = arith.constant 0 : i32
    %c0_i32_0 = arith.constant 0 : i32
    %c0_i32_1 = arith.constant 0 : i32
    return %c0_i32, %c0_i32_0 : i32, i32
  }
  func.func @transform_23(%arg0: i32) -> (i32, i32) {
    %c0_i32 = arith.constant 0 : i32
    %c0_i32_0 = arith.constant 0 : i32
    %c0_i32_1 = arith.constant 0 : i32
    return %c0_i32, %c0_i32_0 : i32, i32
  }
  func.func @transform_24(%arg0: i32) -> (i32, i32) {
    %c0_i32 = arith.constant 0 : i32
    %c0_i32_0 = arith.constant 0 : i32
    %c0_i32_1 = arith.constant 0 : i32
    return %c0_i32, %c0_i32_0 : i32, i32
  }
}

</mosaic_0001>

<llo_original>
// kernel: tpu_custom_call.1
$region0: #{tpu_custom_call.1}
  #allocation0 [shape = 'u32[]', space=smem, size = 0x4, offset = 0x4, fixed_abs, tag = 'smem constant byte address 0x4 - core index']
  #allocation1 [shape = 'u32[144,128]{1,0:T(1,128)}', space=vmem, size = 0x12000, scoped, tag = 'internal scratch']
  %s0 = inlined_call_operand.hbm [shape: f32[48,48], index: 0, kind: input, shape index: {}]
  %s1 = inlined_call_operand.vmem [shape: f32[48,32], index: 1, kind: input, shape index: {}]
  %s2 = inlined_call_operand.vmem [shape: f32[48,32], index: 2, kind: input, shape index: {}]
  %s3 = inlined_call_operand.hbm [shape: f32[48,48], index: 3, kind: input, shape index: {}]
  %s4 = inlined_call_operand.vmem [shape: f32[2,1,32], index: 4, kind: input, shape index: {}]
  %s5 = inlined_call_operand.vmem [shape: f32[2,1,32], index: 5, kind: input, shape index: {}]
  %s6 = inlined_call_operand.vmem [shape: f32[2,32,32], index: 6, kind: input, shape index: {}]
  %s7 = inlined_call_operand.vmem [shape: f32[2,1,32], index: 7, kind: input, shape index: {}]
  %s8 = inlined_call_operand.vmem [shape: f32[2,32,32], index: 8, kind: input, shape index: {}]
  %s9 = inlined_call_operand.vmem [shape: f32[2,1,32], index: 9, kind: input, shape index: {}]
  %s10 = inlined_call_operand.vmem [shape: f32[2,32,32], index: 10, kind: input, shape index: {}]
  %s11 = inlined_call_operand.vmem [shape: f32[2,1,32], index: 11, kind: input, shape index: {}]
  %s12 = inlined_call_operand.vmem [shape: f32[2,32,32], index: 12, kind: input, shape index: {}]
  %s13 = inlined_call_operand.vmem [shape: f32[2,1,32], index: 13, kind: input, shape index: {}]
  %s14 = inlined_call_operand.vmem [shape: f32[2,1,32], index: 14, kind: input, shape index: {}]
  %s15 = inlined_call_operand.vmem [shape: f32[2,1,32], index: 15, kind: input, shape index: {}]
  %s16 = inlined_call_operand.vmem [shape: f32[2,32,64], index: 16, kind: input, shape index: {}]
  %s17 = inlined_call_operand.vmem [shape: f32[2,1,64], index: 17, kind: input, shape index: {}]
  %s18 = inlined_call_operand.vmem [shape: f32[2,64,32], index: 18, kind: input, shape index: {}]
  %s19 = inlined_call_operand.vmem [shape: f32[2,1,32], index: 19, kind: input, shape index: {}]
  %s20 = inlined_call_operand.vmem [shape: f32[1,32], index: 20, kind: input, shape index: {}]
  %s21 = inlined_call_operand.vmem [shape: f32[1,32], index: 21, kind: input, shape index: {}]
  %s22 = inlined_call_operand.vmem [shape: f32[32,2], index: 22, kind: input, shape index: {}]
  %s23 = inlined_call_operand.vmem [shape: f32[1,2], index: 23, kind: input, shape index: {}]
  %s24 = inlined_call_operand.hbm [shape: f32[2,2], index: 24, kind: output, shape index: {}]
  %s25 = sld [smem:[#allocation0]]
  $region114: #{tpu_custom_call.1} parent=0
    _
  %s27 = ssub.s32 1, %s25
  %s28 = scalar_select 0, %s27, %s25
  $region1: #{tpu_custom_call.1} parent=0
    #allocation2 [shape = 'u8[24576]{0}', space=vmem, size = 0x6000, scoped, tag = 'input window, operand 0, single buffered']
    #allocation3 [shape = 's32[1]{0}', space=sflag, size = 0x4, scoped, tag = 'scoped memory for tpu_custom_call.1']
    #allocation4 [shape = 's32[1]{0}', space=sflag, size = 0x4, scoped, tag = 'scoped memory for tpu_custom_call.1']
    #allocation5 [shape = 'u8[24576]{0}', space=vmem, size = 0x6000, scoped, tag = 'input window, operand 3, single buffered']
    #allocation6 [shape = 's32[1]{0}', space=sflag, size = 0x4, scoped, tag = 'scoped memory for tpu_custom_call.1']
    #allocation7 [shape = 'u8[1024]{0}', space=vmem, size = 0x400, scoped, tag = 'output window, operand 0, single buffered']
    %29 = vsyncpa [#allocation3], 0
    %30 = vsyncpa [#allocation6], 0
    %31 = vsyncpa [#allocation4], 0
    // Predicated region
    $region2: #{tpu_custom_call.1} parent=1 // pred_check
      _
    $region3: #{tpu_custom_call.1} parent=1 // pred_check_branch
      %33 = sbr.rel (0) target = $region5
    $region4: #{tpu_custom_call.1} parent=1 // pred_region
      %s35 = ssub.s32 768, 768
      %36 = vsyncadd [#allocation3], %s35
      %s37 = sshll.u32 [#allocation2], 4
      %s38 = int_to_ptr.vmem [resolvable:$true] %s37
      %43 = dma.hbm_to_vmem [thread:$0]  %s0, 768, %s38, [#allocation3], 128, 128, 8
    $region5: #{tpu_custom_call.1} parent=1 // pred_fallthru
      _
    // Predicated region
    $region6: #{tpu_custom_call.1} parent=1 // pred_check
      _
    $region7: #{tpu_custom_call.1} parent=1 // pred_check_branch
      %45 = sbr.rel (0) target = $region9
    $region8: #{tpu_custom_call.1} parent=1 // pred_region
      _
    $region9: #{tpu_custom_call.1} parent=1 // pred_fallthru
      _
    // Predicated region
    $region10: #{tpu_custom_call.1} parent=1 // pred_check
      _
    $region11: #{tpu_custom_call.1} parent=1 // pred_check_branch
      %47 = sbr.rel (0) target = $region13
    $region12: #{tpu_custom_call.1} parent=1 // pred_region
      _
    $region13: #{tpu_custom_call.1} parent=1 // pred_fallthru
      _
    // Predicated region
    $region14: #{tpu_custom_call.1} parent=1 // pred_check
      _
    $region15: #{tpu_custom_call.1} parent=1 // pred_check_branch
      %49 = sbr.rel (0) target = $region17
    $region16: #{tpu_custom_call.1} parent=1 // pred_region
      %s51 = ssub.s32 768, 768
      %52 = vsyncadd [#allocation6], %s51
      %s53 = sshll.u32 [#allocation5], 4
      %s54 = int_to_ptr.vmem [resolvable:$true] %s53
      %59 = dma.hbm_to_vmem [thread:$0]  %s3, 768, %s54, [#allocation6], 128, 128, 8
    $region17: #{tpu_custom_call.1} parent=1 // pred_fallthru
      _
    // Predicated region
    $region18: #{tpu_custom_call.1} parent=1 // pred_check
      _
    $region19: #{tpu_custom_call.1} parent=1 // pred_check_branch
      %61 = sbr.rel (0) target = $region21
    $region20: #{tpu_custom_call.1} parent=1 // pred_region
      _
    $region21: #{tpu_custom_call.1} parent=1 // pred_fallthru
      _
    // Predicated region
    $region22: #{tpu_custom_call.1} parent=1 // pred_check
      _
    $region23: #{tpu_custom_call.1} parent=1 // pred_check_branch
      %63 = sbr.rel (0) target = $region25
    $region24: #{tpu_custom_call.1} parent=1 // pred_region
      _
    $region25: #{tpu_custom_call.1} parent=1 // pred_fallthru
      _
    // Predicated region
    $region26: #{tpu_custom_call.1} parent=1 // pred_check
      _
    $region27: #{tpu_custom_call.1} parent=1 // pred_check_branch
      %65 = sbr.rel (0) target = $region29
    $region28: #{tpu_custom_call.1} parent=1 // pred_region
      _
    $region29: #{tpu_custom_call.1} parent=1 // pred_fallthru
      _
    // Predicated region
    $region30: #{tpu_custom_call.1} parent=1 // pred_check
      _
    $region31: #{tpu_custom_call.1} parent=1 // pred_check_branch
      %67 = sbr.rel (0) target = $region33
    $region32: #{tpu_custom_call.1} parent=1 // pred_region
      _
    $region33: #{tpu_custom_call.1} parent=1 // pred_fallthru
      _
    // Predicated region
    $region34: #{tpu_custom_call.1} parent=1 // pred_check
      _
    $region35: #{tpu_custom_call.1} parent=1 // pred_check_branch
      %69 = sbr.rel (0) target = $region37
    $region36: #{tpu_custom_call.1} parent=1 // pred_region
      _
    $region37: #{tpu_custom_call.1} parent=1 // pred_fallthru
      _
    // Predicated region
    $region38: #{tpu_custom_call.1} parent=1 // pred_check
      _
    $region39: #{tpu_custom_call.1} parent=1 // pred_check_branch
      %71 = sbr.rel (0) target = $region41
    $region40: #{tpu_custom_call.1} parent=1 // pred_region
      _
    $region41: #{tpu_custom_call.1} parent=1 // pred_fallthru
      _
    // Predicated region
    $region42: #{tpu_custom_call.1} parent=1 // pred_check
      _
    $region43: #{tpu_custom_call.1} parent=1 // pred_check_branch
      %73 = sbr.rel (0) target = $region45
    $region44: #{tpu_custom_call.1} parent=1 // pred_region
      _
    $region45: #{tpu_custom_call.1} parent=1 // pred_fallthru
      _
    // Predicated region
    $region46: #{tpu_custom_call.1} parent=1 // pred_check
      _
    $region47: #{tpu_custom_call.1} parent=1 // pred_check_branch
      %75 = sbr.rel (0) target = $region49
    $region48: #{tpu_custom_call.1} parent=1 // pred_region
      _
    $region49: #{tpu_custom_call.1} parent=1 // pred_fallthru
      _
    // Predicated region
    $region50: #{tpu_custom_call.1} parent=1 // pred_check
      _
    $region51: #{tpu_custom_call.1} parent=1 // pred_check_branch
      %77 = sbr.rel (0) target = $region53
    $region52: #{tpu_custom_call.1} parent=1 // pred_region
      _
    $region53: #{tpu_custom_call.1} parent=1 // pred_fallthru
      _
    // Predicated region
    $region54: #{tpu_custom_call.1} parent=1 // pred_check
      _
    $region55: #{tpu_custom_call.1} parent=1 // pred_check_branch
      %79 = sbr.rel (0) target = $region57
    $region56: #{tpu_custom_call.1} parent=1 // pred_region
      _
    $region57: #{tpu_custom_call.1} parent=1 // pred_fallthru
      _
    // Predicated region
    $region58: #{tpu_custom_call.1} parent=1 // pred_check
      _
    $region59: #{tpu_custom_call.1} parent=1 // pred_check_branch
      %81 = sbr.rel (0) target = $region61
    $region60: #{tpu_custom_call.1} parent=1 // pred_region
      _
    $region61: #{tpu_custom_call.1} parent=1 // pred_fallthru
      _
    // Predicated region
    $region62: #{tpu_custom_call.1} parent=1 // pred_check
      _
    $region63: #{tpu_custom_call.1} parent=1 // pred_check_branch
      %83 = sbr.rel (0) target = $region65
    $region64: #{tpu_custom_call.1} parent=1 // pred_region
      _
    $region65: #{tpu_custom_call.1} parent=1 // pred_fallthru
      _
    // Predicated region
    $region66: #{tpu_custom_call.1} parent=1 // pred_check
      _
    $region67: #{tpu_custom_call.1} parent=1 // pred_check_branch
      %85 = sbr.rel (0) target = $region69
    $region68: #{tpu_custom_call.1} parent=1 // pred_region
      _
    $region69: #{tpu_custom_call.1} parent=1 // pred_fallthru
      _
    // Predicated region
    $region70: #{tpu_custom_call.1} parent=1 // pred_check
      _
    $region71: #{tpu_custom_call.1} parent=1 // pred_check_branch
      %87 = sbr.rel (0) target = $region73
    $region72: #{tpu_custom_call.1} parent=1 // pred_region
      _
    $region73: #{tpu_custom_call.1} parent=1 // pred_fallthru
      _
    // Predicated region
    $region74: #{tpu_custom_call.1} parent=1 // pred_check
      _
    $region75: #{tpu_custom_call.1} parent=1 // pred_check_branch
      %89 = sbr.rel (0) target = $region77
    $region76: #{tpu_custom_call.1} parent=1 // pred_region
      _
    $region77: #{tpu_custom_call.1} parent=1 // pred_fallthru
      _
    // Predicated region
    $region78: #{tpu_custom_call.1} parent=1 // pred_check
      _
    $region79: #{tpu_custom_call.1} parent=1 // pred_check_branch
      %91 = sbr.rel (0) target = $region81
    $region80: #{tpu_custom_call.1} parent=1 // pred_region
      _
    $region81: #{tpu_custom_call.1} parent=1 // pred_fallthru
      _
    // Predicated region
    $region82: #{tpu_custom_call.1} parent=1 // pred_check
      _
    $region83: #{tpu_custom_call.1} parent=1 // pred_check_branch
      %93 = sbr.rel (0) target = $region85
    $region84: #{tpu_custom_call.1} parent=1 // pred_region
      _
    $region85: #{tpu_custom_call.1} parent=1 // pred_fallthru
      _
    // Predicated region
    $region86: #{tpu_custom_call.1} parent=1 // pred_check
      _
    $region87: #{tpu_custom_call.1} parent=1 // pred_check_branch
      %95 = sbr.rel (0) target = $region89
    $region88: #{tpu_custom_call.1} parent=1 // pred_region
      _
    $region89: #{tpu_custom_call.1} parent=1 // pred_fallthru
      _
    // Predicated region
    $region90: #{tpu_custom_call.1} parent=1 // pred_check
      _
    $region91: #{tpu_custom_call.1} parent=1 // pred_check_branch
      %97 = sbr.rel (0) target = $region93
    $region92: #{tpu_custom_call.1} parent=1 // pred_region
      _
    $region93: #{tpu_custom_call.1} parent=1 // pred_fallthru
      _
    // Predicated region
    $region94: #{tpu_custom_call.1} parent=1 // pred_check
      _
    $region95: #{tpu_custom_call.1} parent=1 // pred_check_branch
      %99 = sbr.rel (0) target = $region97
    $region96: #{tpu_custom_call.1} parent=1 // pred_region
      _
    $region97: #{tpu_custom_call.1} parent=1 // pred_fallthru
      _
    // Predicated region
    $region98: #{tpu_custom_call.1} parent=1 // pred_check
      _
    $region99: #{tpu_custom_call.1} parent=1 // pred_check_branch
      %101 = sbr.rel (0) target = $region101
    $region100: #{tpu_custom_call.1} parent=1 // pred_region
      %102 = dma.done [#allocation3], 768
    $region101: #{tpu_custom_call.1} parent=1 // pred_fallthru
      _
    // Predicated region
    $region102: #{tpu_custom_call.1} parent=1 // pred_check
      _
    $region103: #{tpu_custom_call.1} parent=1 // pred_check_branch
      %104 = sbr.rel (0) target = $region105
    $region104: #{tpu_custom_call.1} parent=1 // pred_region
      %105 = dma.done [#allocation6], 768
    $region105: #{tpu_custom_call.1} parent=1 // pred_fallthru
      _
    %v106 = vld [vmem:[#allocation2] sm:$0xff]
    %v107 = vld [vmem:[#allocation2 + $0x8] sm:$0xff]
    %v108 = vld [vmem:[#allocation2 + $0x10] sm:$0xff]
    %v109 = vld [vmem:[#allocation2 + $0x18] sm:$0xff]
    %v110 = vld [vmem:[#allocation2 + $0x20] sm:$0xff]
    %v111 = vld [vmem:[#allocation2 + $0x28] sm:$0xff]
    %v112 = vld [vmem:[%s1] sm:$0xff]
    %v113 = vld [vmem:[%s1 + $0x8] sm:$0xff]
    %v114 = vld [vmem:[%s1 + $0x10] sm:$0xff]
    %v115 = vld [vmem:[%s1 + $0x18] sm:$0xff]
    %v116 = vld [vmem:[%s1 + $0x20] sm:$0xff]
    %v117 = vld [vmem:[%s1 + $0x28] sm:$0xff]
    %v118 = vld [vmem:[%s2] sm:$0xff]
    %v119 = vld [vmem:[%s2 + $0x8] sm:$0xff]
    %v120 = vld [vmem:[%s2 + $0x10] sm:$0xff]
    %v121 = vld [vmem:[%s2 + $0x18] sm:$0xff]
    %v122 = vld [vmem:[%s2 + $0x20] sm:$0xff]
    %v123 = vld [vmem:[%s2 + $0x28] sm:$0xff]
    %vm124 = vcmask 392192
    %v126 = vsel %vm124, %v106, 0
    %v129 = vsel %vm124, %v107, 0
    %v132 = vsel %vm124, %v108, 0
    %v135 = vsel %vm124, %v109, 0
    %v138 = vsel %vm124, %v110, 0
    %v141 = vsel %vm124, %v111, 0
    %143 = vmatprep.subr.mxu0 0.0
    %144 = vmatpush1.msra.mxu0 %v112
    %145 = vmatprep.subr.mxu0 0.0
    %146 = vmatpush1.msra.mxu0 %v113
    %147 = vmatprep.subr.mxu0 0.0
    %148 = vmatpush1.msra.mxu0 %v114
    %149 = vmatprep.subr.mxu0 0.0
    %150 = vmatpush1.msra.mxu0 %v115
    %151 = vmatprep.subr.mxu0 0.0
    %152 = vmatpush1.msra.mxu0 %v116
    %153 = vmatprep.subr.mxu0 0.0
    %154 = vmatpush1.msra.mxu0 %v117
    %155 = vmatprep.subr.mxu0 0.0
    %156 = vmatpush1.msra.mxu0 0.0
    %157 = vmatprep.subr.mxu0 0.0
    %158 = vmatpush1.msra.mxu0 0.0
    %159 = vmatprep.subr.mxu0 0.0
    %160 = vmatpush1.msra.mxu0 0.0
    %161 = vmatprep.subr.mxu0 0.0
    %162 = vmatpush1.msra.mxu0 0.0
    %163 = vmatprep.subr.mxu0 0.0
    %164 = vmatpush1.msra.mxu0 0.0
    %165 = vmatprep.subr.mxu0 0.0
    %166 = vmatpush1.msra.mxu0 0.0
    %167 = vmatprep.subr.mxu0 0.0
    %168 = vmatpush1.msra.mxu0 0.0
    %169 = vmatprep.subr.mxu0 0.0
    %170 = vmatpush1.msra.mxu0 0.0
    %171 = vmatprep.subr.mxu0 0.0
    %172 = vmatpush1.msra.mxu0 0.0
    %173 = vmatprep.subr.mxu0 0.0
    %174 = vmatpush1.msra.mxu0 0.0
    %175 = vmatprep.subr.mxu0 0.0
    %176 = vmatpush1.msra.mxu0 0.0
    %177 = vmatprep.subr.mxu0 0.0
    %178 = vmatpush1.msra.mxu0 0.0
    %179 = vmatprep.subr.mxu0 0.0
    %180 = vmatpush1.msra.mxu0 0.0
    %181 = vmatprep.subr.mxu0 0.0
    %182 = vmatpush1.msra.mxu0 0.0
    %183 = vmatprep.subr.mxu0 0.0
    %184 = vmatpush1.msra.mxu0 0.0
    %185 = vmatprep.subr.mxu0 0.0
    %186 = vmatpush1.msra.mxu0 0.0
    %187 = vmatprep.subr.mxu0 0.0
    %188 = vmatpush1.msra.mxu0 0.0
    %189 = vmatprep.subr.mxu0 0.0
    %190 = vmatpush1.msra.mxu0 0.0
    %191 = vmatprep.subr.mxu0 0.0
    %192 = vmatpush1.msra.mxu0 0.0
    %193 = vmatprep.subr.mxu0 0.0
    %194 = vmatpush1.msra.mxu0 0.0
    %195 = vmatprep.subr.mxu0 0.0
    %196 = vmatpush1.msra.mxu0 0.0
    %197 = vmatprep.subr.mxu0 0.0
    %198 = vmatpush1.msra.mxu0 0.0
    %199 = vmatprep.subr.mxu0 0.0
    %200 = vmatpush1.msra.mxu0 0.0
    %201 = vmatprep.subr.mxu0 0.0
    %202 = vmatpush1.msra.mxu0 0.0
    %203 = vmatprep.subr.mxu0 0.0
    %204 = vmatpush1.msra.mxu0 0.0
    %205 = vmatprep.subr.mxu0 0.0
    %206 = vmatpush1.msra.mxu0 0.0
    %207 = vmatprep.mubr.f32.mxu0 0.0
    %208 = vmatmul.mubr.f32.gmra.mrb[0].mxu0 %v126
    %v209 = vpop.f32.mrb[0].mxu0
    %v210 = vadd.f32 %v118, %v209
    %v211 = vpop.f32.mrb[0].mxu0
    %212 = vmatprep.mubr.f32.mxu0 0.0
    %213 = vmatmul.mubr.f32.gmra.mrb[0].mxu0 %v129
    %v214 = vpop.f32.mrb[0].mxu0
    %v215 = vadd.f32 %v119, %v214
    %v216 = vpop.f32.mrb[0].mxu0
    %217 = vmatprep.mubr.f32.mxu0 0.0
    %218 = vmatmul.mubr.f32.gmra.mrb[0].mxu0 %v132
    %v219 = vpop.f32.mrb[0].mxu0
    %v220 = vadd.f32 %v120, %v219
    %v221 = vpop.f32.mrb[0].mxu0
    %222 = vmatprep.mubr.f32.mxu0 0.0
    %223 = vmatmul.mubr.f32.gmra.mrb[0].mxu0 %v135
    %v224 = vpop.f32.mrb[0].mxu0
    %v225 = vadd.f32 %v121, %v224
    %v226 = vpop.f32.mrb[0].mxu0
    %227 = vmatprep.mubr.f32.mxu0 0.0
    %228 = vmatmul.mubr.f32.gmra.mrb[0].mxu0 %v138
    %v229 = vpop.f32.mrb[0].mxu0
    %v230 = vadd.f32 %v122, %v229
    %v231 = vpop.f32.mrb[0].mxu0
    %232 = vmatprep.mubr.f32.mxu0 0.0
    %233 = vmatmul.mubr.f32.gmra.mrb[0].mxu0 %v141
    %v234 = vpop.f32.mrb[0].mxu0
    %v235 = vadd.f32 %v123, %v234
    %v236 = vpop.f32.mrb[0].mxu0
    %237 = vdwg.mxu0
    %v238 = vld [vmem:[#allocation5] sm:$0xff]
    %v239 = vld [vmem:[#allocation5 + $0x8] sm:$0xff]
    %v240 = vld [vmem:[#allocation5 + $0x10] sm:$0xff]
    %v241 = vld [vmem:[#allocation5 + $0x18] sm:$0xff]
    %v242 = vld [vmem:[#allocation5 + $0x20] sm:$0xff]
    %v243 = vld [vmem:[#allocation5 + $0x28] sm:$0xff]
    %v244 = vld [vmem:[%s4] sm:$0x1]
    %v245 = vld [vmem:[%s5] sm:$0x1]
    %vm246 = vcmask 261120
    %v247 = vsel %vm246, %v210, 0.0
    %248 = vadd.xlane.f32.xlu0 %v247
    %v249 = vpop.xlane.xlu0 %248
    %v250 = vsel %vm246, %v215, 0.0
    %251 = vadd.xlane.f32.xlu0 %v250
    %v252 = vpop.xlane.xlu0 %251
    %v253 = vsel %vm246, %v220, 0.0
    %254 = vadd.xlane.f32.xlu0 %v253
    %v255 = vpop.xlane.xlu0 %254
    %v256 = vsel %vm246, %v225, 0.0
    %257 = vadd.xlane.f32.xlu0 %v256
    %v258 = vpop.xlane.xlu0 %257
    %v259 = vsel %vm246, %v230, 0.0
    %260 = vadd.xlane.f32.xlu0 %v259
    %v261 = vpop.xlane.xlu0 %260
    %v262 = vsel %vm246, %v235, 0.0
    %263 = vadd.xlane.f32.xlu0 %v262
    %v264 = vpop.xlane.xlu0 %263
    %v265 = vrcp.pop 32.0
    %v266 = vmul.f32 %v249, %v265
    %v267 = vmul.f32 %v252, %v265
    %v268 = vmul.f32 %v255, %v265
    %v269 = vmul.f32 %v258, %v265
    %v270 = vmul.f32 %v261, %v265
    %v271 = vmul.f32 %v264, %v265
    %v272 = vsub.f32 %v210, %v266
    %v273 = vsub.f32 %v215, %v267
    %v274 = vsub.f32 %v220, %v268
    %v275 = vsub.f32 %v225, %v269
    %v276 = vsub.f32 %v230, %v270
    %v277 = vsub.f32 %v235, %v271
    %v278 = vmul.f32 %v272, %v272
    %v279 = vmul.f32 %v273, %v273
    %v280 = vmul.f32 %v274, %v274
    %v281 = vmul.f32 %v275, %v275
    %v282 = vmul.f32 %v276, %v276
    %v283 = vmul.f32 %v277, %v277
    %v284 = vsel %vm246, %v278, 0.0
    %285 = vadd.xlane.f32.xlu0 %v284
    %v286 = vpop.xlane.xlu0 %285
    %v287 = vsel %vm246, %v279, 0.0
    %288 = vadd.xlane.f32.xlu0 %v287
    %v289 = vpop.xlane.xlu0 %288
    %v290 = vsel %vm246, %v280, 0.0
    %291 = vadd.xlane.f32.xlu0 %v290
    %v292 = vpop.xlane.xlu0 %291
    %v293 = vsel %vm246, %v281, 0.0
    %294 = vadd.xlane.f32.xlu0 %v293
    %v295 = vpop.xlane.xlu0 %294
    %v296 = vsel %vm246, %v282, 0.0
    %297 = vadd.xlane.f32.xlu0 %v296
    %v298 = vpop.xlane.xlu0 %297
    %v299 = vsel %vm246, %v283, 0.0
    %300 = vadd.xlane.f32.xlu0 %v299
    %v301 = vpop.xlane.xlu0 %300
    %v302 = vmul.f32 %v286, %v265
    %v303 = vmul.f32 %v289, %v265
    %v304 = vmul.f32 %v292, %v265
    %v305 = vmul.f32 %v295, %v265
    %v306 = vmul.f32 %v298, %v265
    %v307 = vmul.f32 %v301, %v265
    %v308 = vadd.f32 %v302, 1e-12
    %v309 = vadd.f32 %v303, 1e-12
    %v310 = vadd.f32 %v304, 1e-12
    %v311 = vadd.f32 %v305, 1e-12
    %v312 = vadd.f32 %v306, 1e-12
    %v313 = vadd.f32 %v307, 1e-12
    %v314 = vrsqrt.pop %v308
    %v315 = vrsqrt.pop %v309
    %v316 = vrsqrt.pop %v310
    %v317 = vrsqrt.pop %v311
    %v318 = vrsqrt.pop %v312
    %v319 = vrsqrt.pop %v313
    %v320 = vmul.f32 %v272, %v314
    %v321 = vmul.f32 %v273, %v315
    %v322 = vmul.f32 %v274, %v316
    %v323 = vmul.f32 %v275, %v317
    %v324 = vmul.f32 %v276, %v318
    %v325 = vmul.f32 %v277, %v319
    %v327 = vlaneseq
    %v328 = vshrl.u32 %v327, 7
    %v329 = vsub.s32 0, %v328
    %v330 = vrot.slane %v244, %v329
    %v332 = vmul.f32 %v320, %v330
    %v333 = vmul.f32 %v321, %v330
    %v334 = vmul.f32 %v322, %v330
    %v335 = vmul.f32 %v323, %v330
    %v336 = vmul.f32 %v324, %v330
    %v337 = vmul.f32 %v325, %v330
    %v339 = vlaneseq
    %v340 = vshrl.u32 %v339, 7
    %v341 = vsub.s32 0, %v340
    %v342 = vrot.slane %v245, %v341
    %v344 = vadd.f32 %v332, %v342
    %v345 = vadd.f32 %v333, %v342
    %v346 = vadd.f32 %v334, %v342
    %v347 = vadd.f32 %v335, %v342
    %v348 = vadd.f32 %v336, %v342
    %v349 = vadd.f32 %v337, %v342
    %v350 = vld [vmem:[%s6] sm:$0xff]
    %v351 = vld [vmem:[%s6 + $0x8] sm:$0xff]
    %v352 = vld [vmem:[%s6 + $0x10] sm:$0xff]
    %v353 = vld [vmem:[%s6 + $0x18] sm:$0xff]
    %v354 = vld [vmem:[%s7] sm:$0x1]
    %v356 = vlaneseq
    %v357 = vshrl.u32 %v356, 7
    %v358 = vsub.s32 0, %v357
    %v359 = vrot.slane %v354, %v358
    %v362 = vsel %vm246, %v344, 0
    %v365 = vsel %vm246, %v345, 0
    %v368 = vsel %vm246, %v346, 0
    %v371 = vsel %vm246, %v347, 0
    %v374 = vsel %vm246, %v348, 0
    %v377 = vsel %vm246, %v349, 0
    %379 = vmatprep.subr.mxu0 0.0
    %380 = vmatpush1.msra.mxu0 %v350
    %381 = vmatprep.subr.mxu0 0.0
    %382 = vmatpush1.msra.mxu0 %v351
    %383 = vmatprep.subr.mxu0 0.0
    %384 = vmatpush1.msra.mxu0 %v352
    %385 = vmatprep.subr.mxu0 0.0
    %386 = vmatpush1.msra.mxu0 %v353
    %387 = vmatprep.subr.mxu0 0.0
    %388 = vmatpush1.msra.mxu0 0.0
    %389 = vmatprep.subr.mxu0 0.0
    %390 = vmatpush1.msra.mxu0 0.0
    %391 = vmatprep.subr.mxu0 0.0
    %392 = vmatpush1.msra.mxu0 0.0
    %393 = vmatprep.subr.mxu0 0.0
    %394 = vmatpush1.msra.mxu0 0.0
    %395 = vmatprep.subr.mxu0 0.0
    %396 = vmatpush1.msra.mxu0 0.0
    %397 = vmatprep.subr.mxu0 0.0
    %398 = vmatpush1.msra.mxu0 0.0
    %399 = vmatprep.subr.mxu0 0.0
    %400 = vmatpush1.msra.mxu0 0.0
    %401 = vmatprep.subr.mxu0 0.0
    %402 = vmatpush1.msra.mxu0 0.0
    %403 = vmatprep.subr.mxu0 0.0
    %404 = vmatpush1.msra.mxu0 0.0
    %405 = vmatprep.subr.mxu0 0.0
    %406 = vmatpush1.msra.mxu0 0.0
    %407 = vmatprep.subr.mxu0 0.0
    %408 = vmatpush1.msra.mxu0 0.0
    %409 = vmatprep.subr.mxu0 0.0
    %410 = vmatpush1.msra.mxu0 0.0
    %411 = vmatprep.subr.mxu0 0.0
    %412 = vmatpush1.msra.mxu0 0.0
    %413 = vmatprep.subr.mxu0 0.0
    %414 = vmatpush1.msra.mxu0 0.0
    %415 = vmatprep.subr.mxu0 0.0
    %416 = vmatpush1.msra.mxu0 0.0
    %417 = vmatprep.subr.mxu0 0.0
    %418 = vmatpush1.msra.mxu0 0.0
    %419 = vmatprep.subr.mxu0 0.0
    %420 = vmatpush1.msra.mxu0 0.0
    %421 = vmatprep.subr.mxu0 0.0
    %422 = vmatpush1.msra.mxu0 0.0
    %423 = vmatprep.subr.mxu0 0.0
    %424 = vmatpush1.msra.mxu0 0.0
    %425 = vmatprep.subr.mxu0 0.0
    %426 = vmatpush1.msra.mxu0 0.0
    %427 = vmatprep.subr.mxu0 0.0
    %428 = vmatpush1.msra.mxu0 0.0
    %429 = vmatprep.subr.mxu0 0.0
    %430 = vmatpush1.msra.mxu0 0.0
    %431 = vmatprep.subr.mxu0 0.0
    %432 = vmatpush1.msra.mxu0 0.0
    %433 = vmatprep.subr.mxu0 0.0
    %434 = vmatpush1.msra.mxu0 0.0
    %435 = vmatprep.subr.mxu0 0.0
    %436 = vmatpush1.msra.mxu0 0.0
    %437 = vmatprep.subr.mxu0 0.0
    %438 = vmatpush1.msra.mxu0 0.0
    %439 = vmatprep.subr.mxu0 0.0
    %440 = vmatpush1.msra.mxu0 0.0
    %441 = vmatprep.subr.mxu0 0.0
    %442 = vmatpush1.msra.mxu0 0.0
    %443 = vmatprep.mubr.f32.mxu0 0.0
    %444 = vmatmul.mubr.f32.gmra.mrb[0].mxu0 %v362
    %v445 = vpop.f32.mrb[0].mxu0
    %v446 = vadd.f32 %v359, %v445
    %v447 = vpop.f32.mrb[0].mxu0
    %448 = vmatprep.mubr.f32.mxu0 0.0
    %449 = vmatmul.mubr.f32.gmra.mrb[0].mxu0 %v365
    %v450 = vpop.f32.mrb[0].mxu0
    %v451 = vadd.f32 %v359, %v450
    %v452 = vpop.f32.mrb[0].mxu0
    %453 = vmatprep.mubr.f32.mxu0 0.0
    %454 = vmatmul.mubr.f32.gmra.mrb[0].mxu0 %v368
    %v455 = vpop.f32.mrb[0].mxu0
    %v456 = vadd.f32 %v359, %v455
    %v457 = vpop.f32.mrb[0].mxu0
    %458 = vmatprep.mubr.f32.mxu0 0.0
    %459 = vmatmul.mubr.f32.gmra.mrb[0].mxu0 %v371
    %v460 = vpop.f32.mrb[0].mxu0
    %v461 = vadd.f32 %v359, %v460
    %v462 = vpop.f32.mrb[0].mxu0
    %463 = vmatprep.mubr.f32.mxu0 0.0
    %464 = vmatmul.mubr.f32.gmra.mrb[0].mxu0 %v374
    %v465 = vpop.f32.mrb[0].mxu0
    %v466 = vadd.f32 %v359, %v465
    %v467 = vpop.f32.mrb[0].mxu0
    %468 = vmatprep.mubr.f32.mxu0 0.0
    %469 = vmatmul.mubr.f32.gmra.mrb[0].mxu0 %v377
    %v470 = vpop.f32.mrb[0].mxu0
    %v471 = vadd.f32 %v359, %v470
    %v472 = vpop.f32.mrb[0].mxu0
    %473 = vdwg.mxu0
    %v474 = vmul.f32 %v446, 0.35355338
    %v475 = vmul.f32 %v451, 0.35355338
    %v476 = vmul.f32 %v456, 0.35355338
    %v477 = vmul.f32 %v461, 0.35355338
    %v478 = vmul.f32 %v466, 0.35355338
    %v479 = vmul.f32 %v471, 0.35355338
    %v480 = vld [vmem:[%s8] sm:$0xff]
    %v481 = vld [vmem:[%s8 + $0x8] sm:$0xff]
    %v482 = vld [vmem:[%s8 + $0x10] sm:$0xff]
    %v483 = vld [vmem:[%s8 + $0x18] sm:$0xff]
    %v484 = vld [vmem:[%s9] sm:$0x1]
    %v486 = vlaneseq
    %v487 = vshrl.u32 %v486, 7
    %v488 = vsub.s32 0, %v487
    %v489 = vrot.slane %v484, %v488
    %491 = vmatprep.subr.mxu0 0.0
    %492 = vmatpush1.msra.mxu0 %v480
    %493 = vmatprep.subr.mxu0 0.0
    %494 = vmatpush1.msra.mxu0 %v481
    %495 = vmatprep.subr.mxu0 0.0
    %496 = vmatpush1.msra.mxu0 %v482
    %497 = vmatprep.subr.mxu0 0.0
    %498 = vmatpush1.msra.mxu0 %v483
    %499 = vmatprep.subr.mxu0 0.0
    %500 = vmatpush1.msra.mxu0 0.0
    %501 = vmatprep.subr.mxu0 0.0
    %502 = vmatpush1.msra.mxu0 0.0
    %503 = vmatprep.subr.mxu0 0.0
    %504 = vmatpush1.msra.mxu0 0.0
    %505 = vmatprep.subr.mxu0 0.0
    %506 = vmatpush1.msra.mxu0 0.0
    %507 = vmatprep.subr.mxu0 0.0
    %508 = vmatpush1.msra.mxu0 0.0
    %509 = vmatprep.subr.mxu0 0.0
    %510 = vmatpush1.msra.mxu0 0.0
    %511 = vmatprep.subr.mxu0 0.0
    %512 = vmatpush1.msra.mxu0 0.0
    %513 = vmatprep.subr.mxu0 0.0
    %514 = vmatpush1.msra.mxu0 0.0
    %515 = vmatprep.subr.mxu0 0.0
    %516 = vmatpush1.msra.mxu0 0.0
    %517 = vmatprep.subr.mxu0 0.0
    %518 = vmatpush1.msra.mxu0 0.0
    %519 = vmatprep.subr.mxu0 0.0
    %520 = vmatpush1.msra.mxu0 0.0
    %521 = vmatprep.subr.mxu0 0.0
    %522 = vmatpush1.msra.mxu0 0.0
    %523 = vmatprep.subr.mxu0 0.0
    %524 = vmatpush1.msra.mxu0 0.0
    %525 = vmatprep.subr.mxu0 0.0
    %526 = vmatpush1.msra.mxu0 0.0
    %527 = vmatprep.subr.mxu0 0.0
    %528 = vmatpush1.msra.mxu0 0.0
    %529 = vmatprep.subr.mxu0 0.0
    %530 = vmatpush1.msra.mxu0 0.0
    %531 = vmatprep.subr.mxu0 0.0
    %532 = vmatpush1.msra.mxu0 0.0
    %533 = vmatprep.subr.mxu0 0.0
    %534 = vmatpush1.msra.mxu0 0.0
    %535 = vmatprep.subr.mxu0 0.0
    %536 = vmatpush1.msra.mxu0 0.0
    %537 = vmatprep.subr.mxu0 0.0
    %538 = vmatpush1.msra.mxu0 0.0
    %539 = vmatprep.subr.mxu0 0.0
    %540 = vmatpush1.msra.mxu0 0.0
    %541 = vmatprep.subr.mxu0 0.0
    %542 = vmatpush1.msra.mxu0 0.0
    %543 = vmatprep.subr.mxu0 0.0
    %544 = vmatpush1.msra.mxu0 0.0
    %545 = vmatprep.subr.mxu0 0.0
    %546 = vmatpush1.msra.mxu0 0.0
    %547 = vmatprep.subr.mxu0 0.0
    %548 = vmatpush1.msra.mxu0 0.0
    %549 = vmatprep.subr.mxu0 0.0
    %550 = vmatpush1.msra.mxu0 0.0
    %551 = vmatprep.subr.mxu0 0.0
    %552 = vmatpush1.msra.mxu0 0.0
    %553 = vmatprep.subr.mxu0 0.0
    %554 = vmatpush1.msra.mxu0 0.0
    %555 = vmatprep.mubr.f32.mxu0 0.0
    %556 = vmatmul.mubr.f32.gmra.mrb[0].mxu0 %v362
    %v557 = vpop.f32.mrb[0].mxu0
    %v558 = vadd.f32 %v489, %v557
    %v559 = vpop.f32.mrb[0].mxu0
    %560 = vmatprep.mubr.f32.mxu0 0.0
    %561 = vmatmul.mubr.f32.gmra.mrb[0].mxu0 %v365
    %v562 = vpop.f32.mrb[0].mxu0
    %v563 = vadd.f32 %v489, %v562
    %v564 = vpop.f32.mrb[0].mxu0
    %565 = vmatprep.mubr.f32.mxu0 0.0
    %566 = vmatmul.mubr.f32.gmra.mrb[0].mxu0 %v368
    %v567 = vpop.f32.mrb[0].mxu0
    %v568 = vadd.f32 %v489, %v567
    %v569 = vpop.f32.mrb[0].mxu0
    %570 = vmatprep.mubr.f32.mxu0 0.0
    %571 = vmatmul.mubr.f32.gmra.mrb[0].mxu0 %v371
    %v572 = vpop.f32.mrb[0].mxu0
    %v573 = vadd.f32 %v489, %v572
    %v574 = vpop.f32.mrb[0].mxu0
    %575 = vmatprep.mubr.f32.mxu0 0.0
    %576 = vmatmul.mubr.f32.gmra.mrb[0].mxu0 %v374
    %v577 = vpop.f32.mrb[0].mxu0
    %v578 = vadd.f32 %v489, %v577
    %v579 = vpop.f32.mrb[0].mxu0
    %580 = vmatprep.mubr.f32.mxu0 0.0
    %581 = vmatmul.mubr.f32.gmra.mrb[0].mxu0 %v377
    %v582 = vpop.f32.mrb[0].mxu0
    %v583 = vadd.f32 %v489, %v582
    %v584 = vpop.f32.mrb[0].mxu0
    %585 = vdwg.mxu0
    %v586 = vld [vmem:[%s10] sm:$0xff]
    %v587 = vld [vmem:[%s10 + $0x8] sm:$0xff]
    %v588 = vld [vmem:[%s10 + $0x10] sm:$0xff]
    %v589 = vld [vmem:[%s10 + $0x18] sm:$0xff]
    %v590 = vld [vmem:[%s11] sm:$0x1]
    %v592 = vlaneseq
    %v593 = vshrl.u32 %v592, 7
    %v594 = vsub.s32 0, %v593
    %v595 = vrot.slane %v590, %v594
    %597 = vmatprep.subr.mxu0 0.0
    %598 = vmatpush1.msra.mxu0 %v586
    %599 = vmatprep.subr.mxu0 0.0
    %600 = vmatpush1.msra.mxu0 %v587
    %601 = vmatprep.subr.mxu0 0.0
    %602 = vmatpush1.msra.mxu0 %v588
    %603 = vmatprep.subr.mxu0 0.0
    %604 = vmatpush1.msra.mxu0 %v589
    %605 = vmatprep.subr.mxu0 0.0
    %606 = vmatpush1.msra.mxu0 0.0
    %607 = vmatprep.subr.mxu0 0.0
    %608 = vmatpush1.msra.mxu0 0.0
    %609 = vmatprep.subr.mxu0 0.0
    %610 = vmatpush1.msra.mxu0 0.0
    %611 = vmatprep.subr.mxu0 0.0
    %612 = vmatpush1.msra.mxu0 0.0
    %613 = vmatprep.subr.mxu0 0.0
    %614 = vmatpush1.msra.mxu0 0.0
    %615 = vmatprep.subr.mxu0 0.0
    %616 = vmatpush1.msra.mxu0 0.0
    %617 = vmatprep.subr.mxu0 0.0
    %618 = vmatpush1.msra.mxu0 0.0
    %619 = vmatprep.subr.mxu0 0.0
    %620 = vmatpush1.msra.mxu0 0.0
    %621 = vmatprep.subr.mxu0 0.0
    %622 = vmatpush1.msra.mxu0 0.0
    %623 = vmatprep.subr.mxu0 0.0
    %624 = vmatpush1.msra.mxu0 0.0
    %625 = vmatprep.subr.mxu0 0.0
    %626 = vmatpush1.msra.mxu0 0.0
    %627 = vmatprep.subr.mxu0 0.0
    %628 = vmatpush1.msra.mxu0 0.0
    %629 = vmatprep.subr.mxu0 0.0
    %630 = vmatpush1.msra.mxu0 0.0
    %631 = vmatprep.subr.mxu0 0.0
    %632 = vmatpush1.msra.mxu0 0.0
    %633 = vmatprep.subr.mxu0 0.0
    %634 = vmatpush1.msra.mxu0 0.0
    %635 = vmatprep.subr.mxu0 0.0
    %636 = vmatpush1.msra.mxu0 0.0
    %637 = vmatprep.subr.mxu0 0.0
    %638 = vmatpush1.msra.mxu0 0.0
    %639 = vmatprep.subr.mxu0 0.0
    %640 = vmatpush1.msra.mxu0 0.0
    %641 = vmatprep.subr.mxu0 0.0
    %642 = vmatpush1.msra.mxu0 0.0
    %643 = vmatprep.subr.mxu0 0.0
    %644 = vmatpush1.msra.mxu0 0.0
    %645 = vmatprep.subr.mxu0 0.0
    %646 = vmatpush1.msra.mxu0 0.0
    %647 = vmatprep.subr.mxu0 0.0
    %648 = vmatpush1.msra.mxu0 0.0
    %649 = vmatprep.subr.mxu0 0.0
    %650 = vmatpush1.msra.mxu0 0.0
    %651 = vmatprep.subr.mxu0 0.0
    %652 = vmatpush1.msra.mxu0 0.0
    %653 = vmatprep.subr.mxu0 0.0
    %654 = vmatpush1.msra.mxu0 0.0
    %655 = vmatprep.subr.mxu0 0.0
    %656 = vmatpush1.msra.mxu0 0.0
    %657 = vmatprep.subr.mxu0 0.0
    %658 = vmatpush1.msra.mxu0 0.0
    %659 = vmatprep.subr.mxu0 0.0
    %660 = vmatpush1.msra.mxu0 0.0
    %661 = vmatprep.mubr.f32.mxu0 0.0
    %662 = vmatmul.mubr.f32.gmra.mrb[0].mxu0 %v362
    %v663 = vpop.f32.mrb[0].mxu0
    %v664 = vadd.f32 %v595, %v663
    %v665 = vpop.f32.mrb[0].mxu0
    %666 = vmatprep.mubr.f32.mxu0 0.0
    %667 = vmatmul.mubr.f32.gmra.mrb[0].mxu0 %v365
    %v668 = vpop.f32.mrb[0].mxu0
    %v669 = vadd.f32 %v595, %v668
    %v670 = vpop.f32.mrb[0].mxu0
    %671 = vmatprep.mubr.f32.mxu0 0.0
    %672 = vmatmul.mubr.f32.gmra.mrb[0].mxu0 %v368
    %v673 = vpop.f32.mrb[0].mxu0
    %v674 = vadd.f32 %v595, %v673
    %v675 = vpop.f32.mrb[0].mxu0
    %676 = vmatprep.mubr.f32.mxu0 0.0
    %677 = vmatmul.mubr.f32.gmra.mrb[0].mxu0 %v371
    %v678 = vpop.f32.mrb[0].mxu0
    %v679 = vadd.f32 %v595, %v678
    %v680 = vpop.f32.mrb[0].mxu0
    %681 = vmatprep.mubr.f32.mxu0 0.0
    %682 = vmatmul.mubr.f32.gmra.mrb[0].mxu0 %v374
    %v683 = vpop.f32.mrb[0].mxu0
    %v684 = vadd.f32 %v595, %v683
    %v685 = vpop.f32.mrb[0].mxu0
    %686 = vmatprep.mubr.f32.mxu0 0.0
    %687 = vmatmul.mubr.f32.gmra.mrb[0].mxu0 %v377
    %v688 = vpop.f32.mrb[0].mxu0
    %v689 = vadd.f32 %v595, %v688
    %v690 = vpop.f32.mrb[0].mxu0
    %691 = vdwg.mxu0
    %v692 = vld [vmem:[%s12] sm:$0xff]
    %v693 = vld [vmem:[%s12 + $0x8] sm:$0xff]
    %v694 = vld [vmem:[%s12 + $0x10] sm:$0xff]
    %v695 = vld [vmem:[%s12 + $0x18] sm:$0xff]
    %vm696 = vcmask 64512
    %v698 = vsel %vm696, %v474, 0
    %v701 = vsel %vm696, %v475, 0
    %v704 = vsel %vm696, %v476, 0
    %v707 = vsel %vm696, %v477, 0
    %v710 = vsel %vm696, %v478, 0
    %v713 = vsel %vm696, %v479, 0
    %v716 = vsel %vm696, %v558, 0
    %v719 = vsel %vm696, %v563, 0
    %v722 = vsel %vm696, %v568, 0
    %v725 = vsel %vm696, %v573, 0
    %v728 = vsel %vm696, %v578, 0
    %v731 = vsel %vm696, %v583, 0
    %733 = vmatprep.subr.mxu0 0.0
    %734 = vmatpush1.xpose.msra.mxu0 %v716
    %735 = vmatprep.subr.mxu0 0.0
    %736 = vmatpush1.xpose.msra.mxu0 %v719
    %737 = vmatprep.subr.mxu0 0.0
    %738 = vmatpush1.xpose.msra.mxu0 %v722
    %739 = vmatprep.subr.mxu0 0.0
    %740 = vmatpush1.xpose.msra.mxu0 %v725
    %741 = vmatprep.subr.mxu0 0.0
    %742 = vmatpush1.xpose.msra.mxu0 %v728
    %743 = vmatprep.subr.mxu0 0.0
    %744 = vmatpush1.xpose.msra.mxu0 %v731
    %745 = vmatprep.subr.mxu0 0.0
    %746 = vmatpush1.xpose.msra.mxu0 0.0
    %747 = vmatprep.subr.mxu0 0.0
    %748 = vmatpush1.xpose.msra.mxu0 0.0
    %749 = vmatprep.subr.mxu0 0.0
    %750 = vmatpush1.xpose.msra.mxu0 0.0
    %751 = vmatprep.subr.mxu0 0.0
    %752 = vmatpush1.xpose.msra.mxu0 0.0
    %753 = vmatprep.subr.mxu0 0.0
    %754 = vmatpush1.xpose.msra.mxu0 0.0
    %755 = vmatprep.subr.mxu0 0.0
    %756 = vmatpush1.xpose.msra.mxu0 0.0
    %757 = vmatprep.subr.mxu0 0.0
    %758 = vmatpush1.xpose.msra.mxu0 0.0
    %759 = vmatprep.subr.mxu0 0.0
    %760 = vmatpush1.xpose.msra.mxu0 0.0
    %761 = vmatprep.subr.mxu0 0.0
    %762 = vmatpush1.xpose.msra.mxu0 0.0
    %763 = vmatprep.subr.mxu0 0.0
    %764 = vmatpush1.xpose.msra.mxu0 0.0
    %765 = vmatprep.subr.mxu0 0.0
    %766 = vmatpush1.xpose.msra.mxu0 0.0
    %767 = vmatprep.subr.mxu0 0.0
    %768 = vmatpush1.xpose.msra.mxu0 0.0
    %769 = vmatprep.subr.mxu0 0.0
    %770 = vmatpush1.xpose.msra.mxu0 0.0
    %771 = vmatprep.subr.mxu0 0.0
    %772 = vmatpush1.xpose.msra.mxu0 0.0
    %773 = vmatprep.subr.mxu0 0.0
    %774 = vmatpush1.xpose.msra.mxu0 0.0
    %775 = vmatprep.subr.mxu0 0.0
    %776 = vmatpush1.xpose.msra.mxu0 0.0
    %777 = vmatprep.subr.mxu0 0.0
    %778 = vmatpush1.xpose.msra.mxu0 0.0
    %779 = vmatprep.subr.mxu0 0.0
    %780 = vmatpush1.xpose.msra.mxu0 0.0
    %781 = vmatprep.subr.mxu0 0.0
    %782 = vmatpush1.xpose.msra.mxu0 0.0
    %783 = vmatprep.subr.mxu0 0.0
    %784 = vmatpush1.xpose.msra.mxu0 0.0
    %785 = vmatprep.subr.mxu0 0.0
    %786 = vmatpush1.xpose.msra.mxu0 0.0
    %787 = vmatprep.subr.mxu0 0.0
    %788 = vmatpush1.xpose.msra.mxu0 0.0
    %789 = vmatprep.subr.mxu0 0.0
    %790 = vmatpush1.xpose.msra.mxu0 0.0
    %791 = vmatprep.subr.mxu0 0.0
    %792 = vmatpush1.xpose.msra.mxu0 0.0
    %793 = vmatprep.subr.mxu0 0.0
    %794 = vmatpush1.xpose.msra.mxu0 0.0
    %795 = vmatprep.subr.mxu0 0.0
    %796 = vmatpush1.xpose.msra.mxu0 0.0
    %797 = vmatprep.mubr.f32.mxu0 0.0
    %798 = vmatmul.mubr.f32.gmra.mrb[0].mxu0 %v698
    %v799 = vpop.f32.mrb[0].mxu0
    %v800 = vadd.f32 %v238, %v799
    %v801 = vpop.f32.mrb[0].mxu0
    %802 = vmatprep.mubr.f32.mxu0 0.0
    %803 = vmatmul.mubr.f32.gmra.mrb[0].mxu0 %v701
    %v804 = vpop.f32.mrb[0].mxu0
    %v805 = vadd.f32 %v239, %v804
    %v806 = vpop.f32.mrb[0].mxu0
    %807 = vmatprep.mubr.f32.mxu0 0.0
    %808 = vmatmul.mubr.f32.gmra.mrb[0].mxu0 %v704
    %v809 = vpop.f32.mrb[0].mxu0
    %v810 = vadd.f32 %v240, %v809
    %v811 = vpop.f32.mrb[0].mxu0
    %812 = vmatprep.mubr.f32.mxu0 0.0
    %813 = vmatmul.mubr.f32.gmra.mrb[0].mxu0 %v707
    %v814 = vpop.f32.mrb[0].mxu0
    %v815 = vadd.f32 %v241, %v814
    %v816 = vpop.f32.mrb[0].mxu0
    %817 = vmatprep.mubr.f32.mxu0 0.0
    %818 = vmatmul.mubr.f32.gmra.mrb[0].mxu0 %v710
    %v819 = vpop.f32.mrb[0].mxu0
    %v820 = vadd.f32 %v242, %v819
    %v821 = vpop.f32.mrb[0].mxu0
    %822 = vmatprep.mubr.f32.mxu0 0.0
    %823 = vmatmul.mubr.f32.gmra.mrb[0].mxu0 %v713
    %v824 = vpop.f32.mrb[0].mxu0
    %v825 = vadd.f32 %v243, %v824
    %v826 = vpop.f32.mrb[0].mxu0
    %827 = vdwg.mxu0
    %v828 = vsel %vm124, %v800, -inf
    %829 = vmax.xlane.f32.xlu0 %v828
    %v830 = vpop.xlane.xlu0 %829
    %v831 = vsel %vm124, %v805, -inf
    %832 = vmax.xlane.f32.xlu0 %v831
    %v833 = vpop.xlane.xlu0 %832
    %v834 = vsel %vm124, %v810, -inf
    %835 = vmax.xlane.f32.xlu0 %v834
    %v836 = vpop.xlane.xlu0 %835
    %v837 = vsel %vm124, %v815, -inf
    %838 = vmax.xlane.f32.xlu0 %v837
    %v839 = vpop.xlane.xlu0 %838
    %v840 = vsel %vm124, %v820, -inf
    %841 = vmax.xlane.f32.xlu0 %v840
    %v842 = vpop.xlane.xlu0 %841
    %v843 = vsel %vm124, %v825, -inf
    %844 = vmax.xlane.f32.xlu0 %v843
    %v845 = vpop.xlane.xlu0 %844
    %v846 = vsub.f32 %v800, %v830
    %v847 = vsub.f32 %v805, %v833
    %v848 = vsub.f32 %v810, %v836
    %v849 = vsub.f32 %v815, %v839
    %v850 = vsub.f32 %v820, %v842
    %v851 = vsub.f32 %v825, %v845
    %v852 = vmul.f32 %v846, 1.442695
    %v853 = vpow.pop %v852
    %v854 = vmul.f32 %v847, 1.442695
    %v855 = vpow.pop %v854
    %v856 = vmul.f32 %v848, 1.442695
    %v857 = vpow.pop %v856
    %v858 = vmul.f32 %v849, 1.442695
    %v859 = vpow.pop %v858
    %v860 = vmul.f32 %v850, 1.442695
    %v861 = vpow.pop %v860
    %v862 = vmul.f32 %v851, 1.442695
    %v863 = vpow.pop %v862
    %v864 = vsel %vm124, %v853, 0.0
    %865 = vadd.xlane.f32.xlu0 %v864
    %v866 = vpop.xlane.xlu0 %865
    %v867 = vsel %vm124, %v855, 0.0
    %868 = vadd.xlane.f32.xlu0 %v867
    %v869 = vpop.xlane.xlu0 %868
    %v870 = vsel %vm124, %v857, 0.0
    %871 = vadd.xlane.f32.xlu0 %v870
    %v872 = vpop.xlane.xlu0 %871
    %v873 = vsel %vm124, %v859, 0.0
    %874 = vadd.xlane.f32.xlu0 %v873
    %v875 = vpop.xlane.xlu0 %874
    %v876 = vsel %vm124, %v861, 0.0
    %877 = vadd.xlane.f32.xlu0 %v876
    %v878 = vpop.xlane.xlu0 %877
    %v879 = vsel %vm124, %v863, 0.0
    %880 = vadd.xlane.f32.xlu0 %v879
    %v881 = vpop.xlane.xlu0 %880
    %v882 = vrcp.pop %v866
    %v883 = vrcp.pop %v869
    %v884 = vrcp.pop %v872
    %v885 = vrcp.pop %v875
    %v886 = vrcp.pop %v878
    %v887 = vrcp.pop %v881
    %v888 = vmul.f32 %v853, %v882
    %v889 = vmul.f32 %v855, %v883
    %v890 = vmul.f32 %v857, %v884
    %v891 = vmul.f32 %v859, %v885
    %v892 = vmul.f32 %v861, %v886
    %v893 = vmul.f32 %v863, %v887
    %v895 = vsel %vm124, %v888, 0
    %v898 = vsel %vm124, %v889, 0
    %v901 = vsel %vm124, %v890, 0
    %v904 = vsel %vm124, %v891, 0
    %v907 = vsel %vm124, %v892, 0
    %v910 = vsel %vm124, %v893, 0
    %912 = vmatprep.subr.mxu0 0.0
    %913 = vmatpush1.msra.mxu0 %v664
    %914 = vmatprep.subr.mxu0 0.0
    %915 = vmatpush1.msra.mxu0 %v669
    %916 = vmatprep.subr.mxu0 0.0
    %917 = vmatpush1.msra.mxu0 %v674
    %918 = vmatprep.subr.mxu0 0.0
    %919 = vmatpush1.msra.mxu0 %v679
    %920 = vmatprep.subr.mxu0 0.0
    %921 = vmatpush1.msra.mxu0 %v684
    %922 = vmatprep.subr.mxu0 0.0
    %923 = vmatpush1.msra.mxu0 %v689
    %924 = vmatprep.subr.mxu0 0.0
    %925 = vmatpush1.msra.mxu0 0.0
    %926 = vmatprep.subr.mxu0 0.0
    %927 = vmatpush1.msra.mxu0 0.0
    %928 = vmatprep.subr.mxu0 0.0
    %929 = vmatpush1.msra.mxu0 0.0
    %930 = vmatprep.subr.mxu0 0.0
    %931 = vmatpush1.msra.mxu0 0.0
    %932 = vmatprep.subr.mxu0 0.0
    %933 = vmatpush1.msra.mxu0 0.0
    %934 = vmatprep.subr.mxu0 0.0
    %935 = vmatpush1.msra.mxu0 0.0
    %936 = vmatprep.subr.mxu0 0.0
    %937 = vmatpush1.msra.mxu0 0.0
    %938 = vmatprep.subr.mxu0 0.0
    %939 = vmatpush1.msra.mxu0 0.0
    %940 = vmatprep.subr.mxu0 0.0
    %941 = vmatpush1.msra.mxu0 0.0
    %942 = vmatprep.subr.mxu0 0.0
    %943 = vmatpush1.msra.mxu0 0.0
    %944 = vmatprep.subr.mxu0 0.0
    %945 = vmatpush1.msra.mxu0 0.0
    %946 = vmatprep.subr.mxu0 0.0
    %947 = vmatpush1.msra.mxu0 0.0
    %948 = vmatprep.subr.mxu0 0.0
    %949 = vmatpush1.msra.mxu0 0.0
    %950 = vmatprep.subr.mxu0 0.0
    %951 = vmatpush1.msra.mxu0 0.0
    %952 = vmatprep.subr.mxu0 0.0
    %953 = vmatpush1.msra.mxu0 0.0
    %954 = vmatprep.subr.mxu0 0.0
    %955 = vmatpush1.msra.mxu0 0.0
    %956 = vmatprep.subr.mxu0 0.0
    %957 = vmatpush1.msra.mxu0 0.0
    %958 = vmatprep.subr.mxu0 0.0
    %959 = vmatpush1.msra.mxu0 0.0
    %960 = vmatprep.subr.mxu0 0.0
    %961 = vmatpush1.msra.mxu0 0.0
    %962 = vmatprep.subr.mxu0 0.0
    %963 = vmatpush1.msra.mxu0 0.0
    %964 = vmatprep.subr.mxu0 0.0
    %965 = vmatpush1.msra.mxu0 0.0
    %966 = vmatprep.subr.mxu0 0.0
    %967 = vmatpush1.msra.mxu0 0.0
    %968 = vmatprep.subr.mxu0 0.0
    %969 = vmatpush1.msra.mxu0 0.0
    %970 = vmatprep.subr.mxu0 0.0
    %971 = vmatpush1.msra.mxu0 0.0
    %972 = vmatprep.subr.mxu0 0.0
    %973 = vmatpush1.msra.mxu0 0.0
    %974 = vmatprep.subr.mxu0 0.0
    %975 = vmatpush1.msra.mxu0 0.0
    %976 = vmatprep.mubr.f32.mxu0 0.0
    %977 = vmatmul.mubr.f32.gmra.mrb[0].mxu0 %v895
    %v978 = vpop.f32.mrb[0].mxu0
    %v979 = vadd.f32 0.0, %v978
    %v980 = vpop.f32.mrb[0].mxu0
    %981 = vmatprep.mubr.f32.mxu0 0.0
    %982 = vmatmul.mubr.f32.gmra.mrb[0].mxu0 %v898
    %v983 = vpop.f32.mrb[0].mxu0
    %v984 = vadd.f32 0.0, %v983
    %v985 = vpop.f32.mrb[0].mxu0
    %986 = vmatprep.mubr.f32.mxu0 0.0
    %987 = vmatmul.mubr.f32.gmra.mrb[0].mxu0 %v901
    %v988 = vpop.f32.mrb[0].mxu0
    %v989 = vadd.f32 0.0, %v988
    %v990 = vpop.f32.mrb[0].mxu0
    %991 = vmatprep.mubr.f32.mxu0 0.0
    %992 = vmatmul.mubr.f32.gmra.mrb[0].mxu0 %v904
    %v993 = vpop.f32.mrb[0].mxu0
    %v994 = vadd.f32 0.0, %v993
    %v995 = vpop.f32.mrb[0].mxu0
    %996 = vmatprep.mubr.f32.mxu0 0.0
    %997 = vmatmul.mubr.f32.gmra.mrb[0].mxu0 %v907
    %v998 = vpop.f32.mrb[0].mxu0
    %v999 = vadd.f32 0.0, %v998
    %v1000 = vpop.f32.mrb[0].mxu0
    %1001 = vmatprep.mubr.f32.mxu0 0.0
    %1002 = vmatmul.mubr.f32.gmra.mrb[0].mxu0 %v910
    %v1003 = vpop.f32.mrb[0].mxu0
    %v1004 = vadd.f32 0.0, %v1003
    %v1005 = vpop.f32.mrb[0].mxu0
    %1006 = vdwg.mxu0
    %1007 = vrot.lane.b32.xlu0 %v474, 120
    %v1008 = vpop.permute.xlu0 %1007
    %1009 = vrot.lane.b32.xlu0 %v475, 120
    %v1010 = vpop.permute.xlu0 %1009
    %1011 = vrot.lane.b32.xlu0 %v476, 120
    %v1012 = vpop.permute.xlu0 %1011
    %1013 = vrot.lane.b32.xlu0 %v477, 120
    %v1014 = vpop.permute.xlu0 %1013
    %1015 = vrot.lane.b32.xlu0 %v478, 120
    %v1016 = vpop.permute.xlu0 %1015
    %1017 = vrot.lane.b32.xlu0 %v479, 120
    %v1018 = vpop.permute.xlu0 %1017
    %1019 = vrot.lane.b32.xlu0 %v558, 120
    %v1020 = vpop.permute.xlu0 %1019
    %1021 = vrot.lane.b32.xlu0 %v563, 120
    %v1022 = vpop.permute.xlu0 %1021
    %1023 = vrot.lane.b32.xlu0 %v568, 120
    %v1024 = vpop.permute.xlu0 %1023
    %1025 = vrot.lane.b32.xlu0 %v573, 120
    %v1026 = vpop.permute.xlu0 %1025
    %1027 = vrot.lane.b32.xlu0 %v578, 120
    %v1028 = vpop.permute.xlu0 %1027
    %1029 = vrot.lane.b32.xlu0 %v583, 120
    %v1030 = vpop.permute.xlu0 %1029
    %v1031 = vsel %vm696, %v1008, 0
    %v1033 = vsel %vm696, %v1010, 0
    %v1035 = vsel %vm696, %v1012, 0
    %v1037 = vsel %vm696, %v1014, 0
    %v1039 = vsel %vm696, %v1016, 0
    %v1041 = vsel %vm696, %v1018, 0
    %v1043 = vsel %vm696, %v1020, 0
    %v1045 = vsel %vm696, %v1022, 0
    %v1047 = vsel %vm696, %v1024, 0
    %v1049 = vsel %vm696, %v1026, 0
    %v1051 = vsel %vm696, %v1028, 0
    %v1053 = vsel %vm696, %v1030, 0
    %1055 = vmatprep.subr.mxu0 0.0
    %1056 = vmatpush1.xpose.msra.mxu0 %v1043
    %1057 = vmatprep.subr.mxu0 0.0
    %1058 = vmatpush1.xpose.msra.mxu0 %v1045
    %1059 = vmatprep.subr.mxu0 0.0
    %1060 = vmatpush1.xpose.msra.mxu0 %v1047
    %1061 = vmatprep.subr.mxu0 0.0
    %1062 = vmatpush1.xpose.msra.mxu0 %v1049
    %1063 = vmatprep.subr.mxu0 0.0
    %1064 = vmatpush1.xpose.msra.mxu0 %v1051
    %1065 = vmatprep.subr.mxu0 0.0
    %1066 = vmatpush1.xpose.msra.mxu0 %v1053
    %1067 = vmatprep.subr.mxu0 0.0
    %1068 = vmatpush1.xpose.msra.mxu0 0.0
    %1069 = vmatprep.subr.mxu0 0.0
    %1070 = vmatpush1.xpose.msra.mxu0 0.0
    %1071 = vmatprep.subr.mxu0 0.0
    %1072 = vmatpush1.xpose.msra.mxu0 0.0
    %1073 = vmatprep.subr.mxu0 0.0
    %1074 = vmatpush1.xpose.msra.mxu0 0.0
    %1075 = vmatprep.subr.mxu0 0.0
    %1076 = vmatpush1.xpose.msra.mxu0 0.0
    %1077 = vmatprep.subr.mxu0 0.0
    %1078 = vmatpush1.xpose.msra.mxu0 0.0
    %1079 = vmatprep.subr.mxu0 0.0
    %1080 = vmatpush1.xpose.msra.mxu0 0.0
    %1081 = vmatprep.subr.mxu0 0.0
    %1082 = vmatpush1.xpose.msra.mxu0 0.0
    %1083 = vmatprep.subr.mxu0 0.0
    %1084 = vmatpush1.xpose.msra.mxu0 0.0
    %1085 = vmatprep.subr.mxu0 0.0
    %1086 = vmatpush1.xpose.msra.mxu0 0.0
    %1087 = vmatprep.subr.mxu0 0.0
    %1088 = vmatpush1.xpose.msra.mxu0 0.0
    %1089 = vmatprep.subr.mxu0 0.0
    %1090 = vmatpush1.xpose.msra.mxu0 0.0
    %1091 = vmatprep.subr.mxu0 0.0
    %1092 = vmatpush1.xpose.msra.mxu0 0.0
    %1093 = vmatprep.subr.mxu0 0.0
    %1094 = vmatpush1.xpose.msra.mxu0 0.0
    %1095 = vmatprep.subr.mxu0 0.0
    %1096 = vmatpush1.xpose.msra.mxu0 0.0
    %1097 = vmatprep.subr.mxu0 0.0
    %1098 = vmatpush1.xpose.msra.mxu0 0.0
    %1099 = vmatprep.subr.mxu0 0.0
    %1100 = vmatpush1.xpose.msra.mxu0 0.0
    %1101 = vmatprep.subr.mxu0 0.0
    %1102 = vmatpush1.xpose.msra.mxu0 0.0
    %1103 = vmatprep.subr.mxu0 0.0
    %1104 = vmatpush1.xpose.msra.mxu0 0.0
    %1105 = vmatprep.subr.mxu0 0.0
    %1106 = vmatpush1.xpose.msra.mxu0 0.0
    %1107 = vmatprep.subr.mxu0 0.0
    %1108 = vmatpush1.xpose.msra.mxu0 0.0
    %1109 = vmatprep.subr.mxu0 0.0
    %1110 = vmatpush1.xpose.msra.mxu0 0.0
    %1111 = vmatprep.subr.mxu0 0.0
    %1112 = vmatpush1.xpose.msra.mxu0 0.0
    %1113 = vmatprep.subr.mxu0 0.0
    %1114 = vmatpush1.xpose.msra.mxu0 0.0
    %1115 = vmatprep.subr.mxu0 0.0
    %1116 = vmatpush1.xpose.msra.mxu0 0.0
    %1117 = vmatprep.subr.mxu0 0.0
    %1118 = vmatpush1.xpose.msra.mxu0 0.0
    %1119 = vmatprep.mubr.f32.mxu0 0.0
    %1120 = vmatmul.mubr.f32.gmra.mrb[0].mxu0 %v1031
    %v1121 = vpop.f32.mrb[0].mxu0
    %v1122 = vadd.f32 %v238, %v1121
    %v1123 = vpop.f32.mrb[0].mxu0
    %1124 = vmatprep.mubr.f32.mxu0 0.0
    %1125 = vmatmul.mubr.f32.gmra.mrb[0].mxu0 %v1033
    %v1126 = vpop.f32.mrb[0].mxu0
    %v1127 = vadd.f32 %v239, %v1126
    %v1128 = vpop.f32.mrb[0].mxu0
    %1129 = vmatprep.mubr.f32.mxu0 0.0
    %1130 = vmatmul.mubr.f32.gmra.mrb[0].mxu0 %v1035
    %v1131 = vpop.f32.mrb[0].mxu0
    %v1132 = vadd.f32 %v240, %v1131
    %v1133 = vpop.f32.mrb[0].mxu0
    %1134 = vmatprep.mubr.f32.mxu0 0.0
    %1135 = vmatmul.mubr.f32.gmra.mrb[0].mxu0 %v1037
    %v1136 = vpop.f32.mrb[0].mxu0
    %v1137 = vadd.f32 %v241, %v1136
    %v1138 = vpop.f32.mrb[0].mxu0
    %1139 = vmatprep.mubr.f32.mxu0 0.0
    %1140 = vmatmul.mubr.f32.gmra.mrb[0].mxu0 %v1039
    %v1141 = vpop.f32.mrb[0].mxu0
    %v1142 = vadd.f32 %v242, %v1141
    %v1143 = vpop.f32.mrb[0].mxu0
    %1144 = vmatprep.mubr.f32.mxu0 0.0
    %1145 = vmatmul.mubr.f32.gmra.mrb[0].mxu0 %v1041
    %v1146 = vpop.f32.mrb[0].mxu0
    %v1147 = vadd.f32 %v243, %v1146
    %v1148 = vpop.f32.mrb[0].mxu0
    %1149 = vdwg.mxu0
    %v1150 = vsel %vm124, %v1122, -inf
    %1151 = vmax.xlane.f32.xlu0 %v1150
    %v1152 = vpop.xlane.xlu0 %1151
    %v1153 = vsel %vm124, %v1127, -inf
    %1154 = vmax.xlane.f32.xlu0 %v1153
    %v1155 = vpop.xlane.xlu0 %1154
    %v1156 = vsel %vm124, %v1132, -inf
    %1157 = vmax.xlane.f32.xlu0 %v1156
    %v1158 = vpop.xlane.xlu0 %1157
    %v1159 = vsel %vm124, %v1137, -inf
    %1160 = vmax.xlane.f32.xlu0 %v1159
    %v1161 = vpop.xlane.xlu0 %1160
    %v1162 = vsel %vm124, %v1142, -inf
    %1163 = vmax.xlane.f32.xlu0 %v1162
    %v1164 = vpop.xlane.xlu0 %1163
    %v1165 = vsel %vm124, %v1147, -inf
    %1166 = vmax.xlane.f32.xlu0 %v1165
    %v1167 = vpop.xlane.xlu0 %1166
    %v1168 = vsub.f32 %v1122, %v1152
    %v1169 = vsub.f32 %v1127, %v1155
    %v1170 = vsub.f32 %v1132, %v1158
    %v1171 = vsub.f32 %v1137, %v1161
    %v1172 = vsub.f32 %v1142, %v1164
    %v1173 = vsub.f32 %v1147, %v1167
    %v1174 = vmul.f32 %v1168, 1.442695
    %v1175 = vpow.pop %v1174
    %v1176 = vmul.f32 %v1169, 1.442695
    %v1177 = vpow.pop %v1176
    %v1178 = vmul.f32 %v1170, 1.442695
    %v1179 = vpow.pop %v1178
    %v1180 = vmul.f32 %v1171, 1.442695
    %v1181 = vpow.pop %v1180
    %v1182 = vmul.f32 %v1172, 1.442695
    %v1183 = vpow.pop %v1182
    %v1184 = vmul.f32 %v1173, 1.442695
    %v1185 = vpow.pop %v1184
    %v1186 = vsel %vm124, %v1175, 0.0
    %1187 = vadd.xlane.f32.xlu0 %v1186
    %v1188 = vpop.xlane.xlu0 %1187
    %v1189 = vsel %vm124, %v1177, 0.0
    %1190 = vadd.xlane.f32.xlu0 %v1189
    %v1191 = vpop.xlane.xlu0 %1190
    %v1192 = vsel %vm124, %v1179, 0.0
    %1193 = vadd.xlane.f32.xlu0 %v1192
    %v1194 = vpop.xlane.xlu0 %1193
    %v1195 = vsel %vm124, %v1181, 0.0
    %1196 = vadd.xlane.f32.xlu0 %v1195
    %v1197 = vpop.xlane.xlu0 %1196
    %v1198 = vsel %vm124, %v1183, 0.0
    %1199 = vadd.xlane.f32.xlu0 %v1198
    %v1200 = vpop.xlane.xlu0 %1199
    %v1201 = vsel %vm124, %v1185, 0.0
    %1202 = vadd.xlane.f32.xlu0 %v1201
    %v1203 = vpop.xlane.xlu0 %1202
    %v1204 = vrcp.pop %v1188
    %v1205 = vrcp.pop %v1191
    %v1206 = vrcp.pop %v1194
    %v1207 = vrcp.pop %v1197
    %v1208 = vrcp.pop %v1200
    %v1209 = vrcp.pop %v1203
    %v1210 = vmul.f32 %v1175, %v1204
    %v1211 = vmul.f32 %v1177, %v1205
    %v1212 = vmul.f32 %v1179, %v1206
    %v1213 = vmul.f32 %v1181, %v1207
    %v1214 = vmul.f32 %v1183, %v1208
    %v1215 = vmul.f32 %v1185, %v1209
    %1222 = vrot.lane.b32.xlu0 %v664, 120
    %v1223 = vpop.permute.xlu0 %1222
    %1224 = vrot.lane.b32.xlu0 %v669, 120
    %v1225 = vpop.permute.xlu0 %1224
    %1226 = vrot.lane.b32.xlu0 %v674, 120
    %v1227 = vpop.permute.xlu0 %1226
    %1228 = vrot.lane.b32.xlu0 %v679, 120
    %v1229 = vpop.permute.xlu0 %1228
    %1230 = vrot.lane.b32.xlu0 %v684, 120
    %v1231 = vpop.permute.xlu0 %1230
    %1232 = vrot.lane.b32.xlu0 %v689, 120
    %v1233 = vpop.permute.xlu0 %1232
    %v1241 = vsel %vm124, %v1210, 0
    %v1244 = vsel %vm124, %v1211, 0
    %v1247 = vsel %vm124, %v1212, 0
    %v1250 = vsel %vm124, %v1213, 0
    %v1253 = vsel %vm124, %v1214, 0
    %v1256 = vsel %vm124, %v1215, 0
    %1258 = vmatprep.subr.mxu0 0.0
    %1259 = vmatpush1.msra.mxu0 %v1223
    %1260 = vmatprep.subr.mxu0 0.0
    %1261 = vmatpush1.msra.mxu0 %v1225
    %1262 = vmatprep.subr.mxu0 0.0
    %1263 = vmatpush1.msra.mxu0 %v1227
    %1264 = vmatprep.subr.mxu0 0.0
    %1265 = vmatpush1.msra.mxu0 %v1229
    %1266 = vmatprep.subr.mxu0 0.0
    %1267 = vmatpush1.msra.mxu0 %v1231
    %1268 = vmatprep.subr.mxu0 0.0
    %1269 = vmatpush1.msra.mxu0 %v1233
    %1270 = vmatprep.subr.mxu0 0.0
    %1271 = vmatpush1.msra.mxu0 0.0
    %1272 = vmatprep.subr.mxu0 0.0
    %1273 = vmatpush1.msra.mxu0 0.0
    %1274 = vmatprep.subr.mxu0 0.0
    %1275 = vmatpush1.msra.mxu0 0.0
    %1276 = vmatprep.subr.mxu0 0.0
    %1277 = vmatpush1.msra.mxu0 0.0
    %1278 = vmatprep.subr.mxu0 0.0
    %1279 = vmatpush1.msra.mxu0 0.0
    %1280 = vmatprep.subr.mxu0 0.0
    %1281 = vmatpush1.msra.mxu0 0.0
    %1282 = vmatprep.subr.mxu0 0.0
    %1283 = vmatpush1.msra.mxu0 0.0
    %1284 = vmatprep.subr.mxu0 0.0
    %1285 = vmatpush1.msra.mxu0 0.0
    %1286 = vmatprep.subr.mxu0 0.0
    %1287 = vmatpush1.msra.mxu0 0.0
    %1288 = vmatprep.subr.mxu0 0.0
    %1289 = vmatpush1.msra.mxu0 0.0
    %1290 = vmatprep.subr.mxu0 0.0
    %1291 = vmatpush1.msra.mxu0 0.0
    %1292 = vmatprep.subr.mxu0 0.0
    %1293 = vmatpush1.msra.mxu0 0.0
    %1294 = vmatprep.subr.mxu0 0.0
    %1295 = vmatpush1.msra.mxu0 0.0
    %1296 = vmatprep.subr.mxu0 0.0
    %1297 = vmatpush1.msra.mxu0 0.0
    %1298 = vmatprep.subr.mxu0 0.0
    %1299 = vmatpush1.msra.mxu0 0.0
    %1300 = vmatprep.subr.mxu0 0.0
    %1301 = vmatpush1.msra.mxu0 0.0
    %1302 = vmatprep.subr.mxu0 0.0
    %1303 = vmatpush1.msra.mxu0 0.0
    %1304 = vmatprep.subr.mxu0 0.0
    %1305 = vmatpush1.msra.mxu0 0.0
    %1306 = vmatprep.subr.mxu0 0.0
    %1307 = vmatpush1.msra.mxu0 0.0
    %1308 = vmatprep.subr.mxu0 0.0
    %1309 = vmatpush1.msra.mxu0 0.0
    %1310 = vmatprep.subr.mxu0 0.0
    %1311 = vmatpush1.msra.mxu0 0.0
    %1312 = vmatprep.subr.mxu0 0.0
    %1313 = vmatpush1.msra.mxu0 0.0
    %1314 = vmatprep.subr.mxu0 0.0
    %1315 = vmatpush1.msra.mxu0 0.0
    %1316 = vmatprep.subr.mxu0 0.0
    %1317 = vmatpush1.msra.mxu0 0.0
    %1318 = vmatprep.subr.mxu0 0.0
    %1319 = vmatpush1.msra.mxu0 0.0
    %1320 = vmatprep.subr.mxu0 0.0
    %1321 = vmatpush1.msra.mxu0 0.0
    %1322 = vmatprep.mubr.f32.mxu0 0.0
    %1323 = vmatmul.mubr.f32.gmra.mrb[0].mxu0 %v1241
    %v1324 = vpop.f32.mrb[0].mxu0
    %v1325 = vadd.f32 0.0, %v1324
    %v1326 = vpop.f32.mrb[0].mxu0
    %1327 = vmatprep.mubr.f32.mxu0 0.0
    %1328 = vmatmul.mubr.f32.gmra.mrb[0].mxu0 %v1244
    %v1329 = vpop.f32.mrb[0].mxu0
    %v1330 = vadd.f32 0.0, %v1329
    %v1331 = vpop.f32.mrb[0].mxu0
    %1332 = vmatprep.mubr.f32.mxu0 0.0
    %1333 = vmatmul.mubr.f32.gmra.mrb[0].mxu0 %v1247
    %v1334 = vpop.f32.mrb[0].mxu0
    %v1335 = vadd.f32 0.0, %v1334
    %v1336 = vpop.f32.mrb[0].mxu0
    %1337 = vmatprep.mubr.f32.mxu0 0.0
    %1338 = vmatmul.mubr.f32.gmra.mrb[0].mxu0 %v1250
    %v1339 = vpop.f32.mrb[0].mxu0
    %v1340 = vadd.f32 0.0, %v1339
    %v1341 = vpop.f32.mrb[0].mxu0
    %1342 = vmatprep.mubr.f32.mxu0 0.0
    %1343 = vmatmul.mubr.f32.gmra.mrb[0].mxu0 %v1253
    %v1344 = vpop.f32.mrb[0].mxu0
    %v1345 = vadd.f32 0.0, %v1344
    %v1346 = vpop.f32.mrb[0].mxu0
    %1347 = vmatprep.mubr.f32.mxu0 0.0
    %1348 = vmatmul.mubr.f32.gmra.mrb[0].mxu0 %v1256
    %v1349 = vpop.f32.mrb[0].mxu0
    %v1350 = vadd.f32 0.0, %v1349
    %v1351 = vpop.f32.mrb[0].mxu0
    %1352 = vdwg.mxu0
    %v1354 = vsel %vm696, %v1325, 0
    %v1357 = vsel %vm696, %v1330, 0
    %v1360 = vsel %vm696, %v1335, 0
    %v1363 = vsel %vm696, %v1340, 0
    %v1366 = vsel %vm696, %v1345, 0
    %v1369 = vsel %vm696, %v1350, 0
    %1371 = vmatprep.subr.mxu0 0.0
    %1372 = vmatpush1.msra.mxu0 %v693
    %1373 = vmatprep.subr.mxu0 0.0
    %1374 = vmatpush1.msra.mxu0 0.0
    %1375 = vmatprep.subr.mxu0 0.0
    %1376 = vmatpush1.msra.mxu0 0.0
    %1377 = vmatprep.subr.mxu0 0.0
    %1378 = vmatpush1.msra.mxu0 0.0
    %1379 = vmatprep.subr.mxu0 0.0
    %1380 = vmatpush1.msra.mxu0 0.0
    %1381 = vmatprep.subr.mxu0 0.0
    %1382 = vmatpush1.msra.mxu0 0.0
    %1383 = vmatprep.subr.mxu0 0.0
    %1384 = vmatpush1.msra.mxu0 0.0
    %1385 = vmatprep.subr.mxu0 0.0
    %1386 = vmatpush1.msra.mxu0 0.0
    %1387 = vmatprep.subr.mxu0 0.0
    %1388 = vmatpush1.msra.mxu0 0.0
    %1389 = vmatprep.subr.mxu0 0.0
    %1390 = vmatpush1.msra.mxu0 0.0
    %1391 = vmatprep.subr.mxu0 0.0
    %1392 = vmatpush1.msra.mxu0 0.0
    %1393 = vmatprep.subr.mxu0 0.0
    %1394 = vmatpush1.msra.mxu0 0.0
    %1395 = vmatprep.subr.mxu0 0.0
    %1396 = vmatpush1.msra.mxu0 0.0
    %1397 = vmatprep.subr.mxu0 0.0
    %1398 = vmatpush1.msra.mxu0 0.0
    %1399 = vmatprep.subr.mxu0 0.0
    %1400 = vmatpush1.msra.mxu0 0.0
    %1401 = vmatprep.subr.mxu0 0.0
    %1402 = vmatpush1.msra.mxu0 0.0
    %1403 = vmatprep.subr.mxu0 0.0
    %1404 = vmatpush1.msra.mxu0 0.0
    %1405 = vmatprep.subr.mxu0 0.0
    %1406 = vmatpush1.msra.mxu0 0.0
    %1407 = vmatprep.subr.mxu0 0.0
    %1408 = vmatpush1.msra.mxu0 0.0
    %1409 = vmatprep.subr.mxu0 0.0
    %1410 = vmatpush1.msra.mxu0 0.0
    %1411 = vmatprep.subr.mxu0 0.0
    %1412 = vmatpush1.msra.mxu0 0.0
    %1413 = vmatprep.subr.mxu0 0.0
    %1414 = vmatpush1.msra.mxu0 0.0
    %1415 = vmatprep.subr.mxu0 0.0
    %1416 = vmatpush1.msra.mxu0 0.0
    %1417 = vmatprep.subr.mxu0 0.0
    %1418 = vmatpush1.msra.mxu0 0.0
    %1419 = vmatprep.subr.mxu0 0.0
    %1420 = vmatpush1.msra.mxu0 0.0
    %1421 = vmatprep.subr.mxu0 0.0
    %1422 = vmatpush1.msra.mxu0 0.0
    %1423 = vmatprep.subr.mxu0 0.0
    %1424 = vmatpush1.msra.mxu0 0.0
    %1425 = vmatprep.subr.mxu0 0.0
    %1426 = vmatpush1.msra.mxu0 0.0
    %1427 = vmatprep.subr.mxu0 0.0
    %1428 = vmatpush1.msra.mxu0 0.0
    %1429 = vmatprep.subr.mxu0 0.0
    %1430 = vmatpush1.msra.mxu0 0.0
    %1431 = vmatprep.subr.mxu0 0.0
    %1432 = vmatpush1.msra.mxu0 0.0
    %1433 = vmatprep.subr.mxu0 0.0
    %1434 = vmatpush1.msra.mxu0 0.0
    %1435 = vmatprep.mubr.f32.mxu0 0.0
    %1436 = vmatmul.mubr.f32.gmra.mrb[0].mxu0 %v1354
    %v1437 = vpop.f32.mrb[0].mxu0
    %v1438 = vadd.f32 0.0, %v1437
    %v1439 = vpop.f32.mrb[0].mxu0
    %1440 = vmatprep.mubr.f32.mxu0 0.0
    %1441 = vmatmul.mubr.f32.gmra.mrb[0].mxu0 %v1357
    %v1442 = vpop.f32.mrb[0].mxu0
    %v1443 = vadd.f32 0.0, %v1442
    %v1444 = vpop.f32.mrb[0].mxu0
    %1445 = vmatprep.mubr.f32.mxu0 0.0
    %1446 = vmatmul.mubr.f32.gmra.mrb[0].mxu0 %v1360
    %v1447 = vpop.f32.mrb[0].mxu0
    %v1448 = vadd.f32 0.0, %v1447
    %v1449 = vpop.f32.mrb[0].mxu0
    %1450 = vmatprep.mubr.f32.mxu0 0.0
    %1451 = vmatmul.mubr.f32.gmra.mrb[0].mxu0 %v1363
    %v1452 = vpop.f32.mrb[0].mxu0
    %v1453 = vadd.f32 0.0, %v1452
    %v1454 = vpop.f32.mrb[0].mxu0
    %1455 = vmatprep.mubr.f32.mxu0 0.0
    %1456 = vmatmul.mubr.f32.gmra.mrb[0].mxu0 %v1366
    %v1457 = vpop.f32.mrb[0].mxu0
    %v1458 = vadd.f32 0.0, %v1457
    %v1459 = vpop.f32.mrb[0].mxu0
    %1460 = vmatprep.mubr.f32.mxu0 0.0
    %1461 = vmatmul.mubr.f32.gmra.mrb[0].mxu0 %v1369
    %v1462 = vpop.f32.mrb[0].mxu0
    %v1463 = vadd.f32 0.0, %v1462
    %v1464 = vpop.f32.mrb[0].mxu0
    %1465 = vdwg.mxu0
    %v1467 = vsel %vm696, %v979, 0
    %v1470 = vsel %vm696, %v984, 0
    %v1473 = vsel %vm696, %v989, 0
    %v1476 = vsel %vm696, %v994, 0
    %v1479 = vsel %vm696, %v999, 0
    %v1482 = vsel %vm696, %v1004, 0
    %1484 = vmatprep.subr.mxu0 0.0
    %1485 = vmatpush1.msra.mxu0 %v692
    %1486 = vmatprep.subr.mxu0 0.0
    %1487 = vmatpush1.msra.mxu0 0.0
    %1488 = vmatprep.subr.mxu0 0.0
    %1489 = vmatpush1.msra.mxu0 0.0
    %1490 = vmatprep.subr.mxu0 0.0
    %1491 = vmatpush1.msra.mxu0 0.0
    %1492 = vmatprep.subr.mxu0 0.0
    %1493 = vmatpush1.msra.mxu0 0.0
    %1494 = vmatprep.subr.mxu0 0.0
    %1495 = vmatpush1.msra.mxu0 0.0
    %1496 = vmatprep.subr.mxu0 0.0
    %1497 = vmatpush1.msra.mxu0 0.0
    %1498 = vmatprep.subr.mxu0 0.0
    %1499 = vmatpush1.msra.mxu0 0.0
    %1500 = vmatprep.subr.mxu0 0.0
    %1501 = vmatpush1.msra.mxu0 0.0
    %1502 = vmatprep.subr.mxu0 0.0
    %1503 = vmatpush1.msra.mxu0 0.0
    %1504 = vmatprep.subr.mxu0 0.0
    %1505 = vmatpush1.msra.mxu0 0.0
    %1506 = vmatprep.subr.mxu0 0.0
    %1507 = vmatpush1.msra.mxu0 0.0
    %1508 = vmatprep.subr.mxu0 0.0
    %1509 = vmatpush1.msra.mxu0 0.0
    %1510 = vmatprep.subr.mxu0 0.0
    %1511 = vmatpush1.msra.mxu0 0.0
    %1512 = vmatprep.subr.mxu0 0.0
    %1513 = vmatpush1.msra.mxu0 0.0
    %1514 = vmatprep.subr.mxu0 0.0
    %1515 = vmatpush1.msra.mxu0 0.0
    %1516 = vmatprep.subr.mxu0 0.0
    %1517 = vmatpush1.msra.mxu0 0.0
    %1518 = vmatprep.subr.mxu0 0.0
    %1519 = vmatpush1.msra.mxu0 0.0
    %1520 = vmatprep.subr.mxu0 0.0
    %1521 = vmatpush1.msra.mxu0 0.0
    %1522 = vmatprep.subr.mxu0 0.0
    %1523 = vmatpush1.msra.mxu0 0.0
    %1524 = vmatprep.subr.mxu0 0.0
    %1525 = vmatpush1.msra.mxu0 0.0
    %1526 = vmatprep.subr.mxu0 0.0
    %1527 = vmatpush1.msra.mxu0 0.0
    %1528 = vmatprep.subr.mxu0 0.0
    %1529 = vmatpush1.msra.mxu0 0.0
    %1530 = vmatprep.subr.mxu0 0.0
    %1531 = vmatpush1.msra.mxu0 0.0
    %1532 = vmatprep.subr.mxu0 0.0
    %1533 = vmatpush1.msra.mxu0 0.0
    %1534 = vmatprep.subr.mxu0 0.0
    %1535 = vmatpush1.msra.mxu0 0.0
    %1536 = vmatprep.subr.mxu0 0.0
    %1537 = vmatpush1.msra.mxu0 0.0
    %1538 = vmatprep.subr.mxu0 0.0
    %1539 = vmatpush1.msra.mxu0 0.0
    %1540 = vmatprep.subr.mxu0 0.0
    %1541 = vmatpush1.msra.mxu0 0.0
    %1542 = vmatprep.subr.mxu0 0.0
    %1543 = vmatpush1.msra.mxu0 0.0
    %1544 = vmatprep.subr.mxu0 0.0
    %1545 = vmatpush1.msra.mxu0 0.0
    %1546 = vmatprep.subr.mxu0 0.0
    %1547 = vmatpush1.msra.mxu0 0.0
    %1548 = vmatprep.mubr.f32.mxu0 0.0
    %1549 = vmatmul.mubr.f32.gmra.mrb[0].mxu0 %v1467
    %v1550 = vpop.f32.mrb[0].mxu0
    %v1551 = vadd.f32 %v1438, %v1550
    %v1552 = vpop.f32.mrb[0].mxu0
    %1553 = vmatprep.mubr.f32.mxu0 0.0
    %1554 = vmatmul.mubr.f32.gmra.mrb[0].mxu0 %v1470
    %v1555 = vpop.f32.mrb[0].mxu0
    %v1556 = vadd.f32 %v1443, %v1555
    %v1557 = vpop.f32.mrb[0].mxu0
    %1558 = vmatprep.mubr.f32.mxu0 0.0
    %1559 = vmatmul.mubr.f32.gmra.mrb[0].mxu0 %v1473
    %v1560 = vpop.f32.mrb[0].mxu0
    %v1561 = vadd.f32 %v1448, %v1560
    %v1562 = vpop.f32.mrb[0].mxu0
    %1563 = vmatprep.mubr.f32.mxu0 0.0
    %1564 = vmatmul.mubr.f32.gmra.mrb[0].mxu0 %v1476
    %v1565 = vpop.f32.mrb[0].mxu0
    %v1566 = vadd.f32 %v1453, %v1565
    %v1567 = vpop.f32.mrb[0].mxu0
    %1568 = vmatprep.mubr.f32.mxu0 0.0
    %1569 = vmatmul.mubr.f32.gmra.mrb[0].mxu0 %v1479
    %v1570 = vpop.f32.mrb[0].mxu0
    %v1571 = vadd.f32 %v1458, %v1570
    %v1572 = vpop.f32.mrb[0].mxu0
    %1573 = vmatprep.mubr.f32.mxu0 0.0
    %1574 = vmatmul.mubr.f32.gmra.mrb[0].mxu0 %v1482
    %v1575 = vpop.f32.mrb[0].mxu0
    %v1576 = vadd.f32 %v1463, %v1575
    %v1577 = vpop.f32.mrb[0].mxu0
    %1578 = vdwg.mxu0
    %1579 = vrot.lane.b32.xlu0 %v474, 112
    %v1580 = vpop.permute.xlu0 %1579
    %1581 = vrot.lane.b32.xlu0 %v475, 112
    %v1582 = vpop.permute.xlu0 %1581
    %1583 = vrot.lane.b32.xlu0 %v476, 112
    %v1584 = vpop.permute.xlu0 %1583
    %1585 = vrot.lane.b32.xlu0 %v477, 112
    %v1586 = vpop.permute.xlu0 %1585
    %1587 = vrot.lane.b32.xlu0 %v478, 112
    %v1588 = vpop.permute.xlu0 %1587
    %1589 = vrot.lane.b32.xlu0 %v479, 112
    %v1590 = vpop.permute.xlu0 %1589
    %1591 = vrot.lane.b32.xlu0 %v558, 112
    %v1592 = vpop.permute.xlu0 %1591
    %1593 = vrot.lane.b32.xlu0 %v563, 112
    %v1594 = vpop.permute.xlu0 %1593
    %1595 = vrot.lane.b32.xlu0 %v568, 112
    %v1596 = vpop.permute.xlu0 %1595
    %1597 = vrot.lane.b32.xlu0 %v573, 112
    %v1598 = vpop.permute.xlu0 %1597
    %1599 = vrot.lane.b32.xlu0 %v578, 112
    %v1600 = vpop.permute.xlu0 %1599
    %1601 = vrot.lane.b32.xlu0 %v583, 112
    %v1602 = vpop.permute.xlu0 %1601
    %v1603 = vsel %vm696, %v1580, 0
    %v1605 = vsel %vm696, %v1582, 0
    %v1607 = vsel %vm696, %v1584, 0
    %v1609 = vsel %vm696, %v1586, 0
    %v1611 = vsel %vm696, %v1588, 0
    %v1613 = vsel %vm696, %v1590, 0
    %v1615 = vsel %vm696, %v1592, 0
    %v1617 = vsel %vm696, %v1594, 0
    %v1619 = vsel %vm696, %v1596, 0
    %v1621 = vsel %vm696, %v1598, 0
    %v1623 = vsel %vm696, %v1600, 0
    %v1625 = vsel %vm696, %v1602, 0
    %1627 = vmatprep.subr.mxu0 0.0
    %1628 = vmatpush1.xpose.msra.mxu0 %v1615
    %1629 = vmatprep.subr.mxu0 0.0
    %1630 = vmatpush1.xpose.msra.mxu0 %v1617
    %1631 = vmatprep.subr.mxu0 0.0
    %1632 = vmatpush1.xpose.msra.mxu0 %v1619
    %1633 = vmatprep.subr.mxu0 0.0
    %1634 = vmatpush1.xpose.msra.mxu0 %v1621
    %1635 = vmatprep.subr.mxu0 0.0
    %1636 = vmatpush1.xpose.msra.mxu0 %v1623
    %1637 = vmatprep.subr.mxu0 0.0
    %1638 = vmatpush1.xpose.msra.mxu0 %v1625
    %1639 = vmatprep.subr.mxu0 0.0
    %1640 = vmatpush1.xpose.msra.mxu0 0.0
    %1641 = vmatprep.subr.mxu0 0.0
    %1642 = vmatpush1.xpose.msra.mxu0 0.0
    %1643 = vmatprep.subr.mxu0 0.0
    %1644 = vmatpush1.xpose.msra.mxu0 0.0
    %1645 = vmatprep.subr.mxu0 0.0
    %1646 = vmatpush1.xpose.msra.mxu0 0.0
    %1647 = vmatprep.subr.mxu0 0.0
    %1648 = vmatpush1.xpose.msra.mxu0 0.0
    %1649 = vmatprep.subr.mxu0 0.0
    %1650 = vmatpush1.xpose.msra.mxu0 0.0
    %1651 = vmatprep.subr.mxu0 0.0
    %1652 = vmatpush1.xpose.msra.mxu0 0.0
    %1653 = vmatprep.subr.mxu0 0.0
    %1654 = vmatpush1.xpose.msra.mxu0 0.0
    %1655 = vmatprep.subr.mxu0 0.0
    %1656 = vmatpush1.xpose.msra.mxu0 0.0
    %1657 = vmatprep.subr.mxu0 0.0
    %1658 = vmatpush1.xpose.msra.mxu0 0.0
    %1659 = vmatprep.subr.mxu0 0.0
    %1660 = vmatpush1.xpose.msra.mxu0 0.0
    %1661 = vmatprep.subr.mxu0 0.0
    %1662 = vmatpush1.xpose.msra.mxu0 0.0
    %1663 = vmatprep.subr.mxu0 0.0
    %1664 = vmatpush1.xpose.msra.mxu0 0.0
    %1665 = vmatprep.subr.mxu0 0.0
    %1666 = vmatpush1.xpose.msra.mxu0 0.0
    %1667 = vmatprep.subr.mxu0 0.0
    %1668 = vmatpush1.xpose.msra.mxu0 0.0
    %1669 = vmatprep.subr.mxu0 0.0
    %1670 = vmatpush1.xpose.msra.mxu0 0.0
    %1671 = vmatprep.subr.mxu0 0.0
    %1672 = vmatpush1.xpose.msra.mxu0 0.0
    %1673 = vmatprep.subr.mxu0 0.0
    %1674 = vmatpush1.xpose.msra.mxu0 0.0
    %1675 = vmatprep.subr.mxu0 0.0
    %1676 = vmatpush1.xpose.msra.mxu0 0.0
    %1677 = vmatprep.subr.mxu0 0.0
    %1678 = vmatpush1.xpose.msra.mxu0 0.0
    %1679 = vmatprep.subr.mxu0 0.0
    %1680 = vmatpush1.xpose.msra.mxu0 0.0
    %1681 = vmatprep.subr.mxu0 0.0
    %1682 = vmatpush1.xpose.msra.mxu0 0.0
    %1683 = vmatprep.subr.mxu0 0.0
    %1684 = vmatpush1.xpose.msra.mxu0 0.0
    %1685 = vmatprep.subr.mxu0 0.0
    %1686 = vmatpush1.xpose.msra.mxu0 0.0
    %1687 = vmatprep.subr.mxu0 0.0
    %1688 = vmatpush1.xpose.msra.mxu0 0.0
    %1689 = vmatprep.subr.mxu0 0.0
    %1690 = vmatpush1.xpose.msra.mxu0 0.0
    %1691 = vmatprep.mubr.f32.mxu0 0.0
    %1692 = vmatmul.mubr.f32.gmra.mrb[0].mxu0 %v1603
    %v1693 = vpop.f32.mrb[0].mxu0
    %v1694 = vadd.f32 %v238, %v1693
    %v1695 = vpop.f32.mrb[0].mxu0
    %1696 = vmatprep.mubr.f32.mxu0 0.0
    %1697 = vmatmul.mubr.f32.gmra.mrb[0].mxu0 %v1605
    %v1698 = vpop.f32.mrb[0].mxu0
    %v1699 = vadd.f32 %v239, %v1698
    %v1700 = vpop.f32.mrb[0].mxu0
    %1701 = vmatprep.mubr.f32.mxu0 0.0
    %1702 = vmatmul.mubr.f32.gmra.mrb[0].mxu0 %v1607
    %v1703 = vpop.f32.mrb[0].mxu0
    %v1704 = vadd.f32 %v240, %v1703
    %v1705 = vpop.f32.mrb[0].mxu0
    %1706 = vmatprep.mubr.f32.mxu0 0.0
    %1707 = vmatmul.mubr.f32.gmra.mrb[0].mxu0 %v1609
    %v1708 = vpop.f32.mrb[0].mxu0
    %v1709 = vadd.f32 %v241, %v1708
    %v1710 = vpop.f32.mrb[0].mxu0
    %1711 = vmatprep.mubr.f32.mxu0 0.0
    %1712 = vmatmul.mubr.f32.gmra.mrb[0].mxu0 %v1611
    %v1713 = vpop.f32.mrb[0].mxu0
    %v1714 = vadd.f32 %v242, %v1713
    %v1715 = vpop.f32.mrb[0].mxu0
    %1716 = vmatprep.mubr.f32.mxu0 0.0
    %1717 = vmatmul.mubr.f32.gmra.mrb[0].mxu0 %v1613
    %v1718 = vpop.f32.mrb[0].mxu0
    %v1719 = vadd.f32 %v243, %v1718
    %v1720 = vpop.f32.mrb[0].mxu0
    %1721 = vdwg.mxu0
    %v1722 = vsel %vm124, %v1694, -inf
    %1723 = vmax.xlane.f32.xlu0 %v1722
    %v1724 = vpop.xlane.xlu0 %1723
    %v1725 = vsel %vm124, %v1699, -inf
    %1726 = vmax.xlane.f32.xlu0 %v1725
    %v1727 = vpop.xlane.xlu0 %1726
    %v1728 = vsel %vm124, %v1704, -inf
    %1729 = vmax.xlane.f32.xlu0 %v1728
    %v1730 = vpop.xlane.xlu0 %1729
    %v1731 = vsel %vm124, %v1709, -inf
    %1732 = vmax.xlane.f32.xlu0 %v1731
    %v1733 = vpop.xlane.xlu0 %1732
    %v1734 = vsel %vm124, %v1714, -inf
    %1735 = vmax.xlane.f32.xlu0 %v1734
    %v1736 = vpop.xlane.xlu0 %1735
    %v1737 = vsel %vm124, %v1719, -inf
    %1738 = vmax.xlane.f32.xlu0 %v1737
    %v1739 = vpop.xlane.xlu0 %1738
    %v1740 = vsub.f32 %v1694, %v1724
    %v1741 = vsub.f32 %v1699, %v1727
    %v1742 = vsub.f32 %v1704, %v1730
    %v1743 = vsub.f32 %v1709, %v1733
    %v1744 = vsub.f32 %v1714, %v1736
    %v1745 = vsub.f32 %v1719, %v1739
    %v1746 = vmul.f32 %v1740, 1.442695
    %v1747 = vpow.pop %v1746
    %v1748 = vmul.f32 %v1741, 1.442695
    %v1749 = vpow.pop %v1748
    %v1750 = vmul.f32 %v1742, 1.442695
    %v1751 = vpow.pop %v1750
    %v1752 = vmul.f32 %v1743, 1.442695
    %v1753 = vpow.pop %v1752
    %v1754 = vmul.f32 %v1744, 1.442695
    %v1755 = vpow.pop %v1754
    %v1756 = vmul.f32 %v1745, 1.442695
    %v1757 = vpow.pop %v1756
    %v1758 = vsel %vm124, %v1747, 0.0
    %1759 = vadd.xlane.f32.xlu0 %v1758
    %v1760 = vpop.xlane.xlu0 %1759
    %v1761 = vsel %vm124, %v1749, 0.0
    %1762 = vadd.xlane.f32.xlu0 %v1761
    %v1763 = vpop.xlane.xlu0 %1762
    %v1764 = vsel %vm124, %v1751, 0.0
    %1765 = vadd.xlane.f32.xlu0 %v1764
    %v1766 = vpop.xlane.xlu0 %1765
    %v1767 = vsel %vm124, %v1753, 0.0
    %1768 = vadd.xlane.f32.xlu0 %v1767
    %v1769 = vpop.xlane.xlu0 %1768
    %v1770 = vsel %vm124, %v1755, 0.0
    %1771 = vadd.xlane.f32.xlu0 %v1770
    %v1772 = vpop.xlane.xlu0 %1771
    %v1773 = vsel %vm124, %v1757, 0.0
    %1774 = vadd.xlane.f32.xlu0 %v1773
    %v1775 = vpop.xlane.xlu0 %1774
    %v1776 = vrcp.pop %v1760
    %v1777 = vrcp.pop %v1763
    %v1778 = vrcp.pop %v1766
    %v1779 = vrcp.pop %v1769
    %v1780 = vrcp.pop %v1772
    %v1781 = vrcp.pop %v1775
    %v1782 = vmul.f32 %v1747, %v1776
    %v1783 = vmul.f32 %v1749, %v1777
    %v1784 = vmul.f32 %v1751, %v1778
    %v1785 = vmul.f32 %v1753, %v1779
    %v1786 = vmul.f32 %v1755, %v1780
    %v1787 = vmul.f32 %v1757, %v1781
    %1788 = vrot.lane.b32.xlu0 %v664, 112
    %v1789 = vpop.permute.xlu0 %1788
    %1790 = vrot.lane.b32.xlu0 %v669, 112
    %v1791 = vpop.permute.xlu0 %1790
    %1792 = vrot.lane.b32.xlu0 %v674, 112
    %v1793 = vpop.permute.xlu0 %1792
    %1794 = vrot.lane.b32.xlu0 %v679, 112
    %v1795 = vpop.permute.xlu0 %1794
    %1796 = vrot.lane.b32.xlu0 %v684, 112
    %v1797 = vpop.permute.xlu0 %1796
    %1798 = vrot.lane.b32.xlu0 %v689, 112
    %v1799 = vpop.permute.xlu0 %1798
    %v1807 = vsel %vm124, %v1782, 0
    %v1810 = vsel %vm124, %v1783, 0
    %v1813 = vsel %vm124, %v1784, 0
    %v1816 = vsel %vm124, %v1785, 0
    %v1819 = vsel %vm124, %v1786, 0
    %v1822 = vsel %vm124, %v1787, 0
    %1824 = vmatprep.subr.mxu0 0.0
    %1825 = vmatpush1.msra.mxu0 %v1789
    %1826 = vmatprep.subr.mxu0 0.0
    %1827 = vmatpush1.msra.mxu0 %v1791
    %1828 = vmatprep.subr.mxu0 0.0
    %1829 = vmatpush1.msra.mxu0 %v1793
    %1830 = vmatprep.subr.mxu0 0.0
    %1831 = vmatpush1.msra.mxu0 %v1795
    %1832 = vmatprep.subr.mxu0 0.0
    %1833 = vmatpush1.msra.mxu0 %v1797
    %1834 = vmatprep.subr.mxu0 0.0
    %1835 = vmatpush1.msra.mxu0 %v1799
    %1836 = vmatprep.subr.mxu0 0.0
    %1837 = vmatpush1.msra.mxu0 0.0
    %1838 = vmatprep.subr.mxu0 0.0
    %1839 = vmatpush1.msra.mxu0 0.0
    %1840 = vmatprep.subr.mxu0 0.0
    %1841 = vmatpush1.msra.mxu0 0.0
    %1842 = vmatprep.subr.mxu0 0.0
    %1843 = vmatpush1.msra.mxu0 0.0
    %1844 = vmatprep.subr.mxu0 0.0
    %1845 = vmatpush1.msra.mxu0 0.0
    %1846 = vmatprep.subr.mxu0 0.0
    %1847 = vmatpush1.msra.mxu0 0.0
    %1848 = vmatprep.subr.mxu0 0.0
    %1849 = vmatpush1.msra.mxu0 0.0
    %1850 = vmatprep.subr.mxu0 0.0
    %1851 = vmatpush1.msra.mxu0 0.0
    %1852 = vmatprep.subr.mxu0 0.0
    %1853 = vmatpush1.msra.mxu0 0.0
    %1854 = vmatprep.subr.mxu0 0.0
    %1855 = vmatpush1.msra.mxu0 0.0
    %1856 = vmatprep.subr.mxu0 0.0
    %1857 = vmatpush1.msra.mxu0 0.0
    %1858 = vmatprep.subr.mxu0 0.0
    %1859 = vmatpush1.msra.mxu0 0.0
    %1860 = vmatprep.subr.mxu0 0.0
    %1861 = vmatpush1.msra.mxu0 0.0
    %1862 = vmatprep.subr.mxu0 0.0
    %1863 = vmatpush1.msra.mxu0 0.0
    %1864 = vmatprep.subr.mxu0 0.0
    %1865 = vmatpush1.msra.mxu0 0.0
    %1866 = vmatprep.subr.mxu0 0.0
    %1867 = vmatpush1.msra.mxu0 0.0
    %1868 = vmatprep.subr.mxu0 0.0
    %1869 = vmatpush1.msra.mxu0 0.0
    %1870 = vmatprep.subr.mxu0 0.0
    %1871 = vmatpush1.msra.mxu0 0.0
    %1872 = vmatprep.subr.mxu0 0.0
    %1873 = vmatpush1.msra.mxu0 0.0
    %1874 = vmatprep.subr.mxu0 0.0
    %1875 = vmatpush1.msra.mxu0 0.0
    %1876 = vmatprep.subr.mxu0 0.0
    %1877 = vmatpush1.msra.mxu0 0.0
    %1878 = vmatprep.subr.mxu0 0.0
    %1879 = vmatpush1.msra.mxu0 0.0
    %1880 = vmatprep.subr.mxu0 0.0
    %1881 = vmatpush1.msra.mxu0 0.0
    %1882 = vmatprep.subr.mxu0 0.0
    %1883 = vmatpush1.msra.mxu0 0.0
    %1884 = vmatprep.subr.mxu0 0.0
    %1885 = vmatpush1.msra.mxu0 0.0
    %1886 = vmatprep.subr.mxu0 0.0
    %1887 = vmatpush1.msra.mxu0 0.0
    %1888 = vmatprep.mubr.f32.mxu0 0.0
    %1889 = vmatmul.mubr.f32.gmra.mrb[0].mxu0 %v1807
    %v1890 = vpop.f32.mrb[0].mxu0
    %v1891 = vadd.f32 0.0, %v1890
    %v1892 = vpop.f32.mrb[0].mxu0
    %1893 = vmatprep.mubr.f32.mxu0 0.0
    %1894 = vmatmul.mubr.f32.gmra.mrb[0].mxu0 %v1810
    %v1895 = vpop.f32.mrb[0].mxu0
    %v1896 = vadd.f32 0.0, %v1895
    %v1897 = vpop.f32.mrb[0].mxu0
    %1898 = vmatprep.mubr.f32.mxu0 0.0
    %1899 = vmatmul.mubr.f32.gmra.mrb[0].mxu0 %v1813
    %v1900 = vpop.f32.mrb[0].mxu0
    %v1901 = vadd.f32 0.0, %v1900
    %v1902 = vpop.f32.mrb[0].mxu0
    %1903 = vmatprep.mubr.f32.mxu0 0.0
    %1904 = vmatmul.mubr.f32.gmra.mrb[0].mxu0 %v1816
    %v1905 = vpop.f32.mrb[0].mxu0
    %v1906 = vadd.f32 0.0, %v1905
    %v1907 = vpop.f32.mrb[0].mxu0
    %1908 = vmatprep.mubr.f32.mxu0 0.0
    %1909 = vmatmul.mubr.f32.gmra.mrb[0].mxu0 %v1819
    %v1910 = vpop.f32.mrb[0].mxu0
    %v1911 = vadd.f32 0.0, %v1910
    %v1912 = vpop.f32.mrb[0].mxu0
    %1913 = vmatprep.mubr.f32.mxu0 0.0
    %1914 = vmatmul.mubr.f32.gmra.mrb[0].mxu0 %v1822
    %v1915 = vpop.f32.mrb[0].mxu0
    %v1916 = vadd.f32 0.0, %v1915
    %v1917 = vpop.f32.mrb[0].mxu0
    %1918 = vdwg.mxu0
    %v1920 = vsel %vm696, %v1891, 0
    %v1923 = vsel %vm696, %v1896, 0
    %v1926 = vsel %vm696, %v1901, 0
    %v1929 = vsel %vm696, %v1906, 0
    %v1932 = vsel %vm696, %v1911, 0
    %v1935 = vsel %vm696, %v1916, 0
    %1937 = vmatprep.subr.mxu0 0.0
    %1938 = vmatpush1.msra.mxu0 %v694
    %1939 = vmatprep.subr.mxu0 0.0
    %1940 = vmatpush1.msra.mxu0 0.0
    %1941 = vmatprep.subr.mxu0 0.0
    %1942 = vmatpush1.msra.mxu0 0.0
    %1943 = vmatprep.subr.mxu0 0.0
    %1944 = vmatpush1.msra.mxu0 0.0
    %1945 = vmatprep.subr.mxu0 0.0
    %1946 = vmatpush1.msra.mxu0 0.0
    %1947 = vmatprep.subr.mxu0 0.0
    %1948 = vmatpush1.msra.mxu0 0.0
    %1949 = vmatprep.subr.mxu0 0.0
    %1950 = vmatpush1.msra.mxu0 0.0
    %1951 = vmatprep.subr.mxu0 0.0
    %1952 = vmatpush1.msra.mxu0 0.0
    %1953 = vmatprep.subr.mxu0 0.0
    %1954 = vmatpush1.msra.mxu0 0.0
    %1955 = vmatprep.subr.mxu0 0.0
    %1956 = vmatpush1.msra.mxu0 0.0
    %1957 = vmatprep.subr.mxu0 0.0
    %1958 = vmatpush1.msra.mxu0 0.0
    %1959 = vmatprep.subr.mxu0 0.0
    %1960 = vmatpush1.msra.mxu0 0.0
    %1961 = vmatprep.subr.mxu0 0.0
    %1962 = vmatpush1.msra.mxu0 0.0
    %1963 = vmatprep.subr.mxu0 0.0
    %1964 = vmatpush1.msra.mxu0 0.0
    %1965 = vmatprep.subr.mxu0 0.0
    %1966 = vmatpush1.msra.mxu0 0.0
    %1967 = vmatprep.subr.mxu0 0.0
    %1968 = vmatpush1.msra.mxu0 0.0
    %1969 = vmatprep.subr.mxu0 0.0
    %1970 = vmatpush1.msra.mxu0 0.0
    %1971 = vmatprep.subr.mxu0 0.0
    %1972 = vmatpush1.msra.mxu0 0.0
    %1973 = vmatprep.subr.mxu0 0.0
    %1974 = vmatpush1.msra.mxu0 0.0
    %1975 = vmatprep.subr.mxu0 0.0
    %1976 = vmatpush1.msra.mxu0 0.0
    %1977 = vmatprep.subr.mxu0 0.0
    %1978 = vmatpush1.msra.mxu0 0.0
    %1979 = vmatprep.subr.mxu0 0.0
    %1980 = vmatpush1.msra.mxu0 0.0
    %1981 = vmatprep.subr.mxu0 0.0
    %1982 = vmatpush1.msra.mxu0 0.0
    %1983 = vmatprep.subr.mxu0 0.0
    %1984 = vmatpush1.msra.mxu0 0.0
    %1985 = vmatprep.subr.mxu0 0.0
    %1986 = vmatpush1.msra.mxu0 0.0
    %1987 = vmatprep.subr.mxu0 0.0
    %1988 = vmatpush1.msra.mxu0 0.0
    %1989 = vmatprep.subr.mxu0 0.0
    %1990 = vmatpush1.msra.mxu0 0.0
    %1991 = vmatprep.subr.mxu0 0.0
    %1992 = vmatpush1.msra.mxu0 0.0
    %1993 = vmatprep.subr.mxu0 0.0
    %1994 = vmatpush1.msra.mxu0 0.0
    %1995 = vmatprep.subr.mxu0 0.0
    %1996 = vmatpush1.msra.mxu0 0.0
    %1997 = vmatprep.subr.mxu0 0.0
    %1998 = vmatpush1.msra.mxu0 0.0
    %1999 = vmatprep.subr.mxu0 0.0
    %2000 = vmatpush1.msra.mxu0 0.0
    %2001 = vmatprep.mubr.f32.mxu0 0.0
    %2002 = vmatmul.mubr.f32.gmra.mrb[0].mxu0 %v1920
    %v2003 = vpop.f32.mrb[0].mxu0
    %v2004 = vadd.f32 0.0, %v2003
    %v2005 = vpop.f32.mrb[0].mxu0
    %2006 = vmatprep.mubr.f32.mxu0 0.0
    %2007 = vmatmul.mubr.f32.gmra.mrb[0].mxu0 %v1923
    %v2008 = vpop.f32.mrb[0].mxu0
    %v2009 = vadd.f32 0.0, %v2008
    %v2010 = vpop.f32.mrb[0].mxu0
    %2011 = vmatprep.mubr.f32.mxu0 0.0
    %2012 = vmatmul.mubr.f32.gmra.mrb[0].mxu0 %v1926
    %v2013 = vpop.f32.mrb[0].mxu0
    %v2014 = vadd.f32 0.0, %v2013
    %v2015 = vpop.f32.mrb[0].mxu0
    %2016 = vmatprep.mubr.f32.mxu0 0.0
    %2017 = vmatmul.mubr.f32.gmra.mrb[0].mxu0 %v1929
    %v2018 = vpop.f32.mrb[0].mxu0
    %v2019 = vadd.f32 0.0, %v2018
    %v2020 = vpop.f32.mrb[0].mxu0
    %2021 = vmatprep.mubr.f32.mxu0 0.0
    %2022 = vmatmul.mubr.f32.gmra.mrb[0].mxu0 %v1932
    %v2023 = vpop.f32.mrb[0].mxu0
    %v2024 = vadd.f32 0.0, %v2023
    %v2025 = vpop.f32.mrb[0].mxu0
    %2026 = vmatprep.mubr.f32.mxu0 0.0
    %2027 = vmatmul.mubr.f32.gmra.mrb[0].mxu0 %v1935
    %v2028 = vpop.f32.mrb[0].mxu0
    %v2029 = vadd.f32 0.0, %v2028
    %v2030 = vpop.f32.mrb[0].mxu0
    %2031 = vdwg.mxu0
    %v2032 = vadd.f32 %v1551, %v2004
    %v2033 = vadd.f32 %v1556, %v2009
    %v2034 = vadd.f32 %v1561, %v2014
    %v2035 = vadd.f32 %v1566, %v2019
    %v2036 = vadd.f32 %v1571, %v2024
    %v2037 = vadd.f32 %v1576, %v2029
    %2038 = vrot.lane.b32.xlu0 %v474, 104
    %v2039 = vpop.permute.xlu0 %2038
    %2040 = vrot.lane.b32.xlu0 %v475, 104
    %v2041 = vpop.permute.xlu0 %2040
    %2042 = vrot.lane.b32.xlu0 %v476, 104
    %v2043 = vpop.permute.xlu0 %2042
    %2044 = vrot.lane.b32.xlu0 %v477, 104
    %v2045 = vpop.permute.xlu0 %2044
    %2046 = vrot.lane.b32.xlu0 %v478, 104
    %v2047 = vpop.permute.xlu0 %2046
    %2048 = vrot.lane.b32.xlu0 %v479, 104
    %v2049 = vpop.permute.xlu0 %2048
    %2050 = vrot.lane.b32.xlu0 %v558, 104
    %v2051 = vpop.permute.xlu0 %2050
    %2052 = vrot.lane.b32.xlu0 %v563, 104
    %v2053 = vpop.permute.xlu0 %2052
    %2054 = vrot.lane.b32.xlu0 %v568, 104
    %v2055 = vpop.permute.xlu0 %2054
    %2056 = vrot.lane.b32.xlu0 %v573, 104
    %v2057 = vpop.permute.xlu0 %2056
    %2058 = vrot.lane.b32.xlu0 %v578, 104
    %v2059 = vpop.permute.xlu0 %2058
    %2060 = vrot.lane.b32.xlu0 %v583, 104
    %v2061 = vpop.permute.xlu0 %2060
    %v2062 = vsel %vm696, %v2039, 0
    %v2064 = vsel %vm696, %v2041, 0
    %v2066 = vsel %vm696, %v2043, 0
    %v2068 = vsel %vm696, %v2045, 0
    %v2070 = vsel %vm696, %v2047, 0
    %v2072 = vsel %vm696, %v2049, 0
    %v2074 = vsel %vm696, %v2051, 0
    %v2076 = vsel %vm696, %v2053, 0
    %v2078 = vsel %vm696, %v2055, 0
    %v2080 = vsel %vm696, %v2057, 0
    %v2082 = vsel %vm696, %v2059, 0
    %v2084 = vsel %vm696, %v2061, 0
    %2086 = vmatprep.subr.mxu0 0.0
    %2087 = vmatpush1.xpose.msra.mxu0 %v2074
    %2088 = vmatprep.subr.mxu0 0.0
    %2089 = vmatpush1.xpose.msra.mxu0 %v2076
    %2090 = vmatprep.subr.mxu0 0.0
    %2091 = vmatpush1.xpose.msra.mxu0 %v2078
    %2092 = vmatprep.subr.mxu0 0.0
    %2093 = vmatpush1.xpose.msra.mxu0 %v2080
    %2094 = vmatprep.subr.mxu0 0.0
    %2095 = vmatpush1.xpose.msra.mxu0 %v2082
    %2096 = vmatprep.subr.mxu0 0.0
    %2097 = vmatpush1.xpose.msra.mxu0 %v2084
    %2098 = vmatprep.subr.mxu0 0.0
    %2099 = vmatpush1.xpose.msra.mxu0 0.0
    %2100 = vmatprep.subr.mxu0 0.0
    %2101 = vmatpush1.xpose.msra.mxu0 0.0
    %2102 = vmatprep.subr.mxu0 0.0
    %2103 = vmatpush1.xpose.msra.mxu0 0.0
    %2104 = vmatprep.subr.mxu0 0.0
    %2105 = vmatpush1.xpose.msra.mxu0 0.0
    %2106 = vmatprep.subr.mxu0 0.0
    %2107 = vmatpush1.xpose.msra.mxu0 0.0
    %2108 = vmatprep.subr.mxu0 0.0
    %2109 = vmatpush1.xpose.msra.mxu0 0.0
    %2110 = vmatprep.subr.mxu0 0.0
    %2111 = vmatpush1.xpose.msra.mxu0 0.0
    %2112 = vmatprep.subr.mxu0 0.0
    %2113 = vmatpush1.xpose.msra.mxu0 0.0
    %2114 = vmatprep.subr.mxu0 0.0
    %2115 = vmatpush1.xpose.msra.mxu0 0.0
    %2116 = vmatprep.subr.mxu0 0.0
    %2117 = vmatpush1.xpose.msra.mxu0 0.0
    %2118 = vmatprep.subr.mxu0 0.0
    %2119 = vmatpush1.xpose.msra.mxu0 0.0
    %2120 = vmatprep.subr.mxu0 0.0
    %2121 = vmatpush1.xpose.msra.mxu0 0.0
    %2122 = vmatprep.subr.mxu0 0.0
    %2123 = vmatpush1.xpose.msra.mxu0 0.0
    %2124 = vmatprep.subr.mxu0 0.0
    %2125 = vmatpush1.xpose.msra.mxu0 0.0
    %2126 = vmatprep.subr.mxu0 0.0
    %2127 = vmatpush1.xpose.msra.mxu0 0.0
    %2128 = vmatprep.subr.mxu0 0.0
    %2129 = vmatpush1.xpose.msra.mxu0 0.0
    %2130 = vmatprep.subr.mxu0 0.0
    %2131 = vmatpush1.xpose.msra.mxu0 0.0
    %2132 = vmatprep.subr.mxu0 0.0
    %2133 = vmatpush1.xpose.msra.mxu0 0.0
    %2134 = vmatprep.subr.mxu0 0.0
    %2135 = vmatpush1.xpose.msra.mxu0 0.0
    %2136 = vmatprep.subr.mxu0 0.0
    %2137 = vmatpush1.xpose.msra.mxu0 0.0
    %2138 = vmatprep.subr.mxu0 0.0
    %2139 = vmatpush1.xpose.msra.mxu0 0.0
    %2140 = vmatprep.subr.mxu0 0.0
    %2141 = vmatpush1.xpose.msra.mxu0 0.0
    %2142 = vmatprep.subr.mxu0 0.0
    %2143 = vmatpush1.xpose.msra.mxu0 0.0
    %2144 = vmatprep.subr.mxu0 0.0
    %2145 = vmatpush1.xpose.msra.mxu0 0.0
    %2146 = vmatprep.subr.mxu0 0.0
    %2147 = vmatpush1.xpose.msra.mxu0 0.0
    %2148 = vmatprep.subr.mxu0 0.0
    %2149 = vmatpush1.xpose.msra.mxu0 0.0
    %2150 = vmatprep.mubr.f32.mxu0 0.0
    %2151 = vmatmul.mubr.f32.gmra.mrb[0].mxu0 %v2062
    %v2152 = vpop.f32.mrb[0].mxu0
    %v2153 = vadd.f32 %v238, %v2152
    %v2154 = vpop.f32.mrb[0].mxu0
    %2155 = vmatprep.mubr.f32.mxu0 0.0
    %2156 = vmatmul.mubr.f32.gmra.mrb[0].mxu0 %v2064
    %v2157 = vpop.f32.mrb[0].mxu0
    %v2158 = vadd.f32 %v239, %v2157
    %v2159 = vpop.f32.mrb[0].mxu0
    %2160 = vmatprep.mubr.f32.mxu0 0.0
    %2161 = vmatmul.mubr.f32.gmra.mrb[0].mxu0 %v2066
    %v2162 = vpop.f32.mrb[0].mxu0
    %v2163 = vadd.f32 %v240, %v2162
    %v2164 = vpop.f32.mrb[0].mxu0
    %2165 = vmatprep.mubr.f32.mxu0 0.0
    %2166 = vmatmul.mubr.f32.gmra.mrb[0].mxu0 %v2068
    %v2167 = vpop.f32.mrb[0].mxu0
    %v2168 = vadd.f32 %v241, %v2167
    %v2169 = vpop.f32.mrb[0].mxu0
    %2170 = vmatprep.mubr.f32.mxu0 0.0
    %2171 = vmatmul.mubr.f32.gmra.mrb[0].mxu0 %v2070
    %v2172 = vpop.f32.mrb[0].mxu0
    %v2173 = vadd.f32 %v242, %v2172
    %v2174 = vpop.f32.mrb[0].mxu0
    %2175 = vmatprep.mubr.f32.mxu0 0.0
    %2176 = vmatmul.mubr.f32.gmra.mrb[0].mxu0 %v2072
    %v2177 = vpop.f32.mrb[0].mxu0
    %v2178 = vadd.f32 %v243, %v2177
    %v2179 = vpop.f32.mrb[0].mxu0
    %2180 = vdwg.mxu0
    %v2181 = vsel %vm124, %v2153, -inf
    %2182 = vmax.xlane.f32.xlu0 %v2181
    %v2183 = vpop.xlane.xlu0 %2182
    %v2184 = vsel %vm124, %v2158, -inf
    %2185 = vmax.xlane.f32.xlu0 %v2184
    %v2186 = vpop.xlane.xlu0 %2185
    %v2187 = vsel %vm124, %v2163, -inf
    %2188 = vmax.xlane.f32.xlu0 %v2187
    %v2189 = vpop.xlane.xlu0 %2188
    %v2190 = vsel %vm124, %v2168, -inf
    %2191 = vmax.xlane.f32.xlu0 %v2190
    %v2192 = vpop.xlane.xlu0 %2191
    %v2193 = vsel %vm124, %v2173, -inf
    %2194 = vmax.xlane.f32.xlu0 %v2193
    %v2195 = vpop.xlane.xlu0 %2194
    %v2196 = vsel %vm124, %v2178, -inf
    %2197 = vmax.xlane.f32.xlu0 %v2196
    %v2198 = vpop.xlane.xlu0 %2197
    %v2199 = vsub.f32 %v2153, %v2183
    %v2200 = vsub.f32 %v2158, %v2186
    %v2201 = vsub.f32 %v2163, %v2189
    %v2202 = vsub.f32 %v2168, %v2192
    %v2203 = vsub.f32 %v2173, %v2195
    %v2204 = vsub.f32 %v2178, %v2198
    %v2205 = vmul.f32 %v2199, 1.442695
    %v2206 = vpow.pop %v2205
    %v2207 = vmul.f32 %v2200, 1.442695
    %v2208 = vpow.pop %v2207
    %v2209 = vmul.f32 %v2201, 1.442695
    %v2210 = vpow.pop %v2209
    %v2211 = vmul.f32 %v2202, 1.442695
    %v2212 = vpow.pop %v2211
    %v2213 = vmul.f32 %v2203, 1.442695
    %v2214 = vpow.pop %v2213
    %v2215 = vmul.f32 %v2204, 1.442695
    %v2216 = vpow.pop %v2215
    %v2217 = vsel %vm124, %v2206, 0.0
    %2218 = vadd.xlane.f32.xlu0 %v2217
    %v2219 = vpop.xlane.xlu0 %2218
    %v2220 = vsel %vm124, %v2208, 0.0
    %2221 = vadd.xlane.f32.xlu0 %v2220
    %v2222 = vpop.xlane.xlu0 %2221
    %v2223 = vsel %vm124, %v2210, 0.0
    %2224 = vadd.xlane.f32.xlu0 %v2223
    %v2225 = vpop.xlane.xlu0 %2224
    %v2226 = vsel %vm124, %v2212, 0.0
    %2227 = vadd.xlane.f32.xlu0 %v2226
    %v2228 = vpop.xlane.xlu0 %2227
    %v2229 = vsel %vm124, %v2214, 0.0
    %2230 = vadd.xlane.f32.xlu0 %v2229
    %v2231 = vpop.xlane.xlu0 %2230
    %v2232 = vsel %vm124, %v2216, 0.0
    %2233 = vadd.xlane.f32.xlu0 %v2232
    %v2234 = vpop.xlane.xlu0 %2233
    %v2235 = vrcp.pop %v2219
    %v2236 = vrcp.pop %v2222
    %v2237 = vrcp.pop %v2225
    %v2238 = vrcp.pop %v2228
    %v2239 = vrcp.pop %v2231
    %v2240 = vrcp.pop %v2234
    %v2241 = vmul.f32 %v2206, %v2235
    %v2242 = vmul.f32 %v2208, %v2236
    %v2243 = vmul.f32 %v2210, %v2237
    %v2244 = vmul.f32 %v2212, %v2238
    %v2245 = vmul.f32 %v2214, %v2239
    %v2246 = vmul.f32 %v2216, %v2240
    %2247 = vrot.lane.b32.xlu0 %v664, 104
    %v2248 = vpop.permute.xlu0 %2247
    %2249 = vrot.lane.b32.xlu0 %v669, 104
    %v2250 = vpop.permute.xlu0 %2249
    %2251 = vrot.lane.b32.xlu0 %v674, 104
    %v2252 = vpop.permute.xlu0 %2251
    %2253 = vrot.lane.b32.xlu0 %v679, 104
    %v2254 = vpop.permute.xlu0 %2253
    %2255 = vrot.lane.b32.xlu0 %v684, 104
    %v2256 = vpop.permute.xlu0 %2255
    %2257 = vrot.lane.b32.xlu0 %v689, 104
    %v2258 = vpop.permute.xlu0 %2257
    %v2266 = vsel %vm124, %v2241, 0
    %v2269 = vsel %vm124, %v2242, 0
    %v2272 = vsel %vm124, %v2243, 0
    %v2275 = vsel %vm124, %v2244, 0
    %v2278 = vsel %vm124, %v2245, 0
    %v2281 = vsel %vm124, %v2246, 0
    %2283 = vmatprep.subr.mxu0 0.0
    %2284 = vmatpush1.msra.mxu0 %v2248
    %2285 = vmatprep.subr.mxu0 0.0
    %2286 = vmatpush1.msra.mxu0 %v2250
    %2287 = vmatprep.subr.mxu0 0.0
    %2288 = vmatpush1.msra.mxu0 %v2252
    %2289 = vmatprep.subr.mxu0 0.0
    %2290 = vmatpush1.msra.mxu0 %v2254
    %2291 = vmatprep.subr.mxu0 0.0
    %2292 = vmatpush1.msra.mxu0 %v2256
    %2293 = vmatprep.subr.mxu0 0.0
    %2294 = vmatpush1.msra.mxu0 %v2258
    %2295 = vmatprep.subr.mxu0 0.0
    %2296 = vmatpush1.msra.mxu0 0.0
    %2297 = vmatprep.subr.mxu0 0.0
    %2298 = vmatpush1.msra.mxu0 0.0
    %2299 = vmatprep.subr.mxu0 0.0
    %2300 = vmatpush1.msra.mxu0 0.0
    %2301 = vmatprep.subr.mxu0 0.0
    %2302 = vmatpush1.msra.mxu0 0.0
    %2303 = vmatprep.subr.mxu0 0.0
    %2304 = vmatpush1.msra.mxu0 0.0
    %2305 = vmatprep.subr.mxu0 0.0
    %2306 = vmatpush1.msra.mxu0 0.0
    %2307 = vmatprep.subr.mxu0 0.0
    %2308 = vmatpush1.msra.mxu0 0.0
    %2309 = vmatprep.subr.mxu0 0.0
    %2310 = vmatpush1.msra.mxu0 0.0
    %2311 = vmatprep.subr.mxu0 0.0
    %2312 = vmatpush1.msra.mxu0 0.0
    %2313 = vmatprep.subr.mxu0 0.0
    %2314 = vmatpush1.msra.mxu0 0.0
    %2315 = vmatprep.subr.mxu0 0.0
    %2316 = vmatpush1.msra.mxu0 0.0
    %2317 = vmatprep.subr.mxu0 0.0
    %2318 = vmatpush1.msra.mxu0 0.0
    %2319 = vmatprep.subr.mxu0 0.0
    %2320 = vmatpush1.msra.mxu0 0.0
    %2321 = vmatprep.subr.mxu0 0.0
    %2322 = vmatpush1.msra.mxu0 0.0
    %2323 = vmatprep.subr.mxu0 0.0
    %2324 = vmatpush1.msra.mxu0 0.0
    %2325 = vmatprep.subr.mxu0 0.0
    %2326 = vmatpush1.msra.mxu0 0.0
    %2327 = vmatprep.subr.mxu0 0.0
    %2328 = vmatpush1.msra.mxu0 0.0
    %2329 = vmatprep.subr.mxu0 0.0
    %2330 = vmatpush1.msra.mxu0 0.0
    %2331 = vmatprep.subr.mxu0 0.0
    %2332 = vmatpush1.msra.mxu0 0.0
    %2333 = vmatprep.subr.mxu0 0.0
    %2334 = vmatpush1.msra.mxu0 0.0
    %2335 = vmatprep.subr.mxu0 0.0
    %2336 = vmatpush1.msra.mxu0 0.0
    %2337 = vmatprep.subr.mxu0 0.0
    %2338 = vmatpush1.msra.mxu0 0.0
    %2339 = vmatprep.subr.mxu0 0.0
    %2340 = vmatpush1.msra.mxu0 0.0
    %2341 = vmatprep.subr.mxu0 0.0
    %2342 = vmatpush1.msra.mxu0 0.0
    %2343 = vmatprep.subr.mxu0 0.0
    %2344 = vmatpush1.msra.mxu0 0.0
    %2345 = vmatprep.subr.mxu0 0.0
    %2346 = vmatpush1.msra.mxu0 0.0
    %2347 = vmatprep.mubr.f32.mxu0 0.0
    %2348 = vmatmul.mubr.f32.gmra.mrb[0].mxu0 %v2266
    %v2349 = vpop.f32.mrb[0].mxu0
    %v2350 = vadd.f32 0.0, %v2349
    %v2351 = vpop.f32.mrb[0].mxu0
    %2352 = vmatprep.mubr.f32.mxu0 0.0
    %2353 = vmatmul.mubr.f32.gmra.mrb[0].mxu0 %v2269
    %v2354 = vpop.f32.mrb[0].mxu0
    %v2355 = vadd.f32 0.0, %v2354
    %v2356 = vpop.f32.mrb[0].mxu0
    %2357 = vmatprep.mubr.f32.mxu0 0.0
    %2358 = vmatmul.mubr.f32.gmra.mrb[0].mxu0 %v2272
    %v2359 = vpop.f32.mrb[0].mxu0
    %v2360 = vadd.f32 0.0, %v2359
    %v2361 = vpop.f32.mrb[0].mxu0
    %2362 = vmatprep.mubr.f32.mxu0 0.0
    %2363 = vmatmul.mubr.f32.gmra.mrb[0].mxu0 %v2275
    %v2364 = vpop.f32.mrb[0].mxu0
    %v2365 = vadd.f32 0.0, %v2364
    %v2366 = vpop.f32.mrb[0].mxu0
    %2367 = vmatprep.mubr.f32.mxu0 0.0
    %2368 = vmatmul.mubr.f32.gmra.mrb[0].mxu0 %v2278
    %v2369 = vpop.f32.mrb[0].mxu0
    %v2370 = vadd.f32 0.0, %v2369
    %v2371 = vpop.f32.mrb[0].mxu0
    %2372 = vmatprep.mubr.f32.mxu0 0.0
    %2373 = vmatmul.mubr.f32.gmra.mrb[0].mxu0 %v2281
    %v2374 = vpop.f32.mrb[0].mxu0
    %v2375 = vadd.f32 0.0, %v2374
    %v2376 = vpop.f32.mrb[0].mxu0
    %2377 = vdwg.mxu0
    %v2379 = vsel %vm696, %v2350, 0
    %v2382 = vsel %vm696, %v2355, 0
    %v2385 = vsel %vm696, %v2360, 0
    %v2388 = vsel %vm696, %v2365, 0
    %v2391 = vsel %vm696, %v2370, 0
    %v2394 = vsel %vm696, %v2375, 0
    %2396 = vmatprep.subr.mxu0 0.0
    %2397 = vmatpush1.msra.mxu0 %v695
    %2398 = vmatprep.subr.mxu0 0.0
    %2399 = vmatpush1.msra.mxu0 0.0
    %2400 = vmatprep.subr.mxu0 0.0
    %2401 = vmatpush1.msra.mxu0 0.0
    %2402 = vmatprep.subr.mxu0 0.0
    %2403 = vmatpush1.msra.mxu0 0.0
    %2404 = vmatprep.subr.mxu0 0.0
    %2405 = vmatpush1.msra.mxu0 0.0
    %2406 = vmatprep.subr.mxu0 0.0
    %2407 = vmatpush1.msra.mxu0 0.0
    %2408 = vmatprep.subr.mxu0 0.0
    %2409 = vmatpush1.msra.mxu0 0.0
    %2410 = vmatprep.subr.mxu0 0.0
    %2411 = vmatpush1.msra.mxu0 0.0
    %2412 = vmatprep.subr.mxu0 0.0
    %2413 = vmatpush1.msra.mxu0 0.0
    %2414 = vmatprep.subr.mxu0 0.0
    %2415 = vmatpush1.msra.mxu0 0.0
    %2416 = vmatprep.subr.mxu0 0.0
    %2417 = vmatpush1.msra.mxu0 0.0
    %2418 = vmatprep.subr.mxu0 0.0
    %2419 = vmatpush1.msra.mxu0 0.0
    %2420 = vmatprep.subr.mxu0 0.0
    %2421 = vmatpush1.msra.mxu0 0.0
    %2422 = vmatprep.subr.mxu0 0.0
    %2423 = vmatpush1.msra.mxu0 0.0
    %2424 = vmatprep.subr.mxu0 0.0
    %2425 = vmatpush1.msra.mxu0 0.0
    %2426 = vmatprep.subr.mxu0 0.0
    %2427 = vmatpush1.msra.mxu0 0.0
    %2428 = vmatprep.subr.mxu0 0.0
    %2429 = vmatpush1.msra.mxu0 0.0
    %2430 = vmatprep.subr.mxu0 0.0
    %2431 = vmatpush1.msra.mxu0 0.0
    %2432 = vmatprep.subr.mxu0 0.0
    %2433 = vmatpush1.msra.mxu0 0.0
    %2434 = vmatprep.subr.mxu0 0.0
    %2435 = vmatpush1.msra.mxu0 0.0
    %2436 = vmatprep.subr.mxu0 0.0
    %2437 = vmatpush1.msra.mxu0 0.0
    %2438 = vmatprep.subr.mxu0 0.0
    %2439 = vmatpush1.msra.mxu0 0.0
    %2440 = vmatprep.subr.mxu0 0.0
    %2441 = vmatpush1.msra.mxu0 0.0
    %2442 = vmatprep.subr.mxu0 0.0
    %2443 = vmatpush1.msra.mxu0 0.0
    %2444 = vmatprep.subr.mxu0 0.0
    %2445 = vmatpush1.msra.mxu0 0.0
    %2446 = vmatprep.subr.mxu0 0.0
    %2447 = vmatpush1.msra.mxu0 0.0
    %2448 = vmatprep.subr.mxu0 0.0
    %2449 = vmatpush1.msra.mxu0 0.0
    %2450 = vmatprep.subr.mxu0 0.0
    %2451 = vmatpush1.msra.mxu0 0.0
    %2452 = vmatprep.subr.mxu0 0.0
    %2453 = vmatpush1.msra.mxu0 0.0
    %2454 = vmatprep.subr.mxu0 0.0
    %2455 = vmatpush1.msra.mxu0 0.0
    %2456 = vmatprep.subr.mxu0 0.0
    %2457 = vmatpush1.msra.mxu0 0.0
    %2458 = vmatprep.subr.mxu0 0.0
    %2459 = vmatpush1.msra.mxu0 0.0
    %2460 = vmatprep.mubr.f32.mxu0 0.0
    %2461 = vmatmul.mubr.f32.gmra.mrb[0].mxu0 %v2379
    %v2462 = vpop.f32.mrb[0].mxu0
    %v2463 = vadd.f32 0.0, %v2462
    %v2464 = vpop.f32.mrb[0].mxu0
    %2465 = vmatprep.mubr.f32.mxu0 0.0
    %2466 = vmatmul.mubr.f32.gmra.mrb[0].mxu0 %v2382
    %v2467 = vpop.f32.mrb[0].mxu0
    %v2468 = vadd.f32 0.0, %v2467
    %v2469 = vpop.f32.mrb[0].mxu0
    %2470 = vmatprep.mubr.f32.mxu0 0.0
    %2471 = vmatmul.mubr.f32.gmra.mrb[0].mxu0 %v2385
    %v2472 = vpop.f32.mrb[0].mxu0
    %v2473 = vadd.f32 0.0, %v2472
    %v2474 = vpop.f32.mrb[0].mxu0
    %2475 = vmatprep.mubr.f32.mxu0 0.0
    %2476 = vmatmul.mubr.f32.gmra.mrb[0].mxu0 %v2388
    %v2477 = vpop.f32.mrb[0].mxu0
    %v2478 = vadd.f32 0.0, %v2477
    %v2479 = vpop.f32.mrb[0].mxu0
    %2480 = vmatprep.mubr.f32.mxu0 0.0
    %2481 = vmatmul.mubr.f32.gmra.mrb[0].mxu0 %v2391
    %v2482 = vpop.f32.mrb[0].mxu0
    %v2483 = vadd.f32 0.0, %v2482
    %v2484 = vpop.f32.mrb[0].mxu0
    %2485 = vmatprep.mubr.f32.mxu0 0.0
    %2486 = vmatmul.mubr.f32.gmra.mrb[0].mxu0 %v2394
    %v2487 = vpop.f32.mrb[0].mxu0
    %v2488 = vadd.f32 0.0, %v2487
    %v2489 = vpop.f32.mrb[0].mxu0
    %2490 = vdwg.mxu0
    %v2491 = vadd.f32 %v2032, %v2463
    %v2492 = vadd.f32 %v2033, %v2468
    %v2493 = vadd.f32 %v2034, %v2473
    %v2494 = vadd.f32 %v2035, %v2478
    %v2495 = vadd.f32 %v2036, %v2483
    %v2496 = vadd.f32 %v2037, %v2488
    %v2497 = vadd.f32 %v210, %v2491
    %v2498 = vadd.f32 %v215, %v2492
    %v2499 = vadd.f32 %v220, %v2493
    %v2500 = vadd.f32 %v225, %v2494
    %v2501 = vadd.f32 %v230, %v2495
    %v2502 = vadd.f32 %v235, %v2496
    %v2503 = vld [vmem:[%s13] sm:$0x1]
    %v2505 = vlaneseq
    %v2506 = vshrl.u32 %v2505, 7
    %v2507 = vsub.s32 0, %v2506
    %v2508 = vrot.slane %v2503, %v2507
    %v2510 = vadd.f32 %v2497, %v2508
    %v2511 = vadd.f32 %v2498, %v2508
    %v2512 = vadd.f32 %v2499, %v2508
    %v2513 = vadd.f32 %v2500, %v2508
    %v2514 = vadd.f32 %v2501, %v2508
    %v2515 = vadd.f32 %v2502, %v2508
    %v2516 = vld [vmem:[%s14] sm:$0x1]
    %v2517 = vld [vmem:[%s15] sm:$0x1]
    %v2518 = vsel %vm246, %v2510, 0.0
    %2519 = vadd.xlane.f32.xlu0 %v2518
    %v2520 = vpop.xlane.xlu0 %2519
    %v2521 = vsel %vm246, %v2511, 0.0
    %2522 = vadd.xlane.f32.xlu0 %v2521
    %v2523 = vpop.xlane.xlu0 %2522
    %v2524 = vsel %vm246, %v2512, 0.0
    %2525 = vadd.xlane.f32.xlu0 %v2524
    %v2526 = vpop.xlane.xlu0 %2525
    %v2527 = vsel %vm246, %v2513, 0.0
    %2528 = vadd.xlane.f32.xlu0 %v2527
    %v2529 = vpop.xlane.xlu0 %2528
    %v2530 = vsel %vm246, %v2514, 0.0
    %2531 = vadd.xlane.f32.xlu0 %v2530
    %v2532 = vpop.xlane.xlu0 %2531
    %v2533 = vsel %vm246, %v2515, 0.0
    %2534 = vadd.xlane.f32.xlu0 %v2533
    %v2535 = vpop.xlane.xlu0 %2534
    %v2536 = vmul.f32 %v2520, %v265
    %v2537 = vmul.f32 %v2523, %v265
    %v2538 = vmul.f32 %v2526, %v265
    %v2539 = vmul.f32 %v2529, %v265
    %v2540 = vmul.f32 %v2532, %v265
    %v2541 = vmul.f32 %v2535, %v265
    %v2542 = vsub.f32 %v2510, %v2536
    %v2543 = vsub.f32 %v2511, %v2537
    %v2544 = vsub.f32 %v2512, %v2538
    %v2545 = vsub.f32 %v2513, %v2539
    %v2546 = vsub.f32 %v2514, %v2540
    %v2547 = vsub.f32 %v2515, %v2541
    %v2548 = vmul.f32 %v2542, %v2542
    %v2549 = vmul.f32 %v2543, %v2543
    %v2550 = vmul.f32 %v2544, %v2544
    %v2551 = vmul.f32 %v2545, %v2545
    %v2552 = vmul.f32 %v2546, %v2546
    %v2553 = vmul.f32 %v2547, %v2547
    %v2554 = vsel %vm246, %v2548, 0.0
    %2555 = vadd.xlane.f32.xlu0 %v2554
    %v2556 = vpop.xlane.xlu0 %2555
    %v2557 = vsel %vm246, %v2549, 0.0
    %2558 = vadd.xlane.f32.xlu0 %v2557
    %v2559 = vpop.xlane.xlu0 %2558
    %v2560 = vsel %vm246, %v2550, 0.0
    %2561 = vadd.xlane.f32.xlu0 %v2560
    %v2562 = vpop.xlane.xlu0 %2561
    %v2563 = vsel %vm246, %v2551, 0.0
    %2564 = vadd.xlane.f32.xlu0 %v2563
    %v2565 = vpop.xlane.xlu0 %2564
    %v2566 = vsel %vm246, %v2552, 0.0
    %2567 = vadd.xlane.f32.xlu0 %v2566
    %v2568 = vpop.xlane.xlu0 %2567
    %v2569 = vsel %vm246, %v2553, 0.0
    %2570 = vadd.xlane.f32.xlu0 %v2569
    %v2571 = vpop.xlane.xlu0 %2570
    %v2572 = vmul.f32 %v2556, %v265
    %v2573 = vmul.f32 %v2559, %v265
    %v2574 = vmul.f32 %v2562, %v265
    %v2575 = vmul.f32 %v2565, %v265
    %v2576 = vmul.f32 %v2568, %v265
    %v2577 = vmul.f32 %v2571, %v265
    %v2578 = vadd.f32 %v2572, 1e-12
    %v2579 = vadd.f32 %v2573, 1e-12
    %v2580 = vadd.f32 %v2574, 1e-12
    %v2581 = vadd.f32 %v2575, 1e-12
    %v2582 = vadd.f32 %v2576, 1e-12
    %v2583 = vadd.f32 %v2577, 1e-12
    %v2584 = vrsqrt.pop %v2578
    %v2585 = vrsqrt.pop %v2579
    %v2586 = vrsqrt.pop %v2580
    %v2587 = vrsqrt.pop %v2581
    %v2588 = vrsqrt.pop %v2582
    %v2589 = vrsqrt.pop %v2583
    %v2590 = vmul.f32 %v2542, %v2584
    %v2591 = vmul.f32 %v2543, %v2585
    %v2592 = vmul.f32 %v2544, %v2586
    %v2593 = vmul.f32 %v2545, %v2587
    %v2594 = vmul.f32 %v2546, %v2588
    %v2595 = vmul.f32 %v2547, %v2589
    %v2597 = vlaneseq
    %v2598 = vshrl.u32 %v2597, 7
    %v2599 = vsub.s32 0, %v2598
    %v2600 = vrot.slane %v2516, %v2599
    %v2602 = vmul.f32 %v2590, %v2600
    %v2603 = vmul.f32 %v2591, %v2600
    %v2604 = vmul.f32 %v2592, %v2600
    %v2605 = vmul.f32 %v2593, %v2600
    %v2606 = vmul.f32 %v2594, %v2600
    %v2607 = vmul.f32 %v2595, %v2600
    %v2609 = vlaneseq
    %v2610 = vshrl.u32 %v2609, 7
    %v2611 = vsub.s32 0, %v2610
    %v2612 = vrot.slane %v2517, %v2611
    %v2614 = vadd.f32 %v2602, %v2612
    %v2615 = vadd.f32 %v2603, %v2612
    %v2616 = vadd.f32 %v2604, %v2612
    %v2617 = vadd.f32 %v2605, %v2612
    %v2618 = vadd.f32 %v2606, %v2612
    %v2619 = vadd.f32 %v2607, %v2612
    %v2620 = vld [vmem:[%s16] sm:$0xff]
    %v2621 = vld [vmem:[%s16 + $0x8] sm:$0xff]
    %v2622 = vld [vmem:[%s16 + $0x10] sm:$0xff]
    %v2623 = vld [vmem:[%s16 + $0x18] sm:$0xff]
    %v2624 = vld [vmem:[%s17] sm:$0x1]
    %v2626 = vlaneseq
    %v2627 = vshrl.u32 %v2626, 7
    %v2628 = vsub.s32 0, %v2627
    %v2629 = vrot.slane %v2624, %v2628
    %v2632 = vsel %vm246, %v2614, 0
    %v2635 = vsel %vm246, %v2615, 0
    %v2638 = vsel %vm246, %v2616, 0
    %v2641 = vsel %vm246, %v2617, 0
    %v2644 = vsel %vm246, %v2618, 0
    %v2647 = vsel %vm246, %v2619, 0
    %2649 = vmatprep.subr.mxu0 0.0
    %2650 = vmatpush1.msra.mxu0 %v2620
    %2651 = vmatprep.subr.mxu0 0.0
    %2652 = vmatpush1.msra.mxu0 %v2621
    %2653 = vmatprep.subr.mxu0 0.0
    %2654 = vmatpush1.msra.mxu0 %v2622
    %2655 = vmatprep.subr.mxu0 0.0
    %2656 = vmatpush1.msra.mxu0 %v2623
    %2657 = vmatprep.subr.mxu0 0.0
    %2658 = vmatpush1.msra.mxu0 0.0
    %2659 = vmatprep.subr.mxu0 0.0
    %2660 = vmatpush1.msra.mxu0 0.0
    %2661 = vmatprep.subr.mxu0 0.0
    %2662 = vmatpush1.msra.mxu0 0.0
    %2663 = vmatprep.subr.mxu0 0.0
    %2664 = vmatpush1.msra.mxu0 0.0
    %2665 = vmatprep.subr.mxu0 0.0
    %2666 = vmatpush1.msra.mxu0 0.0
    %2667 = vmatprep.subr.mxu0 0.0
    %2668 = vmatpush1.msra.mxu0 0.0
    %2669 = vmatprep.subr.mxu0 0.0
    %2670 = vmatpush1.msra.mxu0 0.0
    %2671 = vmatprep.subr.mxu0 0.0
    %2672 = vmatpush1.msra.mxu0 0.0
    %2673 = vmatprep.subr.mxu0 0.0
    %2674 = vmatpush1.msra.mxu0 0.0
    %2675 = vmatprep.subr.mxu0 0.0
    %2676 = vmatpush1.msra.mxu0 0.0
    %2677 = vmatprep.subr.mxu0 0.0
    %2678 = vmatpush1.msra.mxu0 0.0
    %2679 = vmatprep.subr.mxu0 0.0
    %2680 = vmatpush1.msra.mxu0 0.0
    %2681 = vmatprep.subr.mxu0 0.0
    %2682 = vmatpush1.msra.mxu0 0.0
    %2683 = vmatprep.subr.mxu0 0.0
    %2684 = vmatpush1.msra.mxu0 0.0
    %2685 = vmatprep.subr.mxu0 0.0
    %2686 = vmatpush1.msra.mxu0 0.0
    %2687 = vmatprep.subr.mxu0 0.0
    %2688 = vmatpush1.msra.mxu0 0.0
    %2689 = vmatprep.subr.mxu0 0.0
    %2690 = vmatpush1.msra.mxu0 0.0
    %2691 = vmatprep.subr.mxu0 0.0
    %2692 = vmatpush1.msra.mxu0 0.0
    %2693 = vmatprep.subr.mxu0 0.0
    %2694 = vmatpush1.msra.mxu0 0.0
    %2695 = vmatprep.subr.mxu0 0.0
    %2696 = vmatpush1.msra.mxu0 0.0
    %2697 = vmatprep.subr.mxu0 0.0
    %2698 = vmatpush1.msra.mxu0 0.0
    %2699 = vmatprep.subr.mxu0 0.0
    %2700 = vmatpush1.msra.mxu0 0.0
    %2701 = vmatprep.subr.mxu0 0.0
    %2702 = vmatpush1.msra.mxu0 0.0
    %2703 = vmatprep.subr.mxu0 0.0
    %2704 = vmatpush1.msra.mxu0 0.0
    %2705 = vmatprep.subr.mxu0 0.0
    %2706 = vmatpush1.msra.mxu0 0.0
    %2707 = vmatprep.subr.mxu0 0.0
    %2708 = vmatpush1.msra.mxu0 0.0
    %2709 = vmatprep.subr.mxu0 0.0
    %2710 = vmatpush1.msra.mxu0 0.0
    %2711 = vmatprep.subr.mxu0 0.0
    %2712 = vmatpush1.msra.mxu0 0.0
    %2713 = vmatprep.mubr.f32.mxu0 0.0
    %2714 = vmatmul.mubr.f32.gmra.mrb[0].mxu0 %v2632
    %v2715 = vpop.f32.mrb[0].mxu0
    %v2716 = vadd.f32 %v2629, %v2715
    %v2717 = vpop.f32.mrb[0].mxu0
    %2718 = vmatprep.mubr.f32.mxu0 0.0
    %2719 = vmatmul.mubr.f32.gmra.mrb[0].mxu0 %v2635
    %v2720 = vpop.f32.mrb[0].mxu0
    %v2721 = vadd.f32 %v2629, %v2720
    %v2722 = vpop.f32.mrb[0].mxu0
    %2723 = vmatprep.mubr.f32.mxu0 0.0
    %2724 = vmatmul.mubr.f32.gmra.mrb[0].mxu0 %v2638
    %v2725 = vpop.f32.mrb[0].mxu0
    %v2726 = vadd.f32 %v2629, %v2725
    %v2727 = vpop.f32.mrb[0].mxu0
    %2728 = vmatprep.mubr.f32.mxu0 0.0
    %2729 = vmatmul.mubr.f32.gmra.mrb[0].mxu0 %v2641
    %v2730 = vpop.f32.mrb[0].mxu0
    %v2731 = vadd.f32 %v2629, %v2730
    %v2732 = vpop.f32.mrb[0].mxu0
    %2733 = vmatprep.mubr.f32.mxu0 0.0
    %2734 = vmatmul.mubr.f32.gmra.mrb[0].mxu0 %v2644
    %v2735 = vpop.f32.mrb[0].mxu0
    %v2736 = vadd.f32 %v2629, %v2735
    %v2737 = vpop.f32.mrb[0].mxu0
    %2738 = vmatprep.mubr.f32.mxu0 0.0
    %2739 = vmatmul.mubr.f32.gmra.mrb[0].mxu0 %v2647
    %v2740 = vpop.f32.mrb[0].mxu0
    %v2741 = vadd.f32 %v2629, %v2740
    %v2742 = vpop.f32.mrb[0].mxu0
    %2743 = vdwg.mxu0
    %v2744 = vmul.f32 %v2716, 0.5
    %v2745 = vmul.f32 %v2721, 0.5
    %v2746 = vmul.f32 %v2726, 0.5
    %v2747 = vmul.f32 %v2731, 0.5
    %v2748 = vmul.f32 %v2736, 0.5
    %v2749 = vmul.f32 %v2741, 0.5
    %v2750 = vmul.f32 %v2716, 0.044715
    %v2751 = vmul.f32 %v2721, 0.044715
    %v2752 = vmul.f32 %v2726, 0.044715
    %v2753 = vmul.f32 %v2731, 0.044715
    %v2754 = vmul.f32 %v2736, 0.044715
    %v2755 = vmul.f32 %v2741, 0.044715
    %v2756 = vmul.f32 %v2750, %v2716
    %v2757 = vmul.f32 %v2751, %v2721
    %v2758 = vmul.f32 %v2752, %v2726
    %v2759 = vmul.f32 %v2753, %v2731
    %v2760 = vmul.f32 %v2754, %v2736
    %v2761 = vmul.f32 %v2755, %v2741
    %v2762 = vmul.f32 %v2756, %v2716
    %v2763 = vmul.f32 %v2757, %v2721
    %v2764 = vmul.f32 %v2758, %v2726
    %v2765 = vmul.f32 %v2759, %v2731
    %v2766 = vmul.f32 %v2760, %v2736
    %v2767 = vmul.f32 %v2761, %v2741
    %v2768 = vadd.f32 %v2716, %v2762
    %v2769 = vadd.f32 %v2721, %v2763
    %v2770 = vadd.f32 %v2726, %v2764
    %v2771 = vadd.f32 %v2731, %v2765
    %v2772 = vadd.f32 %v2736, %v2766
    %v2773 = vadd.f32 %v2741, %v2767
    %v2774 = vmul.f32 %v2768, 0.7978846
    %v2775 = vmul.f32 %v2769, 0.7978846
    %v2776 = vmul.f32 %v2770, 0.7978846
    %v2777 = vmul.f32 %v2771, 0.7978846
    %v2778 = vmul.f32 %v2772, 0.7978846
    %v2779 = vmul.f32 %v2773, 0.7978846
    %v2780 = vtanh.pop %v2774
    %v2781 = vtanh.pop %v2775
    %v2782 = vtanh.pop %v2776
    %v2783 = vtanh.pop %v2777
    %v2784 = vtanh.pop %v2778
    %v2785 = vtanh.pop %v2779
    %v2786 = vadd.f32 %v2780, 1.0
    %v2787 = vadd.f32 %v2781, 1.0
    %v2788 = vadd.f32 %v2782, 1.0
    %v2789 = vadd.f32 %v2783, 1.0
    %v2790 = vadd.f32 %v2784, 1.0
    %v2791 = vadd.f32 %v2785, 1.0
    %v2792 = vmul.f32 %v2744, %v2786
    %v2793 = vmul.f32 %v2745, %v2787
    %v2794 = vmul.f32 %v2746, %v2788
    %v2795 = vmul.f32 %v2747, %v2789
    %v2796 = vmul.f32 %v2748, %v2790
    %v2797 = vmul.f32 %v2749, %v2791
    %v2798 = vld [vmem:[%s18] sm:$0xff]
    %v2799 = vld [vmem:[%s18 + $0x8] sm:$0xff]
    %v2800 = vld [vmem:[%s18 + $0x10] sm:$0xff]
    %v2801 = vld [vmem:[%s18 + $0x18] sm:$0xff]
    %v2802 = vld [vmem:[%s18 + $0x20] sm:$0xff]
    %v2803 = vld [vmem:[%s18 + $0x28] sm:$0xff]
    %v2804 = vld [vmem:[%s18 + $0x30] sm:$0xff]
    %v2805 = vld [vmem:[%s18 + $0x38] sm:$0xff]
    %vm2806 = vcmask 523264
    %v2808 = vsel %vm2806, %v2792, 0
    %v2811 = vsel %vm2806, %v2793, 0
    %v2814 = vsel %vm2806, %v2794, 0
    %v2817 = vsel %vm2806, %v2795, 0
    %v2820 = vsel %vm2806, %v2796, 0
    %v2823 = vsel %vm2806, %v2797, 0
    %2825 = vmatprep.subr.mxu0 0.0
    %2826 = vmatpush1.msra.mxu0 %v2798
    %2827 = vmatprep.subr.mxu0 0.0
    %2828 = vmatpush1.msra.mxu0 %v2799
    %2829 = vmatprep.subr.mxu0 0.0
    %2830 = vmatpush1.msra.mxu0 %v2800
    %2831 = vmatprep.subr.mxu0 0.0
    %2832 = vmatpush1.msra.mxu0 %v2801
    %2833 = vmatprep.subr.mxu0 0.0
    %2834 = vmatpush1.msra.mxu0 %v2802
    %2835 = vmatprep.subr.mxu0 0.0
    %2836 = vmatpush1.msra.mxu0 %v2803
    %2837 = vmatprep.subr.mxu0 0.0
    %2838 = vmatpush1.msra.mxu0 %v2804
    %2839 = vmatprep.subr.mxu0 0.0
    %2840 = vmatpush1.msra.mxu0 %v2805
    %2841 = vmatprep.subr.mxu0 0.0
    %2842 = vmatpush1.msra.mxu0 0.0
    %2843 = vmatprep.subr.mxu0 0.0
    %2844 = vmatpush1.msra.mxu0 0.0
    %2845 = vmatprep.subr.mxu0 0.0
    %2846 = vmatpush1.msra.mxu0 0.0
    %2847 = vmatprep.subr.mxu0 0.0
    %2848 = vmatpush1.msra.mxu0 0.0
    %2849 = vmatprep.subr.mxu0 0.0
    %2850 = vmatpush1.msra.mxu0 0.0
    %2851 = vmatprep.subr.mxu0 0.0
    %2852 = vmatpush1.msra.mxu0 0.0
    %2853 = vmatprep.subr.mxu0 0.0
    %2854 = vmatpush1.msra.mxu0 0.0
    %2855 = vmatprep.subr.mxu0 0.0
    %2856 = vmatpush1.msra.mxu0 0.0
    %2857 = vmatprep.subr.mxu0 0.0
    %2858 = vmatpush1.msra.mxu0 0.0
    %2859 = vmatprep.subr.mxu0 0.0
    %2860 = vmatpush1.msra.mxu0 0.0
    %2861 = vmatprep.subr.mxu0 0.0
    %2862 = vmatpush1.msra.mxu0 0.0
    %2863 = vmatprep.subr.mxu0 0.0
    %2864 = vmatpush1.msra.mxu0 0.0
    %2865 = vmatprep.subr.mxu0 0.0
    %2866 = vmatpush1.msra.mxu0 0.0
    %2867 = vmatprep.subr.mxu0 0.0
    %2868 = vmatpush1.msra.mxu0 0.0
    %2869 = vmatprep.subr.mxu0 0.0
    %2870 = vmatpush1.msra.mxu0 0.0
    %2871 = vmatprep.subr.mxu0 0.0
    %2872 = vmatpush1.msra.mxu0 0.0
    %2873 = vmatprep.subr.mxu0 0.0
    %2874 = vmatpush1.msra.mxu0 0.0
    %2875 = vmatprep.subr.mxu0 0.0
    %2876 = vmatpush1.msra.mxu0 0.0
    %2877 = vmatprep.subr.mxu0 0.0
    %2878 = vmatpush1.msra.mxu0 0.0
    %2879 = vmatprep.subr.mxu0 0.0
    %2880 = vmatpush1.msra.mxu0 0.0
    %2881 = vmatprep.subr.mxu0 0.0
    %2882 = vmatpush1.msra.mxu0 0.0
    %2883 = vmatprep.subr.mxu0 0.0
    %2884 = vmatpush1.msra.mxu0 0.0
    %2885 = vmatprep.subr.mxu0 0.0
    %2886 = vmatpush1.msra.mxu0 0.0
    %2887 = vmatprep.subr.mxu0 0.0
    %2888 = vmatpush1.msra.mxu0 0.0
    %2889 = vmatprep.mubr.f32.mxu0 0.0
    %2890 = vmatmul.mubr.f32.gmra.mrb[0].mxu0 %v2808
    %v2891 = vpop.f32.mrb[0].mxu0
    %v2892 = vadd.f32 0.0, %v2891
    %v2893 = vpop.f32.mrb[0].mxu0
    %2894 = vmatprep.mubr.f32.mxu0 0.0
    %2895 = vmatmul.mubr.f32.gmra.mrb[0].mxu0 %v2811
    %v2896 = vpop.f32.mrb[0].mxu0
    %v2897 = vadd.f32 0.0, %v2896
    %v2898 = vpop.f32.mrb[0].mxu0
    %2899 = vmatprep.mubr.f32.mxu0 0.0
    %2900 = vmatmul.mubr.f32.gmra.mrb[0].mxu0 %v2814
    %v2901 = vpop.f32.mrb[0].mxu0
    %v2902 = vadd.f32 0.0, %v2901
    %v2903 = vpop.f32.mrb[0].mxu0
    %2904 = vmatprep.mubr.f32.mxu0 0.0
    %2905 = vmatmul.mubr.f32.gmra.mrb[0].mxu0 %v2817
    %v2906 = vpop.f32.mrb[0].mxu0
    %v2907 = vadd.f32 0.0, %v2906
    %v2908 = vpop.f32.mrb[0].mxu0
    %2909 = vmatprep.mubr.f32.mxu0 0.0
    %2910 = vmatmul.mubr.f32.gmra.mrb[0].mxu0 %v2820
    %v2911 = vpop.f32.mrb[0].mxu0
    %v2912 = vadd.f32 0.0, %v2911
    %v2913 = vpop.f32.mrb[0].mxu0
    %2914 = vmatprep.mubr.f32.mxu0 0.0
    %2915 = vmatmul.mubr.f32.gmra.mrb[0].mxu0 %v2823
    %v2916 = vpop.f32.mrb[0].mxu0
    %v2917 = vadd.f32 0.0, %v2916
    %v2918 = vpop.f32.mrb[0].mxu0
    %2919 = vdwg.mxu0
    %v2920 = vadd.f32 %v2510, %v2892
    %v2921 = vadd.f32 %v2511, %v2897
    %v2922 = vadd.f32 %v2512, %v2902
    %v2923 = vadd.f32 %v2513, %v2907
    %v2924 = vadd.f32 %v2514, %v2912
    %v2925 = vadd.f32 %v2515, %v2917
    %v2926 = vld [vmem:[%s19] sm:$0x1]
    %v2928 = vlaneseq
    %v2929 = vshrl.u32 %v2928, 7
    %v2930 = vsub.s32 0, %v2929
    %v2931 = vrot.slane %v2926, %v2930
    %v2933 = vadd.f32 %v2920, %v2931
    %v2934 = vadd.f32 %v2921, %v2931
    %v2935 = vadd.f32 %v2922, %v2931
    %v2936 = vadd.f32 %v2923, %v2931
    %v2937 = vadd.f32 %v2924, %v2931
    %v2938 = vadd.f32 %v2925, %v2931
    %s2939 = scalar_lea.vmem %s4, 1
    %v2940 = vld [vmem:[%s2939] sm:$0x1]
    %s2941 = scalar_lea.vmem %s5, 1
    %v2942 = vld [vmem:[%s2941] sm:$0x1]
    %v2943 = vsel %vm246, %v2933, 0.0
    %2944 = vadd.xlane.f32.xlu0 %v2943
    %v2945 = vpop.xlane.xlu0 %2944
    %v2946 = vsel %vm246, %v2934, 0.0
    %2947 = vadd.xlane.f32.xlu0 %v2946
    %v2948 = vpop.xlane.xlu0 %2947
    %v2949 = vsel %vm246, %v2935, 0.0
    %2950 = vadd.xlane.f32.xlu0 %v2949
    %v2951 = vpop.xlane.xlu0 %2950
    %v2952 = vsel %vm246, %v2936, 0.0
    %2953 = vadd.xlane.f32.xlu0 %v2952
    %v2954 = vpop.xlane.xlu0 %2953
    %v2955 = vsel %vm246, %v2937, 0.0
    %2956 = vadd.xlane.f32.xlu0 %v2955
    %v2957 = vpop.xlane.xlu0 %2956
    %v2958 = vsel %vm246, %v2938, 0.0
    %2959 = vadd.xlane.f32.xlu0 %v2958
    %v2960 = vpop.xlane.xlu0 %2959
    %v2961 = vmul.f32 %v2945, %v265
    %v2962 = vmul.f32 %v2948, %v265
    %v2963 = vmul.f32 %v2951, %v265
    %v2964 = vmul.f32 %v2954, %v265
    %v2965 = vmul.f32 %v2957, %v265
    %v2966 = vmul.f32 %v2960, %v265
    %v2967 = vsub.f32 %v2933, %v2961
    %v2968 = vsub.f32 %v2934, %v2962
    %v2969 = vsub.f32 %v2935, %v2963
    %v2970 = vsub.f32 %v2936, %v2964
    %v2971 = vsub.f32 %v2937, %v2965
    %v2972 = vsub.f32 %v2938, %v2966
    %v2973 = vmul.f32 %v2967, %v2967
    %v2974 = vmul.f32 %v2968, %v2968
    %v2975 = vmul.f32 %v2969, %v2969
    %v2976 = vmul.f32 %v2970, %v2970
    %v2977 = vmul.f32 %v2971, %v2971
    %v2978 = vmul.f32 %v2972, %v2972
    %v2979 = vsel %vm246, %v2973, 0.0
    %2980 = vadd.xlane.f32.xlu0 %v2979
    %v2981 = vpop.xlane.xlu0 %2980
    %v2982 = vsel %vm246, %v2974, 0.0
    %2983 = vadd.xlane.f32.xlu0 %v2982
    %v2984 = vpop.xlane.xlu0 %2983
    %v2985 = vsel %vm246, %v2975, 0.0
    %2986 = vadd.xlane.f32.xlu0 %v2985
    %v2987 = vpop.xlane.xlu0 %2986
    %v2988 = vsel %vm246, %v2976, 0.0
    %2989 = vadd.xlane.f32.xlu0 %v2988
    %v2990 = vpop.xlane.xlu0 %2989
    %v2991 = vsel %vm246, %v2977, 0.0
    %2992 = vadd.xlane.f32.xlu0 %v2991
    %v2993 = vpop.xlane.xlu0 %2992
    %v2994 = vsel %vm246, %v2978, 0.0
    %2995 = vadd.xlane.f32.xlu0 %v2994
    %v2996 = vpop.xlane.xlu0 %2995
    %v2997 = vmul.f32 %v2981, %v265
    %v2998 = vmul.f32 %v2984, %v265
    %v2999 = vmul.f32 %v2987, %v265
    %v3000 = vmul.f32 %v2990, %v265
    %v3001 = vmul.f32 %v2993, %v265
    %v3002 = vmul.f32 %v2996, %v265
    %v3003 = vadd.f32 %v2997, 1e-12
    %v3004 = vadd.f32 %v2998, 1e-12
    %v3005 = vadd.f32 %v2999, 1e-12
    %v3006 = vadd.f32 %v3000, 1e-12
    %v3007 = vadd.f32 %v3001, 1e-12
    %v3008 = vadd.f32 %v3002, 1e-12
    %v3009 = vrsqrt.pop %v3003
    %v3010 = vrsqrt.pop %v3004
    %v3011 = vrsqrt.pop %v3005
    %v3012 = vrsqrt.pop %v3006
    %v3013 = vrsqrt.pop %v3007
    %v3014 = vrsqrt.pop %v3008
    %v3015 = vmul.f32 %v2967, %v3009
    %v3016 = vmul.f32 %v2968, %v3010
    %v3017 = vmul.f32 %v2969, %v3011
    %v3018 = vmul.f32 %v2970, %v3012
    %v3019 = vmul.f32 %v2971, %v3013
    %v3020 = vmul.f32 %v2972, %v3014
    %v3022 = vlaneseq
    %v3023 = vshrl.u32 %v3022, 7
    %v3024 = vsub.s32 0, %v3023
    %v3025 = vrot.slane %v2940, %v3024
    %v3027 = vmul.f32 %v3015, %v3025
    %v3028 = vmul.f32 %v3016, %v3025
    %v3029 = vmul.f32 %v3017, %v3025
    %v3030 = vmul.f32 %v3018, %v3025
    %v3031 = vmul.f32 %v3019, %v3025
    %v3032 = vmul.f32 %v3020, %v3025
    %v3034 = vlaneseq
    %v3035 = vshrl.u32 %v3034, 7
    %v3036 = vsub.s32 0, %v3035
    %v3037 = vrot.slane %v2942, %v3036
    %v3039 = vadd.f32 %v3027, %v3037
    %v3040 = vadd.f32 %v3028, %v3037
    %v3041 = vadd.f32 %v3029, %v3037
    %v3042 = vadd.f32 %v3030, %v3037
    %v3043 = vadd.f32 %v3031, %v3037
    %v3044 = vadd.f32 %v3032, %v3037
    %s3045 = scalar_lea.vmem %s6, 32
    %v3046 = vld [vmem:[%s3045] sm:$0xff]
    %v3047 = vld [vmem:[%s3045 + $0x8] sm:$0xff]
    %v3048 = vld [vmem:[%s3045 + $0x10] sm:$0xff]
    %v3049 = vld [vmem:[%s3045 + $0x18] sm:$0xff]
    %s3050 = scalar_lea.vmem %s7, 1
    %v3051 = vld [vmem:[%s3050] sm:$0x1]
    %v3053 = vlaneseq
    %v3054 = vshrl.u32 %v3053, 7
    %v3055 = vsub.s32 0, %v3054
    %v3056 = vrot.slane %v3051, %v3055
    %v3059 = vsel %vm246, %v3039, 0
    %v3062 = vsel %vm246, %v3040, 0
    %v3065 = vsel %vm246, %v3041, 0
    %v3068 = vsel %vm246, %v3042, 0
    %v3071 = vsel %vm246, %v3043, 0
    %v3074 = vsel %vm246, %v3044, 0
    %3076 = vmatprep.subr.mxu0 0.0
    %3077 = vmatpush1.msra.mxu0 %v3046
    %3078 = vmatprep.subr.mxu0 0.0
    %3079 = vmatpush1.msra.mxu0 %v3047
    %3080 = vmatprep.subr.mxu0 0.0
    %3081 = vmatpush1.msra.mxu0 %v3048
    %3082 = vmatprep.subr.mxu0 0.0
    %3083 = vmatpush1.msra.mxu0 %v3049
    %3084 = vmatprep.subr.mxu0 0.0
    %3085 = vmatpush1.msra.mxu0 0.0
    %3086 = vmatprep.subr.mxu0 0.0
    %3087 = vmatpush1.msra.mxu0 0.0
    %3088 = vmatprep.subr.mxu0 0.0
    %3089 = vmatpush1.msra.mxu0 0.0
    %3090 = vmatprep.subr.mxu0 0.0
    %3091 = vmatpush1.msra.mxu0 0.0
    %3092 = vmatprep.subr.mxu0 0.0
    %3093 = vmatpush1.msra.mxu0 0.0
    %3094 = vmatprep.subr.mxu0 0.0
    %3095 = vmatpush1.msra.mxu0 0.0
    %3096 = vmatprep.subr.mxu0 0.0
    %3097 = vmatpush1.msra.mxu0 0.0
    %3098 = vmatprep.subr.mxu0 0.0
    %3099 = vmatpush1.msra.mxu0 0.0
    %3100 = vmatprep.subr.mxu0 0.0
    %3101 = vmatpush1.msra.mxu0 0.0
    %3102 = vmatprep.subr.mxu0 0.0
    %3103 = vmatpush1.msra.mxu0 0.0
    %3104 = vmatprep.subr.mxu0 0.0
    %3105 = vmatpush1.msra.mxu0 0.0
    %3106 = vmatprep.subr.mxu0 0.0
    %3107 = vmatpush1.msra.mxu0 0.0
    %3108 = vmatprep.subr.mxu0 0.0
    %3109 = vmatpush1.msra.mxu0 0.0
    %3110 = vmatprep.subr.mxu0 0.0
    %3111 = vmatpush1.msra.mxu0 0.0
    %3112 = vmatprep.subr.mxu0 0.0
    %3113 = vmatpush1.msra.mxu0 0.0
    %3114 = vmatprep.subr.mxu0 0.0
    %3115 = vmatpush1.msra.mxu0 0.0
    %3116 = vmatprep.subr.mxu0 0.0
    %3117 = vmatpush1.msra.mxu0 0.0
    %3118 = vmatprep.subr.mxu0 0.0
    %3119 = vmatpush1.msra.mxu0 0.0
    %3120 = vmatprep.subr.mxu0 0.0
    %3121 = vmatpush1.msra.mxu0 0.0
    %3122 = vmatprep.subr.mxu0 0.0
    %3123 = vmatpush1.msra.mxu0 0.0
    %3124 = vmatprep.subr.mxu0 0.0
    %3125 = vmatpush1.msra.mxu0 0.0
    %3126 = vmatprep.subr.mxu0 0.0
    %3127 = vmatpush1.msra.mxu0 0.0
    %3128 = vmatprep.subr.mxu0 0.0
    %3129 = vmatpush1.msra.mxu0 0.0
    %3130 = vmatprep.subr.mxu0 0.0
    %3131 = vmatpush1.msra.mxu0 0.0
    %3132 = vmatprep.subr.mxu0 0.0
    %3133 = vmatpush1.msra.mxu0 0.0
    %3134 = vmatprep.subr.mxu0 0.0
    %3135 = vmatpush1.msra.mxu0 0.0
    %3136 = vmatprep.subr.mxu0 0.0
    %3137 = vmatpush1.msra.mxu0 0.0
    %3138 = vmatprep.subr.mxu0 0.0
    %3139 = vmatpush1.msra.mxu0 0.0
    %3140 = vmatprep.mubr.f32.mxu0 0.0
    %3141 = vmatmul.mubr.f32.gmra.mrb[0].mxu0 %v3059
    %v3142 = vpop.f32.mrb[0].mxu0
    %v3143 = vadd.f32 %v3056, %v3142
    %v3144 = vpop.f32.mrb[0].mxu0
    %3145 = vmatprep.mubr.f32.mxu0 0.0
    %3146 = vmatmul.mubr.f32.gmra.mrb[0].mxu0 %v3062
    %v3147 = vpop.f32.mrb[0].mxu0
    %v3148 = vadd.f32 %v3056, %v3147
    %v3149 = vpop.f32.mrb[0].mxu0
    %3150 = vmatprep.mubr.f32.mxu0 0.0
    %3151 = vmatmul.mubr.f32.gmra.mrb[0].mxu0 %v3065
    %v3152 = vpop.f32.mrb[0].mxu0
    %v3153 = vadd.f32 %v3056, %v3152
    %v3154 = vpop.f32.mrb[0].mxu0
    %3155 = vmatprep.mubr.f32.mxu0 0.0
    %3156 = vmatmul.mubr.f32.gmra.mrb[0].mxu0 %v3068
    %v3157 = vpop.f32.mrb[0].mxu0
    %v3158 = vadd.f32 %v3056, %v3157
    %v3159 = vpop.f32.mrb[0].mxu0
    %3160 = vmatprep.mubr.f32.mxu0 0.0
    %3161 = vmatmul.mubr.f32.gmra.mrb[0].mxu0 %v3071
    %v3162 = vpop.f32.mrb[0].mxu0
    %v3163 = vadd.f32 %v3056, %v3162
    %v3164 = vpop.f32.mrb[0].mxu0
    %3165 = vmatprep.mubr.f32.mxu0 0.0
    %3166 = vmatmul.mubr.f32.gmra.mrb[0].mxu0 %v3074
    %v3167 = vpop.f32.mrb[0].mxu0
    %v3168 = vadd.f32 %v3056, %v3167
    %v3169 = vpop.f32.mrb[0].mxu0
    %3170 = vdwg.mxu0
    %v3171 = vmul.f32 %v3143, 0.35355338
    %v3172 = vmul.f32 %v3148, 0.35355338
    %v3173 = vmul.f32 %v3153, 0.35355338
    %v3174 = vmul.f32 %v3158, 0.35355338
    %v3175 = vmul.f32 %v3163, 0.35355338
    %v3176 = vmul.f32 %v3168, 0.35355338
    %s3177 = scalar_lea.vmem %s8, 32
    %v3178 = vld [vmem:[%s3177] sm:$0xff]
    %v3179 = vld [vmem:[%s3177 + $0x8] sm:$0xff]
    %v3180 = vld [vmem:[%s3177 + $0x10] sm:$0xff]
    %v3181 = vld [vmem:[%s3177 + $0x18] sm:$0xff]
    %s3182 = scalar_lea.vmem %s9, 1
    %v3183 = vld [vmem:[%s3182] sm:$0x1]
    %v3185 = vlaneseq
    %v3186 = vshrl.u32 %v3185, 7
    %v3187 = vsub.s32 0, %v3186
    %v3188 = vrot.slane %v3183, %v3187
    %3190 = vmatprep.subr.mxu0 0.0
    %3191 = vmatpush1.msra.mxu0 %v3178
    %3192 = vmatprep.subr.mxu0 0.0
    %3193 = vmatpush1.msra.mxu0 %v3179
    %3194 = vmatprep.subr.mxu0 0.0
    %3195 = vmatpush1.msra.mxu0 %v3180
    %3196 = vmatprep.subr.mxu0 0.0
    %3197 = vmatpush1.msra.mxu0 %v3181
    %3198 = vmatprep.subr.mxu0 0.0
    %3199 = vmatpush1.msra.mxu0 0.0
    %3200 = vmatprep.subr.mxu0 0.0
    %3201 = vmatpush1.msra.mxu0 0.0
    %3202 = vmatprep.subr.mxu0 0.0
    %3203 = vmatpush1.msra.mxu0 0.0
    %3204 = vmatprep.subr.mxu0 0.0
    %3205 = vmatpush1.msra.mxu0 0.0
    %3206 = vmatprep.subr.mxu0 0.0
    %3207 = vmatpush1.msra.mxu0 0.0
    %3208 = vmatprep.subr.mxu0 0.0
    %3209 = vmatpush1.msra.mxu0 0.0
    %3210 = vmatprep.subr.mxu0 0.0
    %3211 = vmatpush1.msra.mxu0 0.0
    %3212 = vmatprep.subr.mxu0 0.0
    %3213 = vmatpush1.msra.mxu0 0.0
    %3214 = vmatprep.subr.mxu0 0.0
    %3215 = vmatpush1.msra.mxu0 0.0
    %3216 = vmatprep.subr.mxu0 0.0
    %3217 = vmatpush1.msra.mxu0 0.0
    %3218 = vmatprep.subr.mxu0 0.0
    %3219 = vmatpush1.msra.mxu0 0.0
    %3220 = vmatprep.subr.mxu0 0.0
    %3221 = vmatpush1.msra.mxu0 0.0
    %3222 = vmatprep.subr.mxu0 0.0
    %3223 = vmatpush1.msra.mxu0 0.0
    %3224 = vmatprep.subr.mxu0 0.0
    %3225 = vmatpush1.msra.mxu0 0.0
    %3226 = vmatprep.subr.mxu0 0.0
    %3227 = vmatpush1.msra.mxu0 0.0
    %3228 = vmatprep.subr.mxu0 0.0
    %3229 = vmatpush1.msra.mxu0 0.0
    %3230 = vmatprep.subr.mxu0 0.0
    %3231 = vmatpush1.msra.mxu0 0.0
    %3232 = vmatprep.subr.mxu0 0.0
    %3233 = vmatpush1.msra.mxu0 0.0
    %3234 = vmatprep.subr.mxu0 0.0
    %3235 = vmatpush1.msra.mxu0 0.0
    %3236 = vmatprep.subr.mxu0 0.0
    %3237 = vmatpush1.msra.mxu0 0.0
    %3238 = vmatprep.subr.mxu0 0.0
    %3239 = vmatpush1.msra.mxu0 0.0
    %3240 = vmatprep.subr.mxu0 0.0
    %3241 = vmatpush1.msra.mxu0 0.0
    %3242 = vmatprep.subr.mxu0 0.0
    %3243 = vmatpush1.msra.mxu0 0.0
    %3244 = vmatprep.subr.mxu0 0.0
    %3245 = vmatpush1.msra.mxu0 0.0
    %3246 = vmatprep.subr.mxu0 0.0
    %3247 = vmatpush1.msra.mxu0 0.0
    %3248 = vmatprep.subr.mxu0 0.0
    %3249 = vmatpush1.msra.mxu0 0.0
    %3250 = vmatprep.subr.mxu0 0.0
    %3251 = vmatpush1.msra.mxu0 0.0
    %3252 = vmatprep.subr.mxu0 0.0
    %3253 = vmatpush1.msra.mxu0 0.0
    %3254 = vmatprep.mubr.f32.mxu0 0.0
    %3255 = vmatmul.mubr.f32.gmra.mrb[0].mxu0 %v3059
    %v3256 = vpop.f32.mrb[0].mxu0
    %v3257 = vadd.f32 %v3188, %v3256
    %v3258 = vpop.f32.mrb[0].mxu0
    %3259 = vmatprep.mubr.f32.mxu0 0.0
    %3260 = vmatmul.mubr.f32.gmra.mrb[0].mxu0 %v3062
    %v3261 = vpop.f32.mrb[0].mxu0
    %v3262 = vadd.f32 %v3188, %v3261
    %v3263 = vpop.f32.mrb[0].mxu0
    %3264 = vmatprep.mubr.f32.mxu0 0.0
    %3265 = vmatmul.mubr.f32.gmra.mrb[0].mxu0 %v3065
    %v3266 = vpop.f32.mrb[0].mxu0
    %v3267 = vadd.f32 %v3188, %v3266
    %v3268 = vpop.f32.mrb[0].mxu0
    %3269 = vmatprep.mubr.f32.mxu0 0.0
    %3270 = vmatmul.mubr.f32.gmra.mrb[0].mxu0 %v3068
    %v3271 = vpop.f32.mrb[0].mxu0
    %v3272 = vadd.f32 %v3188, %v3271
    %v3273 = vpop.f32.mrb[0].mxu0
    %3274 = vmatprep.mubr.f32.mxu0 0.0
    %3275 = vmatmul.mubr.f32.gmra.mrb[0].mxu0 %v3071
    %v3276 = vpop.f32.mrb[0].mxu0
    %v3277 = vadd.f32 %v3188, %v3276
    %v3278 = vpop.f32.mrb[0].mxu0
    %3279 = vmatprep.mubr.f32.mxu0 0.0
    %3280 = vmatmul.mubr.f32.gmra.mrb[0].mxu0 %v3074
    %v3281 = vpop.f32.mrb[0].mxu0
    %v3282 = vadd.f32 %v3188, %v3281
    %v3283 = vpop.f32.mrb[0].mxu0
    %3284 = vdwg.mxu0
    %s3285 = scalar_lea.vmem %s10, 32
    %v3286 = vld [vmem:[%s3285] sm:$0xff]
    %v3287 = vld [vmem:[%s3285 + $0x8] sm:$0xff]
    %v3288 = vld [vmem:[%s3285 + $0x10] sm:$0xff]
    %v3289 = vld [vmem:[%s3285 + $0x18] sm:$0xff]
    %s3290 = scalar_lea.vmem %s11, 1
    %v3291 = vld [vmem:[%s3290] sm:$0x1]
    %v3293 = vlaneseq
    %v3294 = vshrl.u32 %v3293, 7
    %v3295 = vsub.s32 0, %v3294
    %v3296 = vrot.slane %v3291, %v3295
    %3298 = vmatprep.subr.mxu0 0.0
    %3299 = vmatpush1.msra.mxu0 %v3286
    %3300 = vmatprep.subr.mxu0 0.0
    %3301 = vmatpush1.msra.mxu0 %v3287
    %3302 = vmatprep.subr.mxu0 0.0
    %3303 = vmatpush1.msra.mxu0 %v3288
    %3304 = vmatprep.subr.mxu0 0.0
    %3305 = vmatpush1.msra.mxu0 %v3289
    %3306 = vmatprep.subr.mxu0 0.0
    %3307 = vmatpush1.msra.mxu0 0.0
    %3308 = vmatprep.subr.mxu0 0.0
    %3309 = vmatpush1.msra.mxu0 0.0
    %3310 = vmatprep.subr.mxu0 0.0
    %3311 = vmatpush1.msra.mxu0 0.0
    %3312 = vmatprep.subr.mxu0 0.0
    %3313 = vmatpush1.msra.mxu0 0.0
    %3314 = vmatprep.subr.mxu0 0.0
    %3315 = vmatpush1.msra.mxu0 0.0
    %3316 = vmatprep.subr.mxu0 0.0
    %3317 = vmatpush1.msra.mxu0 0.0
    %3318 = vmatprep.subr.mxu0 0.0
    %3319 = vmatpush1.msra.mxu0 0.0
    %3320 = vmatprep.subr.mxu0 0.0
    %3321 = vmatpush1.msra.mxu0 0.0
    %3322 = vmatprep.subr.mxu0 0.0
    %3323 = vmatpush1.msra.mxu0 0.0
    %3324 = vmatprep.subr.mxu0 0.0
    %3325 = vmatpush1.msra.mxu0 0.0
    %3326 = vmatprep.subr.mxu0 0.0
    %3327 = vmatpush1.msra.mxu0 0.0
    %3328 = vmatprep.subr.mxu0 0.0
    %3329 = vmatpush1.msra.mxu0 0.0
    %3330 = vmatprep.subr.mxu0 0.0
    %3331 = vmatpush1.msra.mxu0 0.0
    %3332 = vmatprep.subr.mxu0 0.0
    %3333 = vmatpush1.msra.mxu0 0.0
    %3334 = vmatprep.subr.mxu0 0.0
    %3335 = vmatpush1.msra.mxu0 0.0
    %3336 = vmatprep.subr.mxu0 0.0
    %3337 = vmatpush1.msra.mxu0 0.0
    %3338 = vmatprep.subr.mxu0 0.0
    %3339 = vmatpush1.msra.mxu0 0.0
    %3340 = vmatprep.subr.mxu0 0.0
    %3341 = vmatpush1.msra.mxu0 0.0
    %3342 = vmatprep.subr.mxu0 0.0
    %3343 = vmatpush1.msra.mxu0 0.0
    %3344 = vmatprep.subr.mxu0 0.0
    %3345 = vmatpush1.msra.mxu0 0.0
    %3346 = vmatprep.subr.mxu0 0.0
    %3347 = vmatpush1.msra.mxu0 0.0
    %3348 = vmatprep.subr.mxu0 0.0
    %3349 = vmatpush1.msra.mxu0 0.0
    %3350 = vmatprep.subr.mxu0 0.0
    %3351 = vmatpush1.msra.mxu0 0.0
    %3352 = vmatprep.subr.mxu0 0.0
    %3353 = vmatpush1.msra.mxu0 0.0
    %3354 = vmatprep.subr.mxu0 0.0
    %3355 = vmatpush1.msra.mxu0 0.0
    %3356 = vmatprep.subr.mxu0 0.0
    %3357 = vmatpush1.msra.mxu0 0.0
    %3358 = vmatprep.subr.mxu0 0.0
    %3359 = vmatpush1.msra.mxu0 0.0
    %3360 = vmatprep.subr.mxu0 0.0
    %3361 = vmatpush1.msra.mxu0 0.0
    %3362 = vmatprep.mubr.f32.mxu0 0.0
    %3363 = vmatmul.mubr.f32.gmra.mrb[0].mxu0 %v3059
    %v3364 = vpop.f32.mrb[0].mxu0
    %v3365 = vadd.f32 %v3296, %v3364
    %v3366 = vpop.f32.mrb[0].mxu0
    %3367 = vmatprep.mubr.f32.mxu0 0.0
    %3368 = vmatmul.mubr.f32.gmra.mrb[0].mxu0 %v3062
    %v3369 = vpop.f32.mrb[0].mxu0
    %v3370 = vadd.f32 %v3296, %v3369
    %v3371 = vpop.f32.mrb[0].mxu0
    %3372 = vmatprep.mubr.f32.mxu0 0.0
    %3373 = vmatmul.mubr.f32.gmra.mrb[0].mxu0 %v3065
    %v3374 = vpop.f32.mrb[0].mxu0
    %v3375 = vadd.f32 %v3296, %v3374
    %v3376 = vpop.f32.mrb[0].mxu0
    %3377 = vmatprep.mubr.f32.mxu0 0.0
    %3378 = vmatmul.mubr.f32.gmra.mrb[0].mxu0 %v3068
    %v3379 = vpop.f32.mrb[0].mxu0
    %v3380 = vadd.f32 %v3296, %v3379
    %v3381 = vpop.f32.mrb[0].mxu0
    %3382 = vmatprep.mubr.f32.mxu0 0.0
    %3383 = vmatmul.mubr.f32.gmra.mrb[0].mxu0 %v3071
    %v3384 = vpop.f32.mrb[0].mxu0
    %v3385 = vadd.f32 %v3296, %v3384
    %v3386 = vpop.f32.mrb[0].mxu0
    %3387 = vmatprep.mubr.f32.mxu0 0.0
    %3388 = vmatmul.mubr.f32.gmra.mrb[0].mxu0 %v3074
    %v3389 = vpop.f32.mrb[0].mxu0
    %v3390 = vadd.f32 %v3296, %v3389
    %v3391 = vpop.f32.mrb[0].mxu0
    %3392 = vdwg.mxu0
    %s3393 = scalar_lea.vmem %s12, 32
    %v3394 = vld [vmem:[%s3393] sm:$0xff]
    %v3395 = vld [vmem:[%s3393 + $0x8] sm:$0xff]
    %v3396 = vld [vmem:[%s3393 + $0x10] sm:$0xff]
    %v3397 = vld [vmem:[%s3393 + $0x18] sm:$0xff]
    %v3399 = vsel %vm696, %v3171, 0
    %v3402 = vsel %vm696, %v3172, 0
    %v3405 = vsel %vm696, %v3173, 0
    %v3408 = vsel %vm696, %v3174, 0
    %v3411 = vsel %vm696, %v3175, 0
    %v3414 = vsel %vm696, %v3176, 0
    %v3417 = vsel %vm696, %v3257, 0
    %v3420 = vsel %vm696, %v3262, 0
    %v3423 = vsel %vm696, %v3267, 0
    %v3426 = vsel %vm696, %v3272, 0
    %v3429 = vsel %vm696, %v3277, 0
    %v3432 = vsel %vm696, %v3282, 0
    %3434 = vmatprep.subr.mxu0 0.0
    %3435 = vmatpush1.xpose.msra.mxu0 %v3417
    %3436 = vmatprep.subr.mxu0 0.0
    %3437 = vmatpush1.xpose.msra.mxu0 %v3420
    %3438 = vmatprep.subr.mxu0 0.0
    %3439 = vmatpush1.xpose.msra.mxu0 %v3423
    %3440 = vmatprep.subr.mxu0 0.0
    %3441 = vmatpush1.xpose.msra.mxu0 %v3426
    %3442 = vmatprep.subr.mxu0 0.0
    %3443 = vmatpush1.xpose.msra.mxu0 %v3429
    %3444 = vmatprep.subr.mxu0 0.0
    %3445 = vmatpush1.xpose.msra.mxu0 %v3432
    %3446 = vmatprep.subr.mxu0 0.0
    %3447 = vmatpush1.xpose.msra.mxu0 0.0
    %3448 = vmatprep.subr.mxu0 0.0
    %3449 = vmatpush1.xpose.msra.mxu0 0.0
    %3450 = vmatprep.subr.mxu0 0.0
    %3451 = vmatpush1.xpose.msra.mxu0 0.0
    %3452 = vmatprep.subr.mxu0 0.0
    %3453 = vmatpush1.xpose.msra.mxu0 0.0
    %3454 = vmatprep.subr.mxu0 0.0
    %3455 = vmatpush1.xpose.msra.mxu0 0.0
    %3456 = vmatprep.subr.mxu0 0.0
    %3457 = vmatpush1.xpose.msra.mxu0 0.0
    %3458 = vmatprep.subr.mxu0 0.0
    %3459 = vmatpush1.xpose.msra.mxu0 0.0
    %3460 = vmatprep.subr.mxu0 0.0
    %3461 = vmatpush1.xpose.msra.mxu0 0.0
    %3462 = vmatprep.subr.mxu0 0.0
    %3463 = vmatpush1.xpose.msra.mxu0 0.0
    %3464 = vmatprep.subr.mxu0 0.0
    %3465 = vmatpush1.xpose.msra.mxu0 0.0
    %3466 = vmatprep.subr.mxu0 0.0
    %3467 = vmatpush1.xpose.msra.mxu0 0.0
    %3468 = vmatprep.subr.mxu0 0.0
    %3469 = vmatpush1.xpose.msra.mxu0 0.0
    %3470 = vmatprep.subr.mxu0 0.0
    %3471 = vmatpush1.xpose.msra.mxu0 0.0
    %3472 = vmatprep.subr.mxu0 0.0
    %3473 = vmatpush1.xpose.msra.mxu0 0.0
    %3474 = vmatprep.subr.mxu0 0.0
    %3475 = vmatpush1.xpose.msra.mxu0 0.0
    %3476 = vmatprep.subr.mxu0 0.0
    %3477 = vmatpush1.xpose.msra.mxu0 0.0
    %3478 = vmatprep.subr.mxu0 0.0
    %3479 = vmatpush1.xpose.msra.mxu0 0.0
    %3480 = vmatprep.subr.mxu0 0.0
    %3481 = vmatpush1.xpose.msra.mxu0 0.0
    %3482 = vmatprep.subr.mxu0 0.0
    %3483 = vmatpush1.xpose.msra.mxu0 0.0
    %3484 = vmatprep.subr.mxu0 0.0
    %3485 = vmatpush1.xpose.msra.mxu0 0.0
    %3486 = vmatprep.subr.mxu0 0.0
    %3487 = vmatpush1.xpose.msra.mxu0 0.0
    %3488 = vmatprep.subr.mxu0 0.0
    %3489 = vmatpush1.xpose.msra.mxu0 0.0
    %3490 = vmatprep.subr.mxu0 0.0
    %3491 = vmatpush1.xpose.msra.mxu0 0.0
    %3492 = vmatprep.subr.mxu0 0.0
    %3493 = vmatpush1.xpose.msra.mxu0 0.0
    %3494 = vmatprep.subr.mxu0 0.0
    %3495 = vmatpush1.xpose.msra.mxu0 0.0
    %3496 = vmatprep.subr.mxu0 0.0
    %3497 = vmatpush1.xpose.msra.mxu0 0.0
    %3498 = vmatprep.mubr.f32.mxu0 0.0
    %3499 = vmatmul.mubr.f32.gmra.mrb[0].mxu0 %v3399
    %v3500 = vpop.f32.mrb[0].mxu0
    %v3501 = vadd.f32 %v238, %v3500
    %v3502 = vpop.f32.mrb[0].mxu0
    %3503 = vmatprep.mubr.f32.mxu0 0.0
    %3504 = vmatmul.mubr.f32.gmra.mrb[0].mxu0 %v3402
    %v3505 = vpop.f32.mrb[0].mxu0
    %v3506 = vadd.f32 %v239, %v3505
    %v3507 = vpop.f32.mrb[0].mxu0
    %3508 = vmatprep.mubr.f32.mxu0 0.0
    %3509 = vmatmul.mubr.f32.gmra.mrb[0].mxu0 %v3405
    %v3510 = vpop.f32.mrb[0].mxu0
    %v3511 = vadd.f32 %v240, %v3510
    %v3512 = vpop.f32.mrb[0].mxu0
    %3513 = vmatprep.mubr.f32.mxu0 0.0
    %3514 = vmatmul.mubr.f32.gmra.mrb[0].mxu0 %v3408
    %v3515 = vpop.f32.mrb[0].mxu0
    %v3516 = vadd.f32 %v241, %v3515
    %v3517 = vpop.f32.mrb[0].mxu0
    %3518 = vmatprep.mubr.f32.mxu0 0.0
    %3519 = vmatmul.mubr.f32.gmra.mrb[0].mxu0 %v3411
    %v3520 = vpop.f32.mrb[0].mxu0
    %v3521 = vadd.f32 %v242, %v3520
    %v3522 = vpop.f32.mrb[0].mxu0
    %3523 = vmatprep.mubr.f32.mxu0 0.0
    %3524 = vmatmul.mubr.f32.gmra.mrb[0].mxu0 %v3414
    %v3525 = vpop.f32.mrb[0].mxu0
    %v3526 = vadd.f32 %v243, %v3525
    %v3527 = vpop.f32.mrb[0].mxu0
    %3528 = vdwg.mxu0
    %v3529 = vsel %vm124, %v3501, -inf
    %3530 = vmax.xlane.f32.xlu0 %v3529
    %v3531 = vpop.xlane.xlu0 %3530
    %v3532 = vsel %vm124, %v3506, -inf
    %3533 = vmax.xlane.f32.xlu0 %v3532
    %v3534 = vpop.xlane.xlu0 %3533
    %v3535 = vsel %vm124, %v3511, -inf
    %3536 = vmax.xlane.f32.xlu0 %v3535
    %v3537 = vpop.xlane.xlu0 %3536
    %v3538 = vsel %vm124, %v3516, -inf
    %3539 = vmax.xlane.f32.xlu0 %v3538
    %v3540 = vpop.xlane.xlu0 %3539
    %v3541 = vsel %vm124, %v3521, -inf
    %3542 = vmax.xlane.f32.xlu0 %v3541
    %v3543 = vpop.xlane.xlu0 %3542
    %v3544 = vsel %vm124, %v3526, -inf
    %3545 = vmax.xlane.f32.xlu0 %v3544
    %v3546 = vpop.xlane.xlu0 %3545
    %v3547 = vsub.f32 %v3501, %v3531
    %v3548 = vsub.f32 %v3506, %v3534
    %v3549 = vsub.f32 %v3511, %v3537
    %v3550 = vsub.f32 %v3516, %v3540
    %v3551 = vsub.f32 %v3521, %v3543
    %v3552 = vsub.f32 %v3526, %v3546
    %v3553 = vmul.f32 %v3547, 1.442695
    %v3554 = vpow.pop %v3553
    %v3555 = vmul.f32 %v3548, 1.442695
    %v3556 = vpow.pop %v3555
    %v3557 = vmul.f32 %v3549, 1.442695
    %v3558 = vpow.pop %v3557
    %v3559 = vmul.f32 %v3550, 1.442695
    %v3560 = vpow.pop %v3559
    %v3561 = vmul.f32 %v3551, 1.442695
    %v3562 = vpow.pop %v3561
    %v3563 = vmul.f32 %v3552, 1.442695
    %v3564 = vpow.pop %v3563
    %v3565 = vsel %vm124, %v3554, 0.0
    %3566 = vadd.xlane.f32.xlu0 %v3565
    %v3567 = vpop.xlane.xlu0 %3566
    %v3568 = vsel %vm124, %v3556, 0.0
    %3569 = vadd.xlane.f32.xlu0 %v3568
    %v3570 = vpop.xlane.xlu0 %3569
    %v3571 = vsel %vm124, %v3558, 0.0
    %3572 = vadd.xlane.f32.xlu0 %v3571
    %v3573 = vpop.xlane.xlu0 %3572
    %v3574 = vsel %vm124, %v3560, 0.0
    %3575 = vadd.xlane.f32.xlu0 %v3574
    %v3576 = vpop.xlane.xlu0 %3575
    %v3577 = vsel %vm124, %v3562, 0.0
    %3578 = vadd.xlane.f32.xlu0 %v3577
    %v3579 = vpop.xlane.xlu0 %3578
    %v3580 = vsel %vm124, %v3564, 0.0
    %3581 = vadd.xlane.f32.xlu0 %v3580
    %v3582 = vpop.xlane.xlu0 %3581
    %v3583 = vrcp.pop %v3567
    %v3584 = vrcp.pop %v3570
    %v3585 = vrcp.pop %v3573
    %v3586 = vrcp.pop %v3576
    %v3587 = vrcp.pop %v3579
    %v3588 = vrcp.pop %v3582
    %v3589 = vmul.f32 %v3554, %v3583
    %v3590 = vmul.f32 %v3556, %v3584
    %v3591 = vmul.f32 %v3558, %v3585
    %v3592 = vmul.f32 %v3560, %v3586
    %v3593 = vmul.f32 %v3562, %v3587
    %v3594 = vmul.f32 %v3564, %v3588
    %v3596 = vsel %vm124, %v3589, 0
    %v3599 = vsel %vm124, %v3590, 0
    %v3602 = vsel %vm124, %v3591, 0
    %v3605 = vsel %vm124, %v3592, 0
    %v3608 = vsel %vm124, %v3593, 0
    %v3611 = vsel %vm124, %v3594, 0
    %3613 = vmatprep.subr.mxu0 0.0
    %3614 = vmatpush1.msra.mxu0 %v3365
    %3615 = vmatprep.subr.mxu0 0.0
    %3616 = vmatpush1.msra.mxu0 %v3370
    %3617 = vmatprep.subr.mxu0 0.0
    %3618 = vmatpush1.msra.mxu0 %v3375
    %3619 = vmatprep.subr.mxu0 0.0
    %3620 = vmatpush1.msra.mxu0 %v3380
    %3621 = vmatprep.subr.mxu0 0.0
    %3622 = vmatpush1.msra.mxu0 %v3385
    %3623 = vmatprep.subr.mxu0 0.0
    %3624 = vmatpush1.msra.mxu0 %v3390
    %3625 = vmatprep.subr.mxu0 0.0
    %3626 = vmatpush1.msra.mxu0 0.0
    %3627 = vmatprep.subr.mxu0 0.0
    %3628 = vmatpush1.msra.mxu0 0.0
    %3629 = vmatprep.subr.mxu0 0.0
    %3630 = vmatpush1.msra.mxu0 0.0
    %3631 = vmatprep.subr.mxu0 0.0
    %3632 = vmatpush1.msra.mxu0 0.0
    %3633 = vmatprep.subr.mxu0 0.0
    %3634 = vmatpush1.msra.mxu0 0.0
    %3635 = vmatprep.subr.mxu0 0.0
    %3636 = vmatpush1.msra.mxu0 0.0
    %3637 = vmatprep.subr.mxu0 0.0
    %3638 = vmatpush1.msra.mxu0 0.0
    %3639 = vmatprep.subr.mxu0 0.0
    %3640 = vmatpush1.msra.mxu0 0.0
    %3641 = vmatprep.subr.mxu0 0.0
    %3642 = vmatpush1.msra.mxu0 0.0
    %3643 = vmatprep.subr.mxu0 0.0
    %3644 = vmatpush1.msra.mxu0 0.0
    %3645 = vmatprep.subr.mxu0 0.0
    %3646 = vmatpush1.msra.mxu0 0.0
    %3647 = vmatprep.subr.mxu0 0.0
    %3648 = vmatpush1.msra.mxu0 0.0
    %3649 = vmatprep.subr.mxu0 0.0
    %3650 = vmatpush1.msra.mxu0 0.0
    %3651 = vmatprep.subr.mxu0 0.0
    %3652 = vmatpush1.msra.mxu0 0.0
    %3653 = vmatprep.subr.mxu0 0.0
    %3654 = vmatpush1.msra.mxu0 0.0
    %3655 = vmatprep.subr.mxu0 0.0
    %3656 = vmatpush1.msra.mxu0 0.0
    %3657 = vmatprep.subr.mxu0 0.0
    %3658 = vmatpush1.msra.mxu0 0.0
    %3659 = vmatprep.subr.mxu0 0.0
    %3660 = vmatpush1.msra.mxu0 0.0
    %3661 = vmatprep.subr.mxu0 0.0
    %3662 = vmatpush1.msra.mxu0 0.0
    %3663 = vmatprep.subr.mxu0 0.0
    %3664 = vmatpush1.msra.mxu0 0.0
    %3665 = vmatprep.subr.mxu0 0.0
    %3666 = vmatpush1.msra.mxu0 0.0
    %3667 = vmatprep.subr.mxu0 0.0
    %3668 = vmatpush1.msra.mxu0 0.0
    %3669 = vmatprep.subr.mxu0 0.0
    %3670 = vmatpush1.msra.mxu0 0.0
    %3671 = vmatprep.subr.mxu0 0.0
    %3672 = vmatpush1.msra.mxu0 0.0
    %3673 = vmatprep.subr.mxu0 0.0
    %3674 = vmatpush1.msra.mxu0 0.0
    %3675 = vmatprep.subr.mxu0 0.0
    %3676 = vmatpush1.msra.mxu0 0.0
    %3677 = vmatprep.mubr.f32.mxu0 0.0
    %3678 = vmatmul.mubr.f32.gmra.mrb[0].mxu0 %v3596
    %v3679 = vpop.f32.mrb[0].mxu0
    %v3680 = vadd.f32 0.0, %v3679
    %v3681 = vpop.f32.mrb[0].mxu0
    %3682 = vmatprep.mubr.f32.mxu0 0.0
    %3683 = vmatmul.mubr.f32.gmra.mrb[0].mxu0 %v3599
    %v3684 = vpop.f32.mrb[0].mxu0
    %v3685 = vadd.f32 0.0, %v3684
    %v3686 = vpop.f32.mrb[0].mxu0
    %3687 = vmatprep.mubr.f32.mxu0 0.0
    %3688 = vmatmul.mubr.f32.gmra.mrb[0].mxu0 %v3602
    %v3689 = vpop.f32.mrb[0].mxu0
    %v3690 = vadd.f32 0.0, %v3689
    %v3691 = vpop.f32.mrb[0].mxu0
    %3692 = vmatprep.mubr.f32.mxu0 0.0
    %3693 = vmatmul.mubr.f32.gmra.mrb[0].mxu0 %v3605
    %v3694 = vpop.f32.mrb[0].mxu0
    %v3695 = vadd.f32 0.0, %v3694
    %v3696 = vpop.f32.mrb[0].mxu0
    %3697 = vmatprep.mubr.f32.mxu0 0.0
    %3698 = vmatmul.mubr.f32.gmra.mrb[0].mxu0 %v3608
    %v3699 = vpop.f32.mrb[0].mxu0
    %v3700 = vadd.f32 0.0, %v3699
    %v3701 = vpop.f32.mrb[0].mxu0
    %3702 = vmatprep.mubr.f32.mxu0 0.0
    %3703 = vmatmul.mubr.f32.gmra.mrb[0].mxu0 %v3611
    %v3704 = vpop.f32.mrb[0].mxu0
    %v3705 = vadd.f32 0.0, %v3704
    %v3706 = vpop.f32.mrb[0].mxu0
    %3707 = vdwg.mxu0
    %3708 = vrot.lane.b32.xlu0 %v3171, 120
    %v3709 = vpop.permute.xlu0 %3708
    %3710 = vrot.lane.b32.xlu0 %v3172, 120
    %v3711 = vpop.permute.xlu0 %3710
    %3712 = vrot.lane.b32.xlu0 %v3173, 120
    %v3713 = vpop.permute.xlu0 %3712
    %3714 = vrot.lane.b32.xlu0 %v3174, 120
    %v3715 = vpop.permute.xlu0 %3714
    %3716 = vrot.lane.b32.xlu0 %v3175, 120
    %v3717 = vpop.permute.xlu0 %3716
    %3718 = vrot.lane.b32.xlu0 %v3176, 120
    %v3719 = vpop.permute.xlu0 %3718
    %3720 = vrot.lane.b32.xlu0 %v3257, 120
    %v3721 = vpop.permute.xlu0 %3720
    %3722 = vrot.lane.b32.xlu0 %v3262, 120
    %v3723 = vpop.permute.xlu0 %3722
    %3724 = vrot.lane.b32.xlu0 %v3267, 120
    %v3725 = vpop.permute.xlu0 %3724
    %3726 = vrot.lane.b32.xlu0 %v3272, 120
    %v3727 = vpop.permute.xlu0 %3726
    %3728 = vrot.lane.b32.xlu0 %v3277, 120
    %v3729 = vpop.permute.xlu0 %3728
    %3730 = vrot.lane.b32.xlu0 %v3282, 120
    %v3731 = vpop.permute.xlu0 %3730
    %v3732 = vsel %vm696, %v3709, 0
    %v3734 = vsel %vm696, %v3711, 0
    %v3736 = vsel %vm696, %v3713, 0
    %v3738 = vsel %vm696, %v3715, 0
    %v3740 = vsel %vm696, %v3717, 0
    %v3742 = vsel %vm696, %v3719, 0
    %v3744 = vsel %vm696, %v3721, 0
    %v3746 = vsel %vm696, %v3723, 0
    %v3748 = vsel %vm696, %v3725, 0
    %v3750 = vsel %vm696, %v3727, 0
    %v3752 = vsel %vm696, %v3729, 0
    %v3754 = vsel %vm696, %v3731, 0
    %3756 = vmatprep.subr.mxu0 0.0
    %3757 = vmatpush1.xpose.msra.mxu0 %v3744
    %3758 = vmatprep.subr.mxu0 0.0
    %3759 = vmatpush1.xpose.msra.mxu0 %v3746
    %3760 = vmatprep.subr.mxu0 0.0
    %3761 = vmatpush1.xpose.msra.mxu0 %v3748
    %3762 = vmatprep.subr.mxu0 0.0
    %3763 = vmatpush1.xpose.msra.mxu0 %v3750
    %3764 = vmatprep.subr.mxu0 0.0
    %3765 = vmatpush1.xpose.msra.mxu0 %v3752
    %3766 = vmatprep.subr.mxu0 0.0
    %3767 = vmatpush1.xpose.msra.mxu0 %v3754
    %3768 = vmatprep.subr.mxu0 0.0
    %3769 = vmatpush1.xpose.msra.mxu0 0.0
    %3770 = vmatprep.subr.mxu0 0.0
    %3771 = vmatpush1.xpose.msra.mxu0 0.0
    %3772 = vmatprep.subr.mxu0 0.0
    %3773 = vmatpush1.xpose.msra.mxu0 0.0
    %3774 = vmatprep.subr.mxu0 0.0
    %3775 = vmatpush1.xpose.msra.mxu0 0.0
    %3776 = vmatprep.subr.mxu0 0.0
    %3777 = vmatpush1.xpose.msra.mxu0 0.0
    %3778 = vmatprep.subr.mxu0 0.0
    %3779 = vmatpush1.xpose.msra.mxu0 0.0
    %3780 = vmatprep.subr.mxu0 0.0
    %3781 = vmatpush1.xpose.msra.mxu0 0.0
    %3782 = vmatprep.subr.mxu0 0.0
    %3783 = vmatpush1.xpose.msra.mxu0 0.0
    %3784 = vmatprep.subr.mxu0 0.0
    %3785 = vmatpush1.xpose.msra.mxu0 0.0
    %3786 = vmatprep.subr.mxu0 0.0
    %3787 = vmatpush1.xpose.msra.mxu0 0.0
    %3788 = vmatprep.subr.mxu0 0.0
    %3789 = vmatpush1.xpose.msra.mxu0 0.0
    %3790 = vmatprep.subr.mxu0 0.0
    %3791 = vmatpush1.xpose.msra.mxu0 0.0
    %3792 = vmatprep.subr.mxu0 0.0
    %3793 = vmatpush1.xpose.msra.mxu0 0.0
    %3794 = vmatprep.subr.mxu0 0.0
    %3795 = vmatpush1.xpose.msra.mxu0 0.0
    %3796 = vmatprep.subr.mxu0 0.0
    %3797 = vmatpush1.xpose.msra.mxu0 0.0
    %3798 = vmatprep.subr.mxu0 0.0
    %3799 = vmatpush1.xpose.msra.mxu0 0.0
    %3800 = vmatprep.subr.mxu0 0.0
    %3801 = vmatpush1.xpose.msra.mxu0 0.0
    %3802 = vmatprep.subr.mxu0 0.0
    %3803 = vmatpush1.xpose.msra.mxu0 0.0
    %3804 = vmatprep.subr.mxu0 0.0
    %3805 = vmatpush1.xpose.msra.mxu0 0.0
    %3806 = vmatprep.subr.mxu0 0.0
    %3807 = vmatpush1.xpose.msra.mxu0 0.0
    %3808 = vmatprep.subr.mxu0 0.0
    %3809 = vmatpush1.xpose.msra.mxu0 0.0
    %3810 = vmatprep.subr.mxu0 0.0
    %3811 = vmatpush1.xpose.msra.mxu0 0.0
    %3812 = vmatprep.subr.mxu0 0.0
    %3813 = vmatpush1.xpose.msra.mxu0 0.0
    %3814 = vmatprep.subr.mxu0 0.0
    %3815 = vmatpush1.xpose.msra.mxu0 0.0
    %3816 = vmatprep.subr.mxu0 0.0
    %3817 = vmatpush1.xpose.msra.mxu0 0.0
    %3818 = vmatprep.subr.mxu0 0.0
    %3819 = vmatpush1.xpose.msra.mxu0 0.0
    %3820 = vmatprep.mubr.f32.mxu0 0.0
    %3821 = vmatmul.mubr.f32.gmra.mrb[0].mxu0 %v3732
    %v3822 = vpop.f32.mrb[0].mxu0
    %v3823 = vadd.f32 %v238, %v3822
    %v3824 = vpop.f32.mrb[0].mxu0
    %3825 = vmatprep.mubr.f32.mxu0 0.0
    %3826 = vmatmul.mubr.f32.gmra.mrb[0].mxu0 %v3734
    %v3827 = vpop.f32.mrb[0].mxu0
    %v3828 = vadd.f32 %v239, %v3827
    %v3829 = vpop.f32.mrb[0].mxu0
    %3830 = vmatprep.mubr.f32.mxu0 0.0
    %3831 = vmatmul.mubr.f32.gmra.mrb[0].mxu0 %v3736
    %v3832 = vpop.f32.mrb[0].mxu0
    %v3833 = vadd.f32 %v240, %v3832
    %v3834 = vpop.f32.mrb[0].mxu0
    %3835 = vmatprep.mubr.f32.mxu0 0.0
    %3836 = vmatmul.mubr.f32.gmra.mrb[0].mxu0 %v3738
    %v3837 = vpop.f32.mrb[0].mxu0
    %v3838 = vadd.f32 %v241, %v3837
    %v3839 = vpop.f32.mrb[0].mxu0
    %3840 = vmatprep.mubr.f32.mxu0 0.0
    %3841 = vmatmul.mubr.f32.gmra.mrb[0].mxu0 %v3740
    %v3842 = vpop.f32.mrb[0].mxu0
    %v3843 = vadd.f32 %v242, %v3842
    %v3844 = vpop.f32.mrb[0].mxu0
    %3845 = vmatprep.mubr.f32.mxu0 0.0
    %3846 = vmatmul.mubr.f32.gmra.mrb[0].mxu0 %v3742
    %v3847 = vpop.f32.mrb[0].mxu0
    %v3848 = vadd.f32 %v243, %v3847
    %v3849 = vpop.f32.mrb[0].mxu0
    %3850 = vdwg.mxu0
    %v3851 = vsel %vm124, %v3823, -inf
    %3852 = vmax.xlane.f32.xlu0 %v3851
    %v3853 = vpop.xlane.xlu0 %3852
    %v3854 = vsel %vm124, %v3828, -inf
    %3855 = vmax.xlane.f32.xlu0 %v3854
    %v3856 = vpop.xlane.xlu0 %3855
    %v3857 = vsel %vm124, %v3833, -inf
    %3858 = vmax.xlane.f32.xlu0 %v3857
    %v3859 = vpop.xlane.xlu0 %3858
    %v3860 = vsel %vm124, %v3838, -inf
    %3861 = vmax.xlane.f32.xlu0 %v3860
    %v3862 = vpop.xlane.xlu0 %3861
    %v3863 = vsel %vm124, %v3843, -inf
    %3864 = vmax.xlane.f32.xlu0 %v3863
    %v3865 = vpop.xlane.xlu0 %3864
    %v3866 = vsel %vm124, %v3848, -inf
    %3867 = vmax.xlane.f32.xlu0 %v3866
    %v3868 = vpop.xlane.xlu0 %3867
    %v3869 = vsub.f32 %v3823, %v3853
    %v3870 = vsub.f32 %v3828, %v3856
    %v3871 = vsub.f32 %v3833, %v3859
    %v3872 = vsub.f32 %v3838, %v3862
    %v3873 = vsub.f32 %v3843, %v3865
    %v3874 = vsub.f32 %v3848, %v3868
    %v3875 = vmul.f32 %v3869, 1.442695
    %v3876 = vpow.pop %v3875
    %v3877 = vmul.f32 %v3870, 1.442695
    %v3878 = vpow.pop %v3877
    %v3879 = vmul.f32 %v3871, 1.442695
    %v3880 = vpow.pop %v3879
    %v3881 = vmul.f32 %v3872, 1.442695
    %v3882 = vpow.pop %v3881
    %v3883 = vmul.f32 %v3873, 1.442695
    %v3884 = vpow.pop %v3883
    %v3885 = vmul.f32 %v3874, 1.442695
    %v3886 = vpow.pop %v3885
    %v3887 = vsel %vm124, %v3876, 0.0
    %3888 = vadd.xlane.f32.xlu0 %v3887
    %v3889 = vpop.xlane.xlu0 %3888
    %v3890 = vsel %vm124, %v3878, 0.0
    %3891 = vadd.xlane.f32.xlu0 %v3890
    %v3892 = vpop.xlane.xlu0 %3891
    %v3893 = vsel %vm124, %v3880, 0.0
    %3894 = vadd.xlane.f32.xlu0 %v3893
    %v3895 = vpop.xlane.xlu0 %3894
    %v3896 = vsel %vm124, %v3882, 0.0
    %3897 = vadd.xlane.f32.xlu0 %v3896
    %v3898 = vpop.xlane.xlu0 %3897
    %v3899 = vsel %vm124, %v3884, 0.0
    %3900 = vadd.xlane.f32.xlu0 %v3899
    %v3901 = vpop.xlane.xlu0 %3900
    %v3902 = vsel %vm124, %v3886, 0.0
    %3903 = vadd.xlane.f32.xlu0 %v3902
    %v3904 = vpop.xlane.xlu0 %3903
    %v3905 = vrcp.pop %v3889
    %v3906 = vrcp.pop %v3892
    %v3907 = vrcp.pop %v3895
    %v3908 = vrcp.pop %v3898
    %v3909 = vrcp.pop %v3901
    %v3910 = vrcp.pop %v3904
    %v3911 = vmul.f32 %v3876, %v3905
    %v3912 = vmul.f32 %v3878, %v3906
    %v3913 = vmul.f32 %v3880, %v3907
    %v3914 = vmul.f32 %v3882, %v3908
    %v3915 = vmul.f32 %v3884, %v3909
    %v3916 = vmul.f32 %v3886, %v3910
    %3923 = vrot.lane.b32.xlu0 %v3365, 120
    %v3924 = vpop.permute.xlu0 %3923
    %3925 = vrot.lane.b32.xlu0 %v3370, 120
    %v3926 = vpop.permute.xlu0 %3925
    %3927 = vrot.lane.b32.xlu0 %v3375, 120
    %v3928 = vpop.permute.xlu0 %3927
    %3929 = vrot.lane.b32.xlu0 %v3380, 120
    %v3930 = vpop.permute.xlu0 %3929
    %3931 = vrot.lane.b32.xlu0 %v3385, 120
    %v3932 = vpop.permute.xlu0 %3931
    %3933 = vrot.lane.b32.xlu0 %v3390, 120
    %v3934 = vpop.permute.xlu0 %3933
    %v3942 = vsel %vm124, %v3911, 0
    %v3945 = vsel %vm124, %v3912, 0
    %v3948 = vsel %vm124, %v3913, 0
    %v3951 = vsel %vm124, %v3914, 0
    %v3954 = vsel %vm124, %v3915, 0
    %v3957 = vsel %vm124, %v3916, 0
    %3959 = vmatprep.subr.mxu0 0.0
    %3960 = vmatpush1.msra.mxu0 %v3924
    %3961 = vmatprep.subr.mxu0 0.0
    %3962 = vmatpush1.msra.mxu0 %v3926
    %3963 = vmatprep.subr.mxu0 0.0
    %3964 = vmatpush1.msra.mxu0 %v3928
    %3965 = vmatprep.subr.mxu0 0.0
    %3966 = vmatpush1.msra.mxu0 %v3930
    %3967 = vmatprep.subr.mxu0 0.0
    %3968 = vmatpush1.msra.mxu0 %v3932
    %3969 = vmatprep.subr.mxu0 0.0
    %3970 = vmatpush1.msra.mxu0 %v3934
    %3971 = vmatprep.subr.mxu0 0.0
    %3972 = vmatpush1.msra.mxu0 0.0
    %3973 = vmatprep.subr.mxu0 0.0
    %3974 = vmatpush1.msra.mxu0 0.0
    %3975 = vmatprep.subr.mxu0 0.0
    %3976 = vmatpush1.msra.mxu0 0.0
    %3977 = vmatprep.subr.mxu0 0.0
    %3978 = vmatpush1.msra.mxu0 0.0
    %3979 = vmatprep.subr.mxu0 0.0
    %3980 = vmatpush1.msra.mxu0 0.0
    %3981 = vmatprep.subr.mxu0 0.0
    %3982 = vmatpush1.msra.mxu0 0.0
    %3983 = vmatprep.subr.mxu0 0.0
    %3984 = vmatpush1.msra.mxu0 0.0
    %3985 = vmatprep.subr.mxu0 0.0
    %3986 = vmatpush1.msra.mxu0 0.0
    %3987 = vmatprep.subr.mxu0 0.0
    %3988 = vmatpush1.msra.mxu0 0.0
    %3989 = vmatprep.subr.mxu0 0.0
    %3990 = vmatpush1.msra.mxu0 0.0
    %3991 = vmatprep.subr.mxu0 0.0
    %3992 = vmatpush1.msra.mxu0 0.0
    %3993 = vmatprep.subr.mxu0 0.0
    %3994 = vmatpush1.msra.mxu0 0.0
    %3995 = vmatprep.subr.mxu0 0.0
    %3996 = vmatpush1.msra.mxu0 0.0
    %3997 = vmatprep.subr.mxu0 0.0
    %3998 = vmatpush1.msra.mxu0 0.0
    %3999 = vmatprep.subr.mxu0 0.0
    %4000 = vmatpush1.msra.mxu0 0.0
    %4001 = vmatprep.subr.mxu0 0.0
    %4002 = vmatpush1.msra.mxu0 0.0
    %4003 = vmatprep.subr.mxu0 0.0
    %4004 = vmatpush1.msra.mxu0 0.0
    %4005 = vmatprep.subr.mxu0 0.0
    %4006 = vmatpush1.msra.mxu0 0.0
    %4007 = vmatprep.subr.mxu0 0.0
    %4008 = vmatpush1.msra.mxu0 0.0
    %4009 = vmatprep.subr.mxu0 0.0
    %4010 = vmatpush1.msra.mxu0 0.0
    %4011 = vmatprep.subr.mxu0 0.0
    %4012 = vmatpush1.msra.mxu0 0.0
    %4013 = vmatprep.subr.mxu0 0.0
    %4014 = vmatpush1.msra.mxu0 0.0
    %4015 = vmatprep.subr.mxu0 0.0
    %4016 = vmatpush1.msra.mxu0 0.0
    %4017 = vmatprep.subr.mxu0 0.0
    %4018 = vmatpush1.msra.mxu0 0.0
    %4019 = vmatprep.subr.mxu0 0.0
    %4020 = vmatpush1.msra.mxu0 0.0
    %4021 = vmatprep.subr.mxu0 0.0
    %4022 = vmatpush1.msra.mxu0 0.0
    %4023 = vmatprep.mubr.f32.mxu0 0.0
    %4024 = vmatmul.mubr.f32.gmra.mrb[0].mxu0 %v3942
    %v4025 = vpop.f32.mrb[0].mxu0
    %v4026 = vadd.f32 0.0, %v4025
    %v4027 = vpop.f32.mrb[0].mxu0
    %4028 = vmatprep.mubr.f32.mxu0 0.0
    %4029 = vmatmul.mubr.f32.gmra.mrb[0].mxu0 %v3945
    %v4030 = vpop.f32.mrb[0].mxu0
    %v4031 = vadd.f32 0.0, %v4030
    %v4032 = vpop.f32.mrb[0].mxu0
    %4033 = vmatprep.mubr.f32.mxu0 0.0
    %4034 = vmatmul.mubr.f32.gmra.mrb[0].mxu0 %v3948
    %v4035 = vpop.f32.mrb[0].mxu0
    %v4036 = vadd.f32 0.0, %v4035
    %v4037 = vpop.f32.mrb[0].mxu0
    %4038 = vmatprep.mubr.f32.mxu0 0.0
    %4039 = vmatmul.mubr.f32.gmra.mrb[0].mxu0 %v3951
    %v4040 = vpop.f32.mrb[0].mxu0
    %v4041 = vadd.f32 0.0, %v4040
    %v4042 = vpop.f32.mrb[0].mxu0
    %4043 = vmatprep.mubr.f32.mxu0 0.0
    %4044 = vmatmul.mubr.f32.gmra.mrb[0].mxu0 %v3954
    %v4045 = vpop.f32.mrb[0].mxu0
    %v4046 = vadd.f32 0.0, %v4045
    %v4047 = vpop.f32.mrb[0].mxu0
    %4048 = vmatprep.mubr.f32.mxu0 0.0
    %4049 = vmatmul.mubr.f32.gmra.mrb[0].mxu0 %v3957
    %v4050 = vpop.f32.mrb[0].mxu0
    %v4051 = vadd.f32 0.0, %v4050
    %v4052 = vpop.f32.mrb[0].mxu0
    %4053 = vdwg.mxu0
    %v4055 = vsel %vm696, %v4026, 0
    %v4058 = vsel %vm696, %v4031, 0
    %v4061 = vsel %vm696, %v4036, 0
    %v4064 = vsel %vm696, %v4041, 0
    %v4067 = vsel %vm696, %v4046, 0
    %v4070 = vsel %vm696, %v4051, 0
    %4072 = vmatprep.subr.mxu0 0.0
    %4073 = vmatpush1.msra.mxu0 %v3395
    %4074 = vmatprep.subr.mxu0 0.0
    %4075 = vmatpush1.msra.mxu0 0.0
    %4076 = vmatprep.subr.mxu0 0.0
    %4077 = vmatpush1.msra.mxu0 0.0
    %4078 = vmatprep.subr.mxu0 0.0
    %4079 = vmatpush1.msra.mxu0 0.0
    %4080 = vmatprep.subr.mxu0 0.0
    %4081 = vmatpush1.msra.mxu0 0.0
    %4082 = vmatprep.subr.mxu0 0.0
    %4083 = vmatpush1.msra.mxu0 0.0
    %4084 = vmatprep.subr.mxu0 0.0
    %4085 = vmatpush1.msra.mxu0 0.0
    %4086 = vmatprep.subr.mxu0 0.0
    %4087 = vmatpush1.msra.mxu0 0.0
    %4088 = vmatprep.subr.mxu0 0.0
    %4089 = vmatpush1.msra.mxu0 0.0
    %4090 = vmatprep.subr.mxu0 0.0
    %4091 = vmatpush1.msra.mxu0 0.0
    %4092 = vmatprep.subr.mxu0 0.0
    %4093 = vmatpush1.msra.mxu0 0.0
    %4094 = vmatprep.subr.mxu0 0.0
    %4095 = vmatpush1.msra.mxu0 0.0
    %4096 = vmatprep.subr.mxu0 0.0
    %4097 = vmatpush1.msra.mxu0 0.0
    %4098 = vmatprep.subr.mxu0 0.0
    %4099 = vmatpush1.msra.mxu0 0.0
    %4100 = vmatprep.subr.mxu0 0.0
    %4101 = vmatpush1.msra.mxu0 0.0
    %4102 = vmatprep.subr.mxu0 0.0
    %4103 = vmatpush1.msra.mxu0 0.0
    %4104 = vmatprep.subr.mxu0 0.0
    %4105 = vmatpush1.msra.mxu0 0.0
    %4106 = vmatprep.subr.mxu0 0.0
    %4107 = vmatpush1.msra.mxu0 0.0
    %4108 = vmatprep.subr.mxu0 0.0
    %4109 = vmatpush1.msra.mxu0 0.0
    %4110 = vmatprep.subr.mxu0 0.0
    %4111 = vmatpush1.msra.mxu0 0.0
    %4112 = vmatprep.subr.mxu0 0.0
    %4113 = vmatpush1.msra.mxu0 0.0
    %4114 = vmatprep.subr.mxu0 0.0
    %4115 = vmatpush1.msra.mxu0 0.0
    %4116 = vmatprep.subr.mxu0 0.0
    %4117 = vmatpush1.msra.mxu0 0.0
    %4118 = vmatprep.subr.mxu0 0.0
    %4119 = vmatpush1.msra.mxu0 0.0
    %4120 = vmatprep.subr.mxu0 0.0
    %4121 = vmatpush1.msra.mxu0 0.0
    %4122 = vmatprep.subr.mxu0 0.0
    %4123 = vmatpush1.msra.mxu0 0.0
    %4124 = vmatprep.subr.mxu0 0.0
    %4125 = vmatpush1.msra.mxu0 0.0
    %4126 = vmatprep.subr.mxu0 0.0
    %4127 = vmatpush1.msra.mxu0 0.0
    %4128 = vmatprep.subr.mxu0 0.0
    %4129 = vmatpush1.msra.mxu0 0.0
    %4130 = vmatprep.subr.mxu0 0.0
    %4131 = vmatpush1.msra.mxu0 0.0
    %4132 = vmatprep.subr.mxu0 0.0
    %4133 = vmatpush1.msra.mxu0 0.0
    %4134 = vmatprep.subr.mxu0 0.0
    %4135 = vmatpush1.msra.mxu0 0.0
    %4136 = vmatprep.mubr.f32.mxu0 0.0
    %4137 = vmatmul.mubr.f32.gmra.mrb[0].mxu0 %v4055
    %v4138 = vpop.f32.mrb[0].mxu0
    %v4139 = vadd.f32 0.0, %v4138
    %v4140 = vpop.f32.mrb[0].mxu0
    %4141 = vmatprep.mubr.f32.mxu0 0.0
    %4142 = vmatmul.mubr.f32.gmra.mrb[0].mxu0 %v4058
    %v4143 = vpop.f32.mrb[0].mxu0
    %v4144 = vadd.f32 0.0, %v4143
    %v4145 = vpop.f32.mrb[0].mxu0
    %4146 = vmatprep.mubr.f32.mxu0 0.0
    %4147 = vmatmul.mubr.f32.gmra.mrb[0].mxu0 %v4061
    %v4148 = vpop.f32.mrb[0].mxu0
    %v4149 = vadd.f32 0.0, %v4148
    %v4150 = vpop.f32.mrb[0].mxu0
    %4151 = vmatprep.mubr.f32.mxu0 0.0
    %4152 = vmatmul.mubr.f32.gmra.mrb[0].mxu0 %v4064
    %v4153 = vpop.f32.mrb[0].mxu0
    %v4154 = vadd.f32 0.0, %v4153
    %v4155 = vpop.f32.mrb[0].mxu0
    %4156 = vmatprep.mubr.f32.mxu0 0.0
    %4157 = vmatmul.mubr.f32.gmra.mrb[0].mxu0 %v4067
    %v4158 = vpop.f32.mrb[0].mxu0
    %v4159 = vadd.f32 0.0, %v4158
    %v4160 = vpop.f32.mrb[0].mxu0
    %4161 = vmatprep.mubr.f32.mxu0 0.0
    %4162 = vmatmul.mubr.f32.gmra.mrb[0].mxu0 %v4070
    %v4163 = vpop.f32.mrb[0].mxu0
    %v4164 = vadd.f32 0.0, %v4163
    %v4165 = vpop.f32.mrb[0].mxu0
    %4166 = vdwg.mxu0
    %v4168 = vsel %vm696, %v3680, 0
    %v4171 = vsel %vm696, %v3685, 0
    %v4174 = vsel %vm696, %v3690, 0
    %v4177 = vsel %vm696, %v3695, 0
    %v4180 = vsel %vm696, %v3700, 0
    %v4183 = vsel %vm696, %v3705, 0
    %4185 = vmatprep.subr.mxu0 0.0
    %4186 = vmatpush1.msra.mxu0 %v3394
    %4187 = vmatprep.subr.mxu0 0.0
    %4188 = vmatpush1.msra.mxu0 0.0
    %4189 = vmatprep.subr.mxu0 0.0
    %4190 = vmatpush1.msra.mxu0 0.0
    %4191 = vmatprep.subr.mxu0 0.0
    %4192 = vmatpush1.msra.mxu0 0.0
    %4193 = vmatprep.subr.mxu0 0.0
    %4194 = vmatpush1.msra.mxu0 0.0
    %4195 = vmatprep.subr.mxu0 0.0
    %4196 = vmatpush1.msra.mxu0 0.0
    %4197 = vmatprep.subr.mxu0 0.0
    %4198 = vmatpush1.msra.mxu0 0.0
    %4199 = vmatprep.subr.mxu0 0.0
    %4200 = vmatpush1.msra.mxu0 0.0
    %4201 = vmatprep.subr.mxu0 0.0
    %4202 = vmatpush1.msra.mxu0 0.0
    %4203 = vmatprep.subr.mxu0 0.0
    %4204 = vmatpush1.msra.mxu0 0.0
    %4205 = vmatprep.subr.mxu0 0.0
    %4206 = vmatpush1.msra.mxu0 0.0
    %4207 = vmatprep.subr.mxu0 0.0
    %4208 = vmatpush1.msra.mxu0 0.0
    %4209 = vmatprep.subr.mxu0 0.0
    %4210 = vmatpush1.msra.mxu0 0.0
    %4211 = vmatprep.subr.mxu0 0.0
    %4212 = vmatpush1.msra.mxu0 0.0
    %4213 = vmatprep.subr.mxu0 0.0
    %4214 = vmatpush1.msra.mxu0 0.0
    %4215 = vmatprep.subr.mxu0 0.0
    %4216 = vmatpush1.msra.mxu0 0.0
    %4217 = vmatprep.subr.mxu0 0.0
    %4218 = vmatpush1.msra.mxu0 0.0
    %4219 = vmatprep.subr.mxu0 0.0
    %4220 = vmatpush1.msra.mxu0 0.0
    %4221 = vmatprep.subr.mxu0 0.0
    %4222 = vmatpush1.msra.mxu0 0.0
    %4223 = vmatprep.subr.mxu0 0.0
    %4224 = vmatpush1.msra.mxu0 0.0
    %4225 = vmatprep.subr.mxu0 0.0
    %4226 = vmatpush1.msra.mxu0 0.0
    %4227 = vmatprep.subr.mxu0 0.0
    %4228 = vmatpush1.msra.mxu0 0.0
    %4229 = vmatprep.subr.mxu0 0.0
    %4230 = vmatpush1.msra.mxu0 0.0
    %4231 = vmatprep.subr.mxu0 0.0
    %4232 = vmatpush1.msra.mxu0 0.0
    %4233 = vmatprep.subr.mxu0 0.0
    %4234 = vmatpush1.msra.mxu0 0.0
    %4235 = vmatprep.subr.mxu0 0.0
    %4236 = vmatpush1.msra.mxu0 0.0
    %4237 = vmatprep.subr.mxu0 0.0
    %4238 = vmatpush1.msra.mxu0 0.0
    %4239 = vmatprep.subr.mxu0 0.0
    %4240 = vmatpush1.msra.mxu0 0.0
    %4241 = vmatprep.subr.mxu0 0.0
    %4242 = vmatpush1.msra.mxu0 0.0
    %4243 = vmatprep.subr.mxu0 0.0
    %4244 = vmatpush1.msra.mxu0 0.0
    %4245 = vmatprep.subr.mxu0 0.0
    %4246 = vmatpush1.msra.mxu0 0.0
    %4247 = vmatprep.subr.mxu0 0.0
    %4248 = vmatpush1.msra.mxu0 0.0
    %4249 = vmatprep.mubr.f32.mxu0 0.0
    %4250 = vmatmul.mubr.f32.gmra.mrb[0].mxu0 %v4168
    %v4251 = vpop.f32.mrb[0].mxu0
    %v4252 = vadd.f32 %v4139, %v4251
    %v4253 = vpop.f32.mrb[0].mxu0
    %4254 = vmatprep.mubr.f32.mxu0 0.0
    %4255 = vmatmul.mubr.f32.gmra.mrb[0].mxu0 %v4171
    %v4256 = vpop.f32.mrb[0].mxu0
    %v4257 = vadd.f32 %v4144, %v4256
    %v4258 = vpop.f32.mrb[0].mxu0
    %4259 = vmatprep.mubr.f32.mxu0 0.0
    %4260 = vmatmul.mubr.f32.gmra.mrb[0].mxu0 %v4174
    %v4261 = vpop.f32.mrb[0].mxu0
    %v4262 = vadd.f32 %v4149, %v4261
    %v4263 = vpop.f32.mrb[0].mxu0
    %4264 = vmatprep.mubr.f32.mxu0 0.0
    %4265 = vmatmul.mubr.f32.gmra.mrb[0].mxu0 %v4177
    %v4266 = vpop.f32.mrb[0].mxu0
    %v4267 = vadd.f32 %v4154, %v4266
    %v4268 = vpop.f32.mrb[0].mxu0
    %4269 = vmatprep.mubr.f32.mxu0 0.0
    %4270 = vmatmul.mubr.f32.gmra.mrb[0].mxu0 %v4180
    %v4271 = vpop.f32.mrb[0].mxu0
    %v4272 = vadd.f32 %v4159, %v4271
    %v4273 = vpop.f32.mrb[0].mxu0
    %4274 = vmatprep.mubr.f32.mxu0 0.0
    %4275 = vmatmul.mubr.f32.gmra.mrb[0].mxu0 %v4183
    %v4276 = vpop.f32.mrb[0].mxu0
    %v4277 = vadd.f32 %v4164, %v4276
    %v4278 = vpop.f32.mrb[0].mxu0
    %4279 = vdwg.mxu0
    %4280 = vrot.lane.b32.xlu0 %v3171, 112
    %v4281 = vpop.permute.xlu0 %4280
    %4282 = vrot.lane.b32.xlu0 %v3172, 112
    %v4283 = vpop.permute.xlu0 %4282
    %4284 = vrot.lane.b32.xlu0 %v3173, 112
    %v4285 = vpop.permute.xlu0 %4284
    %4286 = vrot.lane.b32.xlu0 %v3174, 112
    %v4287 = vpop.permute.xlu0 %4286
    %4288 = vrot.lane.b32.xlu0 %v3175, 112
    %v4289 = vpop.permute.xlu0 %4288
    %4290 = vrot.lane.b32.xlu0 %v3176, 112
    %v4291 = vpop.permute.xlu0 %4290
    %4292 = vrot.lane.b32.xlu0 %v3257, 112
    %v4293 = vpop.permute.xlu0 %4292
    %4294 = vrot.lane.b32.xlu0 %v3262, 112
    %v4295 = vpop.permute.xlu0 %4294
    %4296 = vrot.lane.b32.xlu0 %v3267, 112
    %v4297 = vpop.permute.xlu0 %4296
    %4298 = vrot.lane.b32.xlu0 %v3272, 112
    %v4299 = vpop.permute.xlu0 %4298
    %4300 = vrot.lane.b32.xlu0 %v3277, 112
    %v4301 = vpop.permute.xlu0 %4300
    %4302 = vrot.lane.b32.xlu0 %v3282, 112
    %v4303 = vpop.permute.xlu0 %4302
    %v4304 = vsel %vm696, %v4281, 0
    %v4306 = vsel %vm696, %v4283, 0
    %v4308 = vsel %vm696, %v4285, 0
    %v4310 = vsel %vm696, %v4287, 0
    %v4312 = vsel %vm696, %v4289, 0
    %v4314 = vsel %vm696, %v4291, 0
    %v4316 = vsel %vm696, %v4293, 0
    %v4318 = vsel %vm696, %v4295, 0
    %v4320 = vsel %vm696, %v4297, 0
    %v4322 = vsel %vm696, %v4299, 0
    %v4324 = vsel %vm696, %v4301, 0
    %v4326 = vsel %vm696, %v4303, 0
    %4328 = vmatprep.subr.mxu0 0.0
    %4329 = vmatpush1.xpose.msra.mxu0 %v4316
    %4330 = vmatprep.subr.mxu0 0.0
    %4331 = vmatpush1.xpose.msra.mxu0 %v4318
    %4332 = vmatprep.subr.mxu0 0.0
    %4333 = vmatpush1.xpose.msra.mxu0 %v4320
    %4334 = vmatprep.subr.mxu0 0.0
    %4335 = vmatpush1.xpose.msra.mxu0 %v4322
    %4336 = vmatprep.subr.mxu0 0.0
    %4337 = vmatpush1.xpose.msra.mxu0 %v4324
    %4338 = vmatprep.subr.mxu0 0.0
    %4339 = vmatpush1.xpose.msra.mxu0 %v4326
    %4340 = vmatprep.subr.mxu0 0.0
    %4341 = vmatpush1.xpose.msra.mxu0 0.0
    %4342 = vmatprep.subr.mxu0 0.0
    %4343 = vmatpush1.xpose.msra.mxu0 0.0
    %4344 = vmatprep.subr.mxu0 0.0
    %4345 = vmatpush1.xpose.msra.mxu0 0.0
    %4346 = vmatprep.subr.mxu0 0.0
    %4347 = vmatpush1.xpose.msra.mxu0 0.0
    %4348 = vmatprep.subr.mxu0 0.0
    %4349 = vmatpush1.xpose.msra.mxu0 0.0
    %4350 = vmatprep.subr.mxu0 0.0
    %4351 = vmatpush1.xpose.msra.mxu0 0.0
    %4352 = vmatprep.subr.mxu0 0.0
    %4353 = vmatpush1.xpose.msra.mxu0 0.0
    %4354 = vmatprep.subr.mxu0 0.0
    %4355 = vmatpush1.xpose.msra.mxu0 0.0
    %4356 = vmatprep.subr.mxu0 0.0
    %4357 = vmatpush1.xpose.msra.mxu0 0.0
    %4358 = vmatprep.subr.mxu0 0.0
    %4359 = vmatpush1.xpose.msra.mxu0 0.0
    %4360 = vmatprep.subr.mxu0 0.0
    %4361 = vmatpush1.xpose.msra.mxu0 0.0
    %4362 = vmatprep.subr.mxu0 0.0
    %4363 = vmatpush1.xpose.msra.mxu0 0.0
    %4364 = vmatprep.subr.mxu0 0.0
    %4365 = vmatpush1.xpose.msra.mxu0 0.0
    %4366 = vmatprep.subr.mxu0 0.0
    %4367 = vmatpush1.xpose.msra.mxu0 0.0
    %4368 = vmatprep.subr.mxu0 0.0
    %4369 = vmatpush1.xpose.msra.mxu0 0.0
    %4370 = vmatprep.subr.mxu0 0.0
    %4371 = vmatpush1.xpose.msra.mxu0 0.0
    %4372 = vmatprep.subr.mxu0 0.0
    %4373 = vmatpush1.xpose.msra.mxu0 0.0
    %4374 = vmatprep.subr.mxu0 0.0
    %4375 = vmatpush1.xpose.msra.mxu0 0.0
    %4376 = vmatprep.subr.mxu0 0.0
    %4377 = vmatpush1.xpose.msra.mxu0 0.0
    %4378 = vmatprep.subr.mxu0 0.0
    %4379 = vmatpush1.xpose.msra.mxu0 0.0
    %4380 = vmatprep.subr.mxu0 0.0
    %4381 = vmatpush1.xpose.msra.mxu0 0.0
    %4382 = vmatprep.subr.mxu0 0.0
    %4383 = vmatpush1.xpose.msra.mxu0 0.0
    %4384 = vmatprep.subr.mxu0 0.0
    %4385 = vmatpush1.xpose.msra.mxu0 0.0
    %4386 = vmatprep.subr.mxu0 0.0
    %4387 = vmatpush1.xpose.msra.mxu0 0.0
    %4388 = vmatprep.subr.mxu0 0.0
    %4389 = vmatpush1.xpose.msra.mxu0 0.0
    %4390 = vmatprep.subr.mxu0 0.0
    %4391 = vmatpush1.xpose.msra.mxu0 0.0
    %4392 = vmatprep.mubr.f32.mxu0 0.0
    %4393 = vmatmul.mubr.f32.gmra.mrb[0].mxu0 %v4304
    %v4394 = vpop.f32.mrb[0].mxu0
    %v4395 = vadd.f32 %v238, %v4394
    %v4396 = vpop.f32.mrb[0].mxu0
    %4397 = vmatprep.mubr.f32.mxu0 0.0
    %4398 = vmatmul.mubr.f32.gmra.mrb[0].mxu0 %v4306
    %v4399 = vpop.f32.mrb[0].mxu0
    %v4400 = vadd.f32 %v239, %v4399
    %v4401 = vpop.f32.mrb[0].mxu0
    %4402 = vmatprep.mubr.f32.mxu0 0.0
    %4403 = vmatmul.mubr.f32.gmra.mrb[0].mxu0 %v4308
    %v4404 = vpop.f32.mrb[0].mxu0
    %v4405 = vadd.f32 %v240, %v4404
    %v4406 = vpop.f32.mrb[0].mxu0
    %4407 = vmatprep.mubr.f32.mxu0 0.0
    %4408 = vmatmul.mubr.f32.gmra.mrb[0].mxu0 %v4310
    %v4409 = vpop.f32.mrb[0].mxu0
    %v4410 = vadd.f32 %v241, %v4409
    %v4411 = vpop.f32.mrb[0].mxu0
    %4412 = vmatprep.mubr.f32.mxu0 0.0
    %4413 = vmatmul.mubr.f32.gmra.mrb[0].mxu0 %v4312
    %v4414 = vpop.f32.mrb[0].mxu0
    %v4415 = vadd.f32 %v242, %v4414
    %v4416 = vpop.f32.mrb[0].mxu0
    %4417 = vmatprep.mubr.f32.mxu0 0.0
    %4418 = vmatmul.mubr.f32.gmra.mrb[0].mxu0 %v4314
    %v4419 = vpop.f32.mrb[0].mxu0
    %v4420 = vadd.f32 %v243, %v4419
    %v4421 = vpop.f32.mrb[0].mxu0
    %4422 = vdwg.mxu0
    %v4423 = vsel %vm124, %v4395, -inf
    %4424 = vmax.xlane.f32.xlu0 %v4423
    %v4425 = vpop.xlane.xlu0 %4424
    %v4426 = vsel %vm124, %v4400, -inf
    %4427 = vmax.xlane.f32.xlu0 %v4426
    %v4428 = vpop.xlane.xlu0 %4427
    %v4429 = vsel %vm124, %v4405, -inf
    %4430 = vmax.xlane.f32.xlu0 %v4429
    %v4431 = vpop.xlane.xlu0 %4430
    %v4432 = vsel %vm124, %v4410, -inf
    %4433 = vmax.xlane.f32.xlu0 %v4432
    %v4434 = vpop.xlane.xlu0 %4433
    %v4435 = vsel %vm124, %v4415, -inf
    %4436 = vmax.xlane.f32.xlu0 %v4435
    %v4437 = vpop.xlane.xlu0 %4436
    %v4438 = vsel %vm124, %v4420, -inf
    %4439 = vmax.xlane.f32.xlu0 %v4438
    %v4440 = vpop.xlane.xlu0 %4439
    %v4441 = vsub.f32 %v4395, %v4425
    %v4442 = vsub.f32 %v4400, %v4428
    %v4443 = vsub.f32 %v4405, %v4431
    %v4444 = vsub.f32 %v4410, %v4434
    %v4445 = vsub.f32 %v4415, %v4437
    %v4446 = vsub.f32 %v4420, %v4440
    %v4447 = vmul.f32 %v4441, 1.442695
    %v4448 = vpow.pop %v4447
    %v4449 = vmul.f32 %v4442, 1.442695
    %v4450 = vpow.pop %v4449
    %v4451 = vmul.f32 %v4443, 1.442695
    %v4452 = vpow.pop %v4451
    %v4453 = vmul.f32 %v4444, 1.442695
    %v4454 = vpow.pop %v4453
    %v4455 = vmul.f32 %v4445, 1.442695
    %v4456 = vpow.pop %v4455
    %v4457 = vmul.f32 %v4446, 1.442695
    %v4458 = vpow.pop %v4457
    %v4459 = vsel %vm124, %v4448, 0.0
    %4460 = vadd.xlane.f32.xlu0 %v4459
    %v4461 = vpop.xlane.xlu0 %4460
    %v4462 = vsel %vm124, %v4450, 0.0
    %4463 = vadd.xlane.f32.xlu0 %v4462
    %v4464 = vpop.xlane.xlu0 %4463
    %v4465 = vsel %vm124, %v4452, 0.0
    %4466 = vadd.xlane.f32.xlu0 %v4465
    %v4467 = vpop.xlane.xlu0 %4466
    %v4468 = vsel %vm124, %v4454, 0.0
    %4469 = vadd.xlane.f32.xlu0 %v4468
    %v4470 = vpop.xlane.xlu0 %4469
    %v4471 = vsel %vm124, %v4456, 0.0
    %4472 = vadd.xlane.f32.xlu0 %v4471
    %v4473 = vpop.xlane.xlu0 %4472
    %v4474 = vsel %vm124, %v4458, 0.0
    %4475 = vadd.xlane.f32.xlu0 %v4474
    %v4476 = vpop.xlane.xlu0 %4475
    %v4477 = vrcp.pop %v4461
    %v4478 = vrcp.pop %v4464
    %v4479 = vrcp.pop %v4467
    %v4480 = vrcp.pop %v4470
    %v4481 = vrcp.pop %v4473
    %v4482 = vrcp.pop %v4476
    %v4483 = vmul.f32 %v4448, %v4477
    %v4484 = vmul.f32 %v4450, %v4478
    %v4485 = vmul.f32 %v4452, %v4479
    %v4486 = vmul.f32 %v4454, %v4480
    %v4487 = vmul.f32 %v4456, %v4481
    %v4488 = vmul.f32 %v4458, %v4482
    %4489 = vrot.lane.b32.xlu0 %v3365, 112
    %v4490 = vpop.permute.xlu0 %4489
    %4491 = vrot.lane.b32.xlu0 %v3370, 112
    %v4492 = vpop.permute.xlu0 %4491
    %4493 = vrot.lane.b32.xlu0 %v3375, 112
    %v4494 = vpop.permute.xlu0 %4493
    %4495 = vrot.lane.b32.xlu0 %v3380, 112
    %v4496 = vpop.permute.xlu0 %4495
    %4497 = vrot.lane.b32.xlu0 %v3385, 112
    %v4498 = vpop.permute.xlu0 %4497
    %4499 = vrot.lane.b32.xlu0 %v3390, 112
    %v4500 = vpop.permute.xlu0 %4499
    %v4508 = vsel %vm124, %v4483, 0
    %v4511 = vsel %vm124, %v4484, 0
    %v4514 = vsel %vm124, %v4485, 0
    %v4517 = vsel %vm124, %v4486, 0
    %v4520 = vsel %vm124, %v4487, 0
    %v4523 = vsel %vm124, %v4488, 0
    %4525 = vmatprep.subr.mxu0 0.0
    %4526 = vmatpush1.msra.mxu0 %v4490
    %4527 = vmatprep.subr.mxu0 0.0
    %4528 = vmatpush1.msra.mxu0 %v4492
    %4529 = vmatprep.subr.mxu0 0.0
    %4530 = vmatpush1.msra.mxu0 %v4494
    %4531 = vmatprep.subr.mxu0 0.0
    %4532 = vmatpush1.msra.mxu0 %v4496
    %4533 = vmatprep.subr.mxu0 0.0
    %4534 = vmatpush1.msra.mxu0 %v4498
    %4535 = vmatprep.subr.mxu0 0.0
    %4536 = vmatpush1.msra.mxu0 %v4500
    %4537 = vmatprep.subr.mxu0 0.0
    %4538 = vmatpush1.msra.mxu0 0.0
    %4539 = vmatprep.subr.mxu0 0.0
    %4540 = vmatpush1.msra.mxu0 0.0
    %4541 = vmatprep.subr.mxu0 0.0
    %4542 = vmatpush1.msra.mxu0 0.0
    %4543 = vmatprep.subr.mxu0 0.0
    %4544 = vmatpush1.msra.mxu0 0.0
    %4545 = vmatprep.subr.mxu0 0.0
    %4546 = vmatpush1.msra.mxu0 0.0
    %4547 = vmatprep.subr.mxu0 0.0
    %4548 = vmatpush1.msra.mxu0 0.0
    %4549 = vmatprep.subr.mxu0 0.0
    %4550 = vmatpush1.msra.mxu0 0.0
    %4551 = vmatprep.subr.mxu0 0.0
    %4552 = vmatpush1.msra.mxu0 0.0
    %4553 = vmatprep.subr.mxu0 0.0
    %4554 = vmatpush1.msra.mxu0 0.0
    %4555 = vmatprep.subr.mxu0 0.0
    %4556 = vmatpush1.msra.mxu0 0.0
    %4557 = vmatprep.subr.mxu0 0.0
    %4558 = vmatpush1.msra.mxu0 0.0
    %4559 = vmatprep.subr.mxu0 0.0
    %4560 = vmatpush1.msra.mxu0 0.0
    %4561 = vmatprep.subr.mxu0 0.0
    %4562 = vmatpush1.msra.mxu0 0.0
    %4563 = vmatprep.subr.mxu0 0.0
    %4564 = vmatpush1.msra.mxu0 0.0
    %4565 = vmatprep.subr.mxu0 0.0
    %4566 = vmatpush1.msra.mxu0 0.0
    %4567 = vmatprep.subr.mxu0 0.0
    %4568 = vmatpush1.msra.mxu0 0.0
    %4569 = vmatprep.subr.mxu0 0.0
    %4570 = vmatpush1.msra.mxu0 0.0
    %4571 = vmatprep.subr.mxu0 0.0
    %4572 = vmatpush1.msra.mxu0 0.0
    %4573 = vmatprep.subr.mxu0 0.0
    %4574 = vmatpush1.msra.mxu0 0.0
    %4575 = vmatprep.subr.mxu0 0.0
    %4576 = vmatpush1.msra.mxu0 0.0
    %4577 = vmatprep.subr.mxu0 0.0
    %4578 = vmatpush1.msra.mxu0 0.0
    %4579 = vmatprep.subr.mxu0 0.0
    %4580 = vmatpush1.msra.mxu0 0.0
    %4581 = vmatprep.subr.mxu0 0.0
    %4582 = vmatpush1.msra.mxu0 0.0
    %4583 = vmatprep.subr.mxu0 0.0
    %4584 = vmatpush1.msra.mxu0 0.0
    %4585 = vmatprep.subr.mxu0 0.0
    %4586 = vmatpush1.msra.mxu0 0.0
    %4587 = vmatprep.subr.mxu0 0.0
    %4588 = vmatpush1.msra.mxu0 0.0
    %4589 = vmatprep.mubr.f32.mxu0 0.0
    %4590 = vmatmul.mubr.f32.gmra.mrb[0].mxu0 %v4508
    %v4591 = vpop.f32.mrb[0].mxu0
    %v4592 = vadd.f32 0.0, %v4591
    %v4593 = vpop.f32.mrb[0].mxu0
    %4594 = vmatprep.mubr.f32.mxu0 0.0
    %4595 = vmatmul.mubr.f32.gmra.mrb[0].mxu0 %v4511
    %v4596 = vpop.f32.mrb[0].mxu0
    %v4597 = vadd.f32 0.0, %v4596
    %v4598 = vpop.f32.mrb[0].mxu0
    %4599 = vmatprep.mubr.f32.mxu0 0.0
    %4600 = vmatmul.mubr.f32.gmra.mrb[0].mxu0 %v4514
    %v4601 = vpop.f32.mrb[0].mxu0
    %v4602 = vadd.f32 0.0, %v4601
    %v4603 = vpop.f32.mrb[0].mxu0
    %4604 = vmatprep.mubr.f32.mxu0 0.0
    %4605 = vmatmul.mubr.f32.gmra.mrb[0].mxu0 %v4517
    %v4606 = vpop.f32.mrb[0].mxu0
    %v4607 = vadd.f32 0.0, %v4606
    %v4608 = vpop.f32.mrb[0].mxu0
    %4609 = vmatprep.mubr.f32.mxu0 0.0
    %4610 = vmatmul.mubr.f32.gmra.mrb[0].mxu0 %v4520
    %v4611 = vpop.f32.mrb[0].mxu0
    %v4612 = vadd.f32 0.0, %v4611
    %v4613 = vpop.f32.mrb[0].mxu0
    %4614 = vmatprep.mubr.f32.mxu0 0.0
    %4615 = vmatmul.mubr.f32.gmra.mrb[0].mxu0 %v4523
    %v4616 = vpop.f32.mrb[0].mxu0
    %v4617 = vadd.f32 0.0, %v4616
    %v4618 = vpop.f32.mrb[0].mxu0
    %4619 = vdwg.mxu0
    %v4621 = vsel %vm696, %v4592, 0
    %v4624 = vsel %vm696, %v4597, 0
    %v4627 = vsel %vm696, %v4602, 0
    %v4630 = vsel %vm696, %v4607, 0
    %v4633 = vsel %vm696, %v4612, 0
    %v4636 = vsel %vm696, %v4617, 0
    %4638 = vmatprep.subr.mxu0 0.0
    %4639 = vmatpush1.msra.mxu0 %v3396
    %4640 = vmatprep.subr.mxu0 0.0
    %4641 = vmatpush1.msra.mxu0 0.0
    %4642 = vmatprep.subr.mxu0 0.0
    %4643 = vmatpush1.msra.mxu0 0.0
    %4644 = vmatprep.subr.mxu0 0.0
    %4645 = vmatpush1.msra.mxu0 0.0
    %4646 = vmatprep.subr.mxu0 0.0
    %4647 = vmatpush1.msra.mxu0 0.0
    %4648 = vmatprep.subr.mxu0 0.0
    %4649 = vmatpush1.msra.mxu0 0.0
    %4650 = vmatprep.subr.mxu0 0.0
    %4651 = vmatpush1.msra.mxu0 0.0
    %4652 = vmatprep.subr.mxu0 0.0
    %4653 = vmatpush1.msra.mxu0 0.0
    %4654 = vmatprep.subr.mxu0 0.0
    %4655 = vmatpush1.msra.mxu0 0.0
    %4656 = vmatprep.subr.mxu0 0.0
    %4657 = vmatpush1.msra.mxu0 0.0
    %4658 = vmatprep.subr.mxu0 0.0
    %4659 = vmatpush1.msra.mxu0 0.0
    %4660 = vmatprep.subr.mxu0 0.0
    %4661 = vmatpush1.msra.mxu0 0.0
    %4662 = vmatprep.subr.mxu0 0.0
    %4663 = vmatpush1.msra.mxu0 0.0
    %4664 = vmatprep.subr.mxu0 0.0
    %4665 = vmatpush1.msra.mxu0 0.0
    %4666 = vmatprep.subr.mxu0 0.0
    %4667 = vmatpush1.msra.mxu0 0.0
    %4668 = vmatprep.subr.mxu0 0.0
    %4669 = vmatpush1.msra.mxu0 0.0
    %4670 = vmatprep.subr.mxu0 0.0
    %4671 = vmatpush1.msra.mxu0 0.0
    %4672 = vmatprep.subr.mxu0 0.0
    %4673 = vmatpush1.msra.mxu0 0.0
    %4674 = vmatprep.subr.mxu0 0.0
    %4675 = vmatpush1.msra.mxu0 0.0
    %4676 = vmatprep.subr.mxu0 0.0
    %4677 = vmatpush1.msra.mxu0 0.0
    %4678 = vmatprep.subr.mxu0 0.0
    %4679 = vmatpush1.msra.mxu0 0.0
    %4680 = vmatprep.subr.mxu0 0.0
    %4681 = vmatpush1.msra.mxu0 0.0
    %4682 = vmatprep.subr.mxu0 0.0
    %4683 = vmatpush1.msra.mxu0 0.0
    %4684 = vmatprep.subr.mxu0 0.0
    %4685 = vmatpush1.msra.mxu0 0.0
    %4686 = vmatprep.subr.mxu0 0.0
    %4687 = vmatpush1.msra.mxu0 0.0
    %4688 = vmatprep.subr.mxu0 0.0
    %4689 = vmatpush1.msra.mxu0 0.0
    %4690 = vmatprep.subr.mxu0 0.0
    %4691 = vmatpush1.msra.mxu0 0.0
    %4692 = vmatprep.subr.mxu0 0.0
    %4693 = vmatpush1.msra.mxu0 0.0
    %4694 = vmatprep.subr.mxu0 0.0
    %4695 = vmatpush1.msra.mxu0 0.0
    %4696 = vmatprep.subr.mxu0 0.0
    %4697 = vmatpush1.msra.mxu0 0.0
    %4698 = vmatprep.subr.mxu0 0.0
    %4699 = vmatpush1.msra.mxu0 0.0
    %4700 = vmatprep.subr.mxu0 0.0
    %4701 = vmatpush1.msra.mxu0 0.0
    %4702 = vmatprep.mubr.f32.mxu0 0.0
    %4703 = vmatmul.mubr.f32.gmra.mrb[0].mxu0 %v4621
    %v4704 = vpop.f32.mrb[0].mxu0
    %v4705 = vadd.f32 0.0, %v4704
    %v4706 = vpop.f32.mrb[0].mxu0
    %4707 = vmatprep.mubr.f32.mxu0 0.0
    %4708 = vmatmul.mubr.f32.gmra.mrb[0].mxu0 %v4624
    %v4709 = vpop.f32.mrb[0].mxu0
    %v4710 = vadd.f32 0.0, %v4709
    %v4711 = vpop.f32.mrb[0].mxu0
    %4712 = vmatprep.mubr.f32.mxu0 0.0
    %4713 = vmatmul.mubr.f32.gmra.mrb[0].mxu0 %v4627
    %v4714 = vpop.f32.mrb[0].mxu0
    %v4715 = vadd.f32 0.0, %v4714
    %v4716 = vpop.f32.mrb[0].mxu0
    %4717 = vmatprep.mubr.f32.mxu0 0.0
    %4718 = vmatmul.mubr.f32.gmra.mrb[0].mxu0 %v4630
    %v4719 = vpop.f32.mrb[0].mxu0
    %v4720 = vadd.f32 0.0, %v4719
    %v4721 = vpop.f32.mrb[0].mxu0
    %4722 = vmatprep.mubr.f32.mxu0 0.0
    %4723 = vmatmul.mubr.f32.gmra.mrb[0].mxu0 %v4633
    %v4724 = vpop.f32.mrb[0].mxu0
    %v4725 = vadd.f32 0.0, %v4724
    %v4726 = vpop.f32.mrb[0].mxu0
    %4727 = vmatprep.mubr.f32.mxu0 0.0
    %4728 = vmatmul.mubr.f32.gmra.mrb[0].mxu0 %v4636
    %v4729 = vpop.f32.mrb[0].mxu0
    %v4730 = vadd.f32 0.0, %v4729
    %v4731 = vpop.f32.mrb[0].mxu0
    %4732 = vdwg.mxu0
    %v4733 = vadd.f32 %v4252, %v4705
    %v4734 = vadd.f32 %v4257, %v4710
    %v4735 = vadd.f32 %v4262, %v4715
    %v4736 = vadd.f32 %v4267, %v4720
    %v4737 = vadd.f32 %v4272, %v4725
    %v4738 = vadd.f32 %v4277, %v4730
    %4739 = vrot.lane.b32.xlu0 %v3171, 104
    %v4740 = vpop.permute.xlu0 %4739
    %4741 = vrot.lane.b32.xlu0 %v3172, 104
    %v4742 = vpop.permute.xlu0 %4741
    %4743 = vrot.lane.b32.xlu0 %v3173, 104
    %v4744 = vpop.permute.xlu0 %4743
    %4745 = vrot.lane.b32.xlu0 %v3174, 104
    %v4746 = vpop.permute.xlu0 %4745
    %4747 = vrot.lane.b32.xlu0 %v3175, 104
    %v4748 = vpop.permute.xlu0 %4747
    %4749 = vrot.lane.b32.xlu0 %v3176, 104
    %v4750 = vpop.permute.xlu0 %4749
    %4751 = vrot.lane.b32.xlu0 %v3257, 104
    %v4752 = vpop.permute.xlu0 %4751
    %4753 = vrot.lane.b32.xlu0 %v3262, 104
    %v4754 = vpop.permute.xlu0 %4753
    %4755 = vrot.lane.b32.xlu0 %v3267, 104
    %v4756 = vpop.permute.xlu0 %4755
    %4757 = vrot.lane.b32.xlu0 %v3272, 104
    %v4758 = vpop.permute.xlu0 %4757
    %4759 = vrot.lane.b32.xlu0 %v3277, 104
    %v4760 = vpop.permute.xlu0 %4759
    %4761 = vrot.lane.b32.xlu0 %v3282, 104
    %v4762 = vpop.permute.xlu0 %4761
    %v4763 = vsel %vm696, %v4740, 0
    %v4765 = vsel %vm696, %v4742, 0
    %v4767 = vsel %vm696, %v4744, 0
    %v4769 = vsel %vm696, %v4746, 0
    %v4771 = vsel %vm696, %v4748, 0
    %v4773 = vsel %vm696, %v4750, 0
    %v4775 = vsel %vm696, %v4752, 0
    %v4777 = vsel %vm696, %v4754, 0
    %v4779 = vsel %vm696, %v4756, 0
    %v4781 = vsel %vm696, %v4758, 0
    %v4783 = vsel %vm696, %v4760, 0
    %v4785 = vsel %vm696, %v4762, 0
    %4787 = vmatprep.subr.mxu0 0.0
    %4788 = vmatpush1.xpose.msra.mxu0 %v4775
    %4789 = vmatprep.subr.mxu0 0.0
    %4790 = vmatpush1.xpose.msra.mxu0 %v4777
    %4791 = vmatprep.subr.mxu0 0.0
    %4792 = vmatpush1.xpose.msra.mxu0 %v4779
    %4793 = vmatprep.subr.mxu0 0.0
    %4794 = vmatpush1.xpose.msra.mxu0 %v4781
    %4795 = vmatprep.subr.mxu0 0.0
    %4796 = vmatpush1.xpose.msra.mxu0 %v4783
    %4797 = vmatprep.subr.mxu0 0.0
    %4798 = vmatpush1.xpose.msra.mxu0 %v4785
    %4799 = vmatprep.subr.mxu0 0.0
    %4800 = vmatpush1.xpose.msra.mxu0 0.0
    %4801 = vmatprep.subr.mxu0 0.0
    %4802 = vmatpush1.xpose.msra.mxu0 0.0
    %4803 = vmatprep.subr.mxu0 0.0
    %4804 = vmatpush1.xpose.msra.mxu0 0.0
    %4805 = vmatprep.subr.mxu0 0.0
    %4806 = vmatpush1.xpose.msra.mxu0 0.0
    %4807 = vmatprep.subr.mxu0 0.0
    %4808 = vmatpush1.xpose.msra.mxu0 0.0
    %4809 = vmatprep.subr.mxu0 0.0
    %4810 = vmatpush1.xpose.msra.mxu0 0.0
    %4811 = vmatprep.subr.mxu0 0.0
    %4812 = vmatpush1.xpose.msra.mxu0 0.0
    %4813 = vmatprep.subr.mxu0 0.0
    %4814 = vmatpush1.xpose.msra.mxu0 0.0
    %4815 = vmatprep.subr.mxu0 0.0
    %4816 = vmatpush1.xpose.msra.mxu0 0.0
    %4817 = vmatprep.subr.mxu0 0.0
    %4818 = vmatpush1.xpose.msra.mxu0 0.0
    %4819 = vmatprep.subr.mxu0 0.0
    %4820 = vmatpush1.xpose.msra.mxu0 0.0
    %4821 = vmatprep.subr.mxu0 0.0
    %4822 = vmatpush1.xpose.msra.mxu0 0.0
    %4823 = vmatprep.subr.mxu0 0.0
    %4824 = vmatpush1.xpose.msra.mxu0 0.0
    %4825 = vmatprep.subr.mxu0 0.0
    %4826 = vmatpush1.xpose.msra.mxu0 0.0
    %4827 = vmatprep.subr.mxu0 0.0
    %4828 = vmatpush1.xpose.msra.mxu0 0.0
    %4829 = vmatprep.subr.mxu0 0.0
    %4830 = vmatpush1.xpose.msra.mxu0 0.0
    %4831 = vmatprep.subr.mxu0 0.0
    %4832 = vmatpush1.xpose.msra.mxu0 0.0
    %4833 = vmatprep.subr.mxu0 0.0
    %4834 = vmatpush1.xpose.msra.mxu0 0.0
    %4835 = vmatprep.subr.mxu0 0.0
    %4836 = vmatpush1.xpose.msra.mxu0 0.0
    %4837 = vmatprep.subr.mxu0 0.0
    %4838 = vmatpush1.xpose.msra.mxu0 0.0
    %4839 = vmatprep.subr.mxu0 0.0
    %4840 = vmatpush1.xpose.msra.mxu0 0.0
    %4841 = vmatprep.subr.mxu0 0.0
    %4842 = vmatpush1.xpose.msra.mxu0 0.0
    %4843 = vmatprep.subr.mxu0 0.0
    %4844 = vmatpush1.xpose.msra.mxu0 0.0
    %4845 = vmatprep.subr.mxu0 0.0
    %4846 = vmatpush1.xpose.msra.mxu0 0.0
    %4847 = vmatprep.subr.mxu0 0.0
    %4848 = vmatpush1.xpose.msra.mxu0 0.0
    %4849 = vmatprep.subr.mxu0 0.0
    %4850 = vmatpush1.xpose.msra.mxu0 0.0
    %4851 = vmatprep.mubr.f32.mxu0 0.0
    %4852 = vmatmul.mubr.f32.gmra.mrb[0].mxu0 %v4763
    %v4853 = vpop.f32.mrb[0].mxu0
    %v4854 = vadd.f32 %v238, %v4853
    %v4855 = vpop.f32.mrb[0].mxu0
    %4856 = vmatprep.mubr.f32.mxu0 0.0
    %4857 = vmatmul.mubr.f32.gmra.mrb[0].mxu0 %v4765
    %v4858 = vpop.f32.mrb[0].mxu0
    %v4859 = vadd.f32 %v239, %v4858
    %v4860 = vpop.f32.mrb[0].mxu0
    %4861 = vmatprep.mubr.f32.mxu0 0.0
    %4862 = vmatmul.mubr.f32.gmra.mrb[0].mxu0 %v4767
    %v4863 = vpop.f32.mrb[0].mxu0
    %v4864 = vadd.f32 %v240, %v4863
    %v4865 = vpop.f32.mrb[0].mxu0
    %4866 = vmatprep.mubr.f32.mxu0 0.0
    %4867 = vmatmul.mubr.f32.gmra.mrb[0].mxu0 %v4769
    %v4868 = vpop.f32.mrb[0].mxu0
    %v4869 = vadd.f32 %v241, %v4868
    %v4870 = vpop.f32.mrb[0].mxu0
    %4871 = vmatprep.mubr.f32.mxu0 0.0
    %4872 = vmatmul.mubr.f32.gmra.mrb[0].mxu0 %v4771
    %v4873 = vpop.f32.mrb[0].mxu0
    %v4874 = vadd.f32 %v242, %v4873
    %v4875 = vpop.f32.mrb[0].mxu0
    %4876 = vmatprep.mubr.f32.mxu0 0.0
    %4877 = vmatmul.mubr.f32.gmra.mrb[0].mxu0 %v4773
    %v4878 = vpop.f32.mrb[0].mxu0
    %v4879 = vadd.f32 %v243, %v4878
    %v4880 = vpop.f32.mrb[0].mxu0
    %4881 = vdwg.mxu0
    %v4882 = vsel %vm124, %v4854, -inf
    %4883 = vmax.xlane.f32.xlu0 %v4882
    %v4884 = vpop.xlane.xlu0 %4883
    %v4885 = vsel %vm124, %v4859, -inf
    %4886 = vmax.xlane.f32.xlu0 %v4885
    %v4887 = vpop.xlane.xlu0 %4886
    %v4888 = vsel %vm124, %v4864, -inf
    %4889 = vmax.xlane.f32.xlu0 %v4888
    %v4890 = vpop.xlane.xlu0 %4889
    %v4891 = vsel %vm124, %v4869, -inf
    %4892 = vmax.xlane.f32.xlu0 %v4891
    %v4893 = vpop.xlane.xlu0 %4892
    %v4894 = vsel %vm124, %v4874, -inf
    %4895 = vmax.xlane.f32.xlu0 %v4894
    %v4896 = vpop.xlane.xlu0 %4895
    %v4897 = vsel %vm124, %v4879, -inf
    %4898 = vmax.xlane.f32.xlu0 %v4897
    %v4899 = vpop.xlane.xlu0 %4898
    %v4900 = vsub.f32 %v4854, %v4884
    %v4901 = vsub.f32 %v4859, %v4887
    %v4902 = vsub.f32 %v4864, %v4890
    %v4903 = vsub.f32 %v4869, %v4893
    %v4904 = vsub.f32 %v4874, %v4896
    %v4905 = vsub.f32 %v4879, %v4899
    %v4906 = vmul.f32 %v4900, 1.442695
    %v4907 = vpow.pop %v4906
    %v4908 = vmul.f32 %v4901, 1.442695
    %v4909 = vpow.pop %v4908
    %v4910 = vmul.f32 %v4902, 1.442695
    %v4911 = vpow.pop %v4910
    %v4912 = vmul.f32 %v4903, 1.442695
    %v4913 = vpow.pop %v4912
    %v4914 = vmul.f32 %v4904, 1.442695
    %v4915 = vpow.pop %v4914
    %v4916 = vmul.f32 %v4905, 1.442695
    %v4917 = vpow.pop %v4916
    %v4918 = vsel %vm124, %v4907, 0.0
    %4919 = vadd.xlane.f32.xlu0 %v4918
    %v4920 = vpop.xlane.xlu0 %4919
    %v4921 = vsel %vm124, %v4909, 0.0
    %4922 = vadd.xlane.f32.xlu0 %v4921
    %v4923 = vpop.xlane.xlu0 %4922
    %v4924 = vsel %vm124, %v4911, 0.0
    %4925 = vadd.xlane.f32.xlu0 %v4924
    %v4926 = vpop.xlane.xlu0 %4925
    %v4927 = vsel %vm124, %v4913, 0.0
    %4928 = vadd.xlane.f32.xlu0 %v4927
    %v4929 = vpop.xlane.xlu0 %4928
    %v4930 = vsel %vm124, %v4915, 0.0
    %4931 = vadd.xlane.f32.xlu0 %v4930
    %v4932 = vpop.xlane.xlu0 %4931
    %v4933 = vsel %vm124, %v4917, 0.0
    %4934 = vadd.xlane.f32.xlu0 %v4933
    %v4935 = vpop.xlane.xlu0 %4934
    %v4936 = vrcp.pop %v4920
    %v4937 = vrcp.pop %v4923
    %v4938 = vrcp.pop %v4926
    %v4939 = vrcp.pop %v4929
    %v4940 = vrcp.pop %v4932
    %v4941 = vrcp.pop %v4935
    %v4942 = vmul.f32 %v4907, %v4936
    %v4943 = vmul.f32 %v4909, %v4937
    %v4944 = vmul.f32 %v4911, %v4938
    %v4945 = vmul.f32 %v4913, %v4939
    %v4946 = vmul.f32 %v4915, %v4940
    %v4947 = vmul.f32 %v4917, %v4941
    %4948 = vrot.lane.b32.xlu0 %v3365, 104
    %v4949 = vpop.permute.xlu0 %4948
    %4950 = vrot.lane.b32.xlu0 %v3370, 104
    %v4951 = vpop.permute.xlu0 %4950
    %4952 = vrot.lane.b32.xlu0 %v3375, 104
    %v4953 = vpop.permute.xlu0 %4952
    %4954 = vrot.lane.b32.xlu0 %v3380, 104
    %v4955 = vpop.permute.xlu0 %4954
    %4956 = vrot.lane.b32.xlu0 %v3385, 104
    %v4957 = vpop.permute.xlu0 %4956
    %4958 = vrot.lane.b32.xlu0 %v3390, 104
    %v4959 = vpop.permute.xlu0 %4958
    %v4967 = vsel %vm124, %v4942, 0
    %v4970 = vsel %vm124, %v4943, 0
    %v4973 = vsel %vm124, %v4944, 0
    %v4976 = vsel %vm124, %v4945, 0
    %v4979 = vsel %vm124, %v4946, 0
    %v4982 = vsel %vm124, %v4947, 0
    %4984 = vmatprep.subr.mxu0 0.0
    %4985 = vmatpush1.msra.mxu0 %v4949
    %4986 = vmatprep.subr.mxu0 0.0
    %4987 = vmatpush1.msra.mxu0 %v4951
    %4988 = vmatprep.subr.mxu0 0.0
    %4989 = vmatpush1.msra.mxu0 %v4953
    %4990 = vmatprep.subr.mxu0 0.0
    %4991 = vmatpush1.msra.mxu0 %v4955
    %4992 = vmatprep.subr.mxu0 0.0
    %4993 = vmatpush1.msra.mxu0 %v4957
    %4994 = vmatprep.subr.mxu0 0.0
    %4995 = vmatpush1.msra.mxu0 %v4959
    %4996 = vmatprep.subr.mxu0 0.0
    %4997 = vmatpush1.msra.mxu0 0.0
    %4998 = vmatprep.subr.mxu0 0.0
    %4999 = vmatpush1.msra.mxu0 0.0
    %5000 = vmatprep.subr.mxu0 0.0
    %5001 = vmatpush1.msra.mxu0 0.0
    %5002 = vmatprep.subr.mxu0 0.0
    %5003 = vmatpush1.msra.mxu0 0.0
    %5004 = vmatprep.subr.mxu0 0.0
    %5005 = vmatpush1.msra.mxu0 0.0
    %5006 = vmatprep.subr.mxu0 0.0
    %5007 = vmatpush1.msra.mxu0 0.0
    %5008 = vmatprep.subr.mxu0 0.0
    %5009 = vmatpush1.msra.mxu0 0.0
    %5010 = vmatprep.subr.mxu0 0.0
    %5011 = vmatpush1.msra.mxu0 0.0
    %5012 = vmatprep.subr.mxu0 0.0
    %5013 = vmatpush1.msra.mxu0 0.0
    %5014 = vmatprep.subr.mxu0 0.0
    %5015 = vmatpush1.msra.mxu0 0.0
    %5016 = vmatprep.subr.mxu0 0.0
    %5017 = vmatpush1.msra.mxu0 0.0
    %5018 = vmatprep.subr.mxu0 0.0
    %5019 = vmatpush1.msra.mxu0 0.0
    %5020 = vmatprep.subr.mxu0 0.0
    %5021 = vmatpush1.msra.mxu0 0.0
    %5022 = vmatprep.subr.mxu0 0.0
    %5023 = vmatpush1.msra.mxu0 0.0
    %5024 = vmatprep.subr.mxu0 0.0
    %5025 = vmatpush1.msra.mxu0 0.0
    %5026 = vmatprep.subr.mxu0 0.0
    %5027 = vmatpush1.msra.mxu0 0.0
    %5028 = vmatprep.subr.mxu0 0.0
    %5029 = vmatpush1.msra.mxu0 0.0
    %5030 = vmatprep.subr.mxu0 0.0
    %5031 = vmatpush1.msra.mxu0 0.0
    %5032 = vmatprep.subr.mxu0 0.0
    %5033 = vmatpush1.msra.mxu0 0.0
    %5034 = vmatprep.subr.mxu0 0.0
    %5035 = vmatpush1.msra.mxu0 0.0
    %5036 = vmatprep.subr.mxu0 0.0
    %5037 = vmatpush1.msra.mxu0 0.0
    %5038 = vmatprep.subr.mxu0 0.0
    %5039 = vmatpush1.msra.mxu0 0.0
    %5040 = vmatprep.subr.mxu0 0.0
    %5041 = vmatpush1.msra.mxu0 0.0
    %5042 = vmatprep.subr.mxu0 0.0
    %5043 = vmatpush1.msra.mxu0 0.0
    %5044 = vmatprep.subr.mxu0 0.0
    %5045 = vmatpush1.msra.mxu0 0.0
    %5046 = vmatprep.subr.mxu0 0.0
    %5047 = vmatpush1.msra.mxu0 0.0
    %5048 = vmatprep.mubr.f32.mxu0 0.0
    %5049 = vmatmul.mubr.f32.gmra.mrb[0].mxu0 %v4967
    %v5050 = vpop.f32.mrb[0].mxu0
    %v5051 = vadd.f32 0.0, %v5050
    %v5052 = vpop.f32.mrb[0].mxu0
    %5053 = vmatprep.mubr.f32.mxu0 0.0
    %5054 = vmatmul.mubr.f32.gmra.mrb[0].mxu0 %v4970
    %v5055 = vpop.f32.mrb[0].mxu0
    %v5056 = vadd.f32 0.0, %v5055
    %v5057 = vpop.f32.mrb[0].mxu0
    %5058 = vmatprep.mubr.f32.mxu0 0.0
    %5059 = vmatmul.mubr.f32.gmra.mrb[0].mxu0 %v4973
    %v5060 = vpop.f32.mrb[0].mxu0
    %v5061 = vadd.f32 0.0, %v5060
    %v5062 = vpop.f32.mrb[0].mxu0
    %5063 = vmatprep.mubr.f32.mxu0 0.0
    %5064 = vmatmul.mubr.f32.gmra.mrb[0].mxu0 %v4976
    %v5065 = vpop.f32.mrb[0].mxu0
    %v5066 = vadd.f32 0.0, %v5065
    %v5067 = vpop.f32.mrb[0].mxu0
    %5068 = vmatprep.mubr.f32.mxu0 0.0
    %5069 = vmatmul.mubr.f32.gmra.mrb[0].mxu0 %v4979
    %v5070 = vpop.f32.mrb[0].mxu0
    %v5071 = vadd.f32 0.0, %v5070
    %v5072 = vpop.f32.mrb[0].mxu0
    %5073 = vmatprep.mubr.f32.mxu0 0.0
    %5074 = vmatmul.mubr.f32.gmra.mrb[0].mxu0 %v4982
    %v5075 = vpop.f32.mrb[0].mxu0
    %v5076 = vadd.f32 0.0, %v5075
    %v5077 = vpop.f32.mrb[0].mxu0
    %5078 = vdwg.mxu0
    %v5080 = vsel %vm696, %v5051, 0
    %v5083 = vsel %vm696, %v5056, 0
    %v5086 = vsel %vm696, %v5061, 0
    %v5089 = vsel %vm696, %v5066, 0
    %v5092 = vsel %vm696, %v5071, 0
    %v5095 = vsel %vm696, %v5076, 0
    %5097 = vmatprep.subr.mxu0 0.0
    %5098 = vmatpush1.msra.mxu0 %v3397
    %5099 = vmatprep.subr.mxu0 0.0
    %5100 = vmatpush1.msra.mxu0 0.0
    %5101 = vmatprep.subr.mxu0 0.0
    %5102 = vmatpush1.msra.mxu0 0.0
    %5103 = vmatprep.subr.mxu0 0.0
    %5104 = vmatpush1.msra.mxu0 0.0
    %5105 = vmatprep.subr.mxu0 0.0
    %5106 = vmatpush1.msra.mxu0 0.0
    %5107 = vmatprep.subr.mxu0 0.0
    %5108 = vmatpush1.msra.mxu0 0.0
    %5109 = vmatprep.subr.mxu0 0.0
    %5110 = vmatpush1.msra.mxu0 0.0
    %5111 = vmatprep.subr.mxu0 0.0
    %5112 = vmatpush1.msra.mxu0 0.0
    %5113 = vmatprep.subr.mxu0 0.0
    %5114 = vmatpush1.msra.mxu0 0.0
    %5115 = vmatprep.subr.mxu0 0.0
    %5116 = vmatpush1.msra.mxu0 0.0
    %5117 = vmatprep.subr.mxu0 0.0
    %5118 = vmatpush1.msra.mxu0 0.0
    %5119 = vmatprep.subr.mxu0 0.0
    %5120 = vmatpush1.msra.mxu0 0.0
    %5121 = vmatprep.subr.mxu0 0.0
    %5122 = vmatpush1.msra.mxu0 0.0
    %5123 = vmatprep.subr.mxu0 0.0
    %5124 = vmatpush1.msra.mxu0 0.0
    %5125 = vmatprep.subr.mxu0 0.0
    %5126 = vmatpush1.msra.mxu0 0.0
    %5127 = vmatprep.subr.mxu0 0.0
    %5128 = vmatpush1.msra.mxu0 0.0
    %5129 = vmatprep.subr.mxu0 0.0
    %5130 = vmatpush1.msra.mxu0 0.0
    %5131 = vmatprep.subr.mxu0 0.0
    %5132 = vmatpush1.msra.mxu0 0.0
    %5133 = vmatprep.subr.mxu0 0.0
    %5134 = vmatpush1.msra.mxu0 0.0
    %5135 = vmatprep.subr.mxu0 0.0
    %5136 = vmatpush1.msra.mxu0 0.0
    %5137 = vmatprep.subr.mxu0 0.0
    %5138 = vmatpush1.msra.mxu0 0.0
    %5139 = vmatprep.subr.mxu0 0.0
    %5140 = vmatpush1.msra.mxu0 0.0
    %5141 = vmatprep.subr.mxu0 0.0
    %5142 = vmatpush1.msra.mxu0 0.0
    %5143 = vmatprep.subr.mxu0 0.0
    %5144 = vmatpush1.msra.mxu0 0.0
    %5145 = vmatprep.subr.mxu0 0.0
    %5146 = vmatpush1.msra.mxu0 0.0
    %5147 = vmatprep.subr.mxu0 0.0
    %5148 = vmatpush1.msra.mxu0 0.0
    %5149 = vmatprep.subr.mxu0 0.0
    %5150 = vmatpush1.msra.mxu0 0.0
    %5151 = vmatprep.subr.mxu0 0.0
    %5152 = vmatpush1.msra.mxu0 0.0
    %5153 = vmatprep.subr.mxu0 0.0
    %5154 = vmatpush1.msra.mxu0 0.0
    %5155 = vmatprep.subr.mxu0 0.0
    %5156 = vmatpush1.msra.mxu0 0.0
    %5157 = vmatprep.subr.mxu0 0.0
    %5158 = vmatpush1.msra.mxu0 0.0
    %5159 = vmatprep.subr.mxu0 0.0
    %5160 = vmatpush1.msra.mxu0 0.0
    %5161 = vmatprep.mubr.f32.mxu0 0.0
    %5162 = vmatmul.mubr.f32.gmra.mrb[0].mxu0 %v5080
    %v5163 = vpop.f32.mrb[0].mxu0
    %v5164 = vadd.f32 0.0, %v5163
    %v5165 = vpop.f32.mrb[0].mxu0
    %5166 = vmatprep.mubr.f32.mxu0 0.0
    %5167 = vmatmul.mubr.f32.gmra.mrb[0].mxu0 %v5083
    %v5168 = vpop.f32.mrb[0].mxu0
    %v5169 = vadd.f32 0.0, %v5168
    %v5170 = vpop.f32.mrb[0].mxu0
    %5171 = vmatprep.mubr.f32.mxu0 0.0
    %5172 = vmatmul.mubr.f32.gmra.mrb[0].mxu0 %v5086
    %v5173 = vpop.f32.mrb[0].mxu0
    %v5174 = vadd.f32 0.0, %v5173
    %v5175 = vpop.f32.mrb[0].mxu0
    %5176 = vmatprep.mubr.f32.mxu0 0.0
    %5177 = vmatmul.mubr.f32.gmra.mrb[0].mxu0 %v5089
    %v5178 = vpop.f32.mrb[0].mxu0
    %v5179 = vadd.f32 0.0, %v5178
    %v5180 = vpop.f32.mrb[0].mxu0
    %5181 = vmatprep.mubr.f32.mxu0 0.0
    %5182 = vmatmul.mubr.f32.gmra.mrb[0].mxu0 %v5092
    %v5183 = vpop.f32.mrb[0].mxu0
    %v5184 = vadd.f32 0.0, %v5183
    %v5185 = vpop.f32.mrb[0].mxu0
    %5186 = vmatprep.mubr.f32.mxu0 0.0
    %5187 = vmatmul.mubr.f32.gmra.mrb[0].mxu0 %v5095
    %v5188 = vpop.f32.mrb[0].mxu0
    %v5189 = vadd.f32 0.0, %v5188
    %v5190 = vpop.f32.mrb[0].mxu0
    %5191 = vdwg.mxu0
    %v5192 = vadd.f32 %v4733, %v5164
    %v5193 = vadd.f32 %v4734, %v5169
    %v5194 = vadd.f32 %v4735, %v5174
    %v5195 = vadd.f32 %v4736, %v5179
    %v5196 = vadd.f32 %v4737, %v5184
    %v5197 = vadd.f32 %v4738, %v5189
    %v5198 = vadd.f32 %v2933, %v5192
    %v5199 = vadd.f32 %v2934, %v5193
    %v5200 = vadd.f32 %v2935, %v5194
    %v5201 = vadd.f32 %v2936, %v5195
    %v5202 = vadd.f32 %v2937, %v5196
    %v5203 = vadd.f32 %v2938, %v5197
    %s5204 = scalar_lea.vmem %s13, 1
    %v5205 = vld [vmem:[%s5204] sm:$0x1]
    %v5207 = vlaneseq
    %v5208 = vshrl.u32 %v5207, 7
    %v5209 = vsub.s32 0, %v5208
    %v5210 = vrot.slane %v5205, %v5209
    %v5212 = vadd.f32 %v5198, %v5210
    %v5213 = vadd.f32 %v5199, %v5210
    %v5214 = vadd.f32 %v5200, %v5210
    %v5215 = vadd.f32 %v5201, %v5210
    %v5216 = vadd.f32 %v5202, %v5210
    %v5217 = vadd.f32 %v5203, %v5210
    %s5218 = scalar_lea.vmem %s14, 1
    %v5219 = vld [vmem:[%s5218] sm:$0x1]
    %s5220 = scalar_lea.vmem %s15, 1
    %v5221 = vld [vmem:[%s5220] sm:$0x1]
    %v5222 = vsel %vm246, %v5212, 0.0
    %5223 = vadd.xlane.f32.xlu0 %v5222
    %v5224 = vpop.xlane.xlu0 %5223
    %v5225 = vsel %vm246, %v5213, 0.0
    %5226 = vadd.xlane.f32.xlu0 %v5225
    %v5227 = vpop.xlane.xlu0 %5226
    %v5228 = vsel %vm246, %v5214, 0.0
    %5229 = vadd.xlane.f32.xlu0 %v5228
    %v5230 = vpop.xlane.xlu0 %5229
    %v5231 = vsel %vm246, %v5215, 0.0
    %5232 = vadd.xlane.f32.xlu0 %v5231
    %v5233 = vpop.xlane.xlu0 %5232
    %v5234 = vsel %vm246, %v5216, 0.0
    %5235 = vadd.xlane.f32.xlu0 %v5234
    %v5236 = vpop.xlane.xlu0 %5235
    %v5237 = vsel %vm246, %v5217, 0.0
    %5238 = vadd.xlane.f32.xlu0 %v5237
    %v5239 = vpop.xlane.xlu0 %5238
    %v5240 = vmul.f32 %v5224, %v265
    %v5241 = vmul.f32 %v5227, %v265
    %v5242 = vmul.f32 %v5230, %v265
    %v5243 = vmul.f32 %v5233, %v265
    %v5244 = vmul.f32 %v5236, %v265
    %v5245 = vmul.f32 %v5239, %v265
    %v5246 = vsub.f32 %v5212, %v5240
    %v5247 = vsub.f32 %v5213, %v5241
    %v5248 = vsub.f32 %v5214, %v5242
    %v5249 = vsub.f32 %v5215, %v5243
    %v5250 = vsub.f32 %v5216, %v5244
    %v5251 = vsub.f32 %v5217, %v5245
    %v5252 = vmul.f32 %v5246, %v5246
    %v5253 = vmul.f32 %v5247, %v5247
    %v5254 = vmul.f32 %v5248, %v5248
    %v5255 = vmul.f32 %v5249, %v5249
    %v5256 = vmul.f32 %v5250, %v5250
    %v5257 = vmul.f32 %v5251, %v5251
    %v5258 = vsel %vm246, %v5252, 0.0
    %5259 = vadd.xlane.f32.xlu0 %v5258
    %v5260 = vpop.xlane.xlu0 %5259
    %v5261 = vsel %vm246, %v5253, 0.0
    %5262 = vadd.xlane.f32.xlu0 %v5261
    %v5263 = vpop.xlane.xlu0 %5262
    %v5264 = vsel %vm246, %v5254, 0.0
    %5265 = vadd.xlane.f32.xlu0 %v5264
    %v5266 = vpop.xlane.xlu0 %5265
    %v5267 = vsel %vm246, %v5255, 0.0
    %5268 = vadd.xlane.f32.xlu0 %v5267
    %v5269 = vpop.xlane.xlu0 %5268
    %v5270 = vsel %vm246, %v5256, 0.0
    %5271 = vadd.xlane.f32.xlu0 %v5270
    %v5272 = vpop.xlane.xlu0 %5271
    %v5273 = vsel %vm246, %v5257, 0.0
    %5274 = vadd.xlane.f32.xlu0 %v5273
    %v5275 = vpop.xlane.xlu0 %5274
    %v5276 = vmul.f32 %v5260, %v265
    %v5277 = vmul.f32 %v5263, %v265
    %v5278 = vmul.f32 %v5266, %v265
    %v5279 = vmul.f32 %v5269, %v265
    %v5280 = vmul.f32 %v5272, %v265
    %v5281 = vmul.f32 %v5275, %v265
    %v5282 = vadd.f32 %v5276, 1e-12
    %v5283 = vadd.f32 %v5277, 1e-12
    %v5284 = vadd.f32 %v5278, 1e-12
    %v5285 = vadd.f32 %v5279, 1e-12
    %v5286 = vadd.f32 %v5280, 1e-12
    %v5287 = vadd.f32 %v5281, 1e-12
    %v5288 = vrsqrt.pop %v5282
    %v5289 = vrsqrt.pop %v5283
    %v5290 = vrsqrt.pop %v5284
    %v5291 = vrsqrt.pop %v5285
    %v5292 = vrsqrt.pop %v5286
    %v5293 = vrsqrt.pop %v5287
    %v5294 = vmul.f32 %v5246, %v5288
    %v5295 = vmul.f32 %v5247, %v5289
    %v5296 = vmul.f32 %v5248, %v5290
    %v5297 = vmul.f32 %v5249, %v5291
    %v5298 = vmul.f32 %v5250, %v5292
    %v5299 = vmul.f32 %v5251, %v5293
    %v5301 = vlaneseq
    %v5302 = vshrl.u32 %v5301, 7
    %v5303 = vsub.s32 0, %v5302
    %v5304 = vrot.slane %v5219, %v5303
    %v5306 = vmul.f32 %v5294, %v5304
    %v5307 = vmul.f32 %v5295, %v5304
    %v5308 = vmul.f32 %v5296, %v5304
    %v5309 = vmul.f32 %v5297, %v5304
    %v5310 = vmul.f32 %v5298, %v5304
    %v5311 = vmul.f32 %v5299, %v5304
    %v5313 = vlaneseq
    %v5314 = vshrl.u32 %v5313, 7
    %v5315 = vsub.s32 0, %v5314
    %v5316 = vrot.slane %v5221, %v5315
    %v5318 = vadd.f32 %v5306, %v5316
    %v5319 = vadd.f32 %v5307, %v5316
    %v5320 = vadd.f32 %v5308, %v5316
    %v5321 = vadd.f32 %v5309, %v5316
    %v5322 = vadd.f32 %v5310, %v5316
    %v5323 = vadd.f32 %v5311, %v5316
    %s5324 = scalar_lea.vmem %s16, 32
    %v5325 = vld [vmem:[%s5324] sm:$0xff]
    %v5326 = vld [vmem:[%s5324 + $0x8] sm:$0xff]
    %v5327 = vld [vmem:[%s5324 + $0x10] sm:$0xff]
    %v5328 = vld [vmem:[%s5324 + $0x18] sm:$0xff]
    %s5329 = scalar_lea.vmem %s17, 1
    %v5330 = vld [vmem:[%s5329] sm:$0x1]
    %v5332 = vlaneseq
    %v5333 = vshrl.u32 %v5332, 7
    %v5334 = vsub.s32 0, %v5333
    %v5335 = vrot.slane %v5330, %v5334
    %v5338 = vsel %vm246, %v5318, 0
    %v5341 = vsel %vm246, %v5319, 0
    %v5344 = vsel %vm246, %v5320, 0
    %v5347 = vsel %vm246, %v5321, 0
    %v5350 = vsel %vm246, %v5322, 0
    %v5353 = vsel %vm246, %v5323, 0
    %5355 = vmatprep.subr.mxu0 0.0
    %5356 = vmatpush1.msra.mxu0 %v5325
    %5357 = vmatprep.subr.mxu0 0.0
    %5358 = vmatpush1.msra.mxu0 %v5326
    %5359 = vmatprep.subr.mxu0 0.0
    %5360 = vmatpush1.msra.mxu0 %v5327
    %5361 = vmatprep.subr.mxu0 0.0
    %5362 = vmatpush1.msra.mxu0 %v5328
    %5363 = vmatprep.subr.mxu0 0.0
    %5364 = vmatpush1.msra.mxu0 0.0
    %5365 = vmatprep.subr.mxu0 0.0
    %5366 = vmatpush1.msra.mxu0 0.0
    %5367 = vmatprep.subr.mxu0 0.0
    %5368 = vmatpush1.msra.mxu0 0.0
    %5369 = vmatprep.subr.mxu0 0.0
    %5370 = vmatpush1.msra.mxu0 0.0
    %5371 = vmatprep.subr.mxu0 0.0
    %5372 = vmatpush1.msra.mxu0 0.0
    %5373 = vmatprep.subr.mxu0 0.0
    %5374 = vmatpush1.msra.mxu0 0.0
    %5375 = vmatprep.subr.mxu0 0.0
    %5376 = vmatpush1.msra.mxu0 0.0
    %5377 = vmatprep.subr.mxu0 0.0
    %5378 = vmatpush1.msra.mxu0 0.0
    %5379 = vmatprep.subr.mxu0 0.0
    %5380 = vmatpush1.msra.mxu0 0.0
    %5381 = vmatprep.subr.mxu0 0.0
    %5382 = vmatpush1.msra.mxu0 0.0
    %5383 = vmatprep.subr.mxu0 0.0
    %5384 = vmatpush1.msra.mxu0 0.0
    %5385 = vmatprep.subr.mxu0 0.0
    %5386 = vmatpush1.msra.mxu0 0.0
    %5387 = vmatprep.subr.mxu0 0.0
    %5388 = vmatpush1.msra.mxu0 0.0
    %5389 = vmatprep.subr.mxu0 0.0
    %5390 = vmatpush1.msra.mxu0 0.0
    %5391 = vmatprep.subr.mxu0 0.0
    %5392 = vmatpush1.msra.mxu0 0.0
    %5393 = vmatprep.subr.mxu0 0.0
    %5394 = vmatpush1.msra.mxu0 0.0
    %5395 = vmatprep.subr.mxu0 0.0
    %5396 = vmatpush1.msra.mxu0 0.0
    %5397 = vmatprep.subr.mxu0 0.0
    %5398 = vmatpush1.msra.mxu0 0.0
    %5399 = vmatprep.subr.mxu0 0.0
    %5400 = vmatpush1.msra.mxu0 0.0
    %5401 = vmatprep.subr.mxu0 0.0
    %5402 = vmatpush1.msra.mxu0 0.0
    %5403 = vmatprep.subr.mxu0 0.0
    %5404 = vmatpush1.msra.mxu0 0.0
    %5405 = vmatprep.subr.mxu0 0.0
    %5406 = vmatpush1.msra.mxu0 0.0
    %5407 = vmatprep.subr.mxu0 0.0
    %5408 = vmatpush1.msra.mxu0 0.0
    %5409 = vmatprep.subr.mxu0 0.0
    %5410 = vmatpush1.msra.mxu0 0.0
    %5411 = vmatprep.subr.mxu0 0.0
    %5412 = vmatpush1.msra.mxu0 0.0
    %5413 = vmatprep.subr.mxu0 0.0
    %5414 = vmatpush1.msra.mxu0 0.0
    %5415 = vmatprep.subr.mxu0 0.0
    %5416 = vmatpush1.msra.mxu0 0.0
    %5417 = vmatprep.subr.mxu0 0.0
    %5418 = vmatpush1.msra.mxu0 0.0
    %5419 = vmatprep.mubr.f32.mxu0 0.0
    %5420 = vmatmul.mubr.f32.gmra.mrb[0].mxu0 %v5338
    %v5421 = vpop.f32.mrb[0].mxu0
    %v5422 = vadd.f32 %v5335, %v5421
    %v5423 = vpop.f32.mrb[0].mxu0
    %5424 = vmatprep.mubr.f32.mxu0 0.0
    %5425 = vmatmul.mubr.f32.gmra.mrb[0].mxu0 %v5341
    %v5426 = vpop.f32.mrb[0].mxu0
    %v5427 = vadd.f32 %v5335, %v5426
    %v5428 = vpop.f32.mrb[0].mxu0
    %5429 = vmatprep.mubr.f32.mxu0 0.0
    %5430 = vmatmul.mubr.f32.gmra.mrb[0].mxu0 %v5344
    %v5431 = vpop.f32.mrb[0].mxu0
    %v5432 = vadd.f32 %v5335, %v5431
    %v5433 = vpop.f32.mrb[0].mxu0
    %5434 = vmatprep.mubr.f32.mxu0 0.0
    %5435 = vmatmul.mubr.f32.gmra.mrb[0].mxu0 %v5347
    %v5436 = vpop.f32.mrb[0].mxu0
    %v5437 = vadd.f32 %v5335, %v5436
    %v5438 = vpop.f32.mrb[0].mxu0
    %5439 = vmatprep.mubr.f32.mxu0 0.0
    %5440 = vmatmul.mubr.f32.gmra.mrb[0].mxu0 %v5350
    %v5441 = vpop.f32.mrb[0].mxu0
    %v5442 = vadd.f32 %v5335, %v5441
    %v5443 = vpop.f32.mrb[0].mxu0
    %5444 = vmatprep.mubr.f32.mxu0 0.0
    %5445 = vmatmul.mubr.f32.gmra.mrb[0].mxu0 %v5353
    %v5446 = vpop.f32.mrb[0].mxu0
    %v5447 = vadd.f32 %v5335, %v5446
    %v5448 = vpop.f32.mrb[0].mxu0
    %5449 = vdwg.mxu0
    %v5450 = vmul.f32 %v5422, 0.5
    %v5451 = vmul.f32 %v5427, 0.5
    %v5452 = vmul.f32 %v5432, 0.5
    %v5453 = vmul.f32 %v5437, 0.5
    %v5454 = vmul.f32 %v5442, 0.5
    %v5455 = vmul.f32 %v5447, 0.5
    %v5456 = vmul.f32 %v5422, 0.044715
    %v5457 = vmul.f32 %v5427, 0.044715
    %v5458 = vmul.f32 %v5432, 0.044715
    %v5459 = vmul.f32 %v5437, 0.044715
    %v5460 = vmul.f32 %v5442, 0.044715
    %v5461 = vmul.f32 %v5447, 0.044715
    %v5462 = vmul.f32 %v5456, %v5422
    %v5463 = vmul.f32 %v5457, %v5427
    %v5464 = vmul.f32 %v5458, %v5432
    %v5465 = vmul.f32 %v5459, %v5437
    %v5466 = vmul.f32 %v5460, %v5442
    %v5467 = vmul.f32 %v5461, %v5447
    %v5468 = vmul.f32 %v5462, %v5422
    %v5469 = vmul.f32 %v5463, %v5427
    %v5470 = vmul.f32 %v5464, %v5432
    %v5471 = vmul.f32 %v5465, %v5437
    %v5472 = vmul.f32 %v5466, %v5442
    %v5473 = vmul.f32 %v5467, %v5447
    %v5474 = vadd.f32 %v5422, %v5468
    %v5475 = vadd.f32 %v5427, %v5469
    %v5476 = vadd.f32 %v5432, %v5470
    %v5477 = vadd.f32 %v5437, %v5471
    %v5478 = vadd.f32 %v5442, %v5472
    %v5479 = vadd.f32 %v5447, %v5473
    %v5480 = vmul.f32 %v5474, 0.7978846
    %v5481 = vmul.f32 %v5475, 0.7978846
    %v5482 = vmul.f32 %v5476, 0.7978846
    %v5483 = vmul.f32 %v5477, 0.7978846
    %v5484 = vmul.f32 %v5478, 0.7978846
    %v5485 = vmul.f32 %v5479, 0.7978846
    %v5486 = vtanh.pop %v5480
    %v5487 = vtanh.pop %v5481
    %v5488 = vtanh.pop %v5482
    %v5489 = vtanh.pop %v5483
    %v5490 = vtanh.pop %v5484
    %v5491 = vtanh.pop %v5485
    %v5492 = vadd.f32 %v5486, 1.0
    %v5493 = vadd.f32 %v5487, 1.0
    %v5494 = vadd.f32 %v5488, 1.0
    %v5495 = vadd.f32 %v5489, 1.0
    %v5496 = vadd.f32 %v5490, 1.0
    %v5497 = vadd.f32 %v5491, 1.0
    %v5498 = vmul.f32 %v5450, %v5492
    %v5499 = vmul.f32 %v5451, %v5493
    %v5500 = vmul.f32 %v5452, %v5494
    %v5501 = vmul.f32 %v5453, %v5495
    %v5502 = vmul.f32 %v5454, %v5496
    %v5503 = vmul.f32 %v5455, %v5497
    %s5504 = scalar_lea.vmem %s18, 64
    %v5505 = vld [vmem:[%s5504] sm:$0xff]
    %v5506 = vld [vmem:[%s5504 + $0x8] sm:$0xff]
    %v5507 = vld [vmem:[%s5504 + $0x10] sm:$0xff]
    %v5508 = vld [vmem:[%s5504 + $0x18] sm:$0xff]
    %v5509 = vld [vmem:[%s5504 + $0x20] sm:$0xff]
    %v5510 = vld [vmem:[%s5504 + $0x28] sm:$0xff]
    %v5511 = vld [vmem:[%s5504 + $0x30] sm:$0xff]
    %v5512 = vld [vmem:[%s5504 + $0x38] sm:$0xff]
    %v5514 = vsel %vm2806, %v5498, 0
    %v5517 = vsel %vm2806, %v5499, 0
    %v5520 = vsel %vm2806, %v5500, 0
    %v5523 = vsel %vm2806, %v5501, 0
    %v5526 = vsel %vm2806, %v5502, 0
    %v5529 = vsel %vm2806, %v5503, 0
    %5531 = vmatprep.subr.mxu0 0.0
    %5532 = vmatpush1.msra.mxu0 %v5505
    %5533 = vmatprep.subr.mxu0 0.0
    %5534 = vmatpush1.msra.mxu0 %v5506
    %5535 = vmatprep.subr.mxu0 0.0
    %5536 = vmatpush1.msra.mxu0 %v5507
    %5537 = vmatprep.subr.mxu0 0.0
    %5538 = vmatpush1.msra.mxu0 %v5508
    %5539 = vmatprep.subr.mxu0 0.0
    %5540 = vmatpush1.msra.mxu0 %v5509
    %5541 = vmatprep.subr.mxu0 0.0
    %5542 = vmatpush1.msra.mxu0 %v5510
    %5543 = vmatprep.subr.mxu0 0.0
    %5544 = vmatpush1.msra.mxu0 %v5511
    %5545 = vmatprep.subr.mxu0 0.0
    %5546 = vmatpush1.msra.mxu0 %v5512
    %5547 = vmatprep.subr.mxu0 0.0
    %5548 = vmatpush1.msra.mxu0 0.0
    %5549 = vmatprep.subr.mxu0 0.0
    %5550 = vmatpush1.msra.mxu0 0.0
    %5551 = vmatprep.subr.mxu0 0.0
    %5552 = vmatpush1.msra.mxu0 0.0
    %5553 = vmatprep.subr.mxu0 0.0
    %5554 = vmatpush1.msra.mxu0 0.0
    %5555 = vmatprep.subr.mxu0 0.0
    %5556 = vmatpush1.msra.mxu0 0.0
    %5557 = vmatprep.subr.mxu0 0.0
    %5558 = vmatpush1.msra.mxu0 0.0
    %5559 = vmatprep.subr.mxu0 0.0
    %5560 = vmatpush1.msra.mxu0 0.0
    %5561 = vmatprep.subr.mxu0 0.0
    %5562 = vmatpush1.msra.mxu0 0.0
    %5563 = vmatprep.subr.mxu0 0.0
    %5564 = vmatpush1.msra.mxu0 0.0
    %5565 = vmatprep.subr.mxu0 0.0
    %5566 = vmatpush1.msra.mxu0 0.0
    %5567 = vmatprep.subr.mxu0 0.0
    %5568 = vmatpush1.msra.mxu0 0.0
    %5569 = vmatprep.subr.mxu0 0.0
    %5570 = vmatpush1.msra.mxu0 0.0
    %5571 = vmatprep.subr.mxu0 0.0
    %5572 = vmatpush1.msra.mxu0 0.0
    %5573 = vmatprep.subr.mxu0 0.0
    %5574 = vmatpush1.msra.mxu0 0.0
    %5575 = vmatprep.subr.mxu0 0.0
    %5576 = vmatpush1.msra.mxu0 0.0
    %5577 = vmatprep.subr.mxu0 0.0
    %5578 = vmatpush1.msra.mxu0 0.0
    %5579 = vmatprep.subr.mxu0 0.0
    %5580 = vmatpush1.msra.mxu0 0.0
    %5581 = vmatprep.subr.mxu0 0.0
    %5582 = vmatpush1.msra.mxu0 0.0
    %5583 = vmatprep.subr.mxu0 0.0
    %5584 = vmatpush1.msra.mxu0 0.0
    %5585 = vmatprep.subr.mxu0 0.0
    %5586 = vmatpush1.msra.mxu0 0.0
    %5587 = vmatprep.subr.mxu0 0.0
    %5588 = vmatpush1.msra.mxu0 0.0
    %5589 = vmatprep.subr.mxu0 0.0
    %5590 = vmatpush1.msra.mxu0 0.0
    %5591 = vmatprep.subr.mxu0 0.0
    %5592 = vmatpush1.msra.mxu0 0.0
    %5593 = vmatprep.subr.mxu0 0.0
    %5594 = vmatpush1.msra.mxu0 0.0
    %5595 = vmatprep.mubr.f32.mxu0 0.0
    %5596 = vmatmul.mubr.f32.gmra.mrb[0].mxu0 %v5514
    %v5597 = vpop.f32.mrb[0].mxu0
    %v5598 = vadd.f32 0.0, %v5597
    %v5599 = vpop.f32.mrb[0].mxu0
    %5600 = vmatprep.mubr.f32.mxu0 0.0
    %5601 = vmatmul.mubr.f32.gmra.mrb[0].mxu0 %v5517
    %v5602 = vpop.f32.mrb[0].mxu0
    %v5603 = vpop.f32.mrb[0].mxu0
    %5604 = vmatprep.mubr.f32.mxu0 0.0
    %5605 = vmatmul.mubr.f32.gmra.mrb[0].mxu0 %v5520
    %v5606 = vpop.f32.mrb[0].mxu0
    %v5607 = vpop.f32.mrb[0].mxu0
    %5608 = vmatprep.mubr.f32.mxu0 0.0
    %5609 = vmatmul.mubr.f32.gmra.mrb[0].mxu0 %v5523
    %v5610 = vpop.f32.mrb[0].mxu0
    %v5611 = vadd.f32 0.0, %v5610
    %v5612 = vpop.f32.mrb[0].mxu0
    %5613 = vmatprep.mubr.f32.mxu0 0.0
    %5614 = vmatmul.mubr.f32.gmra.mrb[0].mxu0 %v5526
    %v5615 = vpop.f32.mrb[0].mxu0
    %v5616 = vpop.f32.mrb[0].mxu0
    %5617 = vmatprep.mubr.f32.mxu0 0.0
    %5618 = vmatmul.mubr.f32.gmra.mrb[0].mxu0 %v5529
    %v5619 = vpop.f32.mrb[0].mxu0
    %v5620 = vpop.f32.mrb[0].mxu0
    %5621 = vdwg.mxu0
    %v5622 = vadd.f32 %v5212, %v5598
    %v5623 = vadd.f32 %v5215, %v5611
    %s5624 = scalar_lea.vmem %s19, 1
    %v5625 = vld [vmem:[%s5624] sm:$0x1]
    %v5627 = vlaneseq
    %v5628 = vshrl.u32 %v5627, 7
    %v5629 = vsub.s32 0, %v5628
    %v5630 = vrot.slane %v5625, %v5629
    %v5632 = vadd.f32 %v5622, %v5630
    %v5633 = vadd.f32 %v5623, %v5630
    %v5635 = vrot.slane %v5633, 7
    %vm5637 = vcmask 1040384
    %v5638 = vsel %vm5637, %v5632, %v5635
    %v5639 = vld [vmem:[%s20] sm:$0x1]
    %v5640 = vld [vmem:[%s21] sm:$0x1]
    %vm5641 = vcmask 254976
    %v5642 = vsel %vm5641, %v5638, 0.0
    %5643 = vadd.xlane.f32.xlu0 %v5642
    %v5644 = vpop.xlane.xlu0 %5643
    %v5645 = vmul.f32 %v5644, %v265
    %v5646 = vsub.f32 %v5638, %v5645
    %v5647 = vmul.f32 %v5646, %v5646
    %v5648 = vsel %vm5641, %v5647, 0.0
    %5649 = vadd.xlane.f32.xlu0 %v5648
    %v5650 = vpop.xlane.xlu0 %5649
    %v5651 = vmul.f32 %v5650, %v265
    %v5652 = vadd.f32 %v5651, 1e-12
    %v5653 = vrsqrt.pop %v5652
    %v5654 = vmul.f32 %v5646, %v5653
    %v5656 = vlaneseq
    %v5657 = vshrl.u32 %v5656, 7
    %v5658 = vsub.s32 0, %v5657
    %v5659 = vrot.slane %v5639, %v5658
    %v5661 = vmul.f32 %v5654, %v5659
    %v5663 = vlaneseq
    %v5664 = vshrl.u32 %v5663, 7
    %v5665 = vsub.s32 0, %v5664
    %v5666 = vrot.slane %v5640, %v5665
    %v5668 = vadd.f32 %v5661, %v5666
    %v5669 = vld [vmem:[%s22] sm:$0xff]
    %v5670 = vld [vmem:[%s22 + $0x8] sm:$0xff]
    %v5671 = vld [vmem:[%s22 + $0x10] sm:$0xff]
    %v5672 = vld [vmem:[%s22 + $0x18] sm:$0xff]
    %v5673 = vld [vmem:[%s23] sm:$0x1]
    %v5675 = vlaneseq
    %v5676 = vshrl.u32 %v5675, 7
    %v5677 = vsub.s32 0, %v5676
    %v5678 = vrot.slane %v5673, %v5677
    %v5681 = vsel %vm246, %v5668, 0
    %5683 = vmatprep.subr.mxu0 0.0
    %5684 = vmatpush1.msra.mxu0 %v5669
    %5685 = vmatprep.subr.mxu0 0.0
    %5686 = vmatpush1.msra.mxu0 %v5670
    %5687 = vmatprep.subr.mxu0 0.0
    %5688 = vmatpush1.msra.mxu0 %v5671
    %5689 = vmatprep.subr.mxu0 0.0
    %5690 = vmatpush1.msra.mxu0 %v5672
    %5691 = vmatprep.subr.mxu0 0.0
    %5692 = vmatpush1.msra.mxu0 0.0
    %5693 = vmatprep.subr.mxu0 0.0
    %5694 = vmatpush1.msra.mxu0 0.0
    %5695 = vmatprep.subr.mxu0 0.0
    %5696 = vmatpush1.msra.mxu0 0.0
    %5697 = vmatprep.subr.mxu0 0.0
    %5698 = vmatpush1.msra.mxu0 0.0
    %5699 = vmatprep.subr.mxu0 0.0
    %5700 = vmatpush1.msra.mxu0 0.0
    %5701 = vmatprep.subr.mxu0 0.0
    %5702 = vmatpush1.msra.mxu0 0.0
    %5703 = vmatprep.subr.mxu0 0.0
    %5704 = vmatpush1.msra.mxu0 0.0
    %5705 = vmatprep.subr.mxu0 0.0
    %5706 = vmatpush1.msra.mxu0 0.0
    %5707 = vmatprep.subr.mxu0 0.0
    %5708 = vmatpush1.msra.mxu0 0.0
    %5709 = vmatprep.subr.mxu0 0.0
    %5710 = vmatpush1.msra.mxu0 0.0
    %5711 = vmatprep.subr.mxu0 0.0
    %5712 = vmatpush1.msra.mxu0 0.0
    %5713 = vmatprep.subr.mxu0 0.0
    %5714 = vmatpush1.msra.mxu0 0.0
    %5715 = vmatprep.subr.mxu0 0.0
    %5716 = vmatpush1.msra.mxu0 0.0
    %5717 = vmatprep.subr.mxu0 0.0
    %5718 = vmatpush1.msra.mxu0 0.0
    %5719 = vmatprep.subr.mxu0 0.0
    %5720 = vmatpush1.msra.mxu0 0.0
    %5721 = vmatprep.subr.mxu0 0.0
    %5722 = vmatpush1.msra.mxu0 0.0
    %5723 = vmatprep.subr.mxu0 0.0
    %5724 = vmatpush1.msra.mxu0 0.0
    %5725 = vmatprep.subr.mxu0 0.0
    %5726 = vmatpush1.msra.mxu0 0.0
    %5727 = vmatprep.subr.mxu0 0.0
    %5728 = vmatpush1.msra.mxu0 0.0
    %5729 = vmatprep.subr.mxu0 0.0
    %5730 = vmatpush1.msra.mxu0 0.0
    %5731 = vmatprep.subr.mxu0 0.0
    %5732 = vmatpush1.msra.mxu0 0.0
    %5733 = vmatprep.subr.mxu0 0.0
    %5734 = vmatpush1.msra.mxu0 0.0
    %5735 = vmatprep.subr.mxu0 0.0
    %5736 = vmatpush1.msra.mxu0 0.0
    %5737 = vmatprep.subr.mxu0 0.0
    %5738 = vmatpush1.msra.mxu0 0.0
    %5739 = vmatprep.subr.mxu0 0.0
    %5740 = vmatpush1.msra.mxu0 0.0
    %5741 = vmatprep.subr.mxu0 0.0
    %5742 = vmatpush1.msra.mxu0 0.0
    %5743 = vmatprep.subr.mxu0 0.0
    %5744 = vmatpush1.msra.mxu0 0.0
    %5745 = vmatprep.subr.mxu0 0.0
    %5746 = vmatpush1.msra.mxu0 0.0
    %5747 = vmatprep.mubr.f32.mxu0 0.0
    %5748 = vmatmul.mubr.f32.gmra.mrb[0].mxu0 %v5681
    %v5749 = vpop.f32.mrb[0].mxu0
    %v5750 = vadd.f32 %v5678, %v5749
    %v5751 = vpop.f32.mrb[0].mxu0
    %5752 = vdwg.mxu0
    %vm5753 = vcmask 9216
    %5754 = vst.msk [vmem:[#allocation7] sm:$0x3] %vm5753, %v5750
    // Predicated region
    $region106: #{tpu_custom_call.1} parent=1 // pred_check
      _
    $region107: #{tpu_custom_call.1} parent=1 // pred_check_branch
      %5756 = sbr.rel (0) target = $region109
    $region108: #{tpu_custom_call.1} parent=1 // pred_region
      %s5758 = ssub.s32 32, 32
      %5759 = vsyncadd [#allocation4], %s5758
      %s5761 = sshll.u32 [#allocation7], 4
      %s5762 = int_to_ptr.vmem [resolvable:$true] %s5761
      %5764 = dma.vmem_to_hbm [thread:$0]  %s5762, 32, %s24, [#allocation4]
    $region109: #{tpu_custom_call.1} parent=1 // pred_fallthru
      _
    // Predicated region
    $region110: #{tpu_custom_call.1} parent=1 // pred_check
      _
    $region111: #{tpu_custom_call.1} parent=1 // pred_check_branch
      %5766 = sbr.rel (0) target = $region113
    $region112: #{tpu_custom_call.1} parent=1 // pred_region
      %5767 = dma.done [#allocation4], 32
    $region113: #{tpu_custom_call.1} parent=1 // pred_fallthru
      _
    %5768 = vsyncpa [#allocation3], 1
    %5769 = vsyncpa [#allocation6], 1
    %5770 = vsyncpa [#allocation4], 1

</llo_original>
